<compile_context>
chip_gen: v7x
topology: tpu7x:2x2x1
jax: 0.10.0
libtpu: 0.0.40
codegen_flags: <defaults>
</compile_context>

<pallas_src>
import functools
import math

import jax
import jax.numpy as jnp
from jax.experimental import pallas as pl
from jax.experimental.pallas import tpu as pltpu

NUM_HEADS = 8
LN_EPS = 1e-5


def _cross_view_attn_kernel(x_ref, wq_ref, wk_ref, wv_ref, bq_ref, bk_ref,
                            bv_ref, wo_ref, bo_ref, lnw_ref, lnb_ref, out_ref,
                            *, bt, seq, heads):
    m, e = x_ref.shape                       # m = bt * seq rows (bt whole sequences)
    hd = e // heads

    x = x_ref[...]                           # (m, e) f32, kept for residual / LN
    x_bf = x.astype(jnp.bfloat16)

    # QKV projections: bf16 operands on the MXU, f32 accumulation, f32 bias add.
    # The 1/sqrt(hd) scale is pre-folded into wq / bq by the wrapper.
    q = jnp.dot(x_bf, wq_ref[...], preferred_element_type=jnp.float32) + bq_ref[...]
    k = jnp.dot(x_bf, wk_ref[...], preferred_element_type=jnp.float32) + bk_ref[...]
    v = jnp.dot(x_bf, wv_ref[...], preferred_element_type=jnp.float32) + bv_ref[...]

    # Repack (m, e) -> (heads*bt, seq, hd): all layout shuffles are 2D lane
    # slices / leading-dim reshapes / major-axis concat (cheap + always lowers);
    # the attention math itself is a single batched contraction, not a per-head
    # unrolled loop of tiny matmuls.
    def to_heads(t):
        return jnp.concatenate(
            [t[:, h * hd:(h + 1) * hd].reshape(bt, seq, hd) for h in range(heads)],
            axis=0)

    qh = to_heads(q).astype(jnp.bfloat16)    # (heads*bt, seq, hd)
    kh = to_heads(k).astype(jnp.bfloat16)
    vh = to_heads(v).astype(jnp.bfloat16)

    # Scores for every (head, batch) pair at once: (heads*bt, seq, seq), f32 acc.
    s = jax.lax.dot_general(qh, kh, (((2,), (2,)), ((0,), (0,))),
                            preferred_element_type=jnp.float32)

    # Softmax in f32; the divide goes to the EUP via the approximate reciprocal.
    s = s - jnp.max(s, axis=-1, keepdims=True)
    p = jnp.exp(s)
    p = p * pl.reciprocal(jnp.sum(p, axis=-1, keepdims=True), approx=True)

    # Context: (heads*bt, seq, hd), f32 accumulation.
    ctx = jax.lax.dot_general(p.astype(jnp.bfloat16), vh,
                              (((2,), (1,)), ((0,), (0,))),
                              preferred_element_type=jnp.float32)

    # Back to (m, e) with per-row head ordering [h0 d0..d7, h1 d0..d7, ...].
    attn = jnp.concatenate(
        [ctx[h * bt:(h + 1) * bt].reshape(m, hd) for h in range(heads)], axis=-1)

    # Output projection + residual + LayerNorm (f32 except the MXU operands).
    attended = jnp.dot(attn.astype(jnp.bfloat16), wo_ref[...],
                       preferred_element_type=jnp.float32) + bo_ref[...]
    y = attended + x
    mean = jnp.mean(y, axis=-1, keepdims=True)
    var = jnp.mean(jnp.square(y - mean), axis=-1, keepdims=True)
    yn = (y - mean) * jax.lax.rsqrt(var + LN_EPS)
    out_ref[...] = (yn * lnw_ref[...] + lnb_ref[...]).astype(out_ref.dtype)


def _pick_block_batch(batch, seq, target_rows=128):
    """Largest useful batch tile: Bt | B, Bt*S >= 128 if possible, but keep
    >= 2 grid steps whenever B allows it (v7x has 2 TensorCores)."""
    divisors = [d for d in range(1, batch + 1) if batch % d == 0]
    cands = [d for d in divisors if batch // d >= 2] or divisors
    for d in cands:
        if d * seq >= target_rows:
            return d
    return cands[-1]


def cross_view_attention(x, params, *, block_batch=None):
    """x: (B, S, E) float32. params: dict of MHA + LayerNorm parameters."""
    B, S, E = x.shape
    H = NUM_HEADS
    assert E % H == 0
    hd = E // H
    scale = 1.0 / math.sqrt(hd)

    Bt = _pick_block_batch(B, S) if block_batch is None else block_batch
    assert B % Bt == 0
    M = Bt * S

    w_in = params["in_proj_weight"]          # (3E, E)
    b_in = params["in_proj_bias"]            # (3E,)
    # Pre-transpose, fold the 1/sqrt(hd) scale into q, and cast weights to bf16
    # (MXU-native). Biases stay f32 and are added after f32 accumulation.
    wq_t = (w_in[:E].T * scale).astype(jnp.bfloat16)          # (E, E)
    wk_t = w_in[E:2 * E].T.astype(jnp.bfloat16)               # (E, E)
    wv_t = w_in[2 * E:].T.astype(jnp.bfloat16)                # (E, E)
    bq = (b_in[:E] * scale).reshape(1, E).astype(jnp.float32)
    bk = b_in[E:2 * E].reshape(1, E).astype(jnp.float32)
    bv = b_in[2 * E:].reshape(1, E).astype(jnp.float32)
    wo_t = params["out_proj_weight"].T.astype(jnp.bfloat16)   # (E, E)
    bo = params["out_proj_bias"].reshape(1, E).astype(jnp.float32)
    ln_w = params["ln_weight"].reshape(1, E).astype(jnp.float32)
    ln_b = params["ln_bias"].reshape(1, E).astype(jnp.float32)

    # Flatten batch x seq into rows: each grid step handles Bt whole sequences.
    x2 = x.reshape(B * S, E)

    full = lambda shape: pl.BlockSpec(shape, lambda i: (0, 0))
    kernel = functools.partial(_cross_view_attn_kernel, bt=Bt, seq=S, heads=H)

    out2 = pl.pallas_call(
        kernel,
        out_shape=jax.ShapeDtypeStruct((B * S, E), x.dtype),
        grid_spec=pltpu.PrefetchScalarGridSpec(
            num_scalar_prefetch=0,
            grid=(B // Bt,),
            in_specs=[
                pl.BlockSpec((M, E), lambda i: (i, 0)),   # x rows for Bt sequences
                full((E, E)), full((E, E)), full((E, E)),  # Wq^T, Wk^T, Wv^T (bf16)
                full((1, E)), full((1, E)), full((1, E)),  # bq (scaled), bk, bv
                full((E, E)), full((1, E)),                # Wo^T (bf16), bo
                full((1, E)), full((1, E)),                # LayerNorm gamma, beta
            ],
            out_specs=pl.BlockSpec((M, E), lambda i: (i, 0)),
        ),
        compiler_params=pltpu.CompilerParams(
            dimension_semantics=("parallel",)),
    )(x2, wq_t, wk_t, wv_t, bq, bk, bv, wo_t, bo, ln_w, ln_b)

    return out2.reshape(B, S, E)


def _reference(x, params):
    """Pure-JAX f32 reference mirroring torch.nn.MultiheadAttention (eval) + LayerNorm."""
    B, S, E = x.shape
    hd = E // NUM_HEADS
    qkv = jnp.einsum("bse,fe->bsf", x, params["in_proj_weight"]) + params["in_proj_bias"]
    q, k, v = qkv[..., :E], qkv[..., E:2 * E], qkv[..., 2 * E:]
    rs = lambda t: t.reshape(B, S, NUM_HEADS, hd).transpose(0, 2, 1, 3)
    q, k, v = rs(q), rs(k), rs(v)
    s = jnp.einsum("bhqd,bhkd->bhqk", q, k) / math.sqrt(hd)
    p = jax.nn.softmax(s, axis=-1)
    o = jnp.einsum("bhqk,bhkd->bhqd", p, v).transpose(0, 2, 1, 3).reshape(B, S, E)
    attended = jnp.einsum("bse,fe->bsf", o, params["out_proj_weight"]) + params["out_proj_bias"]
    y = attended + x
    mean = jnp.mean(y, axis=-1, keepdims=True)
    var = jnp.mean((y - mean) ** 2, axis=-1, keepdims=True)
    return (y - mean) * jax.lax.rsqrt(var + LN_EPS) * params["ln_weight"] + params["ln_bias"]


if __name__ == "__main__":
    B, S, E = 16, 16, 64  # feature_dim=64, 8 heads -> head_dim=8; Bt=8 -> M=128, grid=(2,)

    key = jax.random.PRNGKey(0)
    k_x, k_w_in, k_b_in, k_w_out, k_b_out, k_lnw, k_lnb = jax.random.split(key, 7)

    x = jax.random.normal(k_x, (B, S, E), dtype=jnp.float32)

    # Deterministic synthetic parameters at PyTorch-init magnitudes
    # (xavier_uniform for in_proj, kaiming-style bound for out_proj).
    a_in = math.sqrt(6.0 / (4.0 * E))
    a_out = 1.0 / math.sqrt(E)
    params = {
        "in_proj_weight": jax.random.uniform(k_w_in, (3 * E, E), jnp.float32, -a_in, a_in),
        "in_proj_bias": 0.02 * jax.random.normal(k_b_in, (3 * E,), jnp.float32),
        "out_proj_weight": jax.random.uniform(k_w_out, (E, E), jnp.float32, -a_out, a_out),
        "out_proj_bias": 0.02 * jax.random.normal(k_b_out, (E,), jnp.float32),
        "ln_weight": 1.0 + 0.1 * jax.random.normal(k_lnw, (E,), jnp.float32),
        "ln_bias": 0.02 * jax.random.normal(k_lnb, (E,), jnp.float32),
    }

    out = cross_view_attention(x, params)
    out = jax.block_until_ready(out)

    ref = _reference(x, params)
    assert out.shape == (B, S, E)
    max_err = float(jnp.max(jnp.abs(out - ref)))
    # bf16 MXU operands (f32 accumulation) vs a pure-f32 reference.
    assert max_err < 5e-2, f"mismatch vs JAX reference: max abs err {max_err}"

    print("KERNEL_OK")
</pallas_src>

<mosaic_0001>
module attributes {stable_mosaic.version = 11 : i64} {
  func.func @_cross_view_attn_kernel(%arg0: i32, %arg1: memref<128x64xf32, #tpu.memory_space<vmem>>, %arg2: memref<64x64xbf16, #tpu.memory_space<vmem>>, %arg3: memref<64x64xbf16, #tpu.memory_space<vmem>>, %arg4: memref<64x64xbf16, #tpu.memory_space<vmem>>, %arg5: memref<1x64xf32, #tpu.memory_space<vmem>>, %arg6: memref<1x64xf32, #tpu.memory_space<vmem>>, %arg7: memref<1x64xf32, #tpu.memory_space<vmem>>, %arg8: memref<64x64xbf16, #tpu.memory_space<vmem>>, %arg9: memref<1x64xf32, #tpu.memory_space<vmem>>, %arg10: memref<1x64xf32, #tpu.memory_space<vmem>>, %arg11: memref<1x64xf32, #tpu.memory_space<vmem>>, %arg12: memref<128x64xf32, #tpu.memory_space<vmem>>) attributes {dimension_semantics = [#tpu.dimension_semantics<parallel>], iteration_bounds = array<i64: 2>, scalar_prefetch = 0 : i64, scratch_operands = 0 : i64, tpu.core_type = #tpu.core_type<tc>, window_params = [{transform_indices = @transform_0, window_bounds = array<i64: 128, 64>}, {pipeline_mode = #tpu.pipeline_mode<synchronous>, transform_indices = @transform_1, window_bounds = array<i64: 64, 64>}, {pipeline_mode = #tpu.pipeline_mode<synchronous>, transform_indices = @transform_2, window_bounds = array<i64: 64, 64>}, {pipeline_mode = #tpu.pipeline_mode<synchronous>, transform_indices = @transform_3, window_bounds = array<i64: 64, 64>}, {pipeline_mode = #tpu.pipeline_mode<synchronous>, transform_indices = @transform_4, window_bounds = array<i64: 1, 64>}, {pipeline_mode = #tpu.pipeline_mode<synchronous>, transform_indices = @transform_5, window_bounds = array<i64: 1, 64>}, {pipeline_mode = #tpu.pipeline_mode<synchronous>, transform_indices = @transform_6, window_bounds = array<i64: 1, 64>}, {pipeline_mode = #tpu.pipeline_mode<synchronous>, transform_indices = @transform_7, window_bounds = array<i64: 64, 64>}, {pipeline_mode = #tpu.pipeline_mode<synchronous>, transform_indices = @transform_8, window_bounds = array<i64: 1, 64>}, {pipeline_mode = #tpu.pipeline_mode<synchronous>, transform_indices = @transform_9, window_bounds = array<i64: 1, 64>}, {pipeline_mode = #tpu.pipeline_mode<synchronous>, transform_indices = @transform_10, window_bounds = array<i64: 1, 64>}, {transform_indices = @transform_11, window_bounds = array<i64: 128, 64>}]} {
    %c0 = arith.constant 0 : index
    %c0_0 = arith.constant 0 : index
    %0 = vector.load %arg1[%c0, %c0_0] : memref<128x64xf32, #tpu.memory_space<vmem>>, vector<128x64xf32>
    %1 = arith.truncf %0 : vector<128x64xf32> to vector<128x64xbf16>
    %c0_1 = arith.constant 0 : index
    %c0_2 = arith.constant 0 : index
    %2 = vector.load %arg2[%c0_1, %c0_2] : memref<64x64xbf16, #tpu.memory_space<vmem>>, vector<64x64xbf16>
    %cst = arith.constant dense<0.000000e+00> : vector<128x64xf32>
    %3 = tpu.matmul %1, %2, %cst {dimension_numbers = #tpu.dot_dimension_numbers<[1], [0], [0], [1], [0, 0, 1, 1], [], []>} : vector<128x64xbf16>, vector<64x64xbf16>, vector<128x64xf32> -> vector<128x64xf32>
    %c0_3 = arith.constant 0 : index
    %c0_4 = arith.constant 0 : index
    %4 = vector.load %arg5[%c0_3, %c0_4] : memref<1x64xf32, #tpu.memory_space<vmem>>, vector<1x64xf32>
    %5 = vector.broadcast %4 : vector<1x64xf32> to vector<128x64xf32>
    %6 = arith.addf %3, %5 : vector<128x64xf32>
    %c0_5 = arith.constant 0 : index
    %c0_6 = arith.constant 0 : index
    %7 = vector.load %arg3[%c0_5, %c0_6] : memref<64x64xbf16, #tpu.memory_space<vmem>>, vector<64x64xbf16>
    %cst_7 = arith.constant dense<0.000000e+00> : vector<128x64xf32>
    %8 = tpu.matmul %1, %7, %cst_7 {dimension_numbers = #tpu.dot_dimension_numbers<[1], [0], [0], [1], [0, 0, 1, 1], [], []>} : vector<128x64xbf16>, vector<64x64xbf16>, vector<128x64xf32> -> vector<128x64xf32>
    %c0_8 = arith.constant 0 : index
    %c0_9 = arith.constant 0 : index
    %9 = vector.load %arg6[%c0_8, %c0_9] : memref<1x64xf32, #tpu.memory_space<vmem>>, vector<1x64xf32>
    %10 = vector.broadcast %9 : vector<1x64xf32> to vector<128x64xf32>
    %11 = arith.addf %8, %10 : vector<128x64xf32>
    %c0_10 = arith.constant 0 : index
    %c0_11 = arith.constant 0 : index
    %12 = vector.load %arg4[%c0_10, %c0_11] : memref<64x64xbf16, #tpu.memory_space<vmem>>, vector<64x64xbf16>
    %cst_12 = arith.constant dense<0.000000e+00> : vector<128x64xf32>
    %13 = tpu.matmul %1, %12, %cst_12 {dimension_numbers = #tpu.dot_dimension_numbers<[1], [0], [0], [1], [0, 0, 1, 1], [], []>} : vector<128x64xbf16>, vector<64x64xbf16>, vector<128x64xf32> -> vector<128x64xf32>
    %c0_13 = arith.constant 0 : index
    %c0_14 = arith.constant 0 : index
    %14 = vector.load %arg7[%c0_13, %c0_14] : memref<1x64xf32, #tpu.memory_space<vmem>>, vector<1x64xf32>
    %15 = vector.broadcast %14 : vector<1x64xf32> to vector<128x64xf32>
    %16 = arith.addf %13, %15 : vector<128x64xf32>
    %17 = vector.extract_strided_slice %6 {offsets = [0, 0], sizes = [128, 8], strides = [1, 1]} : vector<128x64xf32> to vector<128x8xf32>
    %18 = vector.shape_cast %17 : vector<128x8xf32> to vector<8x16x8xf32>
    %19 = vector.extract_strided_slice %6 {offsets = [0, 8], sizes = [128, 8], strides = [1, 1]} : vector<128x64xf32> to vector<128x8xf32>
    %20 = vector.shape_cast %19 : vector<128x8xf32> to vector<8x16x8xf32>
    %21 = vector.extract_strided_slice %6 {offsets = [0, 16], sizes = [128, 8], strides = [1, 1]} : vector<128x64xf32> to vector<128x8xf32>
    %22 = vector.shape_cast %21 : vector<128x8xf32> to vector<8x16x8xf32>
    %23 = vector.extract_strided_slice %6 {offsets = [0, 24], sizes = [128, 8], strides = [1, 1]} : vector<128x64xf32> to vector<128x8xf32>
    %24 = vector.shape_cast %23 : vector<128x8xf32> to vector<8x16x8xf32>
    %25 = vector.extract_strided_slice %6 {offsets = [0, 32], sizes = [128, 8], strides = [1, 1]} : vector<128x64xf32> to vector<128x8xf32>
    %26 = vector.shape_cast %25 : vector<128x8xf32> to vector<8x16x8xf32>
    %27 = vector.extract_strided_slice %6 {offsets = [0, 40], sizes = [128, 8], strides = [1, 1]} : vector<128x64xf32> to vector<128x8xf32>
    %28 = vector.shape_cast %27 : vector<128x8xf32> to vector<8x16x8xf32>
    %29 = vector.extract_strided_slice %6 {offsets = [0, 48], sizes = [128, 8], strides = [1, 1]} : vector<128x64xf32> to vector<128x8xf32>
    %30 = vector.shape_cast %29 : vector<128x8xf32> to vector<8x16x8xf32>
    %31 = vector.extract_strided_slice %6 {offsets = [0, 56], sizes = [128, 8], strides = [1, 1]} : vector<128x64xf32> to vector<128x8xf32>
    %32 = vector.shape_cast %31 : vector<128x8xf32> to vector<8x16x8xf32>
    %33 = tpu.concatenate %18, %20, %22, %24, %26, %28, %30, %32 in 0 : vector<8x16x8xf32>, vector<8x16x8xf32>, vector<8x16x8xf32>, vector<8x16x8xf32>, vector<8x16x8xf32>, vector<8x16x8xf32>, vector<8x16x8xf32>, vector<8x16x8xf32> -> vector<64x16x8xf32>
    %34 = arith.truncf %33 : vector<64x16x8xf32> to vector<64x16x8xbf16>
    %35 = vector.extract_strided_slice %11 {offsets = [0, 0], sizes = [128, 8], strides = [1, 1]} : vector<128x64xf32> to vector<128x8xf32>
    %36 = vector.shape_cast %35 : vector<128x8xf32> to vector<8x16x8xf32>
    %37 = vector.extract_strided_slice %11 {offsets = [0, 8], sizes = [128, 8], strides = [1, 1]} : vector<128x64xf32> to vector<128x8xf32>
    %38 = vector.shape_cast %37 : vector<128x8xf32> to vector<8x16x8xf32>
    %39 = vector.extract_strided_slice %11 {offsets = [0, 16], sizes = [128, 8], strides = [1, 1]} : vector<128x64xf32> to vector<128x8xf32>
    %40 = vector.shape_cast %39 : vector<128x8xf32> to vector<8x16x8xf32>
    %41 = vector.extract_strided_slice %11 {offsets = [0, 24], sizes = [128, 8], strides = [1, 1]} : vector<128x64xf32> to vector<128x8xf32>
    %42 = vector.shape_cast %41 : vector<128x8xf32> to vector<8x16x8xf32>
    %43 = vector.extract_strided_slice %11 {offsets = [0, 32], sizes = [128, 8], strides = [1, 1]} : vector<128x64xf32> to vector<128x8xf32>
    %44 = vector.shape_cast %43 : vector<128x8xf32> to vector<8x16x8xf32>
    %45 = vector.extract_strided_slice %11 {offsets = [0, 40], sizes = [128, 8], strides = [1, 1]} : vector<128x64xf32> to vector<128x8xf32>
    %46 = vector.shape_cast %45 : vector<128x8xf32> to vector<8x16x8xf32>
    %47 = vector.extract_strided_slice %11 {offsets = [0, 48], sizes = [128, 8], strides = [1, 1]} : vector<128x64xf32> to vector<128x8xf32>
    %48 = vector.shape_cast %47 : vector<128x8xf32> to vector<8x16x8xf32>
    %49 = vector.extract_strided_slice %11 {offsets = [0, 56], sizes = [128, 8], strides = [1, 1]} : vector<128x64xf32> to vector<128x8xf32>
    %50 = vector.shape_cast %49 : vector<128x8xf32> to vector<8x16x8xf32>
    %51 = tpu.concatenate %36, %38, %40, %42, %44, %46, %48, %50 in 0 : vector<8x16x8xf32>, vector<8x16x8xf32>, vector<8x16x8xf32>, vector<8x16x8xf32>, vector<8x16x8xf32>, vector<8x16x8xf32>, vector<8x16x8xf32>, vector<8x16x8xf32> -> vector<64x16x8xf32>
    %52 = arith.truncf %51 : vector<64x16x8xf32> to vector<64x16x8xbf16>
    %53 = vector.extract_strided_slice %16 {offsets = [0, 0], sizes = [128, 8], strides = [1, 1]} : vector<128x64xf32> to vector<128x8xf32>
    %54 = vector.shape_cast %53 : vector<128x8xf32> to vector<8x16x8xf32>
    %55 = vector.extract_strided_slice %16 {offsets = [0, 8], sizes = [128, 8], strides = [1, 1]} : vector<128x64xf32> to vector<128x8xf32>
    %56 = vector.shape_cast %55 : vector<128x8xf32> to vector<8x16x8xf32>
    %57 = vector.extract_strided_slice %16 {offsets = [0, 16], sizes = [128, 8], strides = [1, 1]} : vector<128x64xf32> to vector<128x8xf32>
    %58 = vector.shape_cast %57 : vector<128x8xf32> to vector<8x16x8xf32>
    %59 = vector.extract_strided_slice %16 {offsets = [0, 24], sizes = [128, 8], strides = [1, 1]} : vector<128x64xf32> to vector<128x8xf32>
    %60 = vector.shape_cast %59 : vector<128x8xf32> to vector<8x16x8xf32>
    %61 = vector.extract_strided_slice %16 {offsets = [0, 32], sizes = [128, 8], strides = [1, 1]} : vector<128x64xf32> to vector<128x8xf32>
    %62 = vector.shape_cast %61 : vector<128x8xf32> to vector<8x16x8xf32>
    %63 = vector.extract_strided_slice %16 {offsets = [0, 40], sizes = [128, 8], strides = [1, 1]} : vector<128x64xf32> to vector<128x8xf32>
    %64 = vector.shape_cast %63 : vector<128x8xf32> to vector<8x16x8xf32>
    %65 = vector.extract_strided_slice %16 {offsets = [0, 48], sizes = [128, 8], strides = [1, 1]} : vector<128x64xf32> to vector<128x8xf32>
    %66 = vector.shape_cast %65 : vector<128x8xf32> to vector<8x16x8xf32>
    %67 = vector.extract_strided_slice %16 {offsets = [0, 56], sizes = [128, 8], strides = [1, 1]} : vector<128x64xf32> to vector<128x8xf32>
    %68 = vector.shape_cast %67 : vector<128x8xf32> to vector<8x16x8xf32>
    %69 = tpu.concatenate %54, %56, %58, %60, %62, %64, %66, %68 in 0 : vector<8x16x8xf32>, vector<8x16x8xf32>, vector<8x16x8xf32>, vector<8x16x8xf32>, vector<8x16x8xf32>, vector<8x16x8xf32>, vector<8x16x8xf32>, vector<8x16x8xf32> -> vector<64x16x8xf32>
    %70 = arith.truncf %69 : vector<64x16x8xf32> to vector<64x16x8xbf16>
    %cst_15 = arith.constant dense<0.000000e+00> : vector<64x16x16xf32>
    %71 = tpu.matmul %34, %52, %cst_15 {dimension_numbers = #tpu.dot_dimension_numbers<[2], [2], [1], [1], [0, 0, 0, 1, 1, 1], [0], [0]>} : vector<64x16x8xbf16>, vector<64x16x8xbf16>, vector<64x16x16xf32> -> vector<64x16x16xf32>
    %cst_16 = arith.constant dense<0xFF800000> : vector<64x16xf32>
    %72 = vector.multi_reduction <maximumf>, %71, %cst_16 [2] : vector<64x16x16xf32> to vector<64x16xf32>
    %73 = vector.shape_cast %72 : vector<64x16xf32> to vector<64x16x1xf32>
    %74 = vector.broadcast %73 : vector<64x16x1xf32> to vector<64x16x16xf32>
    %75 = arith.subf %71, %74 : vector<64x16x16xf32>
    %76 = math.exp %75 : vector<64x16x16xf32>
    %cst_17 = arith.constant dense<0.000000e+00> : vector<64x16xf32>
    %77 = vector.multi_reduction <add>, %76, %cst_17 [2] : vector<64x16x16xf32> to vector<64x16xf32>
    %78 = vector.shape_cast %77 : vector<64x16xf32> to vector<64x16x1xf32>
    %79 = tpu.reciprocal %78 {approx = true} : vector<64x16x1xf32> -> vector<64x16x1xf32>
    %80 = vector.broadcast %79 : vector<64x16x1xf32> to vector<64x16x16xf32>
    %81 = arith.mulf %76, %80 : vector<64x16x16xf32>
    %82 = arith.truncf %81 : vector<64x16x16xf32> to vector<64x16x16xbf16>
    %cst_18 = arith.constant dense<0.000000e+00> : vector<64x16x8xf32>
    %83 = tpu.matmul %82, %70, %cst_18 {dimension_numbers = #tpu.dot_dimension_numbers<[2], [1], [1], [2], [0, 0, 0, 1, 1, 2], [0], [0]>} : vector<64x16x16xbf16>, vector<64x16x8xbf16>, vector<64x16x8xf32> -> vector<64x16x8xf32>
    %84 = vector.extract_strided_slice %83 {offsets = [0, 0, 0], sizes = [8, 16, 8], strides = [1, 1, 1]} : vector<64x16x8xf32> to vector<8x16x8xf32>
    %85 = vector.shape_cast %84 : vector<8x16x8xf32> to vector<128x8xf32>
    %86 = vector.extract_strided_slice %83 {offsets = [8, 0, 0], sizes = [8, 16, 8], strides = [1, 1, 1]} : vector<64x16x8xf32> to vector<8x16x8xf32>
    %87 = vector.shape_cast %86 : vector<8x16x8xf32> to vector<128x8xf32>
    %88 = vector.extract_strided_slice %83 {offsets = [16, 0, 0], sizes = [8, 16, 8], strides = [1, 1, 1]} : vector<64x16x8xf32> to vector<8x16x8xf32>
    %89 = vector.shape_cast %88 : vector<8x16x8xf32> to vector<128x8xf32>
    %90 = vector.extract_strided_slice %83 {offsets = [24, 0, 0], sizes = [8, 16, 8], strides = [1, 1, 1]} : vector<64x16x8xf32> to vector<8x16x8xf32>
    %91 = vector.shape_cast %90 : vector<8x16x8xf32> to vector<128x8xf32>
    %92 = vector.extract_strided_slice %83 {offsets = [32, 0, 0], sizes = [8, 16, 8], strides = [1, 1, 1]} : vector<64x16x8xf32> to vector<8x16x8xf32>
    %93 = vector.shape_cast %92 : vector<8x16x8xf32> to vector<128x8xf32>
    %94 = vector.extract_strided_slice %83 {offsets = [40, 0, 0], sizes = [8, 16, 8], strides = [1, 1, 1]} : vector<64x16x8xf32> to vector<8x16x8xf32>
    %95 = vector.shape_cast %94 : vector<8x16x8xf32> to vector<128x8xf32>
    %96 = vector.extract_strided_slice %83 {offsets = [48, 0, 0], sizes = [8, 16, 8], strides = [1, 1, 1]} : vector<64x16x8xf32> to vector<8x16x8xf32>
    %97 = vector.shape_cast %96 : vector<8x16x8xf32> to vector<128x8xf32>
    %98 = vector.extract_strided_slice %83 {offsets = [56, 0, 0], sizes = [8, 16, 8], strides = [1, 1, 1]} : vector<64x16x8xf32> to vector<8x16x8xf32>
    %99 = vector.shape_cast %98 : vector<8x16x8xf32> to vector<128x8xf32>
    %100 = tpu.concatenate %85, %87, %89, %91, %93, %95, %97, %99 in 1 : vector<128x8xf32>, vector<128x8xf32>, vector<128x8xf32>, vector<128x8xf32>, vector<128x8xf32>, vector<128x8xf32>, vector<128x8xf32>, vector<128x8xf32> -> vector<128x64xf32>
    %101 = arith.truncf %100 : vector<128x64xf32> to vector<128x64xbf16>
    %c0_19 = arith.constant 0 : index
    %c0_20 = arith.constant 0 : index
    %102 = vector.load %arg8[%c0_19, %c0_20] : memref<64x64xbf16, #tpu.memory_space<vmem>>, vector<64x64xbf16>
    %cst_21 = arith.constant dense<0.000000e+00> : vector<128x64xf32>
    %103 = tpu.matmul %101, %102, %cst_21 {dimension_numbers = #tpu.dot_dimension_numbers<[1], [0], [0], [1], [0, 0, 1, 1], [], []>} : vector<128x64xbf16>, vector<64x64xbf16>, vector<128x64xf32> -> vector<128x64xf32>
    %c0_22 = arith.constant 0 : index
    %c0_23 = arith.constant 0 : index
    %104 = vector.load %arg9[%c0_22, %c0_23] : memref<1x64xf32, #tpu.memory_space<vmem>>, vector<1x64xf32>
    %105 = vector.broadcast %104 : vector<1x64xf32> to vector<128x64xf32>
    %106 = arith.addf %103, %105 : vector<128x64xf32>
    %107 = arith.addf %106, %0 : vector<128x64xf32>
    %cst_24 = arith.constant dense<0.000000e+00> : vector<128xf32>
    %108 = vector.multi_reduction <add>, %107, %cst_24 [1] : vector<128x64xf32> to vector<128xf32>
    %109 = vector.shape_cast %108 : vector<128xf32> to vector<128x1xf32>
    %cst_25 = arith.constant 6.400000e+01 : f32
    %110 = vector.broadcast %cst_25 : f32 to vector<128x1xf32>
    %111 = arith.divf %109, %110 : vector<128x1xf32>
    %112 = vector.broadcast %111 : vector<128x1xf32> to vector<128x64xf32>
    %113 = arith.subf %107, %112 : vector<128x64xf32>
    %114 = arith.mulf %113, %113 : vector<128x64xf32>
    %cst_26 = arith.constant dense<0.000000e+00> : vector<128xf32>
    %115 = vector.multi_reduction <add>, %114, %cst_26 [1] : vector<128x64xf32> to vector<128xf32>
    %116 = vector.shape_cast %115 : vector<128xf32> to vector<128x1xf32>
    %cst_27 = arith.constant 6.400000e+01 : f32
    %117 = vector.broadcast %cst_27 : f32 to vector<128x1xf32>
    %118 = arith.divf %116, %117 : vector<128x1xf32>
    %119 = vector.broadcast %111 : vector<128x1xf32> to vector<128x64xf32>
    %120 = arith.subf %107, %119 : vector<128x64xf32>
    %cst_28 = arith.constant 9.99999974E-6 : f32
    %121 = vector.broadcast %cst_28 : f32 to vector<128x1xf32>
    %122 = arith.addf %118, %121 : vector<128x1xf32>
    %123 = math.rsqrt %122 : vector<128x1xf32>
    %124 = vector.broadcast %123 : vector<128x1xf32> to vector<128x64xf32>
    %125 = arith.mulf %120, %124 : vector<128x64xf32>
    %c0_29 = arith.constant 0 : index
    %c0_30 = arith.constant 0 : index
    %126 = vector.load %arg10[%c0_29, %c0_30] : memref<1x64xf32, #tpu.memory_space<vmem>>, vector<1x64xf32>
    %127 = vector.broadcast %126 : vector<1x64xf32> to vector<128x64xf32>
    %128 = arith.mulf %125, %127 : vector<128x64xf32>
    %c0_31 = arith.constant 0 : index
    %c0_32 = arith.constant 0 : index
    %129 = vector.load %arg11[%c0_31, %c0_32] : memref<1x64xf32, #tpu.memory_space<vmem>>, vector<1x64xf32>
    %130 = vector.broadcast %129 : vector<1x64xf32> to vector<128x64xf32>
    %131 = arith.addf %128, %130 : vector<128x64xf32>
    %c0_33 = arith.constant 0 : index
    %c0_34 = arith.constant 0 : index
    %132 = vector.load %arg12[%c0_33, %c0_34] : memref<128x64xf32, #tpu.memory_space<vmem>>, vector<128x64xf32>
    tpu.vector_store %arg12[%c0_33, %c0_34], %131 {strides = array<i32>} : memref<128x64xf32, #tpu.memory_space<vmem>>, vector<128x64xf32>,
    return
  }
  func.func @transform_0(%arg0: i32) -> (i32, i32) {
    %c0_i32 = arith.constant 0 : i32
    %c0_i32_0 = arith.constant 0 : i32
    return %arg0, %c0_i32 : i32, i32
  }
  func.func @transform_1(%arg0: i32) -> (i32, i32) {
    %c0_i32 = arith.constant 0 : i32
    %c0_i32_0 = arith.constant 0 : i32
    %c0_i32_1 = arith.constant 0 : i32
    return %c0_i32, %c0_i32_0 : i32, i32
  }
  func.func @transform_2(%arg0: i32) -> (i32, i32) {
    %c0_i32 = arith.constant 0 : i32
    %c0_i32_0 = arith.constant 0 : i32
    %c0_i32_1 = arith.constant 0 : i32
    return %c0_i32, %c0_i32_0 : i32, i32
  }
  func.func @transform_3(%arg0: i32) -> (i32, i32) {
    %c0_i32 = arith.constant 0 : i32
    %c0_i32_0 = arith.constant 0 : i32
    %c0_i32_1 = arith.constant 0 : i32
    return %c0_i32, %c0_i32_0 : i32, i32
  }
  func.func @transform_4(%arg0: i32) -> (i32, i32) {
    %c0_i32 = arith.constant 0 : i32
    %c0_i32_0 = arith.constant 0 : i32
    %c0_i32_1 = arith.constant 0 : i32
    return %c0_i32, %c0_i32_0 : i32, i32
  }
  func.func @transform_5(%arg0: i32) -> (i32, i32) {
    %c0_i32 = arith.constant 0 : i32
    %c0_i32_0 = arith.constant 0 : i32
    %c0_i32_1 = arith.constant 0 : i32
    return %c0_i32, %c0_i32_0 : i32, i32
  }
  func.func @transform_6(%arg0: i32) -> (i32, i32) {
    %c0_i32 = arith.constant 0 : i32
    %c0_i32_0 = arith.constant 0 : i32
    %c0_i32_1 = arith.constant 0 : i32
    return %c0_i32, %c0_i32_0 : i32, i32
  }
  func.func @transform_7(%arg0: i32) -> (i32, i32) {
    %c0_i32 = arith.constant 0 : i32
    %c0_i32_0 = arith.constant 0 : i32
    %c0_i32_1 = arith.constant 0 : i32
    return %c0_i32, %c0_i32_0 : i32, i32
  }
  func.func @transform_8(%arg0: i32) -> (i32, i32) {
    %c0_i32 = arith.constant 0 : i32
    %c0_i32_0 = arith.constant 0 : i32
    %c0_i32_1 = arith.constant 0 : i32
    return %c0_i32, %c0_i32_0 : i32, i32
  }
  func.func @transform_9(%arg0: i32) -> (i32, i32) {
    %c0_i32 = arith.constant 0 : i32
    %c0_i32_0 = arith.constant 0 : i32
    %c0_i32_1 = arith.constant 0 : i32
    return %c0_i32, %c0_i32_0 : i32, i32
  }
  func.func @transform_10(%arg0: i32) -> (i32, i32) {
    %c0_i32 = arith.constant 0 : i32
    %c0_i32_0 = arith.constant 0 : i32
    %c0_i32_1 = arith.constant 0 : i32
    return %c0_i32, %c0_i32_0 : i32, i32
  }
  func.func @transform_11(%arg0: i32) -> (i32, i32) {
    %c0_i32 = arith.constant 0 : i32
    %c0_i32_0 = arith.constant 0 : i32
    return %arg0, %c0_i32 : i32, i32
  }
}

</mosaic_0001>

<llo_original>
// kernel: tpu_custom_call.1
$region0: #{tpu_custom_call.1}
  #allocation0 [shape = 'u32[]', space=smem, size = 0x4, offset = 0x4, fixed_abs, tag = 'smem constant byte address 0x4 - core index']
  #allocation1 [shape = 'u32[144,128]{1,0:T(1,128)}', space=vmem, size = 0x12000, scoped, tag = 'internal scratch']
  %s0 = inlined_call_operand.vmem [shape: f32[256,64], index: 0, kind: input, shape index: {}]
  %s1 = inlined_call_operand.vmem [shape: bf16[64,64], index: 1, kind: input, shape index: {}]
  %s2 = inlined_call_operand.vmem [shape: bf16[64,64], index: 2, kind: input, shape index: {}]
  %s3 = inlined_call_operand.vmem [shape: bf16[64,64], index: 3, kind: input, shape index: {}]
  %s4 = inlined_call_operand.vmem [shape: f32[1,64], index: 4, kind: input, shape index: {}]
  %s5 = inlined_call_operand.vmem [shape: f32[1,64], index: 5, kind: input, shape index: {}]
  %s6 = inlined_call_operand.vmem [shape: f32[1,64], index: 6, kind: input, shape index: {}]
  %s7 = inlined_call_operand.vmem [shape: bf16[64,64], index: 7, kind: input, shape index: {}]
  %s8 = inlined_call_operand.vmem [shape: f32[1,64], index: 8, kind: input, shape index: {}]
  %s9 = inlined_call_operand.vmem [shape: f32[1,64], index: 9, kind: input, shape index: {}]
  %s10 = inlined_call_operand.vmem [shape: f32[1,64], index: 10, kind: input, shape index: {}]
  %s11 = inlined_call_operand.vmem [shape: f32[256,64], index: 11, kind: output, shape index: {}]
  %s12 = sld [smem:[#allocation0]]
  $region77: #{tpu_custom_call.1} parent=0
    _
  %s14 = ssub.s32 1, %s12
  %s15 = scalar_select 0, %s14, %s12
  loop: start=0, step=1, limit=4
  $region2: #{tpu_custom_call.1} parent=0 // loop_pre_header
    _
  $region3: #{tpu_custom_call.1} parent=0 // loop_header
    %s17 = sphi 0, %s21
    %p18 = scmp.ge.s32.totalorder %s17, 4
    %s27 = sphi 0, %s29
    %s30 = sphi 0, %s27
    %s31 = sphi 0, %s30
    %s47 = sphi 0, %s31
    %s51 = sphi 0, %s51
    %s53 = sphi 0, %s51
    %s54 = sphi 0, %s53
    %s68 = sphi 0, %s54
    %s72 = sphi 0, %s72
    %s74 = sphi 0, %s72
    %s75 = sphi 0, %s74
    %s89 = sphi 0, %s75
    %s93 = sphi 0, %s93
    %s95 = sphi 0, %s93
    %s96 = sphi 0, %s95
    %s110 = sphi 0, %s96
    %s114 = sphi 0, %s114
    %s116 = sphi 0, %s114
    %s117 = sphi 0, %s116
    %s131 = sphi 0, %s117
    %s135 = sphi 0, %s135
    %s137 = sphi 0, %s135
    %s138 = sphi 0, %s137
    %s152 = sphi 0, %s138
    %s156 = sphi 0, %s156
    %s158 = sphi 0, %s156
    %s159 = sphi 0, %s158
    %s173 = sphi 0, %s159
    %s177 = sphi 0, %s177
    %s179 = sphi 0, %s177
    %s180 = sphi 0, %s179
    %s194 = sphi 0, %s180
    %s198 = sphi 0, %s198
    %s200 = sphi 0, %s198
    %s201 = sphi 0, %s200
    %s215 = sphi 0, %s201
    %s219 = sphi 0, %s219
    %s221 = sphi 0, %s219
    %s222 = sphi 0, %s221
    %s236 = sphi 0, %s222
    %s240 = sphi 0, %s240
    %s242 = sphi 0, %s240
    %s243 = sphi 0, %s242
    %s257 = sphi 0, %s243
    %s263 = sphi 0, %s265
    %s266 = sphi 0, %s263
    %s267 = sphi 0, %s266
    %s283 = sphi 0, %s267
  $region4: #{tpu_custom_call.1} parent=0 // loop_header_branch
    %20 = sbr.rel (%p18) target = $region8
  $region5: #{tpu_custom_call.1} parent=0 // loop_body
    %s22 = ssub.s32 %s17, 1
    %s23 = ssub.s32 %s17, 2
    %s24 = sadd.s32 %s17, 1
    %s25 = ssub.s32 %s17, %s24
    %p26 = scmp.eq.s32.totalorder %s25, 0
    %s28 = sadd.s32 %s27, 1
    %s29 = scalar_select %p26, %s27, %s28
    %p32 = pneg %p26
    %p33 = scmp.eq.s32.totalorder %s17, 1
    %p34 = por %p32, %p33
    %p35 = scmp.ne.s32.totalorder %s27, %s30
    %p36 = scmp.eq.s32.totalorder %s17, 0
    %p37 = por %p35, %p36
    %p38 = scmp.ne.s32.totalorder %s27, %s30
    %p39 = scmp.eq.s32.totalorder %s22, 1
    %p40 = por %p38, %p39
    %p41 = scmp.ne.s32.totalorder %s30, %s31
    %p42 = scmp.eq.s32.totalorder %s22, 0
    %p43 = por %p41, %p42
    %p44 = scmp.ne.s32.totalorder %s30, %s31
    %p45 = scmp.eq.s32.totalorder %s23, 1
    %p46 = por %p44, %p45
    %p48 = scmp.ne.s32.totalorder %s31, %s47
    %p49 = scmp.eq.s32.totalorder %s23, 0
    %p50 = por %p48, %p49
    %s52 = sadd.s32 %s51, 1
    %p55 = scmp.eq.s32.totalorder %s17, 1
    %p56 = scmp.ne.s32.totalorder %s51, %s53
    %p57 = scmp.eq.s32.totalorder %s17, 0
    %p58 = por %p56, %p57
    %p59 = scmp.ne.s32.totalorder %s51, %s53
    %p60 = scmp.eq.s32.totalorder %s22, 1
    %p61 = por %p59, %p60
    %p62 = scmp.ne.s32.totalorder %s53, %s54
    %p63 = scmp.eq.s32.totalorder %s22, 0
    %p64 = por %p62, %p63
    %p65 = scmp.ne.s32.totalorder %s53, %s54
    %p66 = scmp.eq.s32.totalorder %s23, 1
    %p67 = por %p65, %p66
    %p69 = scmp.ne.s32.totalorder %s54, %s68
    %p70 = scmp.eq.s32.totalorder %s23, 0
    %p71 = por %p69, %p70
    %s73 = sadd.s32 %s72, 1
    %p76 = scmp.eq.s32.totalorder %s17, 1
    %p77 = scmp.ne.s32.totalorder %s72, %s74
    %p78 = scmp.eq.s32.totalorder %s17, 0
    %p79 = por %p77, %p78
    %p80 = scmp.ne.s32.totalorder %s72, %s74
    %p81 = scmp.eq.s32.totalorder %s22, 1
    %p82 = por %p80, %p81
    %p83 = scmp.ne.s32.totalorder %s74, %s75
    %p84 = scmp.eq.s32.totalorder %s22, 0
    %p85 = por %p83, %p84
    %p86 = scmp.ne.s32.totalorder %s74, %s75
    %p87 = scmp.eq.s32.totalorder %s23, 1
    %p88 = por %p86, %p87
    %p90 = scmp.ne.s32.totalorder %s75, %s89
    %p91 = scmp.eq.s32.totalorder %s23, 0
    %p92 = por %p90, %p91
    %s94 = sadd.s32 %s93, 1
    %p97 = scmp.eq.s32.totalorder %s17, 1
    %p98 = scmp.ne.s32.totalorder %s93, %s95
    %p99 = scmp.eq.s32.totalorder %s17, 0
    %p100 = por %p98, %p99
    %p101 = scmp.ne.s32.totalorder %s93, %s95
    %p102 = scmp.eq.s32.totalorder %s22, 1
    %p103 = por %p101, %p102
    %p104 = scmp.ne.s32.totalorder %s95, %s96
    %p105 = scmp.eq.s32.totalorder %s22, 0
    %p106 = por %p104, %p105
    %p107 = scmp.ne.s32.totalorder %s95, %s96
    %p108 = scmp.eq.s32.totalorder %s23, 1
    %p109 = por %p107, %p108
    %p111 = scmp.ne.s32.totalorder %s96, %s110
    %p112 = scmp.eq.s32.totalorder %s23, 0
    %p113 = por %p111, %p112
    %s115 = sadd.s32 %s114, 1
    %p118 = scmp.eq.s32.totalorder %s17, 1
    %p119 = scmp.ne.s32.totalorder %s114, %s116
    %p120 = scmp.eq.s32.totalorder %s17, 0
    %p121 = por %p119, %p120
    %p122 = scmp.ne.s32.totalorder %s114, %s116
    %p123 = scmp.eq.s32.totalorder %s22, 1
    %p124 = por %p122, %p123
    %p125 = scmp.ne.s32.totalorder %s116, %s117
    %p126 = scmp.eq.s32.totalorder %s22, 0
    %p127 = por %p125, %p126
    %p128 = scmp.ne.s32.totalorder %s116, %s117
    %p129 = scmp.eq.s32.totalorder %s23, 1
    %p130 = por %p128, %p129
    %p132 = scmp.ne.s32.totalorder %s117, %s131
    %p133 = scmp.eq.s32.totalorder %s23, 0
    %p134 = por %p132, %p133
    %s136 = sadd.s32 %s135, 1
    %p139 = scmp.eq.s32.totalorder %s17, 1
    %p140 = scmp.ne.s32.totalorder %s135, %s137
    %p141 = scmp.eq.s32.totalorder %s17, 0
    %p142 = por %p140, %p141
    %p143 = scmp.ne.s32.totalorder %s135, %s137
    %p144 = scmp.eq.s32.totalorder %s22, 1
    %p145 = por %p143, %p144
    %p146 = scmp.ne.s32.totalorder %s137, %s138
    %p147 = scmp.eq.s32.totalorder %s22, 0
    %p148 = por %p146, %p147
    %p149 = scmp.ne.s32.totalorder %s137, %s138
    %p150 = scmp.eq.s32.totalorder %s23, 1
    %p151 = por %p149, %p150
    %p153 = scmp.ne.s32.totalorder %s138, %s152
    %p154 = scmp.eq.s32.totalorder %s23, 0
    %p155 = por %p153, %p154
    %s157 = sadd.s32 %s156, 1
    %p160 = scmp.eq.s32.totalorder %s17, 1
    %p161 = scmp.ne.s32.totalorder %s156, %s158
    %p162 = scmp.eq.s32.totalorder %s17, 0
    %p163 = por %p161, %p162
    %p164 = scmp.ne.s32.totalorder %s156, %s158
    %p165 = scmp.eq.s32.totalorder %s22, 1
    %p166 = por %p164, %p165
    %p167 = scmp.ne.s32.totalorder %s158, %s159
    %p168 = scmp.eq.s32.totalorder %s22, 0
    %p169 = por %p167, %p168
    %p170 = scmp.ne.s32.totalorder %s158, %s159
    %p171 = scmp.eq.s32.totalorder %s23, 1
    %p172 = por %p170, %p171
    %p174 = scmp.ne.s32.totalorder %s159, %s173
    %p175 = scmp.eq.s32.totalorder %s23, 0
    %p176 = por %p174, %p175
    %s178 = sadd.s32 %s177, 1
    %p181 = scmp.eq.s32.totalorder %s17, 1
    %p182 = scmp.ne.s32.totalorder %s177, %s179
    %p183 = scmp.eq.s32.totalorder %s17, 0
    %p184 = por %p182, %p183
    %p185 = scmp.ne.s32.totalorder %s177, %s179
    %p186 = scmp.eq.s32.totalorder %s22, 1
    %p187 = por %p185, %p186
    %p188 = scmp.ne.s32.totalorder %s179, %s180
    %p189 = scmp.eq.s32.totalorder %s22, 0
    %p190 = por %p188, %p189
    %p191 = scmp.ne.s32.totalorder %s179, %s180
    %p192 = scmp.eq.s32.totalorder %s23, 1
    %p193 = por %p191, %p192
    %p195 = scmp.ne.s32.totalorder %s180, %s194
    %p196 = scmp.eq.s32.totalorder %s23, 0
    %p197 = por %p195, %p196
    %s199 = sadd.s32 %s198, 1
    %p202 = scmp.eq.s32.totalorder %s17, 1
    %p203 = scmp.ne.s32.totalorder %s198, %s200
    %p204 = scmp.eq.s32.totalorder %s17, 0
    %p205 = por %p203, %p204
    %p206 = scmp.ne.s32.totalorder %s198, %s200
    %p207 = scmp.eq.s32.totalorder %s22, 1
    %p208 = por %p206, %p207
    %p209 = scmp.ne.s32.totalorder %s200, %s201
    %p210 = scmp.eq.s32.totalorder %s22, 0
    %p211 = por %p209, %p210
    %p212 = scmp.ne.s32.totalorder %s200, %s201
    %p213 = scmp.eq.s32.totalorder %s23, 1
    %p214 = por %p212, %p213
    %p216 = scmp.ne.s32.totalorder %s201, %s215
    %p217 = scmp.eq.s32.totalorder %s23, 0
    %p218 = por %p216, %p217
    %s220 = sadd.s32 %s219, 1
    %p223 = scmp.eq.s32.totalorder %s17, 1
    %p224 = scmp.ne.s32.totalorder %s219, %s221
    %p225 = scmp.eq.s32.totalorder %s17, 0
    %p226 = por %p224, %p225
    %p227 = scmp.ne.s32.totalorder %s219, %s221
    %p228 = scmp.eq.s32.totalorder %s22, 1
    %p229 = por %p227, %p228
    %p230 = scmp.ne.s32.totalorder %s221, %s222
    %p231 = scmp.eq.s32.totalorder %s22, 0
    %p232 = por %p230, %p231
    %p233 = scmp.ne.s32.totalorder %s221, %s222
    %p234 = scmp.eq.s32.totalorder %s23, 1
    %p235 = por %p233, %p234
    %p237 = scmp.ne.s32.totalorder %s222, %s236
    %p238 = scmp.eq.s32.totalorder %s23, 0
    %p239 = por %p237, %p238
    %s241 = sadd.s32 %s240, 1
    %p244 = scmp.eq.s32.totalorder %s17, 1
    %p245 = scmp.ne.s32.totalorder %s240, %s242
    %p246 = scmp.eq.s32.totalorder %s17, 0
    %p247 = por %p245, %p246
    %p248 = scmp.ne.s32.totalorder %s240, %s242
    %p249 = scmp.eq.s32.totalorder %s22, 1
    %p250 = por %p248, %p249
    %p251 = scmp.ne.s32.totalorder %s242, %s243
    %p252 = scmp.eq.s32.totalorder %s22, 0
    %p253 = por %p251, %p252
    %p254 = scmp.ne.s32.totalorder %s242, %s243
    %p255 = scmp.eq.s32.totalorder %s23, 1
    %p256 = por %p254, %p255
    %p258 = scmp.ne.s32.totalorder %s243, %s257
    %p259 = scmp.eq.s32.totalorder %s23, 0
    %p260 = por %p258, %p259
    %s261 = ssub.s32 %s17, %s24
    %p262 = scmp.eq.s32.totalorder %s261, 0
    %s264 = sadd.s32 %s263, 1
    %s265 = scalar_select %p262, %s263, %s264
    %p268 = pneg %p262
    %p269 = scmp.eq.s32.totalorder %s17, 1
    %p270 = por %p268, %p269
    %p271 = scmp.ne.s32.totalorder %s263, %s266
    %p272 = scmp.eq.s32.totalorder %s17, 0
    %p273 = por %p271, %p272
    %p274 = scmp.ne.s32.totalorder %s263, %s266
    %p275 = scmp.eq.s32.totalorder %s22, 1
    %p276 = por %p274, %p275
    %p277 = scmp.ne.s32.totalorder %s266, %s267
    %p278 = scmp.eq.s32.totalorder %s22, 0
    %p279 = por %p277, %p278
    %p280 = scmp.ne.s32.totalorder %s266, %s267
    %p281 = scmp.eq.s32.totalorder %s23, 1
    %p282 = por %p280, %p281
    %p284 = scmp.ne.s32.totalorder %s267, %s283
    %p285 = scmp.eq.s32.totalorder %s23, 0
    %p286 = por %p284, %p285
    %p287 = scmp.le.s32.totalorder 1, %s17
    %p288 = scmp.lt.s32.totalorder %s17, 3
    %p289 = pnand %p287, %p288
    %p290 = pneg %p289
    // Predicated region
    $region9: #{tpu_custom_call.1} parent=5 // pred_check
      _
    $region10: #{tpu_custom_call.1} parent=5 // pred_check_branch
      %292 = sbr.rel (%p289) target = $region12
    $region11: #{tpu_custom_call.1} parent=5 // pred_region
      %s293 = ssub.s32 %s17, 1
      // Predicated region
      $region13: #{tpu_custom_call.1} parent=11 // pred_check
        %p294 = pneg %p64
      $region14: #{tpu_custom_call.1} parent=11 // pred_check_branch
        %296 = sbr.rel (%p294) target = $region16
      $region15: #{tpu_custom_call.1} parent=11 // pred_region
        _
      $region16: #{tpu_custom_call.1} parent=11 // pred_fallthru
        _
      // Predicated region
      $region17: #{tpu_custom_call.1} parent=11 // pred_check
        %p297 = pneg %p85
      $region18: #{tpu_custom_call.1} parent=11 // pred_check_branch
        %299 = sbr.rel (%p297) target = $region20
      $region19: #{tpu_custom_call.1} parent=11 // pred_region
        _
      $region20: #{tpu_custom_call.1} parent=11 // pred_fallthru
        _
      // Predicated region
      $region21: #{tpu_custom_call.1} parent=11 // pred_check
        %p300 = pneg %p106
      $region22: #{tpu_custom_call.1} parent=11 // pred_check_branch
        %302 = sbr.rel (%p300) target = $region24
      $region23: #{tpu_custom_call.1} parent=11 // pred_region
        _
      $region24: #{tpu_custom_call.1} parent=11 // pred_fallthru
        _
      // Predicated region
      $region25: #{tpu_custom_call.1} parent=11 // pred_check
        %p303 = pneg %p127
      $region26: #{tpu_custom_call.1} parent=11 // pred_check_branch
        %305 = sbr.rel (%p303) target = $region28
      $region27: #{tpu_custom_call.1} parent=11 // pred_region
        _
      $region28: #{tpu_custom_call.1} parent=11 // pred_fallthru
        _
      // Predicated region
      $region29: #{tpu_custom_call.1} parent=11 // pred_check
        %p306 = pneg %p148
      $region30: #{tpu_custom_call.1} parent=11 // pred_check_branch
        %308 = sbr.rel (%p306) target = $region32
      $region31: #{tpu_custom_call.1} parent=11 // pred_region
        _
      $region32: #{tpu_custom_call.1} parent=11 // pred_fallthru
        _
      // Predicated region
      $region33: #{tpu_custom_call.1} parent=11 // pred_check
        %p309 = pneg %p169
      $region34: #{tpu_custom_call.1} parent=11 // pred_check_branch
        %311 = sbr.rel (%p309) target = $region36
      $region35: #{tpu_custom_call.1} parent=11 // pred_region
        _
      $region36: #{tpu_custom_call.1} parent=11 // pred_fallthru
        _
      // Predicated region
      $region37: #{tpu_custom_call.1} parent=11 // pred_check
        %p312 = pneg %p190
      $region38: #{tpu_custom_call.1} parent=11 // pred_check_branch
        %314 = sbr.rel (%p312) target = $region40
      $region39: #{tpu_custom_call.1} parent=11 // pred_region
        _
      $region40: #{tpu_custom_call.1} parent=11 // pred_fallthru
        _
      // Predicated region
      $region41: #{tpu_custom_call.1} parent=11 // pred_check
        %p315 = pneg %p211
      $region42: #{tpu_custom_call.1} parent=11 // pred_check_branch
        %317 = sbr.rel (%p315) target = $region44
      $region43: #{tpu_custom_call.1} parent=11 // pred_region
        _
      $region44: #{tpu_custom_call.1} parent=11 // pred_fallthru
        _
      // Predicated region
      $region45: #{tpu_custom_call.1} parent=11 // pred_check
        %p318 = pneg %p232
      $region46: #{tpu_custom_call.1} parent=11 // pred_check_branch
        %320 = sbr.rel (%p318) target = $region48
      $region47: #{tpu_custom_call.1} parent=11 // pred_region
        _
      $region48: #{tpu_custom_call.1} parent=11 // pred_fallthru
        _
      // Predicated region
      $region49: #{tpu_custom_call.1} parent=11 // pred_check
        %p321 = pneg %p253
      $region50: #{tpu_custom_call.1} parent=11 // pred_check_branch
        %323 = sbr.rel (%p321) target = $region52
      $region51: #{tpu_custom_call.1} parent=11 // pred_region
        _
      $region52: #{tpu_custom_call.1} parent=11 // pred_fallthru
        _
    $region12: #{tpu_custom_call.1} parent=5 // pred_fallthru
      _
    %p324 = scmp.lt.s32.totalorder %s17, 2
    // Predicated region
    $region53: #{tpu_custom_call.1} parent=5 // pred_check
      %p325 = pneg %p324
    $region54: #{tpu_custom_call.1} parent=5 // pred_check_branch
      %327 = sbr.rel (%p325) target = $region56
    $region55: #{tpu_custom_call.1} parent=5 // pred_region
      // Predicated region
      $region57: #{tpu_custom_call.1} parent=55 // pred_check
        %p328 = pneg %p37
      $region58: #{tpu_custom_call.1} parent=55 // pred_check_branch
        %330 = sbr.rel (%p328) target = $region60
      $region59: #{tpu_custom_call.1} parent=55 // pred_region
        %s331 = smul.u32 16, %s17
        %p332 = scmp.lt.s32.totalorder %s331, 31
        %s333 = scalar_select %p332, %s331, 31
        %s334 = smul.addr %s333, 8
        %s335 = scalar_lea.vmem %s0, %s334
        %s336 = smul.u32 16, %s17
      $region60: #{tpu_custom_call.1} parent=55 // pred_fallthru
        _
    $region56: #{tpu_custom_call.1} parent=5 // pred_fallthru
      _
    %p337 = scmp.le.s32.totalorder 1, %s17
    %p338 = scmp.lt.s32.totalorder %s17, 3
    %p339 = pnand %p337, %p338
    %p340 = pneg %p339
    // Predicated region
    $region61: #{tpu_custom_call.1} parent=5 // pred_check
      _
    $region62: #{tpu_custom_call.1} parent=5 // pred_check_branch
      %342 = sbr.rel (%p339) target = $region64
    $region63: #{tpu_custom_call.1} parent=5 // pred_region
      %s343 = ssub.s32 %s17, 1
      %s344 = smul.u32 16, %s22
      %p345 = scmp.lt.s32.totalorder %s344, 31
      %s346 = scalar_select %p345, %s344, 31
      %s347 = smul.addr %s346, 8
      %s348 = scalar_lea.vmem %s0, %s347
      %p349 = pneg %p43
      %p350 = pneg %p40
      %p351 = pneg %p64
      %p352 = pneg %p61
      %p353 = pneg %p85
      %p354 = pneg %p82
      %p355 = pneg %p106
      %p356 = pneg %p103
      %p357 = pneg %p127
      %p358 = pneg %p124
      %p359 = pneg %p148
      %p360 = pneg %p145
      %p361 = pneg %p169
      %p362 = pneg %p166
      %p363 = pneg %p190
      %p364 = pneg %p187
      %p365 = pneg %p211
      %p366 = pneg %p208
      %p367 = pneg %p232
      %p368 = pneg %p229
      %p369 = pneg %p253
      %p370 = pneg %p250
      %p371 = pneg %p279
      %p372 = pneg %p276
      %s373 = smul.u32 16, %s22
      %p374 = scmp.lt.s32.totalorder %s373, 31
      %s375 = scalar_select %p374, %s373, 31
      %s376 = smul.addr %s375, 8
      %s377 = scalar_lea.vmem %s11, %s376
      %s378 = smul.u32 16, %s22
      %p379 = scmp.lt.s32.totalorder %s378, 31
      %s380 = scalar_select %p379, %s378, 31
      %s381 = smul.addr %s380, 8
      %s382 = scalar_lea.vmem %s0, %s381
      %s383 = smul.u32 16, %s22
      %s384 = smul.u32 16, %s22
      %p385 = scmp.lt.s32.totalorder %s384, 31
      %s386 = scalar_select %p385, %s384, 31
      %s387 = smul.addr %s386, 8
      %s388 = scalar_lea.vmem %s11, %s387
      %s389 = smul.u32 16, %s22
      %v391 = vld [vmem:[%s382] sm:$0xff]
      %v392 = vld [vmem:[%s382 + $0x8] sm:$0xff]
      %v393 = vld [vmem:[%s382 + $0x10] sm:$0xff]
      %v394 = vld [vmem:[%s382 + $0x18] sm:$0xff]
      %v395 = vld [vmem:[%s382 + $0x20] sm:$0xff]
      %v396 = vld [vmem:[%s382 + $0x28] sm:$0xff]
      %v397 = vld [vmem:[%s382 + $0x30] sm:$0xff]
      %v398 = vld [vmem:[%s382 + $0x38] sm:$0xff]
      %v399 = vld [vmem:[%s382 + $0x40] sm:$0xff]
      %v400 = vld [vmem:[%s382 + $0x48] sm:$0xff]
      %v401 = vld [vmem:[%s382 + $0x50] sm:$0xff]
      %v402 = vld [vmem:[%s382 + $0x58] sm:$0xff]
      %v403 = vld [vmem:[%s382 + $0x60] sm:$0xff]
      %v404 = vld [vmem:[%s382 + $0x68] sm:$0xff]
      %v405 = vld [vmem:[%s382 + $0x70] sm:$0xff]
      %v406 = vld [vmem:[%s382 + $0x78] sm:$0xff]
      %v407 = vpack.c.bf16 %v392, %v391
      %v408 = vpack.c.bf16 %v394, %v393
      %v409 = vpack.c.bf16 %v396, %v395
      %v410 = vpack.c.bf16 %v398, %v397
      %v411 = vpack.c.bf16 %v400, %v399
      %v412 = vpack.c.bf16 %v402, %v401
      %v413 = vpack.c.bf16 %v404, %v403
      %v414 = vpack.c.bf16 %v406, %v405
      %v415 = vld [vmem:[%s1] sm:$0xf]
      %v416 = vld [vmem:[%s1 + $0x4] sm:$0xf]
      %v417 = vld [vmem:[%s1 + $0x8] sm:$0xf]
      %v418 = vld [vmem:[%s1 + $0xc] sm:$0xf]
      %v419 = vld [vmem:[%s1 + $0x10] sm:$0xf]
      %v420 = vld [vmem:[%s1 + $0x14] sm:$0xf]
      %v421 = vld [vmem:[%s1 + $0x18] sm:$0xf]
      %v422 = vld [vmem:[%s1 + $0x1c] sm:$0xf]
      %v423 = vld [vmem:[%s4] sm:$0x1]
      %v425 = vlaneseq
      %v426 = vshrl.u32 %v425, 7
      %v427 = vsub.s32 0, %v426
      %v428 = vrot.slane %v423, %v427
      %v438 = vunpack.c.l.b16 %v415
      %v439 = vunpack.c.l.b16 %v416
      %v440 = vunpack.c.l.b16 %v417
      %v441 = vunpack.c.l.b16 %v418
      %v442 = vunpack.c.l.b16 %v419
      %v443 = vunpack.c.l.b16 %v420
      %v444 = vunpack.c.l.b16 %v421
      %v445 = vunpack.c.l.b16 %v422
      %v446 = vpack.c.b16 %v439, %v438
      %v447 = vpack.c.b16 %v441, %v440
      %v448 = vpack.c.b16 %v443, %v442
      %v449 = vpack.c.b16 %v445, %v444
      %vm454 = vcmask 523264
      %v456 = vsel %vm454, %v407, 0
      %v459 = vsel %vm454, %v408, 0
      %v462 = vsel %vm454, %v409, 0
      %v465 = vsel %vm454, %v410, 0
      %v468 = vsel %vm454, %v411, 0
      %v471 = vsel %vm454, %v412, 0
      %v474 = vsel %vm454, %v413, 0
      %v477 = vsel %vm454, %v414, 0
      %479 = vmatprep.subr.bf16.mxu0 0
      %480 = vmatpush1.bf16.msra.mxu0 %v446
      %481 = vmatprep.subr.bf16.mxu0 0
      %482 = vmatpush1.bf16.msra.mxu0 %v447
      %483 = vmatprep.subr.bf16.mxu0 0
      %484 = vmatpush1.bf16.msra.mxu0 %v448
      %485 = vmatprep.subr.bf16.mxu0 0
      %486 = vmatpush1.bf16.msra.mxu0 %v449
      %487 = vmatprep.subr.bf16.mxu0 0
      %488 = vmatpush1.bf16.msra.mxu0 0
      %489 = vmatprep.subr.bf16.mxu0 0
      %490 = vmatpush1.bf16.msra.mxu0 0
      %491 = vmatprep.subr.bf16.mxu0 0
      %492 = vmatpush1.bf16.msra.mxu0 0
      %493 = vmatprep.subr.bf16.mxu0 0
      %494 = vmatpush1.bf16.msra.mxu0 0
      %495 = vmatprep.subr.bf16.mxu0 0
      %496 = vmatpush1.bf16.msra.mxu0 0
      %497 = vmatprep.subr.bf16.mxu0 0
      %498 = vmatpush1.bf16.msra.mxu0 0
      %499 = vmatprep.subr.bf16.mxu0 0
      %500 = vmatpush1.bf16.msra.mxu0 0
      %501 = vmatprep.subr.bf16.mxu0 0
      %502 = vmatpush1.bf16.msra.mxu0 0
      %503 = vmatprep.subr.bf16.mxu0 0
      %504 = vmatpush1.bf16.msra.mxu0 0
      %505 = vmatprep.subr.bf16.mxu0 0
      %506 = vmatpush1.bf16.msra.mxu0 0
      %507 = vmatprep.subr.bf16.mxu0 0
      %508 = vmatpush1.bf16.msra.mxu0 0
      %509 = vmatprep.subr.bf16.mxu0 0
      %510 = vmatpush1.bf16.msra.mxu0 0
      %511 = vmatprep.mubr.bf16.mxu0 0
      %512 = vmatmul.mubr.bf16.gmra.mrb[0].mxu0 %v456
      %v513 = vpop.f32.mrb[0].mxu0
      %v514 = vadd.f32 %v428, %v513
      %v515 = vpop.f32.mrb[0].mxu0
      %v516 = vpop.f32.mrb[0].mxu0
      %v517 = vadd.f32 %v428, %v516
      %v518 = vpop.f32.mrb[0].mxu0
      %519 = vmatprep.mubr.bf16.mxu0 0
      %520 = vmatmul.mubr.bf16.gmra.mrb[0].mxu0 %v459
      %v521 = vpop.f32.mrb[0].mxu0
      %v522 = vadd.f32 %v428, %v521
      %v523 = vpop.f32.mrb[0].mxu0
      %v524 = vpop.f32.mrb[0].mxu0
      %v525 = vadd.f32 %v428, %v524
      %v526 = vpop.f32.mrb[0].mxu0
      %527 = vmatprep.mubr.bf16.mxu0 0
      %528 = vmatmul.mubr.bf16.gmra.mrb[0].mxu0 %v462
      %v529 = vpop.f32.mrb[0].mxu0
      %v530 = vadd.f32 %v428, %v529
      %v531 = vpop.f32.mrb[0].mxu0
      %v532 = vpop.f32.mrb[0].mxu0
      %v533 = vadd.f32 %v428, %v532
      %v534 = vpop.f32.mrb[0].mxu0
      %535 = vmatprep.mubr.bf16.mxu0 0
      %536 = vmatmul.mubr.bf16.gmra.mrb[0].mxu0 %v465
      %v537 = vpop.f32.mrb[0].mxu0
      %v538 = vadd.f32 %v428, %v537
      %v539 = vpop.f32.mrb[0].mxu0
      %v540 = vpop.f32.mrb[0].mxu0
      %v541 = vadd.f32 %v428, %v540
      %v542 = vpop.f32.mrb[0].mxu0
      %543 = vmatprep.mubr.bf16.mxu0 0
      %544 = vmatmul.mubr.bf16.gmra.mrb[0].mxu0 %v468
      %v545 = vpop.f32.mrb[0].mxu0
      %v546 = vadd.f32 %v428, %v545
      %v547 = vpop.f32.mrb[0].mxu0
      %v548 = vpop.f32.mrb[0].mxu0
      %v549 = vadd.f32 %v428, %v548
      %v550 = vpop.f32.mrb[0].mxu0
      %551 = vmatprep.mubr.bf16.mxu0 0
      %552 = vmatmul.mubr.bf16.gmra.mrb[0].mxu0 %v471
      %v553 = vpop.f32.mrb[0].mxu0
      %v554 = vadd.f32 %v428, %v553
      %v555 = vpop.f32.mrb[0].mxu0
      %v556 = vpop.f32.mrb[0].mxu0
      %v557 = vadd.f32 %v428, %v556
      %v558 = vpop.f32.mrb[0].mxu0
      %559 = vmatprep.mubr.bf16.mxu0 0
      %560 = vmatmul.mubr.bf16.gmra.mrb[0].mxu0 %v474
      %v561 = vpop.f32.mrb[0].mxu0
      %v562 = vadd.f32 %v428, %v561
      %v563 = vpop.f32.mrb[0].mxu0
      %v564 = vpop.f32.mrb[0].mxu0
      %v565 = vadd.f32 %v428, %v564
      %v566 = vpop.f32.mrb[0].mxu0
      %567 = vmatprep.mubr.bf16.mxu0 0
      %568 = vmatmul.mubr.bf16.gmra.mrb[0].mxu0 %v477
      %v569 = vpop.f32.mrb[0].mxu0
      %v570 = vadd.f32 %v428, %v569
      %v571 = vpop.f32.mrb[0].mxu0
      %v572 = vpop.f32.mrb[0].mxu0
      %v573 = vadd.f32 %v428, %v572
      %v574 = vpop.f32.mrb[0].mxu0
      %575 = vdwg.mxu0
      %v576 = vld [vmem:[%s2] sm:$0xf]
      %v577 = vld [vmem:[%s2 + $0x4] sm:$0xf]
      %v578 = vld [vmem:[%s2 + $0x8] sm:$0xf]
      %v579 = vld [vmem:[%s2 + $0xc] sm:$0xf]
      %v580 = vld [vmem:[%s2 + $0x10] sm:$0xf]
      %v581 = vld [vmem:[%s2 + $0x14] sm:$0xf]
      %v582 = vld [vmem:[%s2 + $0x18] sm:$0xf]
      %v583 = vld [vmem:[%s2 + $0x1c] sm:$0xf]
      %v584 = vld [vmem:[%s5] sm:$0x1]
      %v586 = vlaneseq
      %v587 = vshrl.u32 %v586, 7
      %v588 = vsub.s32 0, %v587
      %v589 = vrot.slane %v584, %v588
      %v599 = vunpack.c.l.b16 %v576
      %v600 = vunpack.c.l.b16 %v577
      %v601 = vunpack.c.l.b16 %v578
      %v602 = vunpack.c.l.b16 %v579
      %v603 = vunpack.c.l.b16 %v580
      %v604 = vunpack.c.l.b16 %v581
      %v605 = vunpack.c.l.b16 %v582
      %v606 = vunpack.c.l.b16 %v583
      %v607 = vpack.c.b16 %v600, %v599
      %v608 = vpack.c.b16 %v602, %v601
      %v609 = vpack.c.b16 %v604, %v603
      %v610 = vpack.c.b16 %v606, %v605
      %615 = vmatprep.subr.bf16.mxu0 0
      %616 = vmatpush1.bf16.msra.mxu0 %v607
      %617 = vmatprep.subr.bf16.mxu0 0
      %618 = vmatpush1.bf16.msra.mxu0 %v608
      %619 = vmatprep.subr.bf16.mxu0 0
      %620 = vmatpush1.bf16.msra.mxu0 %v609
      %621 = vmatprep.subr.bf16.mxu0 0
      %622 = vmatpush1.bf16.msra.mxu0 %v610
      %623 = vmatprep.subr.bf16.mxu0 0
      %624 = vmatpush1.bf16.msra.mxu0 0
      %625 = vmatprep.subr.bf16.mxu0 0
      %626 = vmatpush1.bf16.msra.mxu0 0
      %627 = vmatprep.subr.bf16.mxu0 0
      %628 = vmatpush1.bf16.msra.mxu0 0
      %629 = vmatprep.subr.bf16.mxu0 0
      %630 = vmatpush1.bf16.msra.mxu0 0
      %631 = vmatprep.subr.bf16.mxu0 0
      %632 = vmatpush1.bf16.msra.mxu0 0
      %633 = vmatprep.subr.bf16.mxu0 0
      %634 = vmatpush1.bf16.msra.mxu0 0
      %635 = vmatprep.subr.bf16.mxu0 0
      %636 = vmatpush1.bf16.msra.mxu0 0
      %637 = vmatprep.subr.bf16.mxu0 0
      %638 = vmatpush1.bf16.msra.mxu0 0
      %639 = vmatprep.subr.bf16.mxu0 0
      %640 = vmatpush1.bf16.msra.mxu0 0
      %641 = vmatprep.subr.bf16.mxu0 0
      %642 = vmatpush1.bf16.msra.mxu0 0
      %643 = vmatprep.subr.bf16.mxu0 0
      %644 = vmatpush1.bf16.msra.mxu0 0
      %645 = vmatprep.subr.bf16.mxu0 0
      %646 = vmatpush1.bf16.msra.mxu0 0
      %647 = vmatprep.mubr.bf16.mxu0 0
      %648 = vmatmul.mubr.bf16.gmra.mrb[0].mxu0 %v456
      %v649 = vpop.f32.mrb[0].mxu0
      %v650 = vadd.f32 %v589, %v649
      %v651 = vpop.f32.mrb[0].mxu0
      %v652 = vpop.f32.mrb[0].mxu0
      %v653 = vadd.f32 %v589, %v652
      %v654 = vpop.f32.mrb[0].mxu0
      %655 = vmatprep.mubr.bf16.mxu0 0
      %656 = vmatmul.mubr.bf16.gmra.mrb[0].mxu0 %v459
      %v657 = vpop.f32.mrb[0].mxu0
      %v658 = vadd.f32 %v589, %v657
      %v659 = vpop.f32.mrb[0].mxu0
      %v660 = vpop.f32.mrb[0].mxu0
      %v661 = vadd.f32 %v589, %v660
      %v662 = vpop.f32.mrb[0].mxu0
      %663 = vmatprep.mubr.bf16.mxu0 0
      %664 = vmatmul.mubr.bf16.gmra.mrb[0].mxu0 %v462
      %v665 = vpop.f32.mrb[0].mxu0
      %v666 = vadd.f32 %v589, %v665
      %v667 = vpop.f32.mrb[0].mxu0
      %v668 = vpop.f32.mrb[0].mxu0
      %v669 = vadd.f32 %v589, %v668
      %v670 = vpop.f32.mrb[0].mxu0
      %671 = vmatprep.mubr.bf16.mxu0 0
      %672 = vmatmul.mubr.bf16.gmra.mrb[0].mxu0 %v465
      %v673 = vpop.f32.mrb[0].mxu0
      %v674 = vadd.f32 %v589, %v673
      %v675 = vpop.f32.mrb[0].mxu0
      %v676 = vpop.f32.mrb[0].mxu0
      %v677 = vadd.f32 %v589, %v676
      %v678 = vpop.f32.mrb[0].mxu0
      %679 = vmatprep.mubr.bf16.mxu0 0
      %680 = vmatmul.mubr.bf16.gmra.mrb[0].mxu0 %v468
      %v681 = vpop.f32.mrb[0].mxu0
      %v682 = vadd.f32 %v589, %v681
      %v683 = vpop.f32.mrb[0].mxu0
      %v684 = vpop.f32.mrb[0].mxu0
      %v685 = vadd.f32 %v589, %v684
      %v686 = vpop.f32.mrb[0].mxu0
      %687 = vmatprep.mubr.bf16.mxu0 0
      %688 = vmatmul.mubr.bf16.gmra.mrb[0].mxu0 %v471
      %v689 = vpop.f32.mrb[0].mxu0
      %v690 = vadd.f32 %v589, %v689
      %v691 = vpop.f32.mrb[0].mxu0
      %v692 = vpop.f32.mrb[0].mxu0
      %v693 = vadd.f32 %v589, %v692
      %v694 = vpop.f32.mrb[0].mxu0
      %695 = vmatprep.mubr.bf16.mxu0 0
      %696 = vmatmul.mubr.bf16.gmra.mrb[0].mxu0 %v474
      %v697 = vpop.f32.mrb[0].mxu0
      %v698 = vadd.f32 %v589, %v697
      %v699 = vpop.f32.mrb[0].mxu0
      %v700 = vpop.f32.mrb[0].mxu0
      %v701 = vadd.f32 %v589, %v700
      %v702 = vpop.f32.mrb[0].mxu0
      %703 = vmatprep.mubr.bf16.mxu0 0
      %704 = vmatmul.mubr.bf16.gmra.mrb[0].mxu0 %v477
      %v705 = vpop.f32.mrb[0].mxu0
      %v706 = vadd.f32 %v589, %v705
      %v707 = vpop.f32.mrb[0].mxu0
      %v708 = vpop.f32.mrb[0].mxu0
      %v709 = vadd.f32 %v589, %v708
      %v710 = vpop.f32.mrb[0].mxu0
      %711 = vdwg.mxu0
      %v712 = vld [vmem:[%s3] sm:$0xf]
      %v713 = vld [vmem:[%s3 + $0x4] sm:$0xf]
      %v714 = vld [vmem:[%s3 + $0x8] sm:$0xf]
      %v715 = vld [vmem:[%s3 + $0xc] sm:$0xf]
      %v716 = vld [vmem:[%s3 + $0x10] sm:$0xf]
      %v717 = vld [vmem:[%s3 + $0x14] sm:$0xf]
      %v718 = vld [vmem:[%s3 + $0x18] sm:$0xf]
      %v719 = vld [vmem:[%s3 + $0x1c] sm:$0xf]
      %v720 = vld [vmem:[%s6] sm:$0x1]
      %v722 = vlaneseq
      %v723 = vshrl.u32 %v722, 7
      %v724 = vsub.s32 0, %v723
      %v725 = vrot.slane %v720, %v724
      %v735 = vunpack.c.l.b16 %v712
      %v736 = vunpack.c.l.b16 %v713
      %v737 = vunpack.c.l.b16 %v714
      %v738 = vunpack.c.l.b16 %v715
      %v739 = vunpack.c.l.b16 %v716
      %v740 = vunpack.c.l.b16 %v717
      %v741 = vunpack.c.l.b16 %v718
      %v742 = vunpack.c.l.b16 %v719
      %v743 = vpack.c.b16 %v736, %v735
      %v744 = vpack.c.b16 %v738, %v737
      %v745 = vpack.c.b16 %v740, %v739
      %v746 = vpack.c.b16 %v742, %v741
      %751 = vmatprep.subr.bf16.mxu0 0
      %752 = vmatpush1.bf16.msra.mxu0 %v743
      %753 = vmatprep.subr.bf16.mxu0 0
      %754 = vmatpush1.bf16.msra.mxu0 %v744
      %755 = vmatprep.subr.bf16.mxu0 0
      %756 = vmatpush1.bf16.msra.mxu0 %v745
      %757 = vmatprep.subr.bf16.mxu0 0
      %758 = vmatpush1.bf16.msra.mxu0 %v746
      %759 = vmatprep.subr.bf16.mxu0 0
      %760 = vmatpush1.bf16.msra.mxu0 0
      %761 = vmatprep.subr.bf16.mxu0 0
      %762 = vmatpush1.bf16.msra.mxu0 0
      %763 = vmatprep.subr.bf16.mxu0 0
      %764 = vmatpush1.bf16.msra.mxu0 0
      %765 = vmatprep.subr.bf16.mxu0 0
      %766 = vmatpush1.bf16.msra.mxu0 0
      %767 = vmatprep.subr.bf16.mxu0 0
      %768 = vmatpush1.bf16.msra.mxu0 0
      %769 = vmatprep.subr.bf16.mxu0 0
      %770 = vmatpush1.bf16.msra.mxu0 0
      %771 = vmatprep.subr.bf16.mxu0 0
      %772 = vmatpush1.bf16.msra.mxu0 0
      %773 = vmatprep.subr.bf16.mxu0 0
      %774 = vmatpush1.bf16.msra.mxu0 0
      %775 = vmatprep.subr.bf16.mxu0 0
      %776 = vmatpush1.bf16.msra.mxu0 0
      %777 = vmatprep.subr.bf16.mxu0 0
      %778 = vmatpush1.bf16.msra.mxu0 0
      %779 = vmatprep.subr.bf16.mxu0 0
      %780 = vmatpush1.bf16.msra.mxu0 0
      %781 = vmatprep.subr.bf16.mxu0 0
      %782 = vmatpush1.bf16.msra.mxu0 0
      %783 = vmatprep.mubr.bf16.mxu0 0
      %784 = vmatmul.mubr.bf16.gmra.mrb[0].mxu0 %v456
      %v785 = vpop.f32.mrb[0].mxu0
      %v786 = vadd.f32 %v725, %v785
      %v787 = vpop.f32.mrb[0].mxu0
      %v788 = vpop.f32.mrb[0].mxu0
      %v789 = vadd.f32 %v725, %v788
      %v790 = vpop.f32.mrb[0].mxu0
      %791 = vmatprep.mubr.bf16.mxu0 0
      %792 = vmatmul.mubr.bf16.gmra.mrb[0].mxu0 %v459
      %v793 = vpop.f32.mrb[0].mxu0
      %v794 = vadd.f32 %v725, %v793
      %v795 = vpop.f32.mrb[0].mxu0
      %v796 = vpop.f32.mrb[0].mxu0
      %v797 = vadd.f32 %v725, %v796
      %v798 = vpop.f32.mrb[0].mxu0
      %799 = vmatprep.mubr.bf16.mxu0 0
      %800 = vmatmul.mubr.bf16.gmra.mrb[0].mxu0 %v462
      %v801 = vpop.f32.mrb[0].mxu0
      %v802 = vadd.f32 %v725, %v801
      %v803 = vpop.f32.mrb[0].mxu0
      %v804 = vpop.f32.mrb[0].mxu0
      %v805 = vadd.f32 %v725, %v804
      %v806 = vpop.f32.mrb[0].mxu0
      %807 = vmatprep.mubr.bf16.mxu0 0
      %808 = vmatmul.mubr.bf16.gmra.mrb[0].mxu0 %v465
      %v809 = vpop.f32.mrb[0].mxu0
      %v810 = vadd.f32 %v725, %v809
      %v811 = vpop.f32.mrb[0].mxu0
      %v812 = vpop.f32.mrb[0].mxu0
      %v813 = vadd.f32 %v725, %v812
      %v814 = vpop.f32.mrb[0].mxu0
      %815 = vmatprep.mubr.bf16.mxu0 0
      %816 = vmatmul.mubr.bf16.gmra.mrb[0].mxu0 %v468
      %v817 = vpop.f32.mrb[0].mxu0
      %v818 = vadd.f32 %v725, %v817
      %v819 = vpop.f32.mrb[0].mxu0
      %v820 = vpop.f32.mrb[0].mxu0
      %v821 = vadd.f32 %v725, %v820
      %v822 = vpop.f32.mrb[0].mxu0
      %823 = vmatprep.mubr.bf16.mxu0 0
      %824 = vmatmul.mubr.bf16.gmra.mrb[0].mxu0 %v471
      %v825 = vpop.f32.mrb[0].mxu0
      %v826 = vadd.f32 %v725, %v825
      %v827 = vpop.f32.mrb[0].mxu0
      %v828 = vpop.f32.mrb[0].mxu0
      %v829 = vadd.f32 %v725, %v828
      %v830 = vpop.f32.mrb[0].mxu0
      %831 = vmatprep.mubr.bf16.mxu0 0
      %832 = vmatmul.mubr.bf16.gmra.mrb[0].mxu0 %v474
      %v833 = vpop.f32.mrb[0].mxu0
      %v834 = vadd.f32 %v725, %v833
      %v835 = vpop.f32.mrb[0].mxu0
      %v836 = vpop.f32.mrb[0].mxu0
      %v837 = vadd.f32 %v725, %v836
      %v838 = vpop.f32.mrb[0].mxu0
      %839 = vmatprep.mubr.bf16.mxu0 0
      %840 = vmatmul.mubr.bf16.gmra.mrb[0].mxu0 %v477
      %v841 = vpop.f32.mrb[0].mxu0
      %v842 = vadd.f32 %v725, %v841
      %v843 = vpop.f32.mrb[0].mxu0
      %v844 = vpop.f32.mrb[0].mxu0
      %v845 = vadd.f32 %v725, %v844
      %v846 = vpop.f32.mrb[0].mxu0
      %847 = vdwg.mxu0
      %864 = vrot.lane.b32.xlu0 %v514, 120
      %v865 = vpop.permute.xlu0 %864
      %866 = vrot.lane.b32.xlu0 %v517, 120
      %v867 = vpop.permute.xlu0 %866
      %868 = vrot.lane.b32.xlu0 %v522, 120
      %v869 = vpop.permute.xlu0 %868
      %870 = vrot.lane.b32.xlu0 %v525, 120
      %v871 = vpop.permute.xlu0 %870
      %872 = vrot.lane.b32.xlu0 %v530, 120
      %v873 = vpop.permute.xlu0 %872
      %874 = vrot.lane.b32.xlu0 %v533, 120
      %v875 = vpop.permute.xlu0 %874
      %876 = vrot.lane.b32.xlu0 %v538, 120
      %v877 = vpop.permute.xlu0 %876
      %878 = vrot.lane.b32.xlu0 %v541, 120
      %v879 = vpop.permute.xlu0 %878
      %880 = vrot.lane.b32.xlu0 %v546, 120
      %v881 = vpop.permute.xlu0 %880
      %882 = vrot.lane.b32.xlu0 %v549, 120
      %v883 = vpop.permute.xlu0 %882
      %884 = vrot.lane.b32.xlu0 %v554, 120
      %v885 = vpop.permute.xlu0 %884
      %886 = vrot.lane.b32.xlu0 %v557, 120
      %v887 = vpop.permute.xlu0 %886
      %888 = vrot.lane.b32.xlu0 %v562, 120
      %v889 = vpop.permute.xlu0 %888
      %890 = vrot.lane.b32.xlu0 %v565, 120
      %v891 = vpop.permute.xlu0 %890
      %892 = vrot.lane.b32.xlu0 %v570, 120
      %v893 = vpop.permute.xlu0 %892
      %894 = vrot.lane.b32.xlu0 %v573, 120
      %v895 = vpop.permute.xlu0 %894
      %912 = vrot.lane.b32.xlu0 %v514, 112
      %v913 = vpop.permute.xlu0 %912
      %914 = vrot.lane.b32.xlu0 %v517, 112
      %v915 = vpop.permute.xlu0 %914
      %916 = vrot.lane.b32.xlu0 %v522, 112
      %v917 = vpop.permute.xlu0 %916
      %918 = vrot.lane.b32.xlu0 %v525, 112
      %v919 = vpop.permute.xlu0 %918
      %920 = vrot.lane.b32.xlu0 %v530, 112
      %v921 = vpop.permute.xlu0 %920
      %922 = vrot.lane.b32.xlu0 %v533, 112
      %v923 = vpop.permute.xlu0 %922
      %924 = vrot.lane.b32.xlu0 %v538, 112
      %v925 = vpop.permute.xlu0 %924
      %926 = vrot.lane.b32.xlu0 %v541, 112
      %v927 = vpop.permute.xlu0 %926
      %928 = vrot.lane.b32.xlu0 %v546, 112
      %v929 = vpop.permute.xlu0 %928
      %930 = vrot.lane.b32.xlu0 %v549, 112
      %v931 = vpop.permute.xlu0 %930
      %932 = vrot.lane.b32.xlu0 %v554, 112
      %v933 = vpop.permute.xlu0 %932
      %934 = vrot.lane.b32.xlu0 %v557, 112
      %v935 = vpop.permute.xlu0 %934
      %936 = vrot.lane.b32.xlu0 %v562, 112
      %v937 = vpop.permute.xlu0 %936
      %938 = vrot.lane.b32.xlu0 %v565, 112
      %v939 = vpop.permute.xlu0 %938
      %940 = vrot.lane.b32.xlu0 %v570, 112
      %v941 = vpop.permute.xlu0 %940
      %942 = vrot.lane.b32.xlu0 %v573, 112
      %v943 = vpop.permute.xlu0 %942
      %960 = vrot.lane.b32.xlu0 %v514, 104
      %v961 = vpop.permute.xlu0 %960
      %962 = vrot.lane.b32.xlu0 %v517, 104
      %v963 = vpop.permute.xlu0 %962
      %964 = vrot.lane.b32.xlu0 %v522, 104
      %v965 = vpop.permute.xlu0 %964
      %966 = vrot.lane.b32.xlu0 %v525, 104
      %v967 = vpop.permute.xlu0 %966
      %968 = vrot.lane.b32.xlu0 %v530, 104
      %v969 = vpop.permute.xlu0 %968
      %970 = vrot.lane.b32.xlu0 %v533, 104
      %v971 = vpop.permute.xlu0 %970
      %972 = vrot.lane.b32.xlu0 %v538, 104
      %v973 = vpop.permute.xlu0 %972
      %974 = vrot.lane.b32.xlu0 %v541, 104
      %v975 = vpop.permute.xlu0 %974
      %976 = vrot.lane.b32.xlu0 %v546, 104
      %v977 = vpop.permute.xlu0 %976
      %978 = vrot.lane.b32.xlu0 %v549, 104
      %v979 = vpop.permute.xlu0 %978
      %980 = vrot.lane.b32.xlu0 %v554, 104
      %v981 = vpop.permute.xlu0 %980
      %982 = vrot.lane.b32.xlu0 %v557, 104
      %v983 = vpop.permute.xlu0 %982
      %984 = vrot.lane.b32.xlu0 %v562, 104
      %v985 = vpop.permute.xlu0 %984
      %986 = vrot.lane.b32.xlu0 %v565, 104
      %v987 = vpop.permute.xlu0 %986
      %988 = vrot.lane.b32.xlu0 %v570, 104
      %v989 = vpop.permute.xlu0 %988
      %990 = vrot.lane.b32.xlu0 %v573, 104
      %v991 = vpop.permute.xlu0 %990
      %1008 = vrot.lane.b32.xlu0 %v514, 96
      %v1009 = vpop.permute.xlu0 %1008
      %1010 = vrot.lane.b32.xlu0 %v517, 96
      %v1011 = vpop.permute.xlu0 %1010
      %1012 = vrot.lane.b32.xlu0 %v522, 96
      %v1013 = vpop.permute.xlu0 %1012
      %1014 = vrot.lane.b32.xlu0 %v525, 96
      %v1015 = vpop.permute.xlu0 %1014
      %1016 = vrot.lane.b32.xlu0 %v530, 96
      %v1017 = vpop.permute.xlu0 %1016
      %1018 = vrot.lane.b32.xlu0 %v533, 96
      %v1019 = vpop.permute.xlu0 %1018
      %1020 = vrot.lane.b32.xlu0 %v538, 96
      %v1021 = vpop.permute.xlu0 %1020
      %1022 = vrot.lane.b32.xlu0 %v541, 96
      %v1023 = vpop.permute.xlu0 %1022
      %1024 = vrot.lane.b32.xlu0 %v546, 96
      %v1025 = vpop.permute.xlu0 %1024
      %1026 = vrot.lane.b32.xlu0 %v549, 96
      %v1027 = vpop.permute.xlu0 %1026
      %1028 = vrot.lane.b32.xlu0 %v554, 96
      %v1029 = vpop.permute.xlu0 %1028
      %1030 = vrot.lane.b32.xlu0 %v557, 96
      %v1031 = vpop.permute.xlu0 %1030
      %1032 = vrot.lane.b32.xlu0 %v562, 96
      %v1033 = vpop.permute.xlu0 %1032
      %1034 = vrot.lane.b32.xlu0 %v565, 96
      %v1035 = vpop.permute.xlu0 %1034
      %1036 = vrot.lane.b32.xlu0 %v570, 96
      %v1037 = vpop.permute.xlu0 %1036
      %1038 = vrot.lane.b32.xlu0 %v573, 96
      %v1039 = vpop.permute.xlu0 %1038
      %1056 = vrot.lane.b32.xlu0 %v514, 88
      %v1057 = vpop.permute.xlu0 %1056
      %1058 = vrot.lane.b32.xlu0 %v517, 88
      %v1059 = vpop.permute.xlu0 %1058
      %1060 = vrot.lane.b32.xlu0 %v522, 88
      %v1061 = vpop.permute.xlu0 %1060
      %1062 = vrot.lane.b32.xlu0 %v525, 88
      %v1063 = vpop.permute.xlu0 %1062
      %1064 = vrot.lane.b32.xlu0 %v530, 88
      %v1065 = vpop.permute.xlu0 %1064
      %1066 = vrot.lane.b32.xlu0 %v533, 88
      %v1067 = vpop.permute.xlu0 %1066
      %1068 = vrot.lane.b32.xlu0 %v538, 88
      %v1069 = vpop.permute.xlu0 %1068
      %1070 = vrot.lane.b32.xlu0 %v541, 88
      %v1071 = vpop.permute.xlu0 %1070
      %1072 = vrot.lane.b32.xlu0 %v546, 88
      %v1073 = vpop.permute.xlu0 %1072
      %1074 = vrot.lane.b32.xlu0 %v549, 88
      %v1075 = vpop.permute.xlu0 %1074
      %1076 = vrot.lane.b32.xlu0 %v554, 88
      %v1077 = vpop.permute.xlu0 %1076
      %1078 = vrot.lane.b32.xlu0 %v557, 88
      %v1079 = vpop.permute.xlu0 %1078
      %1080 = vrot.lane.b32.xlu0 %v562, 88
      %v1081 = vpop.permute.xlu0 %1080
      %1082 = vrot.lane.b32.xlu0 %v565, 88
      %v1083 = vpop.permute.xlu0 %1082
      %1084 = vrot.lane.b32.xlu0 %v570, 88
      %v1085 = vpop.permute.xlu0 %1084
      %1086 = vrot.lane.b32.xlu0 %v573, 88
      %v1087 = vpop.permute.xlu0 %1086
      %1104 = vrot.lane.b32.xlu0 %v514, 80
      %v1105 = vpop.permute.xlu0 %1104
      %1106 = vrot.lane.b32.xlu0 %v517, 80
      %v1107 = vpop.permute.xlu0 %1106
      %1108 = vrot.lane.b32.xlu0 %v522, 80
      %v1109 = vpop.permute.xlu0 %1108
      %1110 = vrot.lane.b32.xlu0 %v525, 80
      %v1111 = vpop.permute.xlu0 %1110
      %1112 = vrot.lane.b32.xlu0 %v530, 80
      %v1113 = vpop.permute.xlu0 %1112
      %1114 = vrot.lane.b32.xlu0 %v533, 80
      %v1115 = vpop.permute.xlu0 %1114
      %1116 = vrot.lane.b32.xlu0 %v538, 80
      %v1117 = vpop.permute.xlu0 %1116
      %1118 = vrot.lane.b32.xlu0 %v541, 80
      %v1119 = vpop.permute.xlu0 %1118
      %1120 = vrot.lane.b32.xlu0 %v546, 80
      %v1121 = vpop.permute.xlu0 %1120
      %1122 = vrot.lane.b32.xlu0 %v549, 80
      %v1123 = vpop.permute.xlu0 %1122
      %1124 = vrot.lane.b32.xlu0 %v554, 80
      %v1125 = vpop.permute.xlu0 %1124
      %1126 = vrot.lane.b32.xlu0 %v557, 80
      %v1127 = vpop.permute.xlu0 %1126
      %1128 = vrot.lane.b32.xlu0 %v562, 80
      %v1129 = vpop.permute.xlu0 %1128
      %1130 = vrot.lane.b32.xlu0 %v565, 80
      %v1131 = vpop.permute.xlu0 %1130
      %1132 = vrot.lane.b32.xlu0 %v570, 80
      %v1133 = vpop.permute.xlu0 %1132
      %1134 = vrot.lane.b32.xlu0 %v573, 80
      %v1135 = vpop.permute.xlu0 %1134
      %1152 = vrot.lane.b32.xlu0 %v514, 72
      %v1153 = vpop.permute.xlu0 %1152
      %1154 = vrot.lane.b32.xlu0 %v517, 72
      %v1155 = vpop.permute.xlu0 %1154
      %1156 = vrot.lane.b32.xlu0 %v522, 72
      %v1157 = vpop.permute.xlu0 %1156
      %1158 = vrot.lane.b32.xlu0 %v525, 72
      %v1159 = vpop.permute.xlu0 %1158
      %1160 = vrot.lane.b32.xlu0 %v530, 72
      %v1161 = vpop.permute.xlu0 %1160
      %1162 = vrot.lane.b32.xlu0 %v533, 72
      %v1163 = vpop.permute.xlu0 %1162
      %1164 = vrot.lane.b32.xlu0 %v538, 72
      %v1165 = vpop.permute.xlu0 %1164
      %1166 = vrot.lane.b32.xlu0 %v541, 72
      %v1167 = vpop.permute.xlu0 %1166
      %1168 = vrot.lane.b32.xlu0 %v546, 72
      %v1169 = vpop.permute.xlu0 %1168
      %1170 = vrot.lane.b32.xlu0 %v549, 72
      %v1171 = vpop.permute.xlu0 %1170
      %1172 = vrot.lane.b32.xlu0 %v554, 72
      %v1173 = vpop.permute.xlu0 %1172
      %1174 = vrot.lane.b32.xlu0 %v557, 72
      %v1175 = vpop.permute.xlu0 %1174
      %1176 = vrot.lane.b32.xlu0 %v562, 72
      %v1177 = vpop.permute.xlu0 %1176
      %1178 = vrot.lane.b32.xlu0 %v565, 72
      %v1179 = vpop.permute.xlu0 %1178
      %1180 = vrot.lane.b32.xlu0 %v570, 72
      %v1181 = vpop.permute.xlu0 %1180
      %1182 = vrot.lane.b32.xlu0 %v573, 72
      %v1183 = vpop.permute.xlu0 %1182
      %v1200 = vpack.c.bf16 %v517, %v514
      %v1201 = vpack.c.bf16 %v525, %v522
      %v1202 = vpack.c.bf16 %v533, %v530
      %v1203 = vpack.c.bf16 %v541, %v538
      %v1204 = vpack.c.bf16 %v549, %v546
      %v1205 = vpack.c.bf16 %v557, %v554
      %v1206 = vpack.c.bf16 %v565, %v562
      %v1207 = vpack.c.bf16 %v573, %v570
      %v1208 = vpack.c.bf16 %v867, %v865
      %v1209 = vpack.c.bf16 %v871, %v869
      %v1210 = vpack.c.bf16 %v875, %v873
      %v1211 = vpack.c.bf16 %v879, %v877
      %v1212 = vpack.c.bf16 %v883, %v881
      %v1213 = vpack.c.bf16 %v887, %v885
      %v1214 = vpack.c.bf16 %v891, %v889
      %v1215 = vpack.c.bf16 %v895, %v893
      %v1216 = vpack.c.bf16 %v915, %v913
      %v1217 = vpack.c.bf16 %v919, %v917
      %v1218 = vpack.c.bf16 %v923, %v921
      %v1219 = vpack.c.bf16 %v927, %v925
      %v1220 = vpack.c.bf16 %v931, %v929
      %v1221 = vpack.c.bf16 %v935, %v933
      %v1222 = vpack.c.bf16 %v939, %v937
      %v1223 = vpack.c.bf16 %v943, %v941
      %v1224 = vpack.c.bf16 %v963, %v961
      %v1225 = vpack.c.bf16 %v967, %v965
      %v1226 = vpack.c.bf16 %v971, %v969
      %v1227 = vpack.c.bf16 %v975, %v973
      %v1228 = vpack.c.bf16 %v979, %v977
      %v1229 = vpack.c.bf16 %v983, %v981
      %v1230 = vpack.c.bf16 %v987, %v985
      %v1231 = vpack.c.bf16 %v991, %v989
      %v1232 = vpack.c.bf16 %v1011, %v1009
      %v1233 = vpack.c.bf16 %v1015, %v1013
      %v1234 = vpack.c.bf16 %v1019, %v1017
      %v1235 = vpack.c.bf16 %v1023, %v1021
      %v1236 = vpack.c.bf16 %v1027, %v1025
      %v1237 = vpack.c.bf16 %v1031, %v1029
      %v1238 = vpack.c.bf16 %v1035, %v1033
      %v1239 = vpack.c.bf16 %v1039, %v1037
      %v1240 = vpack.c.bf16 %v1059, %v1057
      %v1241 = vpack.c.bf16 %v1063, %v1061
      %v1242 = vpack.c.bf16 %v1067, %v1065
      %v1243 = vpack.c.bf16 %v1071, %v1069
      %v1244 = vpack.c.bf16 %v1075, %v1073
      %v1245 = vpack.c.bf16 %v1079, %v1077
      %v1246 = vpack.c.bf16 %v1083, %v1081
      %v1247 = vpack.c.bf16 %v1087, %v1085
      %v1248 = vpack.c.bf16 %v1107, %v1105
      %v1249 = vpack.c.bf16 %v1111, %v1109
      %v1250 = vpack.c.bf16 %v1115, %v1113
      %v1251 = vpack.c.bf16 %v1119, %v1117
      %v1252 = vpack.c.bf16 %v1123, %v1121
      %v1253 = vpack.c.bf16 %v1127, %v1125
      %v1254 = vpack.c.bf16 %v1131, %v1129
      %v1255 = vpack.c.bf16 %v1135, %v1133
      %v1256 = vpack.c.bf16 %v1155, %v1153
      %v1257 = vpack.c.bf16 %v1159, %v1157
      %v1258 = vpack.c.bf16 %v1163, %v1161
      %v1259 = vpack.c.bf16 %v1167, %v1165
      %v1260 = vpack.c.bf16 %v1171, %v1169
      %v1261 = vpack.c.bf16 %v1175, %v1173
      %v1262 = vpack.c.bf16 %v1179, %v1177
      %v1263 = vpack.c.bf16 %v1183, %v1181
      %1280 = vrot.lane.b32.xlu0 %v650, 120
      %v1281 = vpop.permute.xlu0 %1280
      %1282 = vrot.lane.b32.xlu0 %v653, 120
      %v1283 = vpop.permute.xlu0 %1282
      %1284 = vrot.lane.b32.xlu0 %v658, 120
      %v1285 = vpop.permute.xlu0 %1284
      %1286 = vrot.lane.b32.xlu0 %v661, 120
      %v1287 = vpop.permute.xlu0 %1286
      %1288 = vrot.lane.b32.xlu0 %v666, 120
      %v1289 = vpop.permute.xlu0 %1288
      %1290 = vrot.lane.b32.xlu0 %v669, 120
      %v1291 = vpop.permute.xlu0 %1290
      %1292 = vrot.lane.b32.xlu0 %v674, 120
      %v1293 = vpop.permute.xlu0 %1292
      %1294 = vrot.lane.b32.xlu0 %v677, 120
      %v1295 = vpop.permute.xlu0 %1294
      %1296 = vrot.lane.b32.xlu0 %v682, 120
      %v1297 = vpop.permute.xlu0 %1296
      %1298 = vrot.lane.b32.xlu0 %v685, 120
      %v1299 = vpop.permute.xlu0 %1298
      %1300 = vrot.lane.b32.xlu0 %v690, 120
      %v1301 = vpop.permute.xlu0 %1300
      %1302 = vrot.lane.b32.xlu0 %v693, 120
      %v1303 = vpop.permute.xlu0 %1302
      %1304 = vrot.lane.b32.xlu0 %v698, 120
      %v1305 = vpop.permute.xlu0 %1304
      %1306 = vrot.lane.b32.xlu0 %v701, 120
      %v1307 = vpop.permute.xlu0 %1306
      %1308 = vrot.lane.b32.xlu0 %v706, 120
      %v1309 = vpop.permute.xlu0 %1308
      %1310 = vrot.lane.b32.xlu0 %v709, 120
      %v1311 = vpop.permute.xlu0 %1310
      %1328 = vrot.lane.b32.xlu0 %v650, 112
      %v1329 = vpop.permute.xlu0 %1328
      %1330 = vrot.lane.b32.xlu0 %v653, 112
      %v1331 = vpop.permute.xlu0 %1330
      %1332 = vrot.lane.b32.xlu0 %v658, 112
      %v1333 = vpop.permute.xlu0 %1332
      %1334 = vrot.lane.b32.xlu0 %v661, 112
      %v1335 = vpop.permute.xlu0 %1334
      %1336 = vrot.lane.b32.xlu0 %v666, 112
      %v1337 = vpop.permute.xlu0 %1336
      %1338 = vrot.lane.b32.xlu0 %v669, 112
      %v1339 = vpop.permute.xlu0 %1338
      %1340 = vrot.lane.b32.xlu0 %v674, 112
      %v1341 = vpop.permute.xlu0 %1340
      %1342 = vrot.lane.b32.xlu0 %v677, 112
      %v1343 = vpop.permute.xlu0 %1342
      %1344 = vrot.lane.b32.xlu0 %v682, 112
      %v1345 = vpop.permute.xlu0 %1344
      %1346 = vrot.lane.b32.xlu0 %v685, 112
      %v1347 = vpop.permute.xlu0 %1346
      %1348 = vrot.lane.b32.xlu0 %v690, 112
      %v1349 = vpop.permute.xlu0 %1348
      %1350 = vrot.lane.b32.xlu0 %v693, 112
      %v1351 = vpop.permute.xlu0 %1350
      %1352 = vrot.lane.b32.xlu0 %v698, 112
      %v1353 = vpop.permute.xlu0 %1352
      %1354 = vrot.lane.b32.xlu0 %v701, 112
      %v1355 = vpop.permute.xlu0 %1354
      %1356 = vrot.lane.b32.xlu0 %v706, 112
      %v1357 = vpop.permute.xlu0 %1356
      %1358 = vrot.lane.b32.xlu0 %v709, 112
      %v1359 = vpop.permute.xlu0 %1358
      %1376 = vrot.lane.b32.xlu0 %v650, 104
      %v1377 = vpop.permute.xlu0 %1376
      %1378 = vrot.lane.b32.xlu0 %v653, 104
      %v1379 = vpop.permute.xlu0 %1378
      %1380 = vrot.lane.b32.xlu0 %v658, 104
      %v1381 = vpop.permute.xlu0 %1380
      %1382 = vrot.lane.b32.xlu0 %v661, 104
      %v1383 = vpop.permute.xlu0 %1382
      %1384 = vrot.lane.b32.xlu0 %v666, 104
      %v1385 = vpop.permute.xlu0 %1384
      %1386 = vrot.lane.b32.xlu0 %v669, 104
      %v1387 = vpop.permute.xlu0 %1386
      %1388 = vrot.lane.b32.xlu0 %v674, 104
      %v1389 = vpop.permute.xlu0 %1388
      %1390 = vrot.lane.b32.xlu0 %v677, 104
      %v1391 = vpop.permute.xlu0 %1390
      %1392 = vrot.lane.b32.xlu0 %v682, 104
      %v1393 = vpop.permute.xlu0 %1392
      %1394 = vrot.lane.b32.xlu0 %v685, 104
      %v1395 = vpop.permute.xlu0 %1394
      %1396 = vrot.lane.b32.xlu0 %v690, 104
      %v1397 = vpop.permute.xlu0 %1396
      %1398 = vrot.lane.b32.xlu0 %v693, 104
      %v1399 = vpop.permute.xlu0 %1398
      %1400 = vrot.lane.b32.xlu0 %v698, 104
      %v1401 = vpop.permute.xlu0 %1400
      %1402 = vrot.lane.b32.xlu0 %v701, 104
      %v1403 = vpop.permute.xlu0 %1402
      %1404 = vrot.lane.b32.xlu0 %v706, 104
      %v1405 = vpop.permute.xlu0 %1404
      %1406 = vrot.lane.b32.xlu0 %v709, 104
      %v1407 = vpop.permute.xlu0 %1406
      %1424 = vrot.lane.b32.xlu0 %v650, 96
      %v1425 = vpop.permute.xlu0 %1424
      %1426 = vrot.lane.b32.xlu0 %v653, 96
      %v1427 = vpop.permute.xlu0 %1426
      %1428 = vrot.lane.b32.xlu0 %v658, 96
      %v1429 = vpop.permute.xlu0 %1428
      %1430 = vrot.lane.b32.xlu0 %v661, 96
      %v1431 = vpop.permute.xlu0 %1430
      %1432 = vrot.lane.b32.xlu0 %v666, 96
      %v1433 = vpop.permute.xlu0 %1432
      %1434 = vrot.lane.b32.xlu0 %v669, 96
      %v1435 = vpop.permute.xlu0 %1434
      %1436 = vrot.lane.b32.xlu0 %v674, 96
      %v1437 = vpop.permute.xlu0 %1436
      %1438 = vrot.lane.b32.xlu0 %v677, 96
      %v1439 = vpop.permute.xlu0 %1438
      %1440 = vrot.lane.b32.xlu0 %v682, 96
      %v1441 = vpop.permute.xlu0 %1440
      %1442 = vrot.lane.b32.xlu0 %v685, 96
      %v1443 = vpop.permute.xlu0 %1442
      %1444 = vrot.lane.b32.xlu0 %v690, 96
      %v1445 = vpop.permute.xlu0 %1444
      %1446 = vrot.lane.b32.xlu0 %v693, 96
      %v1447 = vpop.permute.xlu0 %1446
      %1448 = vrot.lane.b32.xlu0 %v698, 96
      %v1449 = vpop.permute.xlu0 %1448
      %1450 = vrot.lane.b32.xlu0 %v701, 96
      %v1451 = vpop.permute.xlu0 %1450
      %1452 = vrot.lane.b32.xlu0 %v706, 96
      %v1453 = vpop.permute.xlu0 %1452
      %1454 = vrot.lane.b32.xlu0 %v709, 96
      %v1455 = vpop.permute.xlu0 %1454
      %1472 = vrot.lane.b32.xlu0 %v650, 88
      %v1473 = vpop.permute.xlu0 %1472
      %1474 = vrot.lane.b32.xlu0 %v653, 88
      %v1475 = vpop.permute.xlu0 %1474
      %1476 = vrot.lane.b32.xlu0 %v658, 88
      %v1477 = vpop.permute.xlu0 %1476
      %1478 = vrot.lane.b32.xlu0 %v661, 88
      %v1479 = vpop.permute.xlu0 %1478
      %1480 = vrot.lane.b32.xlu0 %v666, 88
      %v1481 = vpop.permute.xlu0 %1480
      %1482 = vrot.lane.b32.xlu0 %v669, 88
      %v1483 = vpop.permute.xlu0 %1482
      %1484 = vrot.lane.b32.xlu0 %v674, 88
      %v1485 = vpop.permute.xlu0 %1484
      %1486 = vrot.lane.b32.xlu0 %v677, 88
      %v1487 = vpop.permute.xlu0 %1486
      %1488 = vrot.lane.b32.xlu0 %v682, 88
      %v1489 = vpop.permute.xlu0 %1488
      %1490 = vrot.lane.b32.xlu0 %v685, 88
      %v1491 = vpop.permute.xlu0 %1490
      %1492 = vrot.lane.b32.xlu0 %v690, 88
      %v1493 = vpop.permute.xlu0 %1492
      %1494 = vrot.lane.b32.xlu0 %v693, 88
      %v1495 = vpop.permute.xlu0 %1494
      %1496 = vrot.lane.b32.xlu0 %v698, 88
      %v1497 = vpop.permute.xlu0 %1496
      %1498 = vrot.lane.b32.xlu0 %v701, 88
      %v1499 = vpop.permute.xlu0 %1498
      %1500 = vrot.lane.b32.xlu0 %v706, 88
      %v1501 = vpop.permute.xlu0 %1500
      %1502 = vrot.lane.b32.xlu0 %v709, 88
      %v1503 = vpop.permute.xlu0 %1502
      %1520 = vrot.lane.b32.xlu0 %v650, 80
      %v1521 = vpop.permute.xlu0 %1520
      %1522 = vrot.lane.b32.xlu0 %v653, 80
      %v1523 = vpop.permute.xlu0 %1522
      %1524 = vrot.lane.b32.xlu0 %v658, 80
      %v1525 = vpop.permute.xlu0 %1524
      %1526 = vrot.lane.b32.xlu0 %v661, 80
      %v1527 = vpop.permute.xlu0 %1526
      %1528 = vrot.lane.b32.xlu0 %v666, 80
      %v1529 = vpop.permute.xlu0 %1528
      %1530 = vrot.lane.b32.xlu0 %v669, 80
      %v1531 = vpop.permute.xlu0 %1530
      %1532 = vrot.lane.b32.xlu0 %v674, 80
      %v1533 = vpop.permute.xlu0 %1532
      %1534 = vrot.lane.b32.xlu0 %v677, 80
      %v1535 = vpop.permute.xlu0 %1534
      %1536 = vrot.lane.b32.xlu0 %v682, 80
      %v1537 = vpop.permute.xlu0 %1536
      %1538 = vrot.lane.b32.xlu0 %v685, 80
      %v1539 = vpop.permute.xlu0 %1538
      %1540 = vrot.lane.b32.xlu0 %v690, 80
      %v1541 = vpop.permute.xlu0 %1540
      %1542 = vrot.lane.b32.xlu0 %v693, 80
      %v1543 = vpop.permute.xlu0 %1542
      %1544 = vrot.lane.b32.xlu0 %v698, 80
      %v1545 = vpop.permute.xlu0 %1544
      %1546 = vrot.lane.b32.xlu0 %v701, 80
      %v1547 = vpop.permute.xlu0 %1546
      %1548 = vrot.lane.b32.xlu0 %v706, 80
      %v1549 = vpop.permute.xlu0 %1548
      %1550 = vrot.lane.b32.xlu0 %v709, 80
      %v1551 = vpop.permute.xlu0 %1550
      %1568 = vrot.lane.b32.xlu0 %v650, 72
      %v1569 = vpop.permute.xlu0 %1568
      %1570 = vrot.lane.b32.xlu0 %v653, 72
      %v1571 = vpop.permute.xlu0 %1570
      %1572 = vrot.lane.b32.xlu0 %v658, 72
      %v1573 = vpop.permute.xlu0 %1572
      %1574 = vrot.lane.b32.xlu0 %v661, 72
      %v1575 = vpop.permute.xlu0 %1574
      %1576 = vrot.lane.b32.xlu0 %v666, 72
      %v1577 = vpop.permute.xlu0 %1576
      %1578 = vrot.lane.b32.xlu0 %v669, 72
      %v1579 = vpop.permute.xlu0 %1578
      %1580 = vrot.lane.b32.xlu0 %v674, 72
      %v1581 = vpop.permute.xlu0 %1580
      %1582 = vrot.lane.b32.xlu0 %v677, 72
      %v1583 = vpop.permute.xlu0 %1582
      %1584 = vrot.lane.b32.xlu0 %v682, 72
      %v1585 = vpop.permute.xlu0 %1584
      %1586 = vrot.lane.b32.xlu0 %v685, 72
      %v1587 = vpop.permute.xlu0 %1586
      %1588 = vrot.lane.b32.xlu0 %v690, 72
      %v1589 = vpop.permute.xlu0 %1588
      %1590 = vrot.lane.b32.xlu0 %v693, 72
      %v1591 = vpop.permute.xlu0 %1590
      %1592 = vrot.lane.b32.xlu0 %v698, 72
      %v1593 = vpop.permute.xlu0 %1592
      %1594 = vrot.lane.b32.xlu0 %v701, 72
      %v1595 = vpop.permute.xlu0 %1594
      %1596 = vrot.lane.b32.xlu0 %v706, 72
      %v1597 = vpop.permute.xlu0 %1596
      %1598 = vrot.lane.b32.xlu0 %v709, 72
      %v1599 = vpop.permute.xlu0 %1598
      %v1616 = vpack.c.bf16 %v653, %v650
      %v1617 = vpack.c.bf16 %v661, %v658
      %v1618 = vpack.c.bf16 %v669, %v666
      %v1619 = vpack.c.bf16 %v677, %v674
      %v1620 = vpack.c.bf16 %v685, %v682
      %v1621 = vpack.c.bf16 %v693, %v690
      %v1622 = vpack.c.bf16 %v701, %v698
      %v1623 = vpack.c.bf16 %v709, %v706
      %v1624 = vpack.c.bf16 %v1283, %v1281
      %v1625 = vpack.c.bf16 %v1287, %v1285
      %v1626 = vpack.c.bf16 %v1291, %v1289
      %v1627 = vpack.c.bf16 %v1295, %v1293
      %v1628 = vpack.c.bf16 %v1299, %v1297
      %v1629 = vpack.c.bf16 %v1303, %v1301
      %v1630 = vpack.c.bf16 %v1307, %v1305
      %v1631 = vpack.c.bf16 %v1311, %v1309
      %v1632 = vpack.c.bf16 %v1331, %v1329
      %v1633 = vpack.c.bf16 %v1335, %v1333
      %v1634 = vpack.c.bf16 %v1339, %v1337
      %v1635 = vpack.c.bf16 %v1343, %v1341
      %v1636 = vpack.c.bf16 %v1347, %v1345
      %v1637 = vpack.c.bf16 %v1351, %v1349
      %v1638 = vpack.c.bf16 %v1355, %v1353
      %v1639 = vpack.c.bf16 %v1359, %v1357
      %v1640 = vpack.c.bf16 %v1379, %v1377
      %v1641 = vpack.c.bf16 %v1383, %v1381
      %v1642 = vpack.c.bf16 %v1387, %v1385
      %v1643 = vpack.c.bf16 %v1391, %v1389
      %v1644 = vpack.c.bf16 %v1395, %v1393
      %v1645 = vpack.c.bf16 %v1399, %v1397
      %v1646 = vpack.c.bf16 %v1403, %v1401
      %v1647 = vpack.c.bf16 %v1407, %v1405
      %v1648 = vpack.c.bf16 %v1427, %v1425
      %v1649 = vpack.c.bf16 %v1431, %v1429
      %v1650 = vpack.c.bf16 %v1435, %v1433
      %v1651 = vpack.c.bf16 %v1439, %v1437
      %v1652 = vpack.c.bf16 %v1443, %v1441
      %v1653 = vpack.c.bf16 %v1447, %v1445
      %v1654 = vpack.c.bf16 %v1451, %v1449
      %v1655 = vpack.c.bf16 %v1455, %v1453
      %v1656 = vpack.c.bf16 %v1475, %v1473
      %v1657 = vpack.c.bf16 %v1479, %v1477
      %v1658 = vpack.c.bf16 %v1483, %v1481
      %v1659 = vpack.c.bf16 %v1487, %v1485
      %v1660 = vpack.c.bf16 %v1491, %v1489
      %v1661 = vpack.c.bf16 %v1495, %v1493
      %v1662 = vpack.c.bf16 %v1499, %v1497
      %v1663 = vpack.c.bf16 %v1503, %v1501
      %v1664 = vpack.c.bf16 %v1523, %v1521
      %v1665 = vpack.c.bf16 %v1527, %v1525
      %v1666 = vpack.c.bf16 %v1531, %v1529
      %v1667 = vpack.c.bf16 %v1535, %v1533
      %v1668 = vpack.c.bf16 %v1539, %v1537
      %v1669 = vpack.c.bf16 %v1543, %v1541
      %v1670 = vpack.c.bf16 %v1547, %v1545
      %v1671 = vpack.c.bf16 %v1551, %v1549
      %v1672 = vpack.c.bf16 %v1571, %v1569
      %v1673 = vpack.c.bf16 %v1575, %v1573
      %v1674 = vpack.c.bf16 %v1579, %v1577
      %v1675 = vpack.c.bf16 %v1583, %v1581
      %v1676 = vpack.c.bf16 %v1587, %v1585
      %v1677 = vpack.c.bf16 %v1591, %v1589
      %v1678 = vpack.c.bf16 %v1595, %v1593
      %v1679 = vpack.c.bf16 %v1599, %v1597
      %1696 = vrot.lane.b32.xlu0 %v786, 120
      %v1697 = vpop.permute.xlu0 %1696
      %1698 = vrot.lane.b32.xlu0 %v789, 120
      %v1699 = vpop.permute.xlu0 %1698
      %1700 = vrot.lane.b32.xlu0 %v794, 120
      %v1701 = vpop.permute.xlu0 %1700
      %1702 = vrot.lane.b32.xlu0 %v797, 120
      %v1703 = vpop.permute.xlu0 %1702
      %1704 = vrot.lane.b32.xlu0 %v802, 120
      %v1705 = vpop.permute.xlu0 %1704
      %1706 = vrot.lane.b32.xlu0 %v805, 120
      %v1707 = vpop.permute.xlu0 %1706
      %1708 = vrot.lane.b32.xlu0 %v810, 120
      %v1709 = vpop.permute.xlu0 %1708
      %1710 = vrot.lane.b32.xlu0 %v813, 120
      %v1711 = vpop.permute.xlu0 %1710
      %1712 = vrot.lane.b32.xlu0 %v818, 120
      %v1713 = vpop.permute.xlu0 %1712
      %1714 = vrot.lane.b32.xlu0 %v821, 120
      %v1715 = vpop.permute.xlu0 %1714
      %1716 = vrot.lane.b32.xlu0 %v826, 120
      %v1717 = vpop.permute.xlu0 %1716
      %1718 = vrot.lane.b32.xlu0 %v829, 120
      %v1719 = vpop.permute.xlu0 %1718
      %1720 = vrot.lane.b32.xlu0 %v834, 120
      %v1721 = vpop.permute.xlu0 %1720
      %1722 = vrot.lane.b32.xlu0 %v837, 120
      %v1723 = vpop.permute.xlu0 %1722
      %1724 = vrot.lane.b32.xlu0 %v842, 120
      %v1725 = vpop.permute.xlu0 %1724
      %1726 = vrot.lane.b32.xlu0 %v845, 120
      %v1727 = vpop.permute.xlu0 %1726
      %1744 = vrot.lane.b32.xlu0 %v786, 112
      %v1745 = vpop.permute.xlu0 %1744
      %1746 = vrot.lane.b32.xlu0 %v789, 112
      %v1747 = vpop.permute.xlu0 %1746
      %1748 = vrot.lane.b32.xlu0 %v794, 112
      %v1749 = vpop.permute.xlu0 %1748
      %1750 = vrot.lane.b32.xlu0 %v797, 112
      %v1751 = vpop.permute.xlu0 %1750
      %1752 = vrot.lane.b32.xlu0 %v802, 112
      %v1753 = vpop.permute.xlu0 %1752
      %1754 = vrot.lane.b32.xlu0 %v805, 112
      %v1755 = vpop.permute.xlu0 %1754
      %1756 = vrot.lane.b32.xlu0 %v810, 112
      %v1757 = vpop.permute.xlu0 %1756
      %1758 = vrot.lane.b32.xlu0 %v813, 112
      %v1759 = vpop.permute.xlu0 %1758
      %1760 = vrot.lane.b32.xlu0 %v818, 112
      %v1761 = vpop.permute.xlu0 %1760
      %1762 = vrot.lane.b32.xlu0 %v821, 112
      %v1763 = vpop.permute.xlu0 %1762
      %1764 = vrot.lane.b32.xlu0 %v826, 112
      %v1765 = vpop.permute.xlu0 %1764
      %1766 = vrot.lane.b32.xlu0 %v829, 112
      %v1767 = vpop.permute.xlu0 %1766
      %1768 = vrot.lane.b32.xlu0 %v834, 112
      %v1769 = vpop.permute.xlu0 %1768
      %1770 = vrot.lane.b32.xlu0 %v837, 112
      %v1771 = vpop.permute.xlu0 %1770
      %1772 = vrot.lane.b32.xlu0 %v842, 112
      %v1773 = vpop.permute.xlu0 %1772
      %1774 = vrot.lane.b32.xlu0 %v845, 112
      %v1775 = vpop.permute.xlu0 %1774
      %1792 = vrot.lane.b32.xlu0 %v786, 104
      %v1793 = vpop.permute.xlu0 %1792
      %1794 = vrot.lane.b32.xlu0 %v789, 104
      %v1795 = vpop.permute.xlu0 %1794
      %1796 = vrot.lane.b32.xlu0 %v794, 104
      %v1797 = vpop.permute.xlu0 %1796
      %1798 = vrot.lane.b32.xlu0 %v797, 104
      %v1799 = vpop.permute.xlu0 %1798
      %1800 = vrot.lane.b32.xlu0 %v802, 104
      %v1801 = vpop.permute.xlu0 %1800
      %1802 = vrot.lane.b32.xlu0 %v805, 104
      %v1803 = vpop.permute.xlu0 %1802
      %1804 = vrot.lane.b32.xlu0 %v810, 104
      %v1805 = vpop.permute.xlu0 %1804
      %1806 = vrot.lane.b32.xlu0 %v813, 104
      %v1807 = vpop.permute.xlu0 %1806
      %1808 = vrot.lane.b32.xlu0 %v818, 104
      %v1809 = vpop.permute.xlu0 %1808
      %1810 = vrot.lane.b32.xlu0 %v821, 104
      %v1811 = vpop.permute.xlu0 %1810
      %1812 = vrot.lane.b32.xlu0 %v826, 104
      %v1813 = vpop.permute.xlu0 %1812
      %1814 = vrot.lane.b32.xlu0 %v829, 104
      %v1815 = vpop.permute.xlu0 %1814
      %1816 = vrot.lane.b32.xlu0 %v834, 104
      %v1817 = vpop.permute.xlu0 %1816
      %1818 = vrot.lane.b32.xlu0 %v837, 104
      %v1819 = vpop.permute.xlu0 %1818
      %1820 = vrot.lane.b32.xlu0 %v842, 104
      %v1821 = vpop.permute.xlu0 %1820
      %1822 = vrot.lane.b32.xlu0 %v845, 104
      %v1823 = vpop.permute.xlu0 %1822
      %1840 = vrot.lane.b32.xlu0 %v786, 96
      %v1841 = vpop.permute.xlu0 %1840
      %1842 = vrot.lane.b32.xlu0 %v789, 96
      %v1843 = vpop.permute.xlu0 %1842
      %1844 = vrot.lane.b32.xlu0 %v794, 96
      %v1845 = vpop.permute.xlu0 %1844
      %1846 = vrot.lane.b32.xlu0 %v797, 96
      %v1847 = vpop.permute.xlu0 %1846
      %1848 = vrot.lane.b32.xlu0 %v802, 96
      %v1849 = vpop.permute.xlu0 %1848
      %1850 = vrot.lane.b32.xlu0 %v805, 96
      %v1851 = vpop.permute.xlu0 %1850
      %1852 = vrot.lane.b32.xlu0 %v810, 96
      %v1853 = vpop.permute.xlu0 %1852
      %1854 = vrot.lane.b32.xlu0 %v813, 96
      %v1855 = vpop.permute.xlu0 %1854
      %1856 = vrot.lane.b32.xlu0 %v818, 96
      %v1857 = vpop.permute.xlu0 %1856
      %1858 = vrot.lane.b32.xlu0 %v821, 96
      %v1859 = vpop.permute.xlu0 %1858
      %1860 = vrot.lane.b32.xlu0 %v826, 96
      %v1861 = vpop.permute.xlu0 %1860
      %1862 = vrot.lane.b32.xlu0 %v829, 96
      %v1863 = vpop.permute.xlu0 %1862
      %1864 = vrot.lane.b32.xlu0 %v834, 96
      %v1865 = vpop.permute.xlu0 %1864
      %1866 = vrot.lane.b32.xlu0 %v837, 96
      %v1867 = vpop.permute.xlu0 %1866
      %1868 = vrot.lane.b32.xlu0 %v842, 96
      %v1869 = vpop.permute.xlu0 %1868
      %1870 = vrot.lane.b32.xlu0 %v845, 96
      %v1871 = vpop.permute.xlu0 %1870
      %1888 = vrot.lane.b32.xlu0 %v786, 88
      %v1889 = vpop.permute.xlu0 %1888
      %1890 = vrot.lane.b32.xlu0 %v789, 88
      %v1891 = vpop.permute.xlu0 %1890
      %1892 = vrot.lane.b32.xlu0 %v794, 88
      %v1893 = vpop.permute.xlu0 %1892
      %1894 = vrot.lane.b32.xlu0 %v797, 88
      %v1895 = vpop.permute.xlu0 %1894
      %1896 = vrot.lane.b32.xlu0 %v802, 88
      %v1897 = vpop.permute.xlu0 %1896
      %1898 = vrot.lane.b32.xlu0 %v805, 88
      %v1899 = vpop.permute.xlu0 %1898
      %1900 = vrot.lane.b32.xlu0 %v810, 88
      %v1901 = vpop.permute.xlu0 %1900
      %1902 = vrot.lane.b32.xlu0 %v813, 88
      %v1903 = vpop.permute.xlu0 %1902
      %1904 = vrot.lane.b32.xlu0 %v818, 88
      %v1905 = vpop.permute.xlu0 %1904
      %1906 = vrot.lane.b32.xlu0 %v821, 88
      %v1907 = vpop.permute.xlu0 %1906
      %1908 = vrot.lane.b32.xlu0 %v826, 88
      %v1909 = vpop.permute.xlu0 %1908
      %1910 = vrot.lane.b32.xlu0 %v829, 88
      %v1911 = vpop.permute.xlu0 %1910
      %1912 = vrot.lane.b32.xlu0 %v834, 88
      %v1913 = vpop.permute.xlu0 %1912
      %1914 = vrot.lane.b32.xlu0 %v837, 88
      %v1915 = vpop.permute.xlu0 %1914
      %1916 = vrot.lane.b32.xlu0 %v842, 88
      %v1917 = vpop.permute.xlu0 %1916
      %1918 = vrot.lane.b32.xlu0 %v845, 88
      %v1919 = vpop.permute.xlu0 %1918
      %1936 = vrot.lane.b32.xlu0 %v786, 80
      %v1937 = vpop.permute.xlu0 %1936
      %1938 = vrot.lane.b32.xlu0 %v789, 80
      %v1939 = vpop.permute.xlu0 %1938
      %1940 = vrot.lane.b32.xlu0 %v794, 80
      %v1941 = vpop.permute.xlu0 %1940
      %1942 = vrot.lane.b32.xlu0 %v797, 80
      %v1943 = vpop.permute.xlu0 %1942
      %1944 = vrot.lane.b32.xlu0 %v802, 80
      %v1945 = vpop.permute.xlu0 %1944
      %1946 = vrot.lane.b32.xlu0 %v805, 80
      %v1947 = vpop.permute.xlu0 %1946
      %1948 = vrot.lane.b32.xlu0 %v810, 80
      %v1949 = vpop.permute.xlu0 %1948
      %1950 = vrot.lane.b32.xlu0 %v813, 80
      %v1951 = vpop.permute.xlu0 %1950
      %1952 = vrot.lane.b32.xlu0 %v818, 80
      %v1953 = vpop.permute.xlu0 %1952
      %1954 = vrot.lane.b32.xlu0 %v821, 80
      %v1955 = vpop.permute.xlu0 %1954
      %1956 = vrot.lane.b32.xlu0 %v826, 80
      %v1957 = vpop.permute.xlu0 %1956
      %1958 = vrot.lane.b32.xlu0 %v829, 80
      %v1959 = vpop.permute.xlu0 %1958
      %1960 = vrot.lane.b32.xlu0 %v834, 80
      %v1961 = vpop.permute.xlu0 %1960
      %1962 = vrot.lane.b32.xlu0 %v837, 80
      %v1963 = vpop.permute.xlu0 %1962
      %1964 = vrot.lane.b32.xlu0 %v842, 80
      %v1965 = vpop.permute.xlu0 %1964
      %1966 = vrot.lane.b32.xlu0 %v845, 80
      %v1967 = vpop.permute.xlu0 %1966
      %1984 = vrot.lane.b32.xlu0 %v786, 72
      %v1985 = vpop.permute.xlu0 %1984
      %1986 = vrot.lane.b32.xlu0 %v789, 72
      %v1987 = vpop.permute.xlu0 %1986
      %1988 = vrot.lane.b32.xlu0 %v794, 72
      %v1989 = vpop.permute.xlu0 %1988
      %1990 = vrot.lane.b32.xlu0 %v797, 72
      %v1991 = vpop.permute.xlu0 %1990
      %1992 = vrot.lane.b32.xlu0 %v802, 72
      %v1993 = vpop.permute.xlu0 %1992
      %1994 = vrot.lane.b32.xlu0 %v805, 72
      %v1995 = vpop.permute.xlu0 %1994
      %1996 = vrot.lane.b32.xlu0 %v810, 72
      %v1997 = vpop.permute.xlu0 %1996
      %1998 = vrot.lane.b32.xlu0 %v813, 72
      %v1999 = vpop.permute.xlu0 %1998
      %2000 = vrot.lane.b32.xlu0 %v818, 72
      %v2001 = vpop.permute.xlu0 %2000
      %2002 = vrot.lane.b32.xlu0 %v821, 72
      %v2003 = vpop.permute.xlu0 %2002
      %2004 = vrot.lane.b32.xlu0 %v826, 72
      %v2005 = vpop.permute.xlu0 %2004
      %2006 = vrot.lane.b32.xlu0 %v829, 72
      %v2007 = vpop.permute.xlu0 %2006
      %2008 = vrot.lane.b32.xlu0 %v834, 72
      %v2009 = vpop.permute.xlu0 %2008
      %2010 = vrot.lane.b32.xlu0 %v837, 72
      %v2011 = vpop.permute.xlu0 %2010
      %2012 = vrot.lane.b32.xlu0 %v842, 72
      %v2013 = vpop.permute.xlu0 %2012
      %2014 = vrot.lane.b32.xlu0 %v845, 72
      %v2015 = vpop.permute.xlu0 %2014
      %v2032 = vpack.c.bf16 %v789, %v786
      %v2033 = vpack.c.bf16 %v797, %v794
      %v2034 = vpack.c.bf16 %v805, %v802
      %v2035 = vpack.c.bf16 %v813, %v810
      %v2036 = vpack.c.bf16 %v821, %v818
      %v2037 = vpack.c.bf16 %v829, %v826
      %v2038 = vpack.c.bf16 %v837, %v834
      %v2039 = vpack.c.bf16 %v845, %v842
      %v2040 = vpack.c.bf16 %v1699, %v1697
      %v2041 = vpack.c.bf16 %v1703, %v1701
      %v2042 = vpack.c.bf16 %v1707, %v1705
      %v2043 = vpack.c.bf16 %v1711, %v1709
      %v2044 = vpack.c.bf16 %v1715, %v1713
      %v2045 = vpack.c.bf16 %v1719, %v1717
      %v2046 = vpack.c.bf16 %v1723, %v1721
      %v2047 = vpack.c.bf16 %v1727, %v1725
      %v2048 = vpack.c.bf16 %v1747, %v1745
      %v2049 = vpack.c.bf16 %v1751, %v1749
      %v2050 = vpack.c.bf16 %v1755, %v1753
      %v2051 = vpack.c.bf16 %v1759, %v1757
      %v2052 = vpack.c.bf16 %v1763, %v1761
      %v2053 = vpack.c.bf16 %v1767, %v1765
      %v2054 = vpack.c.bf16 %v1771, %v1769
      %v2055 = vpack.c.bf16 %v1775, %v1773
      %v2056 = vpack.c.bf16 %v1795, %v1793
      %v2057 = vpack.c.bf16 %v1799, %v1797
      %v2058 = vpack.c.bf16 %v1803, %v1801
      %v2059 = vpack.c.bf16 %v1807, %v1805
      %v2060 = vpack.c.bf16 %v1811, %v1809
      %v2061 = vpack.c.bf16 %v1815, %v1813
      %v2062 = vpack.c.bf16 %v1819, %v1817
      %v2063 = vpack.c.bf16 %v1823, %v1821
      %v2064 = vpack.c.bf16 %v1843, %v1841
      %v2065 = vpack.c.bf16 %v1847, %v1845
      %v2066 = vpack.c.bf16 %v1851, %v1849
      %v2067 = vpack.c.bf16 %v1855, %v1853
      %v2068 = vpack.c.bf16 %v1859, %v1857
      %v2069 = vpack.c.bf16 %v1863, %v1861
      %v2070 = vpack.c.bf16 %v1867, %v1865
      %v2071 = vpack.c.bf16 %v1871, %v1869
      %v2072 = vpack.c.bf16 %v1891, %v1889
      %v2073 = vpack.c.bf16 %v1895, %v1893
      %v2074 = vpack.c.bf16 %v1899, %v1897
      %v2075 = vpack.c.bf16 %v1903, %v1901
      %v2076 = vpack.c.bf16 %v1907, %v1905
      %v2077 = vpack.c.bf16 %v1911, %v1909
      %v2078 = vpack.c.bf16 %v1915, %v1913
      %v2079 = vpack.c.bf16 %v1919, %v1917
      %v2080 = vpack.c.bf16 %v1939, %v1937
      %v2081 = vpack.c.bf16 %v1943, %v1941
      %v2082 = vpack.c.bf16 %v1947, %v1945
      %v2083 = vpack.c.bf16 %v1951, %v1949
      %v2084 = vpack.c.bf16 %v1955, %v1953
      %v2085 = vpack.c.bf16 %v1959, %v1957
      %v2086 = vpack.c.bf16 %v1963, %v1961
      %v2087 = vpack.c.bf16 %v1967, %v1965
      %v2088 = vpack.c.bf16 %v1987, %v1985
      %v2089 = vpack.c.bf16 %v1991, %v1989
      %v2090 = vpack.c.bf16 %v1995, %v1993
      %v2091 = vpack.c.bf16 %v1999, %v1997
      %v2092 = vpack.c.bf16 %v2003, %v2001
      %v2093 = vpack.c.bf16 %v2007, %v2005
      %v2094 = vpack.c.bf16 %v2011, %v2009
      %v2095 = vpack.c.bf16 %v2015, %v2013
      %vm2096 = vcmask 64512
      %v2098 = vsel %vm2096, %v1200, 0
      %v2101 = vsel %vm2096, %v1616, 0
      %2103 = vmatprep.subr.bf16.mxu0 0
      %2104 = vmatpush1.bf16.xpose.msra.mxu0 %v2101
      %2105 = vmatprep.subr.bf16.mxu0 0
      %2106 = vmatpush1.bf16.xpose.msra.mxu0 0
      %2107 = vmatprep.subr.bf16.mxu0 0
      %2108 = vmatpush1.bf16.xpose.msra.mxu0 0
      %2109 = vmatprep.subr.bf16.mxu0 0
      %2110 = vmatpush1.bf16.xpose.msra.mxu0 0
      %2111 = vmatprep.subr.bf16.mxu0 0
      %2112 = vmatpush1.bf16.xpose.msra.mxu0 0
      %2113 = vmatprep.subr.bf16.mxu0 0
      %2114 = vmatpush1.bf16.xpose.msra.mxu0 0
      %2115 = vmatprep.subr.bf16.mxu0 0
      %2116 = vmatpush1.bf16.xpose.msra.mxu0 0
      %2117 = vmatprep.subr.bf16.mxu0 0
      %2118 = vmatpush1.bf16.xpose.msra.mxu0 0
      %2119 = vmatprep.subr.bf16.mxu0 0
      %2120 = vmatpush1.bf16.xpose.msra.mxu0 0
      %2121 = vmatprep.subr.bf16.mxu0 0
      %2122 = vmatpush1.bf16.xpose.msra.mxu0 0
      %2123 = vmatprep.subr.bf16.mxu0 0
      %2124 = vmatpush1.bf16.xpose.msra.mxu0 0
      %2125 = vmatprep.subr.bf16.mxu0 0
      %2126 = vmatpush1.bf16.xpose.msra.mxu0 0
      %2127 = vmatprep.subr.bf16.mxu0 0
      %2128 = vmatpush1.bf16.xpose.msra.mxu0 0
      %2129 = vmatprep.subr.bf16.mxu0 0
      %2130 = vmatpush1.bf16.xpose.msra.mxu0 0
      %2131 = vmatprep.subr.bf16.mxu0 0
      %2132 = vmatpush1.bf16.xpose.msra.mxu0 0
      %2133 = vmatprep.subr.bf16.mxu0 0
      %2134 = vmatpush1.bf16.xpose.msra.mxu0 0
      %2135 = vmatprep.mubr.bf16.mxu0 0
      %2136 = vmatmul.mubr.bf16.gmra.mrb[0].mxu0 %v2098
      %v2137 = vpop.f32.mrb[0].mxu0
      %v2138 = vadd.f32 0.0, %v2137
      %v2139 = vpop.f32.mrb[0].mxu0
      %v2140 = vpop.f32.mrb[0].mxu0
      %v2141 = vadd.f32 0.0, %v2140
      %v2142 = vpop.f32.mrb[0].mxu0
      %2143 = vdwg.mxu0
      %v2145 = vsel %vm2096, %v1201, 0
      %v2148 = vsel %vm2096, %v1617, 0
      %2150 = vmatprep.subr.bf16.mxu0 0
      %2151 = vmatpush1.bf16.xpose.msra.mxu0 %v2148
      %2152 = vmatprep.subr.bf16.mxu0 0
      %2153 = vmatpush1.bf16.xpose.msra.mxu0 0
      %2154 = vmatprep.subr.bf16.mxu0 0
      %2155 = vmatpush1.bf16.xpose.msra.mxu0 0
      %2156 = vmatprep.subr.bf16.mxu0 0
      %2157 = vmatpush1.bf16.xpose.msra.mxu0 0
      %2158 = vmatprep.subr.bf16.mxu0 0
      %2159 = vmatpush1.bf16.xpose.msra.mxu0 0
      %2160 = vmatprep.subr.bf16.mxu0 0
      %2161 = vmatpush1.bf16.xpose.msra.mxu0 0
      %2162 = vmatprep.subr.bf16.mxu0 0
      %2163 = vmatpush1.bf16.xpose.msra.mxu0 0
      %2164 = vmatprep.subr.bf16.mxu0 0
      %2165 = vmatpush1.bf16.xpose.msra.mxu0 0
      %2166 = vmatprep.subr.bf16.mxu0 0
      %2167 = vmatpush1.bf16.xpose.msra.mxu0 0
      %2168 = vmatprep.subr.bf16.mxu0 0
      %2169 = vmatpush1.bf16.xpose.msra.mxu0 0
      %2170 = vmatprep.subr.bf16.mxu0 0
      %2171 = vmatpush1.bf16.xpose.msra.mxu0 0
      %2172 = vmatprep.subr.bf16.mxu0 0
      %2173 = vmatpush1.bf16.xpose.msra.mxu0 0
      %2174 = vmatprep.subr.bf16.mxu0 0
      %2175 = vmatpush1.bf16.xpose.msra.mxu0 0
      %2176 = vmatprep.subr.bf16.mxu0 0
      %2177 = vmatpush1.bf16.xpose.msra.mxu0 0
      %2178 = vmatprep.subr.bf16.mxu0 0
      %2179 = vmatpush1.bf16.xpose.msra.mxu0 0
      %2180 = vmatprep.subr.bf16.mxu0 0
      %2181 = vmatpush1.bf16.xpose.msra.mxu0 0
      %2182 = vmatprep.mubr.bf16.mxu0 0
      %2183 = vmatmul.mubr.bf16.gmra.mrb[0].mxu0 %v2145
      %v2184 = vpop.f32.mrb[0].mxu0
      %v2185 = vadd.f32 0.0, %v2184
      %v2186 = vpop.f32.mrb[0].mxu0
      %v2187 = vpop.f32.mrb[0].mxu0
      %v2188 = vadd.f32 0.0, %v2187
      %v2189 = vpop.f32.mrb[0].mxu0
      %2190 = vdwg.mxu0
      %v2192 = vsel %vm2096, %v1202, 0
      %v2195 = vsel %vm2096, %v1618, 0
      %2197 = vmatprep.subr.bf16.mxu0 0
      %2198 = vmatpush1.bf16.xpose.msra.mxu0 %v2195
      %2199 = vmatprep.subr.bf16.mxu0 0
      %2200 = vmatpush1.bf16.xpose.msra.mxu0 0
      %2201 = vmatprep.subr.bf16.mxu0 0
      %2202 = vmatpush1.bf16.xpose.msra.mxu0 0
      %2203 = vmatprep.subr.bf16.mxu0 0
      %2204 = vmatpush1.bf16.xpose.msra.mxu0 0
      %2205 = vmatprep.subr.bf16.mxu0 0
      %2206 = vmatpush1.bf16.xpose.msra.mxu0 0
      %2207 = vmatprep.subr.bf16.mxu0 0
      %2208 = vmatpush1.bf16.xpose.msra.mxu0 0
      %2209 = vmatprep.subr.bf16.mxu0 0
      %2210 = vmatpush1.bf16.xpose.msra.mxu0 0
      %2211 = vmatprep.subr.bf16.mxu0 0
      %2212 = vmatpush1.bf16.xpose.msra.mxu0 0
      %2213 = vmatprep.subr.bf16.mxu0 0
      %2214 = vmatpush1.bf16.xpose.msra.mxu0 0
      %2215 = vmatprep.subr.bf16.mxu0 0
      %2216 = vmatpush1.bf16.xpose.msra.mxu0 0
      %2217 = vmatprep.subr.bf16.mxu0 0
      %2218 = vmatpush1.bf16.xpose.msra.mxu0 0
      %2219 = vmatprep.subr.bf16.mxu0 0
      %2220 = vmatpush1.bf16.xpose.msra.mxu0 0
      %2221 = vmatprep.subr.bf16.mxu0 0
      %2222 = vmatpush1.bf16.xpose.msra.mxu0 0
      %2223 = vmatprep.subr.bf16.mxu0 0
      %2224 = vmatpush1.bf16.xpose.msra.mxu0 0
      %2225 = vmatprep.subr.bf16.mxu0 0
      %2226 = vmatpush1.bf16.xpose.msra.mxu0 0
      %2227 = vmatprep.subr.bf16.mxu0 0
      %2228 = vmatpush1.bf16.xpose.msra.mxu0 0
      %2229 = vmatprep.mubr.bf16.mxu0 0
      %2230 = vmatmul.mubr.bf16.gmra.mrb[0].mxu0 %v2192
      %v2231 = vpop.f32.mrb[0].mxu0
      %v2232 = vadd.f32 0.0, %v2231
      %v2233 = vpop.f32.mrb[0].mxu0
      %v2234 = vpop.f32.mrb[0].mxu0
      %v2235 = vadd.f32 0.0, %v2234
      %v2236 = vpop.f32.mrb[0].mxu0
      %2237 = vdwg.mxu0
      %v2239 = vsel %vm2096, %v1203, 0
      %v2242 = vsel %vm2096, %v1619, 0
      %2244 = vmatprep.subr.bf16.mxu0 0
      %2245 = vmatpush1.bf16.xpose.msra.mxu0 %v2242
      %2246 = vmatprep.subr.bf16.mxu0 0
      %2247 = vmatpush1.bf16.xpose.msra.mxu0 0
      %2248 = vmatprep.subr.bf16.mxu0 0
      %2249 = vmatpush1.bf16.xpose.msra.mxu0 0
      %2250 = vmatprep.subr.bf16.mxu0 0
      %2251 = vmatpush1.bf16.xpose.msra.mxu0 0
      %2252 = vmatprep.subr.bf16.mxu0 0
      %2253 = vmatpush1.bf16.xpose.msra.mxu0 0
      %2254 = vmatprep.subr.bf16.mxu0 0
      %2255 = vmatpush1.bf16.xpose.msra.mxu0 0
      %2256 = vmatprep.subr.bf16.mxu0 0
      %2257 = vmatpush1.bf16.xpose.msra.mxu0 0
      %2258 = vmatprep.subr.bf16.mxu0 0
      %2259 = vmatpush1.bf16.xpose.msra.mxu0 0
      %2260 = vmatprep.subr.bf16.mxu0 0
      %2261 = vmatpush1.bf16.xpose.msra.mxu0 0
      %2262 = vmatprep.subr.bf16.mxu0 0
      %2263 = vmatpush1.bf16.xpose.msra.mxu0 0
      %2264 = vmatprep.subr.bf16.mxu0 0
      %2265 = vmatpush1.bf16.xpose.msra.mxu0 0
      %2266 = vmatprep.subr.bf16.mxu0 0
      %2267 = vmatpush1.bf16.xpose.msra.mxu0 0
      %2268 = vmatprep.subr.bf16.mxu0 0
      %2269 = vmatpush1.bf16.xpose.msra.mxu0 0
      %2270 = vmatprep.subr.bf16.mxu0 0
      %2271 = vmatpush1.bf16.xpose.msra.mxu0 0
      %2272 = vmatprep.subr.bf16.mxu0 0
      %2273 = vmatpush1.bf16.xpose.msra.mxu0 0
      %2274 = vmatprep.subr.bf16.mxu0 0
      %2275 = vmatpush1.bf16.xpose.msra.mxu0 0
      %2276 = vmatprep.mubr.bf16.mxu0 0
      %2277 = vmatmul.mubr.bf16.gmra.mrb[0].mxu0 %v2239
      %v2278 = vpop.f32.mrb[0].mxu0
      %v2279 = vadd.f32 0.0, %v2278
      %v2280 = vpop.f32.mrb[0].mxu0
      %v2281 = vpop.f32.mrb[0].mxu0
      %v2282 = vadd.f32 0.0, %v2281
      %v2283 = vpop.f32.mrb[0].mxu0
      %2284 = vdwg.mxu0
      %v2286 = vsel %vm2096, %v1204, 0
      %v2289 = vsel %vm2096, %v1620, 0
      %2291 = vmatprep.subr.bf16.mxu0 0
      %2292 = vmatpush1.bf16.xpose.msra.mxu0 %v2289
      %2293 = vmatprep.subr.bf16.mxu0 0
      %2294 = vmatpush1.bf16.xpose.msra.mxu0 0
      %2295 = vmatprep.subr.bf16.mxu0 0
      %2296 = vmatpush1.bf16.xpose.msra.mxu0 0
      %2297 = vmatprep.subr.bf16.mxu0 0
      %2298 = vmatpush1.bf16.xpose.msra.mxu0 0
      %2299 = vmatprep.subr.bf16.mxu0 0
      %2300 = vmatpush1.bf16.xpose.msra.mxu0 0
      %2301 = vmatprep.subr.bf16.mxu0 0
      %2302 = vmatpush1.bf16.xpose.msra.mxu0 0
      %2303 = vmatprep.subr.bf16.mxu0 0
      %2304 = vmatpush1.bf16.xpose.msra.mxu0 0
      %2305 = vmatprep.subr.bf16.mxu0 0
      %2306 = vmatpush1.bf16.xpose.msra.mxu0 0
      %2307 = vmatprep.subr.bf16.mxu0 0
      %2308 = vmatpush1.bf16.xpose.msra.mxu0 0
      %2309 = vmatprep.subr.bf16.mxu0 0
      %2310 = vmatpush1.bf16.xpose.msra.mxu0 0
      %2311 = vmatprep.subr.bf16.mxu0 0
      %2312 = vmatpush1.bf16.xpose.msra.mxu0 0
      %2313 = vmatprep.subr.bf16.mxu0 0
      %2314 = vmatpush1.bf16.xpose.msra.mxu0 0
      %2315 = vmatprep.subr.bf16.mxu0 0
      %2316 = vmatpush1.bf16.xpose.msra.mxu0 0
      %2317 = vmatprep.subr.bf16.mxu0 0
      %2318 = vmatpush1.bf16.xpose.msra.mxu0 0
      %2319 = vmatprep.subr.bf16.mxu0 0
      %2320 = vmatpush1.bf16.xpose.msra.mxu0 0
      %2321 = vmatprep.subr.bf16.mxu0 0
      %2322 = vmatpush1.bf16.xpose.msra.mxu0 0
      %2323 = vmatprep.mubr.bf16.mxu0 0
      %2324 = vmatmul.mubr.bf16.gmra.mrb[0].mxu0 %v2286
      %v2325 = vpop.f32.mrb[0].mxu0
      %v2326 = vadd.f32 0.0, %v2325
      %v2327 = vpop.f32.mrb[0].mxu0
      %v2328 = vpop.f32.mrb[0].mxu0
      %v2329 = vadd.f32 0.0, %v2328
      %v2330 = vpop.f32.mrb[0].mxu0
      %2331 = vdwg.mxu0
      %v2333 = vsel %vm2096, %v1205, 0
      %v2336 = vsel %vm2096, %v1621, 0
      %2338 = vmatprep.subr.bf16.mxu0 0
      %2339 = vmatpush1.bf16.xpose.msra.mxu0 %v2336
      %2340 = vmatprep.subr.bf16.mxu0 0
      %2341 = vmatpush1.bf16.xpose.msra.mxu0 0
      %2342 = vmatprep.subr.bf16.mxu0 0
      %2343 = vmatpush1.bf16.xpose.msra.mxu0 0
      %2344 = vmatprep.subr.bf16.mxu0 0
      %2345 = vmatpush1.bf16.xpose.msra.mxu0 0
      %2346 = vmatprep.subr.bf16.mxu0 0
      %2347 = vmatpush1.bf16.xpose.msra.mxu0 0
      %2348 = vmatprep.subr.bf16.mxu0 0
      %2349 = vmatpush1.bf16.xpose.msra.mxu0 0
      %2350 = vmatprep.subr.bf16.mxu0 0
      %2351 = vmatpush1.bf16.xpose.msra.mxu0 0
      %2352 = vmatprep.subr.bf16.mxu0 0
      %2353 = vmatpush1.bf16.xpose.msra.mxu0 0
      %2354 = vmatprep.subr.bf16.mxu0 0
      %2355 = vmatpush1.bf16.xpose.msra.mxu0 0
      %2356 = vmatprep.subr.bf16.mxu0 0
      %2357 = vmatpush1.bf16.xpose.msra.mxu0 0
      %2358 = vmatprep.subr.bf16.mxu0 0
      %2359 = vmatpush1.bf16.xpose.msra.mxu0 0
      %2360 = vmatprep.subr.bf16.mxu0 0
      %2361 = vmatpush1.bf16.xpose.msra.mxu0 0
      %2362 = vmatprep.subr.bf16.mxu0 0
      %2363 = vmatpush1.bf16.xpose.msra.mxu0 0
      %2364 = vmatprep.subr.bf16.mxu0 0
      %2365 = vmatpush1.bf16.xpose.msra.mxu0 0
      %2366 = vmatprep.subr.bf16.mxu0 0
      %2367 = vmatpush1.bf16.xpose.msra.mxu0 0
      %2368 = vmatprep.subr.bf16.mxu0 0
      %2369 = vmatpush1.bf16.xpose.msra.mxu0 0
      %2370 = vmatprep.mubr.bf16.mxu0 0
      %2371 = vmatmul.mubr.bf16.gmra.mrb[0].mxu0 %v2333
      %v2372 = vpop.f32.mrb[0].mxu0
      %v2373 = vadd.f32 0.0, %v2372
      %v2374 = vpop.f32.mrb[0].mxu0
      %v2375 = vpop.f32.mrb[0].mxu0
      %v2376 = vadd.f32 0.0, %v2375
      %v2377 = vpop.f32.mrb[0].mxu0
      %2378 = vdwg.mxu0
      %v2380 = vsel %vm2096, %v1206, 0
      %v2383 = vsel %vm2096, %v1622, 0
      %2385 = vmatprep.subr.bf16.mxu0 0
      %2386 = vmatpush1.bf16.xpose.msra.mxu0 %v2383
      %2387 = vmatprep.subr.bf16.mxu0 0
      %2388 = vmatpush1.bf16.xpose.msra.mxu0 0
      %2389 = vmatprep.subr.bf16.mxu0 0
      %2390 = vmatpush1.bf16.xpose.msra.mxu0 0
      %2391 = vmatprep.subr.bf16.mxu0 0
      %2392 = vmatpush1.bf16.xpose.msra.mxu0 0
      %2393 = vmatprep.subr.bf16.mxu0 0
      %2394 = vmatpush1.bf16.xpose.msra.mxu0 0
      %2395 = vmatprep.subr.bf16.mxu0 0
      %2396 = vmatpush1.bf16.xpose.msra.mxu0 0
      %2397 = vmatprep.subr.bf16.mxu0 0
      %2398 = vmatpush1.bf16.xpose.msra.mxu0 0
      %2399 = vmatprep.subr.bf16.mxu0 0
      %2400 = vmatpush1.bf16.xpose.msra.mxu0 0
      %2401 = vmatprep.subr.bf16.mxu0 0
      %2402 = vmatpush1.bf16.xpose.msra.mxu0 0
      %2403 = vmatprep.subr.bf16.mxu0 0
      %2404 = vmatpush1.bf16.xpose.msra.mxu0 0
      %2405 = vmatprep.subr.bf16.mxu0 0
      %2406 = vmatpush1.bf16.xpose.msra.mxu0 0
      %2407 = vmatprep.subr.bf16.mxu0 0
      %2408 = vmatpush1.bf16.xpose.msra.mxu0 0
      %2409 = vmatprep.subr.bf16.mxu0 0
      %2410 = vmatpush1.bf16.xpose.msra.mxu0 0
      %2411 = vmatprep.subr.bf16.mxu0 0
      %2412 = vmatpush1.bf16.xpose.msra.mxu0 0
      %2413 = vmatprep.subr.bf16.mxu0 0
      %2414 = vmatpush1.bf16.xpose.msra.mxu0 0
      %2415 = vmatprep.subr.bf16.mxu0 0
      %2416 = vmatpush1.bf16.xpose.msra.mxu0 0
      %2417 = vmatprep.mubr.bf16.mxu0 0
      %2418 = vmatmul.mubr.bf16.gmra.mrb[0].mxu0 %v2380
      %v2419 = vpop.f32.mrb[0].mxu0
      %v2420 = vadd.f32 0.0, %v2419
      %v2421 = vpop.f32.mrb[0].mxu0
      %v2422 = vpop.f32.mrb[0].mxu0
      %v2423 = vadd.f32 0.0, %v2422
      %v2424 = vpop.f32.mrb[0].mxu0
      %2425 = vdwg.mxu0
      %v2427 = vsel %vm2096, %v1207, 0
      %v2430 = vsel %vm2096, %v1623, 0
      %2432 = vmatprep.subr.bf16.mxu0 0
      %2433 = vmatpush1.bf16.xpose.msra.mxu0 %v2430
      %2434 = vmatprep.subr.bf16.mxu0 0
      %2435 = vmatpush1.bf16.xpose.msra.mxu0 0
      %2436 = vmatprep.subr.bf16.mxu0 0
      %2437 = vmatpush1.bf16.xpose.msra.mxu0 0
      %2438 = vmatprep.subr.bf16.mxu0 0
      %2439 = vmatpush1.bf16.xpose.msra.mxu0 0
      %2440 = vmatprep.subr.bf16.mxu0 0
      %2441 = vmatpush1.bf16.xpose.msra.mxu0 0
      %2442 = vmatprep.subr.bf16.mxu0 0
      %2443 = vmatpush1.bf16.xpose.msra.mxu0 0
      %2444 = vmatprep.subr.bf16.mxu0 0
      %2445 = vmatpush1.bf16.xpose.msra.mxu0 0
      %2446 = vmatprep.subr.bf16.mxu0 0
      %2447 = vmatpush1.bf16.xpose.msra.mxu0 0
      %2448 = vmatprep.subr.bf16.mxu0 0
      %2449 = vmatpush1.bf16.xpose.msra.mxu0 0
      %2450 = vmatprep.subr.bf16.mxu0 0
      %2451 = vmatpush1.bf16.xpose.msra.mxu0 0
      %2452 = vmatprep.subr.bf16.mxu0 0
      %2453 = vmatpush1.bf16.xpose.msra.mxu0 0
      %2454 = vmatprep.subr.bf16.mxu0 0
      %2455 = vmatpush1.bf16.xpose.msra.mxu0 0
      %2456 = vmatprep.subr.bf16.mxu0 0
      %2457 = vmatpush1.bf16.xpose.msra.mxu0 0
      %2458 = vmatprep.subr.bf16.mxu0 0
      %2459 = vmatpush1.bf16.xpose.msra.mxu0 0
      %2460 = vmatprep.subr.bf16.mxu0 0
      %2461 = vmatpush1.bf16.xpose.msra.mxu0 0
      %2462 = vmatprep.subr.bf16.mxu0 0
      %2463 = vmatpush1.bf16.xpose.msra.mxu0 0
      %2464 = vmatprep.mubr.bf16.mxu0 0
      %2465 = vmatmul.mubr.bf16.gmra.mrb[0].mxu0 %v2427
      %v2466 = vpop.f32.mrb[0].mxu0
      %v2467 = vadd.f32 0.0, %v2466
      %v2468 = vpop.f32.mrb[0].mxu0
      %v2469 = vpop.f32.mrb[0].mxu0
      %v2470 = vadd.f32 0.0, %v2469
      %v2471 = vpop.f32.mrb[0].mxu0
      %2472 = vdwg.mxu0
      %v2474 = vsel %vm2096, %v1208, 0
      %v2477 = vsel %vm2096, %v1624, 0
      %2479 = vmatprep.subr.bf16.mxu0 0
      %2480 = vmatpush1.bf16.xpose.msra.mxu0 %v2477
      %2481 = vmatprep.subr.bf16.mxu0 0
      %2482 = vmatpush1.bf16.xpose.msra.mxu0 0
      %2483 = vmatprep.subr.bf16.mxu0 0
      %2484 = vmatpush1.bf16.xpose.msra.mxu0 0
      %2485 = vmatprep.subr.bf16.mxu0 0
      %2486 = vmatpush1.bf16.xpose.msra.mxu0 0
      %2487 = vmatprep.subr.bf16.mxu0 0
      %2488 = vmatpush1.bf16.xpose.msra.mxu0 0
      %2489 = vmatprep.subr.bf16.mxu0 0
      %2490 = vmatpush1.bf16.xpose.msra.mxu0 0
      %2491 = vmatprep.subr.bf16.mxu0 0
      %2492 = vmatpush1.bf16.xpose.msra.mxu0 0
      %2493 = vmatprep.subr.bf16.mxu0 0
      %2494 = vmatpush1.bf16.xpose.msra.mxu0 0
      %2495 = vmatprep.subr.bf16.mxu0 0
      %2496 = vmatpush1.bf16.xpose.msra.mxu0 0
      %2497 = vmatprep.subr.bf16.mxu0 0
      %2498 = vmatpush1.bf16.xpose.msra.mxu0 0
      %2499 = vmatprep.subr.bf16.mxu0 0
      %2500 = vmatpush1.bf16.xpose.msra.mxu0 0
      %2501 = vmatprep.subr.bf16.mxu0 0
      %2502 = vmatpush1.bf16.xpose.msra.mxu0 0
      %2503 = vmatprep.subr.bf16.mxu0 0
      %2504 = vmatpush1.bf16.xpose.msra.mxu0 0
      %2505 = vmatprep.subr.bf16.mxu0 0
      %2506 = vmatpush1.bf16.xpose.msra.mxu0 0
      %2507 = vmatprep.subr.bf16.mxu0 0
      %2508 = vmatpush1.bf16.xpose.msra.mxu0 0
      %2509 = vmatprep.subr.bf16.mxu0 0
      %2510 = vmatpush1.bf16.xpose.msra.mxu0 0
      %2511 = vmatprep.mubr.bf16.mxu0 0
      %2512 = vmatmul.mubr.bf16.gmra.mrb[0].mxu0 %v2474
      %v2513 = vpop.f32.mrb[0].mxu0
      %v2514 = vadd.f32 0.0, %v2513
      %v2515 = vpop.f32.mrb[0].mxu0
      %v2516 = vpop.f32.mrb[0].mxu0
      %v2517 = vadd.f32 0.0, %v2516
      %v2518 = vpop.f32.mrb[0].mxu0
      %2519 = vdwg.mxu0
      %v2521 = vsel %vm2096, %v1209, 0
      %v2524 = vsel %vm2096, %v1625, 0
      %2526 = vmatprep.subr.bf16.mxu0 0
      %2527 = vmatpush1.bf16.xpose.msra.mxu0 %v2524
      %2528 = vmatprep.subr.bf16.mxu0 0
      %2529 = vmatpush1.bf16.xpose.msra.mxu0 0
      %2530 = vmatprep.subr.bf16.mxu0 0
      %2531 = vmatpush1.bf16.xpose.msra.mxu0 0
      %2532 = vmatprep.subr.bf16.mxu0 0
      %2533 = vmatpush1.bf16.xpose.msra.mxu0 0
      %2534 = vmatprep.subr.bf16.mxu0 0
      %2535 = vmatpush1.bf16.xpose.msra.mxu0 0
      %2536 = vmatprep.subr.bf16.mxu0 0
      %2537 = vmatpush1.bf16.xpose.msra.mxu0 0
      %2538 = vmatprep.subr.bf16.mxu0 0
      %2539 = vmatpush1.bf16.xpose.msra.mxu0 0
      %2540 = vmatprep.subr.bf16.mxu0 0
      %2541 = vmatpush1.bf16.xpose.msra.mxu0 0
      %2542 = vmatprep.subr.bf16.mxu0 0
      %2543 = vmatpush1.bf16.xpose.msra.mxu0 0
      %2544 = vmatprep.subr.bf16.mxu0 0
      %2545 = vmatpush1.bf16.xpose.msra.mxu0 0
      %2546 = vmatprep.subr.bf16.mxu0 0
      %2547 = vmatpush1.bf16.xpose.msra.mxu0 0
      %2548 = vmatprep.subr.bf16.mxu0 0
      %2549 = vmatpush1.bf16.xpose.msra.mxu0 0
      %2550 = vmatprep.subr.bf16.mxu0 0
      %2551 = vmatpush1.bf16.xpose.msra.mxu0 0
      %2552 = vmatprep.subr.bf16.mxu0 0
      %2553 = vmatpush1.bf16.xpose.msra.mxu0 0
      %2554 = vmatprep.subr.bf16.mxu0 0
      %2555 = vmatpush1.bf16.xpose.msra.mxu0 0
      %2556 = vmatprep.subr.bf16.mxu0 0
      %2557 = vmatpush1.bf16.xpose.msra.mxu0 0
      %2558 = vmatprep.mubr.bf16.mxu0 0
      %2559 = vmatmul.mubr.bf16.gmra.mrb[0].mxu0 %v2521
      %v2560 = vpop.f32.mrb[0].mxu0
      %v2561 = vadd.f32 0.0, %v2560
      %v2562 = vpop.f32.mrb[0].mxu0
      %v2563 = vpop.f32.mrb[0].mxu0
      %v2564 = vadd.f32 0.0, %v2563
      %v2565 = vpop.f32.mrb[0].mxu0
      %2566 = vdwg.mxu0
      %v2568 = vsel %vm2096, %v1210, 0
      %v2571 = vsel %vm2096, %v1626, 0
      %2573 = vmatprep.subr.bf16.mxu0 0
      %2574 = vmatpush1.bf16.xpose.msra.mxu0 %v2571
      %2575 = vmatprep.subr.bf16.mxu0 0
      %2576 = vmatpush1.bf16.xpose.msra.mxu0 0
      %2577 = vmatprep.subr.bf16.mxu0 0
      %2578 = vmatpush1.bf16.xpose.msra.mxu0 0
      %2579 = vmatprep.subr.bf16.mxu0 0
      %2580 = vmatpush1.bf16.xpose.msra.mxu0 0
      %2581 = vmatprep.subr.bf16.mxu0 0
      %2582 = vmatpush1.bf16.xpose.msra.mxu0 0
      %2583 = vmatprep.subr.bf16.mxu0 0
      %2584 = vmatpush1.bf16.xpose.msra.mxu0 0
      %2585 = vmatprep.subr.bf16.mxu0 0
      %2586 = vmatpush1.bf16.xpose.msra.mxu0 0
      %2587 = vmatprep.subr.bf16.mxu0 0
      %2588 = vmatpush1.bf16.xpose.msra.mxu0 0
      %2589 = vmatprep.subr.bf16.mxu0 0
      %2590 = vmatpush1.bf16.xpose.msra.mxu0 0
      %2591 = vmatprep.subr.bf16.mxu0 0
      %2592 = vmatpush1.bf16.xpose.msra.mxu0 0
      %2593 = vmatprep.subr.bf16.mxu0 0
      %2594 = vmatpush1.bf16.xpose.msra.mxu0 0
      %2595 = vmatprep.subr.bf16.mxu0 0
      %2596 = vmatpush1.bf16.xpose.msra.mxu0 0
      %2597 = vmatprep.subr.bf16.mxu0 0
      %2598 = vmatpush1.bf16.xpose.msra.mxu0 0
      %2599 = vmatprep.subr.bf16.mxu0 0
      %2600 = vmatpush1.bf16.xpose.msra.mxu0 0
      %2601 = vmatprep.subr.bf16.mxu0 0
      %2602 = vmatpush1.bf16.xpose.msra.mxu0 0
      %2603 = vmatprep.subr.bf16.mxu0 0
      %2604 = vmatpush1.bf16.xpose.msra.mxu0 0
      %2605 = vmatprep.mubr.bf16.mxu0 0
      %2606 = vmatmul.mubr.bf16.gmra.mrb[0].mxu0 %v2568
      %v2607 = vpop.f32.mrb[0].mxu0
      %v2608 = vadd.f32 0.0, %v2607
      %v2609 = vpop.f32.mrb[0].mxu0
      %v2610 = vpop.f32.mrb[0].mxu0
      %v2611 = vadd.f32 0.0, %v2610
      %v2612 = vpop.f32.mrb[0].mxu0
      %2613 = vdwg.mxu0
      %v2615 = vsel %vm2096, %v1211, 0
      %v2618 = vsel %vm2096, %v1627, 0
      %2620 = vmatprep.subr.bf16.mxu0 0
      %2621 = vmatpush1.bf16.xpose.msra.mxu0 %v2618
      %2622 = vmatprep.subr.bf16.mxu0 0
      %2623 = vmatpush1.bf16.xpose.msra.mxu0 0
      %2624 = vmatprep.subr.bf16.mxu0 0
      %2625 = vmatpush1.bf16.xpose.msra.mxu0 0
      %2626 = vmatprep.subr.bf16.mxu0 0
      %2627 = vmatpush1.bf16.xpose.msra.mxu0 0
      %2628 = vmatprep.subr.bf16.mxu0 0
      %2629 = vmatpush1.bf16.xpose.msra.mxu0 0
      %2630 = vmatprep.subr.bf16.mxu0 0
      %2631 = vmatpush1.bf16.xpose.msra.mxu0 0
      %2632 = vmatprep.subr.bf16.mxu0 0
      %2633 = vmatpush1.bf16.xpose.msra.mxu0 0
      %2634 = vmatprep.subr.bf16.mxu0 0
      %2635 = vmatpush1.bf16.xpose.msra.mxu0 0
      %2636 = vmatprep.subr.bf16.mxu0 0
      %2637 = vmatpush1.bf16.xpose.msra.mxu0 0
      %2638 = vmatprep.subr.bf16.mxu0 0
      %2639 = vmatpush1.bf16.xpose.msra.mxu0 0
      %2640 = vmatprep.subr.bf16.mxu0 0
      %2641 = vmatpush1.bf16.xpose.msra.mxu0 0
      %2642 = vmatprep.subr.bf16.mxu0 0
      %2643 = vmatpush1.bf16.xpose.msra.mxu0 0
      %2644 = vmatprep.subr.bf16.mxu0 0
      %2645 = vmatpush1.bf16.xpose.msra.mxu0 0
      %2646 = vmatprep.subr.bf16.mxu0 0
      %2647 = vmatpush1.bf16.xpose.msra.mxu0 0
      %2648 = vmatprep.subr.bf16.mxu0 0
      %2649 = vmatpush1.bf16.xpose.msra.mxu0 0
      %2650 = vmatprep.subr.bf16.mxu0 0
      %2651 = vmatpush1.bf16.xpose.msra.mxu0 0
      %2652 = vmatprep.mubr.bf16.mxu0 0
      %2653 = vmatmul.mubr.bf16.gmra.mrb[0].mxu0 %v2615
      %v2654 = vpop.f32.mrb[0].mxu0
      %v2655 = vadd.f32 0.0, %v2654
      %v2656 = vpop.f32.mrb[0].mxu0
      %v2657 = vpop.f32.mrb[0].mxu0
      %v2658 = vadd.f32 0.0, %v2657
      %v2659 = vpop.f32.mrb[0].mxu0
      %2660 = vdwg.mxu0
      %v2662 = vsel %vm2096, %v1212, 0
      %v2665 = vsel %vm2096, %v1628, 0
      %2667 = vmatprep.subr.bf16.mxu0 0
      %2668 = vmatpush1.bf16.xpose.msra.mxu0 %v2665
      %2669 = vmatprep.subr.bf16.mxu0 0
      %2670 = vmatpush1.bf16.xpose.msra.mxu0 0
      %2671 = vmatprep.subr.bf16.mxu0 0
      %2672 = vmatpush1.bf16.xpose.msra.mxu0 0
      %2673 = vmatprep.subr.bf16.mxu0 0
      %2674 = vmatpush1.bf16.xpose.msra.mxu0 0
      %2675 = vmatprep.subr.bf16.mxu0 0
      %2676 = vmatpush1.bf16.xpose.msra.mxu0 0
      %2677 = vmatprep.subr.bf16.mxu0 0
      %2678 = vmatpush1.bf16.xpose.msra.mxu0 0
      %2679 = vmatprep.subr.bf16.mxu0 0
      %2680 = vmatpush1.bf16.xpose.msra.mxu0 0
      %2681 = vmatprep.subr.bf16.mxu0 0
      %2682 = vmatpush1.bf16.xpose.msra.mxu0 0
      %2683 = vmatprep.subr.bf16.mxu0 0
      %2684 = vmatpush1.bf16.xpose.msra.mxu0 0
      %2685 = vmatprep.subr.bf16.mxu0 0
      %2686 = vmatpush1.bf16.xpose.msra.mxu0 0
      %2687 = vmatprep.subr.bf16.mxu0 0
      %2688 = vmatpush1.bf16.xpose.msra.mxu0 0
      %2689 = vmatprep.subr.bf16.mxu0 0
      %2690 = vmatpush1.bf16.xpose.msra.mxu0 0
      %2691 = vmatprep.subr.bf16.mxu0 0
      %2692 = vmatpush1.bf16.xpose.msra.mxu0 0
      %2693 = vmatprep.subr.bf16.mxu0 0
      %2694 = vmatpush1.bf16.xpose.msra.mxu0 0
      %2695 = vmatprep.subr.bf16.mxu0 0
      %2696 = vmatpush1.bf16.xpose.msra.mxu0 0
      %2697 = vmatprep.subr.bf16.mxu0 0
      %2698 = vmatpush1.bf16.xpose.msra.mxu0 0
      %2699 = vmatprep.mubr.bf16.mxu0 0
      %2700 = vmatmul.mubr.bf16.gmra.mrb[0].mxu0 %v2662
      %v2701 = vpop.f32.mrb[0].mxu0
      %v2702 = vadd.f32 0.0, %v2701
      %v2703 = vpop.f32.mrb[0].mxu0
      %v2704 = vpop.f32.mrb[0].mxu0
      %v2705 = vadd.f32 0.0, %v2704
      %v2706 = vpop.f32.mrb[0].mxu0
      %2707 = vdwg.mxu0
      %v2709 = vsel %vm2096, %v1213, 0
      %v2712 = vsel %vm2096, %v1629, 0
      %2714 = vmatprep.subr.bf16.mxu0 0
      %2715 = vmatpush1.bf16.xpose.msra.mxu0 %v2712
      %2716 = vmatprep.subr.bf16.mxu0 0
      %2717 = vmatpush1.bf16.xpose.msra.mxu0 0
      %2718 = vmatprep.subr.bf16.mxu0 0
      %2719 = vmatpush1.bf16.xpose.msra.mxu0 0
      %2720 = vmatprep.subr.bf16.mxu0 0
      %2721 = vmatpush1.bf16.xpose.msra.mxu0 0
      %2722 = vmatprep.subr.bf16.mxu0 0
      %2723 = vmatpush1.bf16.xpose.msra.mxu0 0
      %2724 = vmatprep.subr.bf16.mxu0 0
      %2725 = vmatpush1.bf16.xpose.msra.mxu0 0
      %2726 = vmatprep.subr.bf16.mxu0 0
      %2727 = vmatpush1.bf16.xpose.msra.mxu0 0
      %2728 = vmatprep.subr.bf16.mxu0 0
      %2729 = vmatpush1.bf16.xpose.msra.mxu0 0
      %2730 = vmatprep.subr.bf16.mxu0 0
      %2731 = vmatpush1.bf16.xpose.msra.mxu0 0
      %2732 = vmatprep.subr.bf16.mxu0 0
      %2733 = vmatpush1.bf16.xpose.msra.mxu0 0
      %2734 = vmatprep.subr.bf16.mxu0 0
      %2735 = vmatpush1.bf16.xpose.msra.mxu0 0
      %2736 = vmatprep.subr.bf16.mxu0 0
      %2737 = vmatpush1.bf16.xpose.msra.mxu0 0
      %2738 = vmatprep.subr.bf16.mxu0 0
      %2739 = vmatpush1.bf16.xpose.msra.mxu0 0
      %2740 = vmatprep.subr.bf16.mxu0 0
      %2741 = vmatpush1.bf16.xpose.msra.mxu0 0
      %2742 = vmatprep.subr.bf16.mxu0 0
      %2743 = vmatpush1.bf16.xpose.msra.mxu0 0
      %2744 = vmatprep.subr.bf16.mxu0 0
      %2745 = vmatpush1.bf16.xpose.msra.mxu0 0
      %2746 = vmatprep.mubr.bf16.mxu0 0
      %2747 = vmatmul.mubr.bf16.gmra.mrb[0].mxu0 %v2709
      %v2748 = vpop.f32.mrb[0].mxu0
      %v2749 = vadd.f32 0.0, %v2748
      %v2750 = vpop.f32.mrb[0].mxu0
      %v2751 = vpop.f32.mrb[0].mxu0
      %v2752 = vadd.f32 0.0, %v2751
      %v2753 = vpop.f32.mrb[0].mxu0
      %2754 = vdwg.mxu0
      %v2756 = vsel %vm2096, %v1214, 0
      %v2759 = vsel %vm2096, %v1630, 0
      %2761 = vmatprep.subr.bf16.mxu0 0
      %2762 = vmatpush1.bf16.xpose.msra.mxu0 %v2759
      %2763 = vmatprep.subr.bf16.mxu0 0
      %2764 = vmatpush1.bf16.xpose.msra.mxu0 0
      %2765 = vmatprep.subr.bf16.mxu0 0
      %2766 = vmatpush1.bf16.xpose.msra.mxu0 0
      %2767 = vmatprep.subr.bf16.mxu0 0
      %2768 = vmatpush1.bf16.xpose.msra.mxu0 0
      %2769 = vmatprep.subr.bf16.mxu0 0
      %2770 = vmatpush1.bf16.xpose.msra.mxu0 0
      %2771 = vmatprep.subr.bf16.mxu0 0
      %2772 = vmatpush1.bf16.xpose.msra.mxu0 0
      %2773 = vmatprep.subr.bf16.mxu0 0
      %2774 = vmatpush1.bf16.xpose.msra.mxu0 0
      %2775 = vmatprep.subr.bf16.mxu0 0
      %2776 = vmatpush1.bf16.xpose.msra.mxu0 0
      %2777 = vmatprep.subr.bf16.mxu0 0
      %2778 = vmatpush1.bf16.xpose.msra.mxu0 0
      %2779 = vmatprep.subr.bf16.mxu0 0
      %2780 = vmatpush1.bf16.xpose.msra.mxu0 0
      %2781 = vmatprep.subr.bf16.mxu0 0
      %2782 = vmatpush1.bf16.xpose.msra.mxu0 0
      %2783 = vmatprep.subr.bf16.mxu0 0
      %2784 = vmatpush1.bf16.xpose.msra.mxu0 0
      %2785 = vmatprep.subr.bf16.mxu0 0
      %2786 = vmatpush1.bf16.xpose.msra.mxu0 0
      %2787 = vmatprep.subr.bf16.mxu0 0
      %2788 = vmatpush1.bf16.xpose.msra.mxu0 0
      %2789 = vmatprep.subr.bf16.mxu0 0
      %2790 = vmatpush1.bf16.xpose.msra.mxu0 0
      %2791 = vmatprep.subr.bf16.mxu0 0
      %2792 = vmatpush1.bf16.xpose.msra.mxu0 0
      %2793 = vmatprep.mubr.bf16.mxu0 0
      %2794 = vmatmul.mubr.bf16.gmra.mrb[0].mxu0 %v2756
      %v2795 = vpop.f32.mrb[0].mxu0
      %v2796 = vadd.f32 0.0, %v2795
      %v2797 = vpop.f32.mrb[0].mxu0
      %v2798 = vpop.f32.mrb[0].mxu0
      %v2799 = vadd.f32 0.0, %v2798
      %v2800 = vpop.f32.mrb[0].mxu0
      %2801 = vdwg.mxu0
      %v2803 = vsel %vm2096, %v1215, 0
      %v2806 = vsel %vm2096, %v1631, 0
      %2808 = vmatprep.subr.bf16.mxu0 0
      %2809 = vmatpush1.bf16.xpose.msra.mxu0 %v2806
      %2810 = vmatprep.subr.bf16.mxu0 0
      %2811 = vmatpush1.bf16.xpose.msra.mxu0 0
      %2812 = vmatprep.subr.bf16.mxu0 0
      %2813 = vmatpush1.bf16.xpose.msra.mxu0 0
      %2814 = vmatprep.subr.bf16.mxu0 0
      %2815 = vmatpush1.bf16.xpose.msra.mxu0 0
      %2816 = vmatprep.subr.bf16.mxu0 0
      %2817 = vmatpush1.bf16.xpose.msra.mxu0 0
      %2818 = vmatprep.subr.bf16.mxu0 0
      %2819 = vmatpush1.bf16.xpose.msra.mxu0 0
      %2820 = vmatprep.subr.bf16.mxu0 0
      %2821 = vmatpush1.bf16.xpose.msra.mxu0 0
      %2822 = vmatprep.subr.bf16.mxu0 0
      %2823 = vmatpush1.bf16.xpose.msra.mxu0 0
      %2824 = vmatprep.subr.bf16.mxu0 0
      %2825 = vmatpush1.bf16.xpose.msra.mxu0 0
      %2826 = vmatprep.subr.bf16.mxu0 0
      %2827 = vmatpush1.bf16.xpose.msra.mxu0 0
      %2828 = vmatprep.subr.bf16.mxu0 0
      %2829 = vmatpush1.bf16.xpose.msra.mxu0 0
      %2830 = vmatprep.subr.bf16.mxu0 0
      %2831 = vmatpush1.bf16.xpose.msra.mxu0 0
      %2832 = vmatprep.subr.bf16.mxu0 0
      %2833 = vmatpush1.bf16.xpose.msra.mxu0 0
      %2834 = vmatprep.subr.bf16.mxu0 0
      %2835 = vmatpush1.bf16.xpose.msra.mxu0 0
      %2836 = vmatprep.subr.bf16.mxu0 0
      %2837 = vmatpush1.bf16.xpose.msra.mxu0 0
      %2838 = vmatprep.subr.bf16.mxu0 0
      %2839 = vmatpush1.bf16.xpose.msra.mxu0 0
      %2840 = vmatprep.mubr.bf16.mxu0 0
      %2841 = vmatmul.mubr.bf16.gmra.mrb[0].mxu0 %v2803
      %v2842 = vpop.f32.mrb[0].mxu0
      %v2843 = vadd.f32 0.0, %v2842
      %v2844 = vpop.f32.mrb[0].mxu0
      %v2845 = vpop.f32.mrb[0].mxu0
      %v2846 = vadd.f32 0.0, %v2845
      %v2847 = vpop.f32.mrb[0].mxu0
      %2848 = vdwg.mxu0
      %v2850 = vsel %vm2096, %v1216, 0
      %v2853 = vsel %vm2096, %v1632, 0
      %2855 = vmatprep.subr.bf16.mxu0 0
      %2856 = vmatpush1.bf16.xpose.msra.mxu0 %v2853
      %2857 = vmatprep.subr.bf16.mxu0 0
      %2858 = vmatpush1.bf16.xpose.msra.mxu0 0
      %2859 = vmatprep.subr.bf16.mxu0 0
      %2860 = vmatpush1.bf16.xpose.msra.mxu0 0
      %2861 = vmatprep.subr.bf16.mxu0 0
      %2862 = vmatpush1.bf16.xpose.msra.mxu0 0
      %2863 = vmatprep.subr.bf16.mxu0 0
      %2864 = vmatpush1.bf16.xpose.msra.mxu0 0
      %2865 = vmatprep.subr.bf16.mxu0 0
      %2866 = vmatpush1.bf16.xpose.msra.mxu0 0
      %2867 = vmatprep.subr.bf16.mxu0 0
      %2868 = vmatpush1.bf16.xpose.msra.mxu0 0
      %2869 = vmatprep.subr.bf16.mxu0 0
      %2870 = vmatpush1.bf16.xpose.msra.mxu0 0
      %2871 = vmatprep.subr.bf16.mxu0 0
      %2872 = vmatpush1.bf16.xpose.msra.mxu0 0
      %2873 = vmatprep.subr.bf16.mxu0 0
      %2874 = vmatpush1.bf16.xpose.msra.mxu0 0
      %2875 = vmatprep.subr.bf16.mxu0 0
      %2876 = vmatpush1.bf16.xpose.msra.mxu0 0
      %2877 = vmatprep.subr.bf16.mxu0 0
      %2878 = vmatpush1.bf16.xpose.msra.mxu0 0
      %2879 = vmatprep.subr.bf16.mxu0 0
      %2880 = vmatpush1.bf16.xpose.msra.mxu0 0
      %2881 = vmatprep.subr.bf16.mxu0 0
      %2882 = vmatpush1.bf16.xpose.msra.mxu0 0
      %2883 = vmatprep.subr.bf16.mxu0 0
      %2884 = vmatpush1.bf16.xpose.msra.mxu0 0
      %2885 = vmatprep.subr.bf16.mxu0 0
      %2886 = vmatpush1.bf16.xpose.msra.mxu0 0
      %2887 = vmatprep.mubr.bf16.mxu0 0
      %2888 = vmatmul.mubr.bf16.gmra.mrb[0].mxu0 %v2850
      %v2889 = vpop.f32.mrb[0].mxu0
      %v2890 = vadd.f32 0.0, %v2889
      %v2891 = vpop.f32.mrb[0].mxu0
      %v2892 = vpop.f32.mrb[0].mxu0
      %v2893 = vadd.f32 0.0, %v2892
      %v2894 = vpop.f32.mrb[0].mxu0
      %2895 = vdwg.mxu0
      %v2897 = vsel %vm2096, %v1217, 0
      %v2900 = vsel %vm2096, %v1633, 0
      %2902 = vmatprep.subr.bf16.mxu0 0
      %2903 = vmatpush1.bf16.xpose.msra.mxu0 %v2900
      %2904 = vmatprep.subr.bf16.mxu0 0
      %2905 = vmatpush1.bf16.xpose.msra.mxu0 0
      %2906 = vmatprep.subr.bf16.mxu0 0
      %2907 = vmatpush1.bf16.xpose.msra.mxu0 0
      %2908 = vmatprep.subr.bf16.mxu0 0
      %2909 = vmatpush1.bf16.xpose.msra.mxu0 0
      %2910 = vmatprep.subr.bf16.mxu0 0
      %2911 = vmatpush1.bf16.xpose.msra.mxu0 0
      %2912 = vmatprep.subr.bf16.mxu0 0
      %2913 = vmatpush1.bf16.xpose.msra.mxu0 0
      %2914 = vmatprep.subr.bf16.mxu0 0
      %2915 = vmatpush1.bf16.xpose.msra.mxu0 0
      %2916 = vmatprep.subr.bf16.mxu0 0
      %2917 = vmatpush1.bf16.xpose.msra.mxu0 0
      %2918 = vmatprep.subr.bf16.mxu0 0
      %2919 = vmatpush1.bf16.xpose.msra.mxu0 0
      %2920 = vmatprep.subr.bf16.mxu0 0
      %2921 = vmatpush1.bf16.xpose.msra.mxu0 0
      %2922 = vmatprep.subr.bf16.mxu0 0
      %2923 = vmatpush1.bf16.xpose.msra.mxu0 0
      %2924 = vmatprep.subr.bf16.mxu0 0
      %2925 = vmatpush1.bf16.xpose.msra.mxu0 0
      %2926 = vmatprep.subr.bf16.mxu0 0
      %2927 = vmatpush1.bf16.xpose.msra.mxu0 0
      %2928 = vmatprep.subr.bf16.mxu0 0
      %2929 = vmatpush1.bf16.xpose.msra.mxu0 0
      %2930 = vmatprep.subr.bf16.mxu0 0
      %2931 = vmatpush1.bf16.xpose.msra.mxu0 0
      %2932 = vmatprep.subr.bf16.mxu0 0
      %2933 = vmatpush1.bf16.xpose.msra.mxu0 0
      %2934 = vmatprep.mubr.bf16.mxu0 0
      %2935 = vmatmul.mubr.bf16.gmra.mrb[0].mxu0 %v2897
      %v2936 = vpop.f32.mrb[0].mxu0
      %v2937 = vadd.f32 0.0, %v2936
      %v2938 = vpop.f32.mrb[0].mxu0
      %v2939 = vpop.f32.mrb[0].mxu0
      %v2940 = vadd.f32 0.0, %v2939
      %v2941 = vpop.f32.mrb[0].mxu0
      %2942 = vdwg.mxu0
      %v2944 = vsel %vm2096, %v1218, 0
      %v2947 = vsel %vm2096, %v1634, 0
      %2949 = vmatprep.subr.bf16.mxu0 0
      %2950 = vmatpush1.bf16.xpose.msra.mxu0 %v2947
      %2951 = vmatprep.subr.bf16.mxu0 0
      %2952 = vmatpush1.bf16.xpose.msra.mxu0 0
      %2953 = vmatprep.subr.bf16.mxu0 0
      %2954 = vmatpush1.bf16.xpose.msra.mxu0 0
      %2955 = vmatprep.subr.bf16.mxu0 0
      %2956 = vmatpush1.bf16.xpose.msra.mxu0 0
      %2957 = vmatprep.subr.bf16.mxu0 0
      %2958 = vmatpush1.bf16.xpose.msra.mxu0 0
      %2959 = vmatprep.subr.bf16.mxu0 0
      %2960 = vmatpush1.bf16.xpose.msra.mxu0 0
      %2961 = vmatprep.subr.bf16.mxu0 0
      %2962 = vmatpush1.bf16.xpose.msra.mxu0 0
      %2963 = vmatprep.subr.bf16.mxu0 0
      %2964 = vmatpush1.bf16.xpose.msra.mxu0 0
      %2965 = vmatprep.subr.bf16.mxu0 0
      %2966 = vmatpush1.bf16.xpose.msra.mxu0 0
      %2967 = vmatprep.subr.bf16.mxu0 0
      %2968 = vmatpush1.bf16.xpose.msra.mxu0 0
      %2969 = vmatprep.subr.bf16.mxu0 0
      %2970 = vmatpush1.bf16.xpose.msra.mxu0 0
      %2971 = vmatprep.subr.bf16.mxu0 0
      %2972 = vmatpush1.bf16.xpose.msra.mxu0 0
      %2973 = vmatprep.subr.bf16.mxu0 0
      %2974 = vmatpush1.bf16.xpose.msra.mxu0 0
      %2975 = vmatprep.subr.bf16.mxu0 0
      %2976 = vmatpush1.bf16.xpose.msra.mxu0 0
      %2977 = vmatprep.subr.bf16.mxu0 0
      %2978 = vmatpush1.bf16.xpose.msra.mxu0 0
      %2979 = vmatprep.subr.bf16.mxu0 0
      %2980 = vmatpush1.bf16.xpose.msra.mxu0 0
      %2981 = vmatprep.mubr.bf16.mxu0 0
      %2982 = vmatmul.mubr.bf16.gmra.mrb[0].mxu0 %v2944
      %v2983 = vpop.f32.mrb[0].mxu0
      %v2984 = vadd.f32 0.0, %v2983
      %v2985 = vpop.f32.mrb[0].mxu0
      %v2986 = vpop.f32.mrb[0].mxu0
      %v2987 = vadd.f32 0.0, %v2986
      %v2988 = vpop.f32.mrb[0].mxu0
      %2989 = vdwg.mxu0
      %v2991 = vsel %vm2096, %v1219, 0
      %v2994 = vsel %vm2096, %v1635, 0
      %2996 = vmatprep.subr.bf16.mxu0 0
      %2997 = vmatpush1.bf16.xpose.msra.mxu0 %v2994
      %2998 = vmatprep.subr.bf16.mxu0 0
      %2999 = vmatpush1.bf16.xpose.msra.mxu0 0
      %3000 = vmatprep.subr.bf16.mxu0 0
      %3001 = vmatpush1.bf16.xpose.msra.mxu0 0
      %3002 = vmatprep.subr.bf16.mxu0 0
      %3003 = vmatpush1.bf16.xpose.msra.mxu0 0
      %3004 = vmatprep.subr.bf16.mxu0 0
      %3005 = vmatpush1.bf16.xpose.msra.mxu0 0
      %3006 = vmatprep.subr.bf16.mxu0 0
      %3007 = vmatpush1.bf16.xpose.msra.mxu0 0
      %3008 = vmatprep.subr.bf16.mxu0 0
      %3009 = vmatpush1.bf16.xpose.msra.mxu0 0
      %3010 = vmatprep.subr.bf16.mxu0 0
      %3011 = vmatpush1.bf16.xpose.msra.mxu0 0
      %3012 = vmatprep.subr.bf16.mxu0 0
      %3013 = vmatpush1.bf16.xpose.msra.mxu0 0
      %3014 = vmatprep.subr.bf16.mxu0 0
      %3015 = vmatpush1.bf16.xpose.msra.mxu0 0
      %3016 = vmatprep.subr.bf16.mxu0 0
      %3017 = vmatpush1.bf16.xpose.msra.mxu0 0
      %3018 = vmatprep.subr.bf16.mxu0 0
      %3019 = vmatpush1.bf16.xpose.msra.mxu0 0
      %3020 = vmatprep.subr.bf16.mxu0 0
      %3021 = vmatpush1.bf16.xpose.msra.mxu0 0
      %3022 = vmatprep.subr.bf16.mxu0 0
      %3023 = vmatpush1.bf16.xpose.msra.mxu0 0
      %3024 = vmatprep.subr.bf16.mxu0 0
      %3025 = vmatpush1.bf16.xpose.msra.mxu0 0
      %3026 = vmatprep.subr.bf16.mxu0 0
      %3027 = vmatpush1.bf16.xpose.msra.mxu0 0
      %3028 = vmatprep.mubr.bf16.mxu0 0
      %3029 = vmatmul.mubr.bf16.gmra.mrb[0].mxu0 %v2991
      %v3030 = vpop.f32.mrb[0].mxu0
      %v3031 = vadd.f32 0.0, %v3030
      %v3032 = vpop.f32.mrb[0].mxu0
      %v3033 = vpop.f32.mrb[0].mxu0
      %v3034 = vadd.f32 0.0, %v3033
      %v3035 = vpop.f32.mrb[0].mxu0
      %3036 = vdwg.mxu0
      %v3038 = vsel %vm2096, %v1220, 0
      %v3041 = vsel %vm2096, %v1636, 0
      %3043 = vmatprep.subr.bf16.mxu0 0
      %3044 = vmatpush1.bf16.xpose.msra.mxu0 %v3041
      %3045 = vmatprep.subr.bf16.mxu0 0
      %3046 = vmatpush1.bf16.xpose.msra.mxu0 0
      %3047 = vmatprep.subr.bf16.mxu0 0
      %3048 = vmatpush1.bf16.xpose.msra.mxu0 0
      %3049 = vmatprep.subr.bf16.mxu0 0
      %3050 = vmatpush1.bf16.xpose.msra.mxu0 0
      %3051 = vmatprep.subr.bf16.mxu0 0
      %3052 = vmatpush1.bf16.xpose.msra.mxu0 0
      %3053 = vmatprep.subr.bf16.mxu0 0
      %3054 = vmatpush1.bf16.xpose.msra.mxu0 0
      %3055 = vmatprep.subr.bf16.mxu0 0
      %3056 = vmatpush1.bf16.xpose.msra.mxu0 0
      %3057 = vmatprep.subr.bf16.mxu0 0
      %3058 = vmatpush1.bf16.xpose.msra.mxu0 0
      %3059 = vmatprep.subr.bf16.mxu0 0
      %3060 = vmatpush1.bf16.xpose.msra.mxu0 0
      %3061 = vmatprep.subr.bf16.mxu0 0
      %3062 = vmatpush1.bf16.xpose.msra.mxu0 0
      %3063 = vmatprep.subr.bf16.mxu0 0
      %3064 = vmatpush1.bf16.xpose.msra.mxu0 0
      %3065 = vmatprep.subr.bf16.mxu0 0
      %3066 = vmatpush1.bf16.xpose.msra.mxu0 0
      %3067 = vmatprep.subr.bf16.mxu0 0
      %3068 = vmatpush1.bf16.xpose.msra.mxu0 0
      %3069 = vmatprep.subr.bf16.mxu0 0
      %3070 = vmatpush1.bf16.xpose.msra.mxu0 0
      %3071 = vmatprep.subr.bf16.mxu0 0
      %3072 = vmatpush1.bf16.xpose.msra.mxu0 0
      %3073 = vmatprep.subr.bf16.mxu0 0
      %3074 = vmatpush1.bf16.xpose.msra.mxu0 0
      %3075 = vmatprep.mubr.bf16.mxu0 0
      %3076 = vmatmul.mubr.bf16.gmra.mrb[0].mxu0 %v3038
      %v3077 = vpop.f32.mrb[0].mxu0
      %v3078 = vadd.f32 0.0, %v3077
      %v3079 = vpop.f32.mrb[0].mxu0
      %v3080 = vpop.f32.mrb[0].mxu0
      %v3081 = vadd.f32 0.0, %v3080
      %v3082 = vpop.f32.mrb[0].mxu0
      %3083 = vdwg.mxu0
      %v3085 = vsel %vm2096, %v1221, 0
      %v3088 = vsel %vm2096, %v1637, 0
      %3090 = vmatprep.subr.bf16.mxu0 0
      %3091 = vmatpush1.bf16.xpose.msra.mxu0 %v3088
      %3092 = vmatprep.subr.bf16.mxu0 0
      %3093 = vmatpush1.bf16.xpose.msra.mxu0 0
      %3094 = vmatprep.subr.bf16.mxu0 0
      %3095 = vmatpush1.bf16.xpose.msra.mxu0 0
      %3096 = vmatprep.subr.bf16.mxu0 0
      %3097 = vmatpush1.bf16.xpose.msra.mxu0 0
      %3098 = vmatprep.subr.bf16.mxu0 0
      %3099 = vmatpush1.bf16.xpose.msra.mxu0 0
      %3100 = vmatprep.subr.bf16.mxu0 0
      %3101 = vmatpush1.bf16.xpose.msra.mxu0 0
      %3102 = vmatprep.subr.bf16.mxu0 0
      %3103 = vmatpush1.bf16.xpose.msra.mxu0 0
      %3104 = vmatprep.subr.bf16.mxu0 0
      %3105 = vmatpush1.bf16.xpose.msra.mxu0 0
      %3106 = vmatprep.subr.bf16.mxu0 0
      %3107 = vmatpush1.bf16.xpose.msra.mxu0 0
      %3108 = vmatprep.subr.bf16.mxu0 0
      %3109 = vmatpush1.bf16.xpose.msra.mxu0 0
      %3110 = vmatprep.subr.bf16.mxu0 0
      %3111 = vmatpush1.bf16.xpose.msra.mxu0 0
      %3112 = vmatprep.subr.bf16.mxu0 0
      %3113 = vmatpush1.bf16.xpose.msra.mxu0 0
      %3114 = vmatprep.subr.bf16.mxu0 0
      %3115 = vmatpush1.bf16.xpose.msra.mxu0 0
      %3116 = vmatprep.subr.bf16.mxu0 0
      %3117 = vmatpush1.bf16.xpose.msra.mxu0 0
      %3118 = vmatprep.subr.bf16.mxu0 0
      %3119 = vmatpush1.bf16.xpose.msra.mxu0 0
      %3120 = vmatprep.subr.bf16.mxu0 0
      %3121 = vmatpush1.bf16.xpose.msra.mxu0 0
      %3122 = vmatprep.mubr.bf16.mxu0 0
      %3123 = vmatmul.mubr.bf16.gmra.mrb[0].mxu0 %v3085
      %v3124 = vpop.f32.mrb[0].mxu0
      %v3125 = vadd.f32 0.0, %v3124
      %v3126 = vpop.f32.mrb[0].mxu0
      %v3127 = vpop.f32.mrb[0].mxu0
      %v3128 = vadd.f32 0.0, %v3127
      %v3129 = vpop.f32.mrb[0].mxu0
      %3130 = vdwg.mxu0
      %v3132 = vsel %vm2096, %v1222, 0
      %v3135 = vsel %vm2096, %v1638, 0
      %3137 = vmatprep.subr.bf16.mxu0 0
      %3138 = vmatpush1.bf16.xpose.msra.mxu0 %v3135
      %3139 = vmatprep.subr.bf16.mxu0 0
      %3140 = vmatpush1.bf16.xpose.msra.mxu0 0
      %3141 = vmatprep.subr.bf16.mxu0 0
      %3142 = vmatpush1.bf16.xpose.msra.mxu0 0
      %3143 = vmatprep.subr.bf16.mxu0 0
      %3144 = vmatpush1.bf16.xpose.msra.mxu0 0
      %3145 = vmatprep.subr.bf16.mxu0 0
      %3146 = vmatpush1.bf16.xpose.msra.mxu0 0
      %3147 = vmatprep.subr.bf16.mxu0 0
      %3148 = vmatpush1.bf16.xpose.msra.mxu0 0
      %3149 = vmatprep.subr.bf16.mxu0 0
      %3150 = vmatpush1.bf16.xpose.msra.mxu0 0
      %3151 = vmatprep.subr.bf16.mxu0 0
      %3152 = vmatpush1.bf16.xpose.msra.mxu0 0
      %3153 = vmatprep.subr.bf16.mxu0 0
      %3154 = vmatpush1.bf16.xpose.msra.mxu0 0
      %3155 = vmatprep.subr.bf16.mxu0 0
      %3156 = vmatpush1.bf16.xpose.msra.mxu0 0
      %3157 = vmatprep.subr.bf16.mxu0 0
      %3158 = vmatpush1.bf16.xpose.msra.mxu0 0
      %3159 = vmatprep.subr.bf16.mxu0 0
      %3160 = vmatpush1.bf16.xpose.msra.mxu0 0
      %3161 = vmatprep.subr.bf16.mxu0 0
      %3162 = vmatpush1.bf16.xpose.msra.mxu0 0
      %3163 = vmatprep.subr.bf16.mxu0 0
      %3164 = vmatpush1.bf16.xpose.msra.mxu0 0
      %3165 = vmatprep.subr.bf16.mxu0 0
      %3166 = vmatpush1.bf16.xpose.msra.mxu0 0
      %3167 = vmatprep.subr.bf16.mxu0 0
      %3168 = vmatpush1.bf16.xpose.msra.mxu0 0
      %3169 = vmatprep.mubr.bf16.mxu0 0
      %3170 = vmatmul.mubr.bf16.gmra.mrb[0].mxu0 %v3132
      %v3171 = vpop.f32.mrb[0].mxu0
      %v3172 = vadd.f32 0.0, %v3171
      %v3173 = vpop.f32.mrb[0].mxu0
      %v3174 = vpop.f32.mrb[0].mxu0
      %v3175 = vadd.f32 0.0, %v3174
      %v3176 = vpop.f32.mrb[0].mxu0
      %3177 = vdwg.mxu0
      %v3179 = vsel %vm2096, %v1223, 0
      %v3182 = vsel %vm2096, %v1639, 0
      %3184 = vmatprep.subr.bf16.mxu0 0
      %3185 = vmatpush1.bf16.xpose.msra.mxu0 %v3182
      %3186 = vmatprep.subr.bf16.mxu0 0
      %3187 = vmatpush1.bf16.xpose.msra.mxu0 0
      %3188 = vmatprep.subr.bf16.mxu0 0
      %3189 = vmatpush1.bf16.xpose.msra.mxu0 0
      %3190 = vmatprep.subr.bf16.mxu0 0
      %3191 = vmatpush1.bf16.xpose.msra.mxu0 0
      %3192 = vmatprep.subr.bf16.mxu0 0
      %3193 = vmatpush1.bf16.xpose.msra.mxu0 0
      %3194 = vmatprep.subr.bf16.mxu0 0
      %3195 = vmatpush1.bf16.xpose.msra.mxu0 0
      %3196 = vmatprep.subr.bf16.mxu0 0
      %3197 = vmatpush1.bf16.xpose.msra.mxu0 0
      %3198 = vmatprep.subr.bf16.mxu0 0
      %3199 = vmatpush1.bf16.xpose.msra.mxu0 0
      %3200 = vmatprep.subr.bf16.mxu0 0
      %3201 = vmatpush1.bf16.xpose.msra.mxu0 0
      %3202 = vmatprep.subr.bf16.mxu0 0
      %3203 = vmatpush1.bf16.xpose.msra.mxu0 0
      %3204 = vmatprep.subr.bf16.mxu0 0
      %3205 = vmatpush1.bf16.xpose.msra.mxu0 0
      %3206 = vmatprep.subr.bf16.mxu0 0
      %3207 = vmatpush1.bf16.xpose.msra.mxu0 0
      %3208 = vmatprep.subr.bf16.mxu0 0
      %3209 = vmatpush1.bf16.xpose.msra.mxu0 0
      %3210 = vmatprep.subr.bf16.mxu0 0
      %3211 = vmatpush1.bf16.xpose.msra.mxu0 0
      %3212 = vmatprep.subr.bf16.mxu0 0
      %3213 = vmatpush1.bf16.xpose.msra.mxu0 0
      %3214 = vmatprep.subr.bf16.mxu0 0
      %3215 = vmatpush1.bf16.xpose.msra.mxu0 0
      %3216 = vmatprep.mubr.bf16.mxu0 0
      %3217 = vmatmul.mubr.bf16.gmra.mrb[0].mxu0 %v3179
      %v3218 = vpop.f32.mrb[0].mxu0
      %v3219 = vadd.f32 0.0, %v3218
      %v3220 = vpop.f32.mrb[0].mxu0
      %v3221 = vpop.f32.mrb[0].mxu0
      %v3222 = vadd.f32 0.0, %v3221
      %v3223 = vpop.f32.mrb[0].mxu0
      %3224 = vdwg.mxu0
      %v3226 = vsel %vm2096, %v1224, 0
      %v3229 = vsel %vm2096, %v1640, 0
      %3231 = vmatprep.subr.bf16.mxu0 0
      %3232 = vmatpush1.bf16.xpose.msra.mxu0 %v3229
      %3233 = vmatprep.subr.bf16.mxu0 0
      %3234 = vmatpush1.bf16.xpose.msra.mxu0 0
      %3235 = vmatprep.subr.bf16.mxu0 0
      %3236 = vmatpush1.bf16.xpose.msra.mxu0 0
      %3237 = vmatprep.subr.bf16.mxu0 0
      %3238 = vmatpush1.bf16.xpose.msra.mxu0 0
      %3239 = vmatprep.subr.bf16.mxu0 0
      %3240 = vmatpush1.bf16.xpose.msra.mxu0 0
      %3241 = vmatprep.subr.bf16.mxu0 0
      %3242 = vmatpush1.bf16.xpose.msra.mxu0 0
      %3243 = vmatprep.subr.bf16.mxu0 0
      %3244 = vmatpush1.bf16.xpose.msra.mxu0 0
      %3245 = vmatprep.subr.bf16.mxu0 0
      %3246 = vmatpush1.bf16.xpose.msra.mxu0 0
      %3247 = vmatprep.subr.bf16.mxu0 0
      %3248 = vmatpush1.bf16.xpose.msra.mxu0 0
      %3249 = vmatprep.subr.bf16.mxu0 0
      %3250 = vmatpush1.bf16.xpose.msra.mxu0 0
      %3251 = vmatprep.subr.bf16.mxu0 0
      %3252 = vmatpush1.bf16.xpose.msra.mxu0 0
      %3253 = vmatprep.subr.bf16.mxu0 0
      %3254 = vmatpush1.bf16.xpose.msra.mxu0 0
      %3255 = vmatprep.subr.bf16.mxu0 0
      %3256 = vmatpush1.bf16.xpose.msra.mxu0 0
      %3257 = vmatprep.subr.bf16.mxu0 0
      %3258 = vmatpush1.bf16.xpose.msra.mxu0 0
      %3259 = vmatprep.subr.bf16.mxu0 0
      %3260 = vmatpush1.bf16.xpose.msra.mxu0 0
      %3261 = vmatprep.subr.bf16.mxu0 0
      %3262 = vmatpush1.bf16.xpose.msra.mxu0 0
      %3263 = vmatprep.mubr.bf16.mxu0 0
      %3264 = vmatmul.mubr.bf16.gmra.mrb[0].mxu0 %v3226
      %v3265 = vpop.f32.mrb[0].mxu0
      %v3266 = vadd.f32 0.0, %v3265
      %v3267 = vpop.f32.mrb[0].mxu0
      %v3268 = vpop.f32.mrb[0].mxu0
      %v3269 = vadd.f32 0.0, %v3268
      %v3270 = vpop.f32.mrb[0].mxu0
      %3271 = vdwg.mxu0
      %v3273 = vsel %vm2096, %v1225, 0
      %v3276 = vsel %vm2096, %v1641, 0
      %3278 = vmatprep.subr.bf16.mxu0 0
      %3279 = vmatpush1.bf16.xpose.msra.mxu0 %v3276
      %3280 = vmatprep.subr.bf16.mxu0 0
      %3281 = vmatpush1.bf16.xpose.msra.mxu0 0
      %3282 = vmatprep.subr.bf16.mxu0 0
      %3283 = vmatpush1.bf16.xpose.msra.mxu0 0
      %3284 = vmatprep.subr.bf16.mxu0 0
      %3285 = vmatpush1.bf16.xpose.msra.mxu0 0
      %3286 = vmatprep.subr.bf16.mxu0 0
      %3287 = vmatpush1.bf16.xpose.msra.mxu0 0
      %3288 = vmatprep.subr.bf16.mxu0 0
      %3289 = vmatpush1.bf16.xpose.msra.mxu0 0
      %3290 = vmatprep.subr.bf16.mxu0 0
      %3291 = vmatpush1.bf16.xpose.msra.mxu0 0
      %3292 = vmatprep.subr.bf16.mxu0 0
      %3293 = vmatpush1.bf16.xpose.msra.mxu0 0
      %3294 = vmatprep.subr.bf16.mxu0 0
      %3295 = vmatpush1.bf16.xpose.msra.mxu0 0
      %3296 = vmatprep.subr.bf16.mxu0 0
      %3297 = vmatpush1.bf16.xpose.msra.mxu0 0
      %3298 = vmatprep.subr.bf16.mxu0 0
      %3299 = vmatpush1.bf16.xpose.msra.mxu0 0
      %3300 = vmatprep.subr.bf16.mxu0 0
      %3301 = vmatpush1.bf16.xpose.msra.mxu0 0
      %3302 = vmatprep.subr.bf16.mxu0 0
      %3303 = vmatpush1.bf16.xpose.msra.mxu0 0
      %3304 = vmatprep.subr.bf16.mxu0 0
      %3305 = vmatpush1.bf16.xpose.msra.mxu0 0
      %3306 = vmatprep.subr.bf16.mxu0 0
      %3307 = vmatpush1.bf16.xpose.msra.mxu0 0
      %3308 = vmatprep.subr.bf16.mxu0 0
      %3309 = vmatpush1.bf16.xpose.msra.mxu0 0
      %3310 = vmatprep.mubr.bf16.mxu0 0
      %3311 = vmatmul.mubr.bf16.gmra.mrb[0].mxu0 %v3273
      %v3312 = vpop.f32.mrb[0].mxu0
      %v3313 = vadd.f32 0.0, %v3312
      %v3314 = vpop.f32.mrb[0].mxu0
      %v3315 = vpop.f32.mrb[0].mxu0
      %v3316 = vadd.f32 0.0, %v3315
      %v3317 = vpop.f32.mrb[0].mxu0
      %3318 = vdwg.mxu0
      %v3320 = vsel %vm2096, %v1226, 0
      %v3323 = vsel %vm2096, %v1642, 0
      %3325 = vmatprep.subr.bf16.mxu0 0
      %3326 = vmatpush1.bf16.xpose.msra.mxu0 %v3323
      %3327 = vmatprep.subr.bf16.mxu0 0
      %3328 = vmatpush1.bf16.xpose.msra.mxu0 0
      %3329 = vmatprep.subr.bf16.mxu0 0
      %3330 = vmatpush1.bf16.xpose.msra.mxu0 0
      %3331 = vmatprep.subr.bf16.mxu0 0
      %3332 = vmatpush1.bf16.xpose.msra.mxu0 0
      %3333 = vmatprep.subr.bf16.mxu0 0
      %3334 = vmatpush1.bf16.xpose.msra.mxu0 0
      %3335 = vmatprep.subr.bf16.mxu0 0
      %3336 = vmatpush1.bf16.xpose.msra.mxu0 0
      %3337 = vmatprep.subr.bf16.mxu0 0
      %3338 = vmatpush1.bf16.xpose.msra.mxu0 0
      %3339 = vmatprep.subr.bf16.mxu0 0
      %3340 = vmatpush1.bf16.xpose.msra.mxu0 0
      %3341 = vmatprep.subr.bf16.mxu0 0
      %3342 = vmatpush1.bf16.xpose.msra.mxu0 0
      %3343 = vmatprep.subr.bf16.mxu0 0
      %3344 = vmatpush1.bf16.xpose.msra.mxu0 0
      %3345 = vmatprep.subr.bf16.mxu0 0
      %3346 = vmatpush1.bf16.xpose.msra.mxu0 0
      %3347 = vmatprep.subr.bf16.mxu0 0
      %3348 = vmatpush1.bf16.xpose.msra.mxu0 0
      %3349 = vmatprep.subr.bf16.mxu0 0
      %3350 = vmatpush1.bf16.xpose.msra.mxu0 0
      %3351 = vmatprep.subr.bf16.mxu0 0
      %3352 = vmatpush1.bf16.xpose.msra.mxu0 0
      %3353 = vmatprep.subr.bf16.mxu0 0
      %3354 = vmatpush1.bf16.xpose.msra.mxu0 0
      %3355 = vmatprep.subr.bf16.mxu0 0
      %3356 = vmatpush1.bf16.xpose.msra.mxu0 0
      %3357 = vmatprep.mubr.bf16.mxu0 0
      %3358 = vmatmul.mubr.bf16.gmra.mrb[0].mxu0 %v3320
      %v3359 = vpop.f32.mrb[0].mxu0
      %v3360 = vadd.f32 0.0, %v3359
      %v3361 = vpop.f32.mrb[0].mxu0
      %v3362 = vpop.f32.mrb[0].mxu0
      %v3363 = vadd.f32 0.0, %v3362
      %v3364 = vpop.f32.mrb[0].mxu0
      %3365 = vdwg.mxu0
      %v3367 = vsel %vm2096, %v1227, 0
      %v3370 = vsel %vm2096, %v1643, 0
      %3372 = vmatprep.subr.bf16.mxu0 0
      %3373 = vmatpush1.bf16.xpose.msra.mxu0 %v3370
      %3374 = vmatprep.subr.bf16.mxu0 0
      %3375 = vmatpush1.bf16.xpose.msra.mxu0 0
      %3376 = vmatprep.subr.bf16.mxu0 0
      %3377 = vmatpush1.bf16.xpose.msra.mxu0 0
      %3378 = vmatprep.subr.bf16.mxu0 0
      %3379 = vmatpush1.bf16.xpose.msra.mxu0 0
      %3380 = vmatprep.subr.bf16.mxu0 0
      %3381 = vmatpush1.bf16.xpose.msra.mxu0 0
      %3382 = vmatprep.subr.bf16.mxu0 0
      %3383 = vmatpush1.bf16.xpose.msra.mxu0 0
      %3384 = vmatprep.subr.bf16.mxu0 0
      %3385 = vmatpush1.bf16.xpose.msra.mxu0 0
      %3386 = vmatprep.subr.bf16.mxu0 0
      %3387 = vmatpush1.bf16.xpose.msra.mxu0 0
      %3388 = vmatprep.subr.bf16.mxu0 0
      %3389 = vmatpush1.bf16.xpose.msra.mxu0 0
      %3390 = vmatprep.subr.bf16.mxu0 0
      %3391 = vmatpush1.bf16.xpose.msra.mxu0 0
      %3392 = vmatprep.subr.bf16.mxu0 0
      %3393 = vmatpush1.bf16.xpose.msra.mxu0 0
      %3394 = vmatprep.subr.bf16.mxu0 0
      %3395 = vmatpush1.bf16.xpose.msra.mxu0 0
      %3396 = vmatprep.subr.bf16.mxu0 0
      %3397 = vmatpush1.bf16.xpose.msra.mxu0 0
      %3398 = vmatprep.subr.bf16.mxu0 0
      %3399 = vmatpush1.bf16.xpose.msra.mxu0 0
      %3400 = vmatprep.subr.bf16.mxu0 0
      %3401 = vmatpush1.bf16.xpose.msra.mxu0 0
      %3402 = vmatprep.subr.bf16.mxu0 0
      %3403 = vmatpush1.bf16.xpose.msra.mxu0 0
      %3404 = vmatprep.mubr.bf16.mxu0 0
      %3405 = vmatmul.mubr.bf16.gmra.mrb[0].mxu0 %v3367
      %v3406 = vpop.f32.mrb[0].mxu0
      %v3407 = vadd.f32 0.0, %v3406
      %v3408 = vpop.f32.mrb[0].mxu0
      %v3409 = vpop.f32.mrb[0].mxu0
      %v3410 = vadd.f32 0.0, %v3409
      %v3411 = vpop.f32.mrb[0].mxu0
      %3412 = vdwg.mxu0
      %v3414 = vsel %vm2096, %v1228, 0
      %v3417 = vsel %vm2096, %v1644, 0
      %3419 = vmatprep.subr.bf16.mxu0 0
      %3420 = vmatpush1.bf16.xpose.msra.mxu0 %v3417
      %3421 = vmatprep.subr.bf16.mxu0 0
      %3422 = vmatpush1.bf16.xpose.msra.mxu0 0
      %3423 = vmatprep.subr.bf16.mxu0 0
      %3424 = vmatpush1.bf16.xpose.msra.mxu0 0
      %3425 = vmatprep.subr.bf16.mxu0 0
      %3426 = vmatpush1.bf16.xpose.msra.mxu0 0
      %3427 = vmatprep.subr.bf16.mxu0 0
      %3428 = vmatpush1.bf16.xpose.msra.mxu0 0
      %3429 = vmatprep.subr.bf16.mxu0 0
      %3430 = vmatpush1.bf16.xpose.msra.mxu0 0
      %3431 = vmatprep.subr.bf16.mxu0 0
      %3432 = vmatpush1.bf16.xpose.msra.mxu0 0
      %3433 = vmatprep.subr.bf16.mxu0 0
      %3434 = vmatpush1.bf16.xpose.msra.mxu0 0
      %3435 = vmatprep.subr.bf16.mxu0 0
      %3436 = vmatpush1.bf16.xpose.msra.mxu0 0
      %3437 = vmatprep.subr.bf16.mxu0 0
      %3438 = vmatpush1.bf16.xpose.msra.mxu0 0
      %3439 = vmatprep.subr.bf16.mxu0 0
      %3440 = vmatpush1.bf16.xpose.msra.mxu0 0
      %3441 = vmatprep.subr.bf16.mxu0 0
      %3442 = vmatpush1.bf16.xpose.msra.mxu0 0
      %3443 = vmatprep.subr.bf16.mxu0 0
      %3444 = vmatpush1.bf16.xpose.msra.mxu0 0
      %3445 = vmatprep.subr.bf16.mxu0 0
      %3446 = vmatpush1.bf16.xpose.msra.mxu0 0
      %3447 = vmatprep.subr.bf16.mxu0 0
      %3448 = vmatpush1.bf16.xpose.msra.mxu0 0
      %3449 = vmatprep.subr.bf16.mxu0 0
      %3450 = vmatpush1.bf16.xpose.msra.mxu0 0
      %3451 = vmatprep.mubr.bf16.mxu0 0
      %3452 = vmatmul.mubr.bf16.gmra.mrb[0].mxu0 %v3414
      %v3453 = vpop.f32.mrb[0].mxu0
      %v3454 = vadd.f32 0.0, %v3453
      %v3455 = vpop.f32.mrb[0].mxu0
      %v3456 = vpop.f32.mrb[0].mxu0
      %v3457 = vadd.f32 0.0, %v3456
      %v3458 = vpop.f32.mrb[0].mxu0
      %3459 = vdwg.mxu0
      %v3461 = vsel %vm2096, %v1229, 0
      %v3464 = vsel %vm2096, %v1645, 0
      %3466 = vmatprep.subr.bf16.mxu0 0
      %3467 = vmatpush1.bf16.xpose.msra.mxu0 %v3464
      %3468 = vmatprep.subr.bf16.mxu0 0
      %3469 = vmatpush1.bf16.xpose.msra.mxu0 0
      %3470 = vmatprep.subr.bf16.mxu0 0
      %3471 = vmatpush1.bf16.xpose.msra.mxu0 0
      %3472 = vmatprep.subr.bf16.mxu0 0
      %3473 = vmatpush1.bf16.xpose.msra.mxu0 0
      %3474 = vmatprep.subr.bf16.mxu0 0
      %3475 = vmatpush1.bf16.xpose.msra.mxu0 0
      %3476 = vmatprep.subr.bf16.mxu0 0
      %3477 = vmatpush1.bf16.xpose.msra.mxu0 0
      %3478 = vmatprep.subr.bf16.mxu0 0
      %3479 = vmatpush1.bf16.xpose.msra.mxu0 0
      %3480 = vmatprep.subr.bf16.mxu0 0
      %3481 = vmatpush1.bf16.xpose.msra.mxu0 0
      %3482 = vmatprep.subr.bf16.mxu0 0
      %3483 = vmatpush1.bf16.xpose.msra.mxu0 0
      %3484 = vmatprep.subr.bf16.mxu0 0
      %3485 = vmatpush1.bf16.xpose.msra.mxu0 0
      %3486 = vmatprep.subr.bf16.mxu0 0
      %3487 = vmatpush1.bf16.xpose.msra.mxu0 0
      %3488 = vmatprep.subr.bf16.mxu0 0
      %3489 = vmatpush1.bf16.xpose.msra.mxu0 0
      %3490 = vmatprep.subr.bf16.mxu0 0
      %3491 = vmatpush1.bf16.xpose.msra.mxu0 0
      %3492 = vmatprep.subr.bf16.mxu0 0
      %3493 = vmatpush1.bf16.xpose.msra.mxu0 0
      %3494 = vmatprep.subr.bf16.mxu0 0
      %3495 = vmatpush1.bf16.xpose.msra.mxu0 0
      %3496 = vmatprep.subr.bf16.mxu0 0
      %3497 = vmatpush1.bf16.xpose.msra.mxu0 0
      %3498 = vmatprep.mubr.bf16.mxu0 0
      %3499 = vmatmul.mubr.bf16.gmra.mrb[0].mxu0 %v3461
      %v3500 = vpop.f32.mrb[0].mxu0
      %v3501 = vadd.f32 0.0, %v3500
      %v3502 = vpop.f32.mrb[0].mxu0
      %v3503 = vpop.f32.mrb[0].mxu0
      %v3504 = vadd.f32 0.0, %v3503
      %v3505 = vpop.f32.mrb[0].mxu0
      %3506 = vdwg.mxu0
      %v3508 = vsel %vm2096, %v1230, 0
      %v3511 = vsel %vm2096, %v1646, 0
      %3513 = vmatprep.subr.bf16.mxu0 0
      %3514 = vmatpush1.bf16.xpose.msra.mxu0 %v3511
      %3515 = vmatprep.subr.bf16.mxu0 0
      %3516 = vmatpush1.bf16.xpose.msra.mxu0 0
      %3517 = vmatprep.subr.bf16.mxu0 0
      %3518 = vmatpush1.bf16.xpose.msra.mxu0 0
      %3519 = vmatprep.subr.bf16.mxu0 0
      %3520 = vmatpush1.bf16.xpose.msra.mxu0 0
      %3521 = vmatprep.subr.bf16.mxu0 0
      %3522 = vmatpush1.bf16.xpose.msra.mxu0 0
      %3523 = vmatprep.subr.bf16.mxu0 0
      %3524 = vmatpush1.bf16.xpose.msra.mxu0 0
      %3525 = vmatprep.subr.bf16.mxu0 0
      %3526 = vmatpush1.bf16.xpose.msra.mxu0 0
      %3527 = vmatprep.subr.bf16.mxu0 0
      %3528 = vmatpush1.bf16.xpose.msra.mxu0 0
      %3529 = vmatprep.subr.bf16.mxu0 0
      %3530 = vmatpush1.bf16.xpose.msra.mxu0 0
      %3531 = vmatprep.subr.bf16.mxu0 0
      %3532 = vmatpush1.bf16.xpose.msra.mxu0 0
      %3533 = vmatprep.subr.bf16.mxu0 0
      %3534 = vmatpush1.bf16.xpose.msra.mxu0 0
      %3535 = vmatprep.subr.bf16.mxu0 0
      %3536 = vmatpush1.bf16.xpose.msra.mxu0 0
      %3537 = vmatprep.subr.bf16.mxu0 0
      %3538 = vmatpush1.bf16.xpose.msra.mxu0 0
      %3539 = vmatprep.subr.bf16.mxu0 0
      %3540 = vmatpush1.bf16.xpose.msra.mxu0 0
      %3541 = vmatprep.subr.bf16.mxu0 0
      %3542 = vmatpush1.bf16.xpose.msra.mxu0 0
      %3543 = vmatprep.subr.bf16.mxu0 0
      %3544 = vmatpush1.bf16.xpose.msra.mxu0 0
      %3545 = vmatprep.mubr.bf16.mxu0 0
      %3546 = vmatmul.mubr.bf16.gmra.mrb[0].mxu0 %v3508
      %v3547 = vpop.f32.mrb[0].mxu0
      %v3548 = vadd.f32 0.0, %v3547
      %v3549 = vpop.f32.mrb[0].mxu0
      %v3550 = vpop.f32.mrb[0].mxu0
      %v3551 = vadd.f32 0.0, %v3550
      %v3552 = vpop.f32.mrb[0].mxu0
      %3553 = vdwg.mxu0
      %v3555 = vsel %vm2096, %v1231, 0
      %v3558 = vsel %vm2096, %v1647, 0
      %3560 = vmatprep.subr.bf16.mxu0 0
      %3561 = vmatpush1.bf16.xpose.msra.mxu0 %v3558
      %3562 = vmatprep.subr.bf16.mxu0 0
      %3563 = vmatpush1.bf16.xpose.msra.mxu0 0
      %3564 = vmatprep.subr.bf16.mxu0 0
      %3565 = vmatpush1.bf16.xpose.msra.mxu0 0
      %3566 = vmatprep.subr.bf16.mxu0 0
      %3567 = vmatpush1.bf16.xpose.msra.mxu0 0
      %3568 = vmatprep.subr.bf16.mxu0 0
      %3569 = vmatpush1.bf16.xpose.msra.mxu0 0
      %3570 = vmatprep.subr.bf16.mxu0 0
      %3571 = vmatpush1.bf16.xpose.msra.mxu0 0
      %3572 = vmatprep.subr.bf16.mxu0 0
      %3573 = vmatpush1.bf16.xpose.msra.mxu0 0
      %3574 = vmatprep.subr.bf16.mxu0 0
      %3575 = vmatpush1.bf16.xpose.msra.mxu0 0
      %3576 = vmatprep.subr.bf16.mxu0 0
      %3577 = vmatpush1.bf16.xpose.msra.mxu0 0
      %3578 = vmatprep.subr.bf16.mxu0 0
      %3579 = vmatpush1.bf16.xpose.msra.mxu0 0
      %3580 = vmatprep.subr.bf16.mxu0 0
      %3581 = vmatpush1.bf16.xpose.msra.mxu0 0
      %3582 = vmatprep.subr.bf16.mxu0 0
      %3583 = vmatpush1.bf16.xpose.msra.mxu0 0
      %3584 = vmatprep.subr.bf16.mxu0 0
      %3585 = vmatpush1.bf16.xpose.msra.mxu0 0
      %3586 = vmatprep.subr.bf16.mxu0 0
      %3587 = vmatpush1.bf16.xpose.msra.mxu0 0
      %3588 = vmatprep.subr.bf16.mxu0 0
      %3589 = vmatpush1.bf16.xpose.msra.mxu0 0
      %3590 = vmatprep.subr.bf16.mxu0 0
      %3591 = vmatpush1.bf16.xpose.msra.mxu0 0
      %3592 = vmatprep.mubr.bf16.mxu0 0
      %3593 = vmatmul.mubr.bf16.gmra.mrb[0].mxu0 %v3555
      %v3594 = vpop.f32.mrb[0].mxu0
      %v3595 = vadd.f32 0.0, %v3594
      %v3596 = vpop.f32.mrb[0].mxu0
      %v3597 = vpop.f32.mrb[0].mxu0
      %v3598 = vadd.f32 0.0, %v3597
      %v3599 = vpop.f32.mrb[0].mxu0
      %3600 = vdwg.mxu0
      %v3602 = vsel %vm2096, %v1232, 0
      %v3605 = vsel %vm2096, %v1648, 0
      %3607 = vmatprep.subr.bf16.mxu0 0
      %3608 = vmatpush1.bf16.xpose.msra.mxu0 %v3605
      %3609 = vmatprep.subr.bf16.mxu0 0
      %3610 = vmatpush1.bf16.xpose.msra.mxu0 0
      %3611 = vmatprep.subr.bf16.mxu0 0
      %3612 = vmatpush1.bf16.xpose.msra.mxu0 0
      %3613 = vmatprep.subr.bf16.mxu0 0
      %3614 = vmatpush1.bf16.xpose.msra.mxu0 0
      %3615 = vmatprep.subr.bf16.mxu0 0
      %3616 = vmatpush1.bf16.xpose.msra.mxu0 0
      %3617 = vmatprep.subr.bf16.mxu0 0
      %3618 = vmatpush1.bf16.xpose.msra.mxu0 0
      %3619 = vmatprep.subr.bf16.mxu0 0
      %3620 = vmatpush1.bf16.xpose.msra.mxu0 0
      %3621 = vmatprep.subr.bf16.mxu0 0
      %3622 = vmatpush1.bf16.xpose.msra.mxu0 0
      %3623 = vmatprep.subr.bf16.mxu0 0
      %3624 = vmatpush1.bf16.xpose.msra.mxu0 0
      %3625 = vmatprep.subr.bf16.mxu0 0
      %3626 = vmatpush1.bf16.xpose.msra.mxu0 0
      %3627 = vmatprep.subr.bf16.mxu0 0
      %3628 = vmatpush1.bf16.xpose.msra.mxu0 0
      %3629 = vmatprep.subr.bf16.mxu0 0
      %3630 = vmatpush1.bf16.xpose.msra.mxu0 0
      %3631 = vmatprep.subr.bf16.mxu0 0
      %3632 = vmatpush1.bf16.xpose.msra.mxu0 0
      %3633 = vmatprep.subr.bf16.mxu0 0
      %3634 = vmatpush1.bf16.xpose.msra.mxu0 0
      %3635 = vmatprep.subr.bf16.mxu0 0
      %3636 = vmatpush1.bf16.xpose.msra.mxu0 0
      %3637 = vmatprep.subr.bf16.mxu0 0
      %3638 = vmatpush1.bf16.xpose.msra.mxu0 0
      %3639 = vmatprep.mubr.bf16.mxu0 0
      %3640 = vmatmul.mubr.bf16.gmra.mrb[0].mxu0 %v3602
      %v3641 = vpop.f32.mrb[0].mxu0
      %v3642 = vadd.f32 0.0, %v3641
      %v3643 = vpop.f32.mrb[0].mxu0
      %v3644 = vpop.f32.mrb[0].mxu0
      %v3645 = vadd.f32 0.0, %v3644
      %v3646 = vpop.f32.mrb[0].mxu0
      %3647 = vdwg.mxu0
      %v3649 = vsel %vm2096, %v1233, 0
      %v3652 = vsel %vm2096, %v1649, 0
      %3654 = vmatprep.subr.bf16.mxu0 0
      %3655 = vmatpush1.bf16.xpose.msra.mxu0 %v3652
      %3656 = vmatprep.subr.bf16.mxu0 0
      %3657 = vmatpush1.bf16.xpose.msra.mxu0 0
      %3658 = vmatprep.subr.bf16.mxu0 0
      %3659 = vmatpush1.bf16.xpose.msra.mxu0 0
      %3660 = vmatprep.subr.bf16.mxu0 0
      %3661 = vmatpush1.bf16.xpose.msra.mxu0 0
      %3662 = vmatprep.subr.bf16.mxu0 0
      %3663 = vmatpush1.bf16.xpose.msra.mxu0 0
      %3664 = vmatprep.subr.bf16.mxu0 0
      %3665 = vmatpush1.bf16.xpose.msra.mxu0 0
      %3666 = vmatprep.subr.bf16.mxu0 0
      %3667 = vmatpush1.bf16.xpose.msra.mxu0 0
      %3668 = vmatprep.subr.bf16.mxu0 0
      %3669 = vmatpush1.bf16.xpose.msra.mxu0 0
      %3670 = vmatprep.subr.bf16.mxu0 0
      %3671 = vmatpush1.bf16.xpose.msra.mxu0 0
      %3672 = vmatprep.subr.bf16.mxu0 0
      %3673 = vmatpush1.bf16.xpose.msra.mxu0 0
      %3674 = vmatprep.subr.bf16.mxu0 0
      %3675 = vmatpush1.bf16.xpose.msra.mxu0 0
      %3676 = vmatprep.subr.bf16.mxu0 0
      %3677 = vmatpush1.bf16.xpose.msra.mxu0 0
      %3678 = vmatprep.subr.bf16.mxu0 0
      %3679 = vmatpush1.bf16.xpose.msra.mxu0 0
      %3680 = vmatprep.subr.bf16.mxu0 0
      %3681 = vmatpush1.bf16.xpose.msra.mxu0 0
      %3682 = vmatprep.subr.bf16.mxu0 0
      %3683 = vmatpush1.bf16.xpose.msra.mxu0 0
      %3684 = vmatprep.subr.bf16.mxu0 0
      %3685 = vmatpush1.bf16.xpose.msra.mxu0 0
      %3686 = vmatprep.mubr.bf16.mxu0 0
      %3687 = vmatmul.mubr.bf16.gmra.mrb[0].mxu0 %v3649
      %v3688 = vpop.f32.mrb[0].mxu0
      %v3689 = vadd.f32 0.0, %v3688
      %v3690 = vpop.f32.mrb[0].mxu0
      %v3691 = vpop.f32.mrb[0].mxu0
      %v3692 = vadd.f32 0.0, %v3691
      %v3693 = vpop.f32.mrb[0].mxu0
      %3694 = vdwg.mxu0
      %v3696 = vsel %vm2096, %v1234, 0
      %v3699 = vsel %vm2096, %v1650, 0
      %3701 = vmatprep.subr.bf16.mxu0 0
      %3702 = vmatpush1.bf16.xpose.msra.mxu0 %v3699
      %3703 = vmatprep.subr.bf16.mxu0 0
      %3704 = vmatpush1.bf16.xpose.msra.mxu0 0
      %3705 = vmatprep.subr.bf16.mxu0 0
      %3706 = vmatpush1.bf16.xpose.msra.mxu0 0
      %3707 = vmatprep.subr.bf16.mxu0 0
      %3708 = vmatpush1.bf16.xpose.msra.mxu0 0
      %3709 = vmatprep.subr.bf16.mxu0 0
      %3710 = vmatpush1.bf16.xpose.msra.mxu0 0
      %3711 = vmatprep.subr.bf16.mxu0 0
      %3712 = vmatpush1.bf16.xpose.msra.mxu0 0
      %3713 = vmatprep.subr.bf16.mxu0 0
      %3714 = vmatpush1.bf16.xpose.msra.mxu0 0
      %3715 = vmatprep.subr.bf16.mxu0 0
      %3716 = vmatpush1.bf16.xpose.msra.mxu0 0
      %3717 = vmatprep.subr.bf16.mxu0 0
      %3718 = vmatpush1.bf16.xpose.msra.mxu0 0
      %3719 = vmatprep.subr.bf16.mxu0 0
      %3720 = vmatpush1.bf16.xpose.msra.mxu0 0
      %3721 = vmatprep.subr.bf16.mxu0 0
      %3722 = vmatpush1.bf16.xpose.msra.mxu0 0
      %3723 = vmatprep.subr.bf16.mxu0 0
      %3724 = vmatpush1.bf16.xpose.msra.mxu0 0
      %3725 = vmatprep.subr.bf16.mxu0 0
      %3726 = vmatpush1.bf16.xpose.msra.mxu0 0
      %3727 = vmatprep.subr.bf16.mxu0 0
      %3728 = vmatpush1.bf16.xpose.msra.mxu0 0
      %3729 = vmatprep.subr.bf16.mxu0 0
      %3730 = vmatpush1.bf16.xpose.msra.mxu0 0
      %3731 = vmatprep.subr.bf16.mxu0 0
      %3732 = vmatpush1.bf16.xpose.msra.mxu0 0
      %3733 = vmatprep.mubr.bf16.mxu0 0
      %3734 = vmatmul.mubr.bf16.gmra.mrb[0].mxu0 %v3696
      %v3735 = vpop.f32.mrb[0].mxu0
      %v3736 = vadd.f32 0.0, %v3735
      %v3737 = vpop.f32.mrb[0].mxu0
      %v3738 = vpop.f32.mrb[0].mxu0
      %v3739 = vadd.f32 0.0, %v3738
      %v3740 = vpop.f32.mrb[0].mxu0
      %3741 = vdwg.mxu0
      %v3743 = vsel %vm2096, %v1235, 0
      %v3746 = vsel %vm2096, %v1651, 0
      %3748 = vmatprep.subr.bf16.mxu0 0
      %3749 = vmatpush1.bf16.xpose.msra.mxu0 %v3746
      %3750 = vmatprep.subr.bf16.mxu0 0
      %3751 = vmatpush1.bf16.xpose.msra.mxu0 0
      %3752 = vmatprep.subr.bf16.mxu0 0
      %3753 = vmatpush1.bf16.xpose.msra.mxu0 0
      %3754 = vmatprep.subr.bf16.mxu0 0
      %3755 = vmatpush1.bf16.xpose.msra.mxu0 0
      %3756 = vmatprep.subr.bf16.mxu0 0
      %3757 = vmatpush1.bf16.xpose.msra.mxu0 0
      %3758 = vmatprep.subr.bf16.mxu0 0
      %3759 = vmatpush1.bf16.xpose.msra.mxu0 0
      %3760 = vmatprep.subr.bf16.mxu0 0
      %3761 = vmatpush1.bf16.xpose.msra.mxu0 0
      %3762 = vmatprep.subr.bf16.mxu0 0
      %3763 = vmatpush1.bf16.xpose.msra.mxu0 0
      %3764 = vmatprep.subr.bf16.mxu0 0
      %3765 = vmatpush1.bf16.xpose.msra.mxu0 0
      %3766 = vmatprep.subr.bf16.mxu0 0
      %3767 = vmatpush1.bf16.xpose.msra.mxu0 0
      %3768 = vmatprep.subr.bf16.mxu0 0
      %3769 = vmatpush1.bf16.xpose.msra.mxu0 0
      %3770 = vmatprep.subr.bf16.mxu0 0
      %3771 = vmatpush1.bf16.xpose.msra.mxu0 0
      %3772 = vmatprep.subr.bf16.mxu0 0
      %3773 = vmatpush1.bf16.xpose.msra.mxu0 0
      %3774 = vmatprep.subr.bf16.mxu0 0
      %3775 = vmatpush1.bf16.xpose.msra.mxu0 0
      %3776 = vmatprep.subr.bf16.mxu0 0
      %3777 = vmatpush1.bf16.xpose.msra.mxu0 0
      %3778 = vmatprep.subr.bf16.mxu0 0
      %3779 = vmatpush1.bf16.xpose.msra.mxu0 0
      %3780 = vmatprep.mubr.bf16.mxu0 0
      %3781 = vmatmul.mubr.bf16.gmra.mrb[0].mxu0 %v3743
      %v3782 = vpop.f32.mrb[0].mxu0
      %v3783 = vadd.f32 0.0, %v3782
      %v3784 = vpop.f32.mrb[0].mxu0
      %v3785 = vpop.f32.mrb[0].mxu0
      %v3786 = vadd.f32 0.0, %v3785
      %v3787 = vpop.f32.mrb[0].mxu0
      %3788 = vdwg.mxu0
      %v3790 = vsel %vm2096, %v1236, 0
      %v3793 = vsel %vm2096, %v1652, 0
      %3795 = vmatprep.subr.bf16.mxu0 0
      %3796 = vmatpush1.bf16.xpose.msra.mxu0 %v3793
      %3797 = vmatprep.subr.bf16.mxu0 0
      %3798 = vmatpush1.bf16.xpose.msra.mxu0 0
      %3799 = vmatprep.subr.bf16.mxu0 0
      %3800 = vmatpush1.bf16.xpose.msra.mxu0 0
      %3801 = vmatprep.subr.bf16.mxu0 0
      %3802 = vmatpush1.bf16.xpose.msra.mxu0 0
      %3803 = vmatprep.subr.bf16.mxu0 0
      %3804 = vmatpush1.bf16.xpose.msra.mxu0 0
      %3805 = vmatprep.subr.bf16.mxu0 0
      %3806 = vmatpush1.bf16.xpose.msra.mxu0 0
      %3807 = vmatprep.subr.bf16.mxu0 0
      %3808 = vmatpush1.bf16.xpose.msra.mxu0 0
      %3809 = vmatprep.subr.bf16.mxu0 0
      %3810 = vmatpush1.bf16.xpose.msra.mxu0 0
      %3811 = vmatprep.subr.bf16.mxu0 0
      %3812 = vmatpush1.bf16.xpose.msra.mxu0 0
      %3813 = vmatprep.subr.bf16.mxu0 0
      %3814 = vmatpush1.bf16.xpose.msra.mxu0 0
      %3815 = vmatprep.subr.bf16.mxu0 0
      %3816 = vmatpush1.bf16.xpose.msra.mxu0 0
      %3817 = vmatprep.subr.bf16.mxu0 0
      %3818 = vmatpush1.bf16.xpose.msra.mxu0 0
      %3819 = vmatprep.subr.bf16.mxu0 0
      %3820 = vmatpush1.bf16.xpose.msra.mxu0 0
      %3821 = vmatprep.subr.bf16.mxu0 0
      %3822 = vmatpush1.bf16.xpose.msra.mxu0 0
      %3823 = vmatprep.subr.bf16.mxu0 0
      %3824 = vmatpush1.bf16.xpose.msra.mxu0 0
      %3825 = vmatprep.subr.bf16.mxu0 0
      %3826 = vmatpush1.bf16.xpose.msra.mxu0 0
      %3827 = vmatprep.mubr.bf16.mxu0 0
      %3828 = vmatmul.mubr.bf16.gmra.mrb[0].mxu0 %v3790
      %v3829 = vpop.f32.mrb[0].mxu0
      %v3830 = vadd.f32 0.0, %v3829
      %v3831 = vpop.f32.mrb[0].mxu0
      %v3832 = vpop.f32.mrb[0].mxu0
      %v3833 = vadd.f32 0.0, %v3832
      %v3834 = vpop.f32.mrb[0].mxu0
      %3835 = vdwg.mxu0
      %v3837 = vsel %vm2096, %v1237, 0
      %v3840 = vsel %vm2096, %v1653, 0
      %3842 = vmatprep.subr.bf16.mxu0 0
      %3843 = vmatpush1.bf16.xpose.msra.mxu0 %v3840
      %3844 = vmatprep.subr.bf16.mxu0 0
      %3845 = vmatpush1.bf16.xpose.msra.mxu0 0
      %3846 = vmatprep.subr.bf16.mxu0 0
      %3847 = vmatpush1.bf16.xpose.msra.mxu0 0
      %3848 = vmatprep.subr.bf16.mxu0 0
      %3849 = vmatpush1.bf16.xpose.msra.mxu0 0
      %3850 = vmatprep.subr.bf16.mxu0 0
      %3851 = vmatpush1.bf16.xpose.msra.mxu0 0
      %3852 = vmatprep.subr.bf16.mxu0 0
      %3853 = vmatpush1.bf16.xpose.msra.mxu0 0
      %3854 = vmatprep.subr.bf16.mxu0 0
      %3855 = vmatpush1.bf16.xpose.msra.mxu0 0
      %3856 = vmatprep.subr.bf16.mxu0 0
      %3857 = vmatpush1.bf16.xpose.msra.mxu0 0
      %3858 = vmatprep.subr.bf16.mxu0 0
      %3859 = vmatpush1.bf16.xpose.msra.mxu0 0
      %3860 = vmatprep.subr.bf16.mxu0 0
      %3861 = vmatpush1.bf16.xpose.msra.mxu0 0
      %3862 = vmatprep.subr.bf16.mxu0 0
      %3863 = vmatpush1.bf16.xpose.msra.mxu0 0
      %3864 = vmatprep.subr.bf16.mxu0 0
      %3865 = vmatpush1.bf16.xpose.msra.mxu0 0
      %3866 = vmatprep.subr.bf16.mxu0 0
      %3867 = vmatpush1.bf16.xpose.msra.mxu0 0
      %3868 = vmatprep.subr.bf16.mxu0 0
      %3869 = vmatpush1.bf16.xpose.msra.mxu0 0
      %3870 = vmatprep.subr.bf16.mxu0 0
      %3871 = vmatpush1.bf16.xpose.msra.mxu0 0
      %3872 = vmatprep.subr.bf16.mxu0 0
      %3873 = vmatpush1.bf16.xpose.msra.mxu0 0
      %3874 = vmatprep.mubr.bf16.mxu0 0
      %3875 = vmatmul.mubr.bf16.gmra.mrb[0].mxu0 %v3837
      %v3876 = vpop.f32.mrb[0].mxu0
      %v3877 = vadd.f32 0.0, %v3876
      %v3878 = vpop.f32.mrb[0].mxu0
      %v3879 = vpop.f32.mrb[0].mxu0
      %v3880 = vadd.f32 0.0, %v3879
      %v3881 = vpop.f32.mrb[0].mxu0
      %3882 = vdwg.mxu0
      %v3884 = vsel %vm2096, %v1238, 0
      %v3887 = vsel %vm2096, %v1654, 0
      %3889 = vmatprep.subr.bf16.mxu0 0
      %3890 = vmatpush1.bf16.xpose.msra.mxu0 %v3887
      %3891 = vmatprep.subr.bf16.mxu0 0
      %3892 = vmatpush1.bf16.xpose.msra.mxu0 0
      %3893 = vmatprep.subr.bf16.mxu0 0
      %3894 = vmatpush1.bf16.xpose.msra.mxu0 0
      %3895 = vmatprep.subr.bf16.mxu0 0
      %3896 = vmatpush1.bf16.xpose.msra.mxu0 0
      %3897 = vmatprep.subr.bf16.mxu0 0
      %3898 = vmatpush1.bf16.xpose.msra.mxu0 0
      %3899 = vmatprep.subr.bf16.mxu0 0
      %3900 = vmatpush1.bf16.xpose.msra.mxu0 0
      %3901 = vmatprep.subr.bf16.mxu0 0
      %3902 = vmatpush1.bf16.xpose.msra.mxu0 0
      %3903 = vmatprep.subr.bf16.mxu0 0
      %3904 = vmatpush1.bf16.xpose.msra.mxu0 0
      %3905 = vmatprep.subr.bf16.mxu0 0
      %3906 = vmatpush1.bf16.xpose.msra.mxu0 0
      %3907 = vmatprep.subr.bf16.mxu0 0
      %3908 = vmatpush1.bf16.xpose.msra.mxu0 0
      %3909 = vmatprep.subr.bf16.mxu0 0
      %3910 = vmatpush1.bf16.xpose.msra.mxu0 0
      %3911 = vmatprep.subr.bf16.mxu0 0
      %3912 = vmatpush1.bf16.xpose.msra.mxu0 0
      %3913 = vmatprep.subr.bf16.mxu0 0
      %3914 = vmatpush1.bf16.xpose.msra.mxu0 0
      %3915 = vmatprep.subr.bf16.mxu0 0
      %3916 = vmatpush1.bf16.xpose.msra.mxu0 0
      %3917 = vmatprep.subr.bf16.mxu0 0
      %3918 = vmatpush1.bf16.xpose.msra.mxu0 0
      %3919 = vmatprep.subr.bf16.mxu0 0
      %3920 = vmatpush1.bf16.xpose.msra.mxu0 0
      %3921 = vmatprep.mubr.bf16.mxu0 0
      %3922 = vmatmul.mubr.bf16.gmra.mrb[0].mxu0 %v3884
      %v3923 = vpop.f32.mrb[0].mxu0
      %v3924 = vadd.f32 0.0, %v3923
      %v3925 = vpop.f32.mrb[0].mxu0
      %v3926 = vpop.f32.mrb[0].mxu0
      %v3927 = vadd.f32 0.0, %v3926
      %v3928 = vpop.f32.mrb[0].mxu0
      %3929 = vdwg.mxu0
      %v3931 = vsel %vm2096, %v1239, 0
      %v3934 = vsel %vm2096, %v1655, 0
      %3936 = vmatprep.subr.bf16.mxu0 0
      %3937 = vmatpush1.bf16.xpose.msra.mxu0 %v3934
      %3938 = vmatprep.subr.bf16.mxu0 0
      %3939 = vmatpush1.bf16.xpose.msra.mxu0 0
      %3940 = vmatprep.subr.bf16.mxu0 0
      %3941 = vmatpush1.bf16.xpose.msra.mxu0 0
      %3942 = vmatprep.subr.bf16.mxu0 0
      %3943 = vmatpush1.bf16.xpose.msra.mxu0 0
      %3944 = vmatprep.subr.bf16.mxu0 0
      %3945 = vmatpush1.bf16.xpose.msra.mxu0 0
      %3946 = vmatprep.subr.bf16.mxu0 0
      %3947 = vmatpush1.bf16.xpose.msra.mxu0 0
      %3948 = vmatprep.subr.bf16.mxu0 0
      %3949 = vmatpush1.bf16.xpose.msra.mxu0 0
      %3950 = vmatprep.subr.bf16.mxu0 0
      %3951 = vmatpush1.bf16.xpose.msra.mxu0 0
      %3952 = vmatprep.subr.bf16.mxu0 0
      %3953 = vmatpush1.bf16.xpose.msra.mxu0 0
      %3954 = vmatprep.subr.bf16.mxu0 0
      %3955 = vmatpush1.bf16.xpose.msra.mxu0 0
      %3956 = vmatprep.subr.bf16.mxu0 0
      %3957 = vmatpush1.bf16.xpose.msra.mxu0 0
      %3958 = vmatprep.subr.bf16.mxu0 0
      %3959 = vmatpush1.bf16.xpose.msra.mxu0 0
      %3960 = vmatprep.subr.bf16.mxu0 0
      %3961 = vmatpush1.bf16.xpose.msra.mxu0 0
      %3962 = vmatprep.subr.bf16.mxu0 0
      %3963 = vmatpush1.bf16.xpose.msra.mxu0 0
      %3964 = vmatprep.subr.bf16.mxu0 0
      %3965 = vmatpush1.bf16.xpose.msra.mxu0 0
      %3966 = vmatprep.subr.bf16.mxu0 0
      %3967 = vmatpush1.bf16.xpose.msra.mxu0 0
      %3968 = vmatprep.mubr.bf16.mxu0 0
      %3969 = vmatmul.mubr.bf16.gmra.mrb[0].mxu0 %v3931
      %v3970 = vpop.f32.mrb[0].mxu0
      %v3971 = vadd.f32 0.0, %v3970
      %v3972 = vpop.f32.mrb[0].mxu0
      %v3973 = vpop.f32.mrb[0].mxu0
      %v3974 = vadd.f32 0.0, %v3973
      %v3975 = vpop.f32.mrb[0].mxu0
      %3976 = vdwg.mxu0
      %v3978 = vsel %vm2096, %v1240, 0
      %v3981 = vsel %vm2096, %v1656, 0
      %3983 = vmatprep.subr.bf16.mxu0 0
      %3984 = vmatpush1.bf16.xpose.msra.mxu0 %v3981
      %3985 = vmatprep.subr.bf16.mxu0 0
      %3986 = vmatpush1.bf16.xpose.msra.mxu0 0
      %3987 = vmatprep.subr.bf16.mxu0 0
      %3988 = vmatpush1.bf16.xpose.msra.mxu0 0
      %3989 = vmatprep.subr.bf16.mxu0 0
      %3990 = vmatpush1.bf16.xpose.msra.mxu0 0
      %3991 = vmatprep.subr.bf16.mxu0 0
      %3992 = vmatpush1.bf16.xpose.msra.mxu0 0
      %3993 = vmatprep.subr.bf16.mxu0 0
      %3994 = vmatpush1.bf16.xpose.msra.mxu0 0
      %3995 = vmatprep.subr.bf16.mxu0 0
      %3996 = vmatpush1.bf16.xpose.msra.mxu0 0
      %3997 = vmatprep.subr.bf16.mxu0 0
      %3998 = vmatpush1.bf16.xpose.msra.mxu0 0
      %3999 = vmatprep.subr.bf16.mxu0 0
      %4000 = vmatpush1.bf16.xpose.msra.mxu0 0
      %4001 = vmatprep.subr.bf16.mxu0 0
      %4002 = vmatpush1.bf16.xpose.msra.mxu0 0
      %4003 = vmatprep.subr.bf16.mxu0 0
      %4004 = vmatpush1.bf16.xpose.msra.mxu0 0
      %4005 = vmatprep.subr.bf16.mxu0 0
      %4006 = vmatpush1.bf16.xpose.msra.mxu0 0
      %4007 = vmatprep.subr.bf16.mxu0 0
      %4008 = vmatpush1.bf16.xpose.msra.mxu0 0
      %4009 = vmatprep.subr.bf16.mxu0 0
      %4010 = vmatpush1.bf16.xpose.msra.mxu0 0
      %4011 = vmatprep.subr.bf16.mxu0 0
      %4012 = vmatpush1.bf16.xpose.msra.mxu0 0
      %4013 = vmatprep.subr.bf16.mxu0 0
      %4014 = vmatpush1.bf16.xpose.msra.mxu0 0
      %4015 = vmatprep.mubr.bf16.mxu0 0
      %4016 = vmatmul.mubr.bf16.gmra.mrb[0].mxu0 %v3978
      %v4017 = vpop.f32.mrb[0].mxu0
      %v4018 = vadd.f32 0.0, %v4017
      %v4019 = vpop.f32.mrb[0].mxu0
      %v4020 = vpop.f32.mrb[0].mxu0
      %v4021 = vadd.f32 0.0, %v4020
      %v4022 = vpop.f32.mrb[0].mxu0
      %4023 = vdwg.mxu0
      %v4025 = vsel %vm2096, %v1241, 0
      %v4028 = vsel %vm2096, %v1657, 0
      %4030 = vmatprep.subr.bf16.mxu0 0
      %4031 = vmatpush1.bf16.xpose.msra.mxu0 %v4028
      %4032 = vmatprep.subr.bf16.mxu0 0
      %4033 = vmatpush1.bf16.xpose.msra.mxu0 0
      %4034 = vmatprep.subr.bf16.mxu0 0
      %4035 = vmatpush1.bf16.xpose.msra.mxu0 0
      %4036 = vmatprep.subr.bf16.mxu0 0
      %4037 = vmatpush1.bf16.xpose.msra.mxu0 0
      %4038 = vmatprep.subr.bf16.mxu0 0
      %4039 = vmatpush1.bf16.xpose.msra.mxu0 0
      %4040 = vmatprep.subr.bf16.mxu0 0
      %4041 = vmatpush1.bf16.xpose.msra.mxu0 0
      %4042 = vmatprep.subr.bf16.mxu0 0
      %4043 = vmatpush1.bf16.xpose.msra.mxu0 0
      %4044 = vmatprep.subr.bf16.mxu0 0
      %4045 = vmatpush1.bf16.xpose.msra.mxu0 0
      %4046 = vmatprep.subr.bf16.mxu0 0
      %4047 = vmatpush1.bf16.xpose.msra.mxu0 0
      %4048 = vmatprep.subr.bf16.mxu0 0
      %4049 = vmatpush1.bf16.xpose.msra.mxu0 0
      %4050 = vmatprep.subr.bf16.mxu0 0
      %4051 = vmatpush1.bf16.xpose.msra.mxu0 0
      %4052 = vmatprep.subr.bf16.mxu0 0
      %4053 = vmatpush1.bf16.xpose.msra.mxu0 0
      %4054 = vmatprep.subr.bf16.mxu0 0
      %4055 = vmatpush1.bf16.xpose.msra.mxu0 0
      %4056 = vmatprep.subr.bf16.mxu0 0
      %4057 = vmatpush1.bf16.xpose.msra.mxu0 0
      %4058 = vmatprep.subr.bf16.mxu0 0
      %4059 = vmatpush1.bf16.xpose.msra.mxu0 0
      %4060 = vmatprep.subr.bf16.mxu0 0
      %4061 = vmatpush1.bf16.xpose.msra.mxu0 0
      %4062 = vmatprep.mubr.bf16.mxu0 0
      %4063 = vmatmul.mubr.bf16.gmra.mrb[0].mxu0 %v4025
      %v4064 = vpop.f32.mrb[0].mxu0
      %v4065 = vadd.f32 0.0, %v4064
      %v4066 = vpop.f32.mrb[0].mxu0
      %v4067 = vpop.f32.mrb[0].mxu0
      %v4068 = vadd.f32 0.0, %v4067
      %v4069 = vpop.f32.mrb[0].mxu0
      %4070 = vdwg.mxu0
      %v4072 = vsel %vm2096, %v1242, 0
      %v4075 = vsel %vm2096, %v1658, 0
      %4077 = vmatprep.subr.bf16.mxu0 0
      %4078 = vmatpush1.bf16.xpose.msra.mxu0 %v4075
      %4079 = vmatprep.subr.bf16.mxu0 0
      %4080 = vmatpush1.bf16.xpose.msra.mxu0 0
      %4081 = vmatprep.subr.bf16.mxu0 0
      %4082 = vmatpush1.bf16.xpose.msra.mxu0 0
      %4083 = vmatprep.subr.bf16.mxu0 0
      %4084 = vmatpush1.bf16.xpose.msra.mxu0 0
      %4085 = vmatprep.subr.bf16.mxu0 0
      %4086 = vmatpush1.bf16.xpose.msra.mxu0 0
      %4087 = vmatprep.subr.bf16.mxu0 0
      %4088 = vmatpush1.bf16.xpose.msra.mxu0 0
      %4089 = vmatprep.subr.bf16.mxu0 0
      %4090 = vmatpush1.bf16.xpose.msra.mxu0 0
      %4091 = vmatprep.subr.bf16.mxu0 0
      %4092 = vmatpush1.bf16.xpose.msra.mxu0 0
      %4093 = vmatprep.subr.bf16.mxu0 0
      %4094 = vmatpush1.bf16.xpose.msra.mxu0 0
      %4095 = vmatprep.subr.bf16.mxu0 0
      %4096 = vmatpush1.bf16.xpose.msra.mxu0 0
      %4097 = vmatprep.subr.bf16.mxu0 0
      %4098 = vmatpush1.bf16.xpose.msra.mxu0 0
      %4099 = vmatprep.subr.bf16.mxu0 0
      %4100 = vmatpush1.bf16.xpose.msra.mxu0 0
      %4101 = vmatprep.subr.bf16.mxu0 0
      %4102 = vmatpush1.bf16.xpose.msra.mxu0 0
      %4103 = vmatprep.subr.bf16.mxu0 0
      %4104 = vmatpush1.bf16.xpose.msra.mxu0 0
      %4105 = vmatprep.subr.bf16.mxu0 0
      %4106 = vmatpush1.bf16.xpose.msra.mxu0 0
      %4107 = vmatprep.subr.bf16.mxu0 0
      %4108 = vmatpush1.bf16.xpose.msra.mxu0 0
      %4109 = vmatprep.mubr.bf16.mxu0 0
      %4110 = vmatmul.mubr.bf16.gmra.mrb[0].mxu0 %v4072
      %v4111 = vpop.f32.mrb[0].mxu0
      %v4112 = vadd.f32 0.0, %v4111
      %v4113 = vpop.f32.mrb[0].mxu0
      %v4114 = vpop.f32.mrb[0].mxu0
      %v4115 = vadd.f32 0.0, %v4114
      %v4116 = vpop.f32.mrb[0].mxu0
      %4117 = vdwg.mxu0
      %v4119 = vsel %vm2096, %v1243, 0
      %v4122 = vsel %vm2096, %v1659, 0
      %4124 = vmatprep.subr.bf16.mxu0 0
      %4125 = vmatpush1.bf16.xpose.msra.mxu0 %v4122
      %4126 = vmatprep.subr.bf16.mxu0 0
      %4127 = vmatpush1.bf16.xpose.msra.mxu0 0
      %4128 = vmatprep.subr.bf16.mxu0 0
      %4129 = vmatpush1.bf16.xpose.msra.mxu0 0
      %4130 = vmatprep.subr.bf16.mxu0 0
      %4131 = vmatpush1.bf16.xpose.msra.mxu0 0
      %4132 = vmatprep.subr.bf16.mxu0 0
      %4133 = vmatpush1.bf16.xpose.msra.mxu0 0
      %4134 = vmatprep.subr.bf16.mxu0 0
      %4135 = vmatpush1.bf16.xpose.msra.mxu0 0
      %4136 = vmatprep.subr.bf16.mxu0 0
      %4137 = vmatpush1.bf16.xpose.msra.mxu0 0
      %4138 = vmatprep.subr.bf16.mxu0 0
      %4139 = vmatpush1.bf16.xpose.msra.mxu0 0
      %4140 = vmatprep.subr.bf16.mxu0 0
      %4141 = vmatpush1.bf16.xpose.msra.mxu0 0
      %4142 = vmatprep.subr.bf16.mxu0 0
      %4143 = vmatpush1.bf16.xpose.msra.mxu0 0
      %4144 = vmatprep.subr.bf16.mxu0 0
      %4145 = vmatpush1.bf16.xpose.msra.mxu0 0
      %4146 = vmatprep.subr.bf16.mxu0 0
      %4147 = vmatpush1.bf16.xpose.msra.mxu0 0
      %4148 = vmatprep.subr.bf16.mxu0 0
      %4149 = vmatpush1.bf16.xpose.msra.mxu0 0
      %4150 = vmatprep.subr.bf16.mxu0 0
      %4151 = vmatpush1.bf16.xpose.msra.mxu0 0
      %4152 = vmatprep.subr.bf16.mxu0 0
      %4153 = vmatpush1.bf16.xpose.msra.mxu0 0
      %4154 = vmatprep.subr.bf16.mxu0 0
      %4155 = vmatpush1.bf16.xpose.msra.mxu0 0
      %4156 = vmatprep.mubr.bf16.mxu0 0
      %4157 = vmatmul.mubr.bf16.gmra.mrb[0].mxu0 %v4119
      %v4158 = vpop.f32.mrb[0].mxu0
      %v4159 = vadd.f32 0.0, %v4158
      %v4160 = vpop.f32.mrb[0].mxu0
      %v4161 = vpop.f32.mrb[0].mxu0
      %v4162 = vadd.f32 0.0, %v4161
      %v4163 = vpop.f32.mrb[0].mxu0
      %4164 = vdwg.mxu0
      %v4166 = vsel %vm2096, %v1244, 0
      %v4169 = vsel %vm2096, %v1660, 0
      %4171 = vmatprep.subr.bf16.mxu0 0
      %4172 = vmatpush1.bf16.xpose.msra.mxu0 %v4169
      %4173 = vmatprep.subr.bf16.mxu0 0
      %4174 = vmatpush1.bf16.xpose.msra.mxu0 0
      %4175 = vmatprep.subr.bf16.mxu0 0
      %4176 = vmatpush1.bf16.xpose.msra.mxu0 0
      %4177 = vmatprep.subr.bf16.mxu0 0
      %4178 = vmatpush1.bf16.xpose.msra.mxu0 0
      %4179 = vmatprep.subr.bf16.mxu0 0
      %4180 = vmatpush1.bf16.xpose.msra.mxu0 0
      %4181 = vmatprep.subr.bf16.mxu0 0
      %4182 = vmatpush1.bf16.xpose.msra.mxu0 0
      %4183 = vmatprep.subr.bf16.mxu0 0
      %4184 = vmatpush1.bf16.xpose.msra.mxu0 0
      %4185 = vmatprep.subr.bf16.mxu0 0
      %4186 = vmatpush1.bf16.xpose.msra.mxu0 0
      %4187 = vmatprep.subr.bf16.mxu0 0
      %4188 = vmatpush1.bf16.xpose.msra.mxu0 0
      %4189 = vmatprep.subr.bf16.mxu0 0
      %4190 = vmatpush1.bf16.xpose.msra.mxu0 0
      %4191 = vmatprep.subr.bf16.mxu0 0
      %4192 = vmatpush1.bf16.xpose.msra.mxu0 0
      %4193 = vmatprep.subr.bf16.mxu0 0
      %4194 = vmatpush1.bf16.xpose.msra.mxu0 0
      %4195 = vmatprep.subr.bf16.mxu0 0
      %4196 = vmatpush1.bf16.xpose.msra.mxu0 0
      %4197 = vmatprep.subr.bf16.mxu0 0
      %4198 = vmatpush1.bf16.xpose.msra.mxu0 0
      %4199 = vmatprep.subr.bf16.mxu0 0
      %4200 = vmatpush1.bf16.xpose.msra.mxu0 0
      %4201 = vmatprep.subr.bf16.mxu0 0
      %4202 = vmatpush1.bf16.xpose.msra.mxu0 0
      %4203 = vmatprep.mubr.bf16.mxu0 0
      %4204 = vmatmul.mubr.bf16.gmra.mrb[0].mxu0 %v4166
      %v4205 = vpop.f32.mrb[0].mxu0
      %v4206 = vadd.f32 0.0, %v4205
      %v4207 = vpop.f32.mrb[0].mxu0
      %v4208 = vpop.f32.mrb[0].mxu0
      %v4209 = vadd.f32 0.0, %v4208
      %v4210 = vpop.f32.mrb[0].mxu0
      %4211 = vdwg.mxu0
      %v4213 = vsel %vm2096, %v1245, 0
      %v4216 = vsel %vm2096, %v1661, 0
      %4218 = vmatprep.subr.bf16.mxu0 0
      %4219 = vmatpush1.bf16.xpose.msra.mxu0 %v4216
      %4220 = vmatprep.subr.bf16.mxu0 0
      %4221 = vmatpush1.bf16.xpose.msra.mxu0 0
      %4222 = vmatprep.subr.bf16.mxu0 0
      %4223 = vmatpush1.bf16.xpose.msra.mxu0 0
      %4224 = vmatprep.subr.bf16.mxu0 0
      %4225 = vmatpush1.bf16.xpose.msra.mxu0 0
      %4226 = vmatprep.subr.bf16.mxu0 0
      %4227 = vmatpush1.bf16.xpose.msra.mxu0 0
      %4228 = vmatprep.subr.bf16.mxu0 0
      %4229 = vmatpush1.bf16.xpose.msra.mxu0 0
      %4230 = vmatprep.subr.bf16.mxu0 0
      %4231 = vmatpush1.bf16.xpose.msra.mxu0 0
      %4232 = vmatprep.subr.bf16.mxu0 0
      %4233 = vmatpush1.bf16.xpose.msra.mxu0 0
      %4234 = vmatprep.subr.bf16.mxu0 0
      %4235 = vmatpush1.bf16.xpose.msra.mxu0 0
      %4236 = vmatprep.subr.bf16.mxu0 0
      %4237 = vmatpush1.bf16.xpose.msra.mxu0 0
      %4238 = vmatprep.subr.bf16.mxu0 0
      %4239 = vmatpush1.bf16.xpose.msra.mxu0 0
      %4240 = vmatprep.subr.bf16.mxu0 0
      %4241 = vmatpush1.bf16.xpose.msra.mxu0 0
      %4242 = vmatprep.subr.bf16.mxu0 0
      %4243 = vmatpush1.bf16.xpose.msra.mxu0 0
      %4244 = vmatprep.subr.bf16.mxu0 0
      %4245 = vmatpush1.bf16.xpose.msra.mxu0 0
      %4246 = vmatprep.subr.bf16.mxu0 0
      %4247 = vmatpush1.bf16.xpose.msra.mxu0 0
      %4248 = vmatprep.subr.bf16.mxu0 0
      %4249 = vmatpush1.bf16.xpose.msra.mxu0 0
      %4250 = vmatprep.mubr.bf16.mxu0 0
      %4251 = vmatmul.mubr.bf16.gmra.mrb[0].mxu0 %v4213
      %v4252 = vpop.f32.mrb[0].mxu0
      %v4253 = vadd.f32 0.0, %v4252
      %v4254 = vpop.f32.mrb[0].mxu0
      %v4255 = vpop.f32.mrb[0].mxu0
      %v4256 = vadd.f32 0.0, %v4255
      %v4257 = vpop.f32.mrb[0].mxu0
      %4258 = vdwg.mxu0
      %v4260 = vsel %vm2096, %v1246, 0
      %v4263 = vsel %vm2096, %v1662, 0
      %4265 = vmatprep.subr.bf16.mxu0 0
      %4266 = vmatpush1.bf16.xpose.msra.mxu0 %v4263
      %4267 = vmatprep.subr.bf16.mxu0 0
      %4268 = vmatpush1.bf16.xpose.msra.mxu0 0
      %4269 = vmatprep.subr.bf16.mxu0 0
      %4270 = vmatpush1.bf16.xpose.msra.mxu0 0
      %4271 = vmatprep.subr.bf16.mxu0 0
      %4272 = vmatpush1.bf16.xpose.msra.mxu0 0
      %4273 = vmatprep.subr.bf16.mxu0 0
      %4274 = vmatpush1.bf16.xpose.msra.mxu0 0
      %4275 = vmatprep.subr.bf16.mxu0 0
      %4276 = vmatpush1.bf16.xpose.msra.mxu0 0
      %4277 = vmatprep.subr.bf16.mxu0 0
      %4278 = vmatpush1.bf16.xpose.msra.mxu0 0
      %4279 = vmatprep.subr.bf16.mxu0 0
      %4280 = vmatpush1.bf16.xpose.msra.mxu0 0
      %4281 = vmatprep.subr.bf16.mxu0 0
      %4282 = vmatpush1.bf16.xpose.msra.mxu0 0
      %4283 = vmatprep.subr.bf16.mxu0 0
      %4284 = vmatpush1.bf16.xpose.msra.mxu0 0
      %4285 = vmatprep.subr.bf16.mxu0 0
      %4286 = vmatpush1.bf16.xpose.msra.mxu0 0
      %4287 = vmatprep.subr.bf16.mxu0 0
      %4288 = vmatpush1.bf16.xpose.msra.mxu0 0
      %4289 = vmatprep.subr.bf16.mxu0 0
      %4290 = vmatpush1.bf16.xpose.msra.mxu0 0
      %4291 = vmatprep.subr.bf16.mxu0 0
      %4292 = vmatpush1.bf16.xpose.msra.mxu0 0
      %4293 = vmatprep.subr.bf16.mxu0 0
      %4294 = vmatpush1.bf16.xpose.msra.mxu0 0
      %4295 = vmatprep.subr.bf16.mxu0 0
      %4296 = vmatpush1.bf16.xpose.msra.mxu0 0
      %4297 = vmatprep.mubr.bf16.mxu0 0
      %4298 = vmatmul.mubr.bf16.gmra.mrb[0].mxu0 %v4260
      %v4299 = vpop.f32.mrb[0].mxu0
      %v4300 = vadd.f32 0.0, %v4299
      %v4301 = vpop.f32.mrb[0].mxu0
      %v4302 = vpop.f32.mrb[0].mxu0
      %v4303 = vadd.f32 0.0, %v4302
      %v4304 = vpop.f32.mrb[0].mxu0
      %4305 = vdwg.mxu0
      %v4307 = vsel %vm2096, %v1247, 0
      %v4310 = vsel %vm2096, %v1663, 0
      %4312 = vmatprep.subr.bf16.mxu0 0
      %4313 = vmatpush1.bf16.xpose.msra.mxu0 %v4310
      %4314 = vmatprep.subr.bf16.mxu0 0
      %4315 = vmatpush1.bf16.xpose.msra.mxu0 0
      %4316 = vmatprep.subr.bf16.mxu0 0
      %4317 = vmatpush1.bf16.xpose.msra.mxu0 0
      %4318 = vmatprep.subr.bf16.mxu0 0
      %4319 = vmatpush1.bf16.xpose.msra.mxu0 0
      %4320 = vmatprep.subr.bf16.mxu0 0
      %4321 = vmatpush1.bf16.xpose.msra.mxu0 0
      %4322 = vmatprep.subr.bf16.mxu0 0
      %4323 = vmatpush1.bf16.xpose.msra.mxu0 0
      %4324 = vmatprep.subr.bf16.mxu0 0
      %4325 = vmatpush1.bf16.xpose.msra.mxu0 0
      %4326 = vmatprep.subr.bf16.mxu0 0
      %4327 = vmatpush1.bf16.xpose.msra.mxu0 0
      %4328 = vmatprep.subr.bf16.mxu0 0
      %4329 = vmatpush1.bf16.xpose.msra.mxu0 0
      %4330 = vmatprep.subr.bf16.mxu0 0
      %4331 = vmatpush1.bf16.xpose.msra.mxu0 0
      %4332 = vmatprep.subr.bf16.mxu0 0
      %4333 = vmatpush1.bf16.xpose.msra.mxu0 0
      %4334 = vmatprep.subr.bf16.mxu0 0
      %4335 = vmatpush1.bf16.xpose.msra.mxu0 0
      %4336 = vmatprep.subr.bf16.mxu0 0
      %4337 = vmatpush1.bf16.xpose.msra.mxu0 0
      %4338 = vmatprep.subr.bf16.mxu0 0
      %4339 = vmatpush1.bf16.xpose.msra.mxu0 0
      %4340 = vmatprep.subr.bf16.mxu0 0
      %4341 = vmatpush1.bf16.xpose.msra.mxu0 0
      %4342 = vmatprep.subr.bf16.mxu0 0
      %4343 = vmatpush1.bf16.xpose.msra.mxu0 0
      %4344 = vmatprep.mubr.bf16.mxu0 0
      %4345 = vmatmul.mubr.bf16.gmra.mrb[0].mxu0 %v4307
      %v4346 = vpop.f32.mrb[0].mxu0
      %v4347 = vadd.f32 0.0, %v4346
      %v4348 = vpop.f32.mrb[0].mxu0
      %v4349 = vpop.f32.mrb[0].mxu0
      %v4350 = vadd.f32 0.0, %v4349
      %v4351 = vpop.f32.mrb[0].mxu0
      %4352 = vdwg.mxu0
      %v4354 = vsel %vm2096, %v1248, 0
      %v4357 = vsel %vm2096, %v1664, 0
      %4359 = vmatprep.subr.bf16.mxu0 0
      %4360 = vmatpush1.bf16.xpose.msra.mxu0 %v4357
      %4361 = vmatprep.subr.bf16.mxu0 0
      %4362 = vmatpush1.bf16.xpose.msra.mxu0 0
      %4363 = vmatprep.subr.bf16.mxu0 0
      %4364 = vmatpush1.bf16.xpose.msra.mxu0 0
      %4365 = vmatprep.subr.bf16.mxu0 0
      %4366 = vmatpush1.bf16.xpose.msra.mxu0 0
      %4367 = vmatprep.subr.bf16.mxu0 0
      %4368 = vmatpush1.bf16.xpose.msra.mxu0 0
      %4369 = vmatprep.subr.bf16.mxu0 0
      %4370 = vmatpush1.bf16.xpose.msra.mxu0 0
      %4371 = vmatprep.subr.bf16.mxu0 0
      %4372 = vmatpush1.bf16.xpose.msra.mxu0 0
      %4373 = vmatprep.subr.bf16.mxu0 0
      %4374 = vmatpush1.bf16.xpose.msra.mxu0 0
      %4375 = vmatprep.subr.bf16.mxu0 0
      %4376 = vmatpush1.bf16.xpose.msra.mxu0 0
      %4377 = vmatprep.subr.bf16.mxu0 0
      %4378 = vmatpush1.bf16.xpose.msra.mxu0 0
      %4379 = vmatprep.subr.bf16.mxu0 0
      %4380 = vmatpush1.bf16.xpose.msra.mxu0 0
      %4381 = vmatprep.subr.bf16.mxu0 0
      %4382 = vmatpush1.bf16.xpose.msra.mxu0 0
      %4383 = vmatprep.subr.bf16.mxu0 0
      %4384 = vmatpush1.bf16.xpose.msra.mxu0 0
      %4385 = vmatprep.subr.bf16.mxu0 0
      %4386 = vmatpush1.bf16.xpose.msra.mxu0 0
      %4387 = vmatprep.subr.bf16.mxu0 0
      %4388 = vmatpush1.bf16.xpose.msra.mxu0 0
      %4389 = vmatprep.subr.bf16.mxu0 0
      %4390 = vmatpush1.bf16.xpose.msra.mxu0 0
      %4391 = vmatprep.mubr.bf16.mxu0 0
      %4392 = vmatmul.mubr.bf16.gmra.mrb[0].mxu0 %v4354
      %v4393 = vpop.f32.mrb[0].mxu0
      %v4394 = vadd.f32 0.0, %v4393
      %v4395 = vpop.f32.mrb[0].mxu0
      %v4396 = vpop.f32.mrb[0].mxu0
      %v4397 = vadd.f32 0.0, %v4396
      %v4398 = vpop.f32.mrb[0].mxu0
      %4399 = vdwg.mxu0
      %v4401 = vsel %vm2096, %v1249, 0
      %v4404 = vsel %vm2096, %v1665, 0
      %4406 = vmatprep.subr.bf16.mxu0 0
      %4407 = vmatpush1.bf16.xpose.msra.mxu0 %v4404
      %4408 = vmatprep.subr.bf16.mxu0 0
      %4409 = vmatpush1.bf16.xpose.msra.mxu0 0
      %4410 = vmatprep.subr.bf16.mxu0 0
      %4411 = vmatpush1.bf16.xpose.msra.mxu0 0
      %4412 = vmatprep.subr.bf16.mxu0 0
      %4413 = vmatpush1.bf16.xpose.msra.mxu0 0
      %4414 = vmatprep.subr.bf16.mxu0 0
      %4415 = vmatpush1.bf16.xpose.msra.mxu0 0
      %4416 = vmatprep.subr.bf16.mxu0 0
      %4417 = vmatpush1.bf16.xpose.msra.mxu0 0
      %4418 = vmatprep.subr.bf16.mxu0 0
      %4419 = vmatpush1.bf16.xpose.msra.mxu0 0
      %4420 = vmatprep.subr.bf16.mxu0 0
      %4421 = vmatpush1.bf16.xpose.msra.mxu0 0
      %4422 = vmatprep.subr.bf16.mxu0 0
      %4423 = vmatpush1.bf16.xpose.msra.mxu0 0
      %4424 = vmatprep.subr.bf16.mxu0 0
      %4425 = vmatpush1.bf16.xpose.msra.mxu0 0
      %4426 = vmatprep.subr.bf16.mxu0 0
      %4427 = vmatpush1.bf16.xpose.msra.mxu0 0
      %4428 = vmatprep.subr.bf16.mxu0 0
      %4429 = vmatpush1.bf16.xpose.msra.mxu0 0
      %4430 = vmatprep.subr.bf16.mxu0 0
      %4431 = vmatpush1.bf16.xpose.msra.mxu0 0
      %4432 = vmatprep.subr.bf16.mxu0 0
      %4433 = vmatpush1.bf16.xpose.msra.mxu0 0
      %4434 = vmatprep.subr.bf16.mxu0 0
      %4435 = vmatpush1.bf16.xpose.msra.mxu0 0
      %4436 = vmatprep.subr.bf16.mxu0 0
      %4437 = vmatpush1.bf16.xpose.msra.mxu0 0
      %4438 = vmatprep.mubr.bf16.mxu0 0
      %4439 = vmatmul.mubr.bf16.gmra.mrb[0].mxu0 %v4401
      %v4440 = vpop.f32.mrb[0].mxu0
      %v4441 = vadd.f32 0.0, %v4440
      %v4442 = vpop.f32.mrb[0].mxu0
      %v4443 = vpop.f32.mrb[0].mxu0
      %v4444 = vadd.f32 0.0, %v4443
      %v4445 = vpop.f32.mrb[0].mxu0
      %4446 = vdwg.mxu0
      %v4448 = vsel %vm2096, %v1250, 0
      %v4451 = vsel %vm2096, %v1666, 0
      %4453 = vmatprep.subr.bf16.mxu0 0
      %4454 = vmatpush1.bf16.xpose.msra.mxu0 %v4451
      %4455 = vmatprep.subr.bf16.mxu0 0
      %4456 = vmatpush1.bf16.xpose.msra.mxu0 0
      %4457 = vmatprep.subr.bf16.mxu0 0
      %4458 = vmatpush1.bf16.xpose.msra.mxu0 0
      %4459 = vmatprep.subr.bf16.mxu0 0
      %4460 = vmatpush1.bf16.xpose.msra.mxu0 0
      %4461 = vmatprep.subr.bf16.mxu0 0
      %4462 = vmatpush1.bf16.xpose.msra.mxu0 0
      %4463 = vmatprep.subr.bf16.mxu0 0
      %4464 = vmatpush1.bf16.xpose.msra.mxu0 0
      %4465 = vmatprep.subr.bf16.mxu0 0
      %4466 = vmatpush1.bf16.xpose.msra.mxu0 0
      %4467 = vmatprep.subr.bf16.mxu0 0
      %4468 = vmatpush1.bf16.xpose.msra.mxu0 0
      %4469 = vmatprep.subr.bf16.mxu0 0
      %4470 = vmatpush1.bf16.xpose.msra.mxu0 0
      %4471 = vmatprep.subr.bf16.mxu0 0
      %4472 = vmatpush1.bf16.xpose.msra.mxu0 0
      %4473 = vmatprep.subr.bf16.mxu0 0
      %4474 = vmatpush1.bf16.xpose.msra.mxu0 0
      %4475 = vmatprep.subr.bf16.mxu0 0
      %4476 = vmatpush1.bf16.xpose.msra.mxu0 0
      %4477 = vmatprep.subr.bf16.mxu0 0
      %4478 = vmatpush1.bf16.xpose.msra.mxu0 0
      %4479 = vmatprep.subr.bf16.mxu0 0
      %4480 = vmatpush1.bf16.xpose.msra.mxu0 0
      %4481 = vmatprep.subr.bf16.mxu0 0
      %4482 = vmatpush1.bf16.xpose.msra.mxu0 0
      %4483 = vmatprep.subr.bf16.mxu0 0
      %4484 = vmatpush1.bf16.xpose.msra.mxu0 0
      %4485 = vmatprep.mubr.bf16.mxu0 0
      %4486 = vmatmul.mubr.bf16.gmra.mrb[0].mxu0 %v4448
      %v4487 = vpop.f32.mrb[0].mxu0
      %v4488 = vadd.f32 0.0, %v4487
      %v4489 = vpop.f32.mrb[0].mxu0
      %v4490 = vpop.f32.mrb[0].mxu0
      %v4491 = vadd.f32 0.0, %v4490
      %v4492 = vpop.f32.mrb[0].mxu0
      %4493 = vdwg.mxu0
      %v4495 = vsel %vm2096, %v1251, 0
      %v4498 = vsel %vm2096, %v1667, 0
      %4500 = vmatprep.subr.bf16.mxu0 0
      %4501 = vmatpush1.bf16.xpose.msra.mxu0 %v4498
      %4502 = vmatprep.subr.bf16.mxu0 0
      %4503 = vmatpush1.bf16.xpose.msra.mxu0 0
      %4504 = vmatprep.subr.bf16.mxu0 0
      %4505 = vmatpush1.bf16.xpose.msra.mxu0 0
      %4506 = vmatprep.subr.bf16.mxu0 0
      %4507 = vmatpush1.bf16.xpose.msra.mxu0 0
      %4508 = vmatprep.subr.bf16.mxu0 0
      %4509 = vmatpush1.bf16.xpose.msra.mxu0 0
      %4510 = vmatprep.subr.bf16.mxu0 0
      %4511 = vmatpush1.bf16.xpose.msra.mxu0 0
      %4512 = vmatprep.subr.bf16.mxu0 0
      %4513 = vmatpush1.bf16.xpose.msra.mxu0 0
      %4514 = vmatprep.subr.bf16.mxu0 0
      %4515 = vmatpush1.bf16.xpose.msra.mxu0 0
      %4516 = vmatprep.subr.bf16.mxu0 0
      %4517 = vmatpush1.bf16.xpose.msra.mxu0 0
      %4518 = vmatprep.subr.bf16.mxu0 0
      %4519 = vmatpush1.bf16.xpose.msra.mxu0 0
      %4520 = vmatprep.subr.bf16.mxu0 0
      %4521 = vmatpush1.bf16.xpose.msra.mxu0 0
      %4522 = vmatprep.subr.bf16.mxu0 0
      %4523 = vmatpush1.bf16.xpose.msra.mxu0 0
      %4524 = vmatprep.subr.bf16.mxu0 0
      %4525 = vmatpush1.bf16.xpose.msra.mxu0 0
      %4526 = vmatprep.subr.bf16.mxu0 0
      %4527 = vmatpush1.bf16.xpose.msra.mxu0 0
      %4528 = vmatprep.subr.bf16.mxu0 0
      %4529 = vmatpush1.bf16.xpose.msra.mxu0 0
      %4530 = vmatprep.subr.bf16.mxu0 0
      %4531 = vmatpush1.bf16.xpose.msra.mxu0 0
      %4532 = vmatprep.mubr.bf16.mxu0 0
      %4533 = vmatmul.mubr.bf16.gmra.mrb[0].mxu0 %v4495
      %v4534 = vpop.f32.mrb[0].mxu0
      %v4535 = vadd.f32 0.0, %v4534
      %v4536 = vpop.f32.mrb[0].mxu0
      %v4537 = vpop.f32.mrb[0].mxu0
      %v4538 = vadd.f32 0.0, %v4537
      %v4539 = vpop.f32.mrb[0].mxu0
      %4540 = vdwg.mxu0
      %v4542 = vsel %vm2096, %v1252, 0
      %v4545 = vsel %vm2096, %v1668, 0
      %4547 = vmatprep.subr.bf16.mxu0 0
      %4548 = vmatpush1.bf16.xpose.msra.mxu0 %v4545
      %4549 = vmatprep.subr.bf16.mxu0 0
      %4550 = vmatpush1.bf16.xpose.msra.mxu0 0
      %4551 = vmatprep.subr.bf16.mxu0 0
      %4552 = vmatpush1.bf16.xpose.msra.mxu0 0
      %4553 = vmatprep.subr.bf16.mxu0 0
      %4554 = vmatpush1.bf16.xpose.msra.mxu0 0
      %4555 = vmatprep.subr.bf16.mxu0 0
      %4556 = vmatpush1.bf16.xpose.msra.mxu0 0
      %4557 = vmatprep.subr.bf16.mxu0 0
      %4558 = vmatpush1.bf16.xpose.msra.mxu0 0
      %4559 = vmatprep.subr.bf16.mxu0 0
      %4560 = vmatpush1.bf16.xpose.msra.mxu0 0
      %4561 = vmatprep.subr.bf16.mxu0 0
      %4562 = vmatpush1.bf16.xpose.msra.mxu0 0
      %4563 = vmatprep.subr.bf16.mxu0 0
      %4564 = vmatpush1.bf16.xpose.msra.mxu0 0
      %4565 = vmatprep.subr.bf16.mxu0 0
      %4566 = vmatpush1.bf16.xpose.msra.mxu0 0
      %4567 = vmatprep.subr.bf16.mxu0 0
      %4568 = vmatpush1.bf16.xpose.msra.mxu0 0
      %4569 = vmatprep.subr.bf16.mxu0 0
      %4570 = vmatpush1.bf16.xpose.msra.mxu0 0
      %4571 = vmatprep.subr.bf16.mxu0 0
      %4572 = vmatpush1.bf16.xpose.msra.mxu0 0
      %4573 = vmatprep.subr.bf16.mxu0 0
      %4574 = vmatpush1.bf16.xpose.msra.mxu0 0
      %4575 = vmatprep.subr.bf16.mxu0 0
      %4576 = vmatpush1.bf16.xpose.msra.mxu0 0
      %4577 = vmatprep.subr.bf16.mxu0 0
      %4578 = vmatpush1.bf16.xpose.msra.mxu0 0
      %4579 = vmatprep.mubr.bf16.mxu0 0
      %4580 = vmatmul.mubr.bf16.gmra.mrb[0].mxu0 %v4542
      %v4581 = vpop.f32.mrb[0].mxu0
      %v4582 = vadd.f32 0.0, %v4581
      %v4583 = vpop.f32.mrb[0].mxu0
      %v4584 = vpop.f32.mrb[0].mxu0
      %v4585 = vadd.f32 0.0, %v4584
      %v4586 = vpop.f32.mrb[0].mxu0
      %4587 = vdwg.mxu0
      %v4589 = vsel %vm2096, %v1253, 0
      %v4592 = vsel %vm2096, %v1669, 0
      %4594 = vmatprep.subr.bf16.mxu0 0
      %4595 = vmatpush1.bf16.xpose.msra.mxu0 %v4592
      %4596 = vmatprep.subr.bf16.mxu0 0
      %4597 = vmatpush1.bf16.xpose.msra.mxu0 0
      %4598 = vmatprep.subr.bf16.mxu0 0
      %4599 = vmatpush1.bf16.xpose.msra.mxu0 0
      %4600 = vmatprep.subr.bf16.mxu0 0
      %4601 = vmatpush1.bf16.xpose.msra.mxu0 0
      %4602 = vmatprep.subr.bf16.mxu0 0
      %4603 = vmatpush1.bf16.xpose.msra.mxu0 0
      %4604 = vmatprep.subr.bf16.mxu0 0
      %4605 = vmatpush1.bf16.xpose.msra.mxu0 0
      %4606 = vmatprep.subr.bf16.mxu0 0
      %4607 = vmatpush1.bf16.xpose.msra.mxu0 0
      %4608 = vmatprep.subr.bf16.mxu0 0
      %4609 = vmatpush1.bf16.xpose.msra.mxu0 0
      %4610 = vmatprep.subr.bf16.mxu0 0
      %4611 = vmatpush1.bf16.xpose.msra.mxu0 0
      %4612 = vmatprep.subr.bf16.mxu0 0
      %4613 = vmatpush1.bf16.xpose.msra.mxu0 0
      %4614 = vmatprep.subr.bf16.mxu0 0
      %4615 = vmatpush1.bf16.xpose.msra.mxu0 0
      %4616 = vmatprep.subr.bf16.mxu0 0
      %4617 = vmatpush1.bf16.xpose.msra.mxu0 0
      %4618 = vmatprep.subr.bf16.mxu0 0
      %4619 = vmatpush1.bf16.xpose.msra.mxu0 0
      %4620 = vmatprep.subr.bf16.mxu0 0
      %4621 = vmatpush1.bf16.xpose.msra.mxu0 0
      %4622 = vmatprep.subr.bf16.mxu0 0
      %4623 = vmatpush1.bf16.xpose.msra.mxu0 0
      %4624 = vmatprep.subr.bf16.mxu0 0
      %4625 = vmatpush1.bf16.xpose.msra.mxu0 0
      %4626 = vmatprep.mubr.bf16.mxu0 0
      %4627 = vmatmul.mubr.bf16.gmra.mrb[0].mxu0 %v4589
      %v4628 = vpop.f32.mrb[0].mxu0
      %v4629 = vadd.f32 0.0, %v4628
      %v4630 = vpop.f32.mrb[0].mxu0
      %v4631 = vpop.f32.mrb[0].mxu0
      %v4632 = vadd.f32 0.0, %v4631
      %v4633 = vpop.f32.mrb[0].mxu0
      %4634 = vdwg.mxu0
      %v4636 = vsel %vm2096, %v1254, 0
      %v4639 = vsel %vm2096, %v1670, 0
      %4641 = vmatprep.subr.bf16.mxu0 0
      %4642 = vmatpush1.bf16.xpose.msra.mxu0 %v4639
      %4643 = vmatprep.subr.bf16.mxu0 0
      %4644 = vmatpush1.bf16.xpose.msra.mxu0 0
      %4645 = vmatprep.subr.bf16.mxu0 0
      %4646 = vmatpush1.bf16.xpose.msra.mxu0 0
      %4647 = vmatprep.subr.bf16.mxu0 0
      %4648 = vmatpush1.bf16.xpose.msra.mxu0 0
      %4649 = vmatprep.subr.bf16.mxu0 0
      %4650 = vmatpush1.bf16.xpose.msra.mxu0 0
      %4651 = vmatprep.subr.bf16.mxu0 0
      %4652 = vmatpush1.bf16.xpose.msra.mxu0 0
      %4653 = vmatprep.subr.bf16.mxu0 0
      %4654 = vmatpush1.bf16.xpose.msra.mxu0 0
      %4655 = vmatprep.subr.bf16.mxu0 0
      %4656 = vmatpush1.bf16.xpose.msra.mxu0 0
      %4657 = vmatprep.subr.bf16.mxu0 0
      %4658 = vmatpush1.bf16.xpose.msra.mxu0 0
      %4659 = vmatprep.subr.bf16.mxu0 0
      %4660 = vmatpush1.bf16.xpose.msra.mxu0 0
      %4661 = vmatprep.subr.bf16.mxu0 0
      %4662 = vmatpush1.bf16.xpose.msra.mxu0 0
      %4663 = vmatprep.subr.bf16.mxu0 0
      %4664 = vmatpush1.bf16.xpose.msra.mxu0 0
      %4665 = vmatprep.subr.bf16.mxu0 0
      %4666 = vmatpush1.bf16.xpose.msra.mxu0 0
      %4667 = vmatprep.subr.bf16.mxu0 0
      %4668 = vmatpush1.bf16.xpose.msra.mxu0 0
      %4669 = vmatprep.subr.bf16.mxu0 0
      %4670 = vmatpush1.bf16.xpose.msra.mxu0 0
      %4671 = vmatprep.subr.bf16.mxu0 0
      %4672 = vmatpush1.bf16.xpose.msra.mxu0 0
      %4673 = vmatprep.mubr.bf16.mxu0 0
      %4674 = vmatmul.mubr.bf16.gmra.mrb[0].mxu0 %v4636
      %v4675 = vpop.f32.mrb[0].mxu0
      %v4676 = vadd.f32 0.0, %v4675
      %v4677 = vpop.f32.mrb[0].mxu0
      %v4678 = vpop.f32.mrb[0].mxu0
      %v4679 = vadd.f32 0.0, %v4678
      %v4680 = vpop.f32.mrb[0].mxu0
      %4681 = vdwg.mxu0
      %v4683 = vsel %vm2096, %v1255, 0
      %v4686 = vsel %vm2096, %v1671, 0
      %4688 = vmatprep.subr.bf16.mxu0 0
      %4689 = vmatpush1.bf16.xpose.msra.mxu0 %v4686
      %4690 = vmatprep.subr.bf16.mxu0 0
      %4691 = vmatpush1.bf16.xpose.msra.mxu0 0
      %4692 = vmatprep.subr.bf16.mxu0 0
      %4693 = vmatpush1.bf16.xpose.msra.mxu0 0
      %4694 = vmatprep.subr.bf16.mxu0 0
      %4695 = vmatpush1.bf16.xpose.msra.mxu0 0
      %4696 = vmatprep.subr.bf16.mxu0 0
      %4697 = vmatpush1.bf16.xpose.msra.mxu0 0
      %4698 = vmatprep.subr.bf16.mxu0 0
      %4699 = vmatpush1.bf16.xpose.msra.mxu0 0
      %4700 = vmatprep.subr.bf16.mxu0 0
      %4701 = vmatpush1.bf16.xpose.msra.mxu0 0
      %4702 = vmatprep.subr.bf16.mxu0 0
      %4703 = vmatpush1.bf16.xpose.msra.mxu0 0
      %4704 = vmatprep.subr.bf16.mxu0 0
      %4705 = vmatpush1.bf16.xpose.msra.mxu0 0
      %4706 = vmatprep.subr.bf16.mxu0 0
      %4707 = vmatpush1.bf16.xpose.msra.mxu0 0
      %4708 = vmatprep.subr.bf16.mxu0 0
      %4709 = vmatpush1.bf16.xpose.msra.mxu0 0
      %4710 = vmatprep.subr.bf16.mxu0 0
      %4711 = vmatpush1.bf16.xpose.msra.mxu0 0
      %4712 = vmatprep.subr.bf16.mxu0 0
      %4713 = vmatpush1.bf16.xpose.msra.mxu0 0
      %4714 = vmatprep.subr.bf16.mxu0 0
      %4715 = vmatpush1.bf16.xpose.msra.mxu0 0
      %4716 = vmatprep.subr.bf16.mxu0 0
      %4717 = vmatpush1.bf16.xpose.msra.mxu0 0
      %4718 = vmatprep.subr.bf16.mxu0 0
      %4719 = vmatpush1.bf16.xpose.msra.mxu0 0
      %4720 = vmatprep.mubr.bf16.mxu0 0
      %4721 = vmatmul.mubr.bf16.gmra.mrb[0].mxu0 %v4683
      %v4722 = vpop.f32.mrb[0].mxu0
      %v4723 = vadd.f32 0.0, %v4722
      %v4724 = vpop.f32.mrb[0].mxu0
      %v4725 = vpop.f32.mrb[0].mxu0
      %v4726 = vadd.f32 0.0, %v4725
      %v4727 = vpop.f32.mrb[0].mxu0
      %4728 = vdwg.mxu0
      %v4730 = vsel %vm2096, %v1256, 0
      %v4733 = vsel %vm2096, %v1672, 0
      %4735 = vmatprep.subr.bf16.mxu0 0
      %4736 = vmatpush1.bf16.xpose.msra.mxu0 %v4733
      %4737 = vmatprep.subr.bf16.mxu0 0
      %4738 = vmatpush1.bf16.xpose.msra.mxu0 0
      %4739 = vmatprep.subr.bf16.mxu0 0
      %4740 = vmatpush1.bf16.xpose.msra.mxu0 0
      %4741 = vmatprep.subr.bf16.mxu0 0
      %4742 = vmatpush1.bf16.xpose.msra.mxu0 0
      %4743 = vmatprep.subr.bf16.mxu0 0
      %4744 = vmatpush1.bf16.xpose.msra.mxu0 0
      %4745 = vmatprep.subr.bf16.mxu0 0
      %4746 = vmatpush1.bf16.xpose.msra.mxu0 0
      %4747 = vmatprep.subr.bf16.mxu0 0
      %4748 = vmatpush1.bf16.xpose.msra.mxu0 0
      %4749 = vmatprep.subr.bf16.mxu0 0
      %4750 = vmatpush1.bf16.xpose.msra.mxu0 0
      %4751 = vmatprep.subr.bf16.mxu0 0
      %4752 = vmatpush1.bf16.xpose.msra.mxu0 0
      %4753 = vmatprep.subr.bf16.mxu0 0
      %4754 = vmatpush1.bf16.xpose.msra.mxu0 0
      %4755 = vmatprep.subr.bf16.mxu0 0
      %4756 = vmatpush1.bf16.xpose.msra.mxu0 0
      %4757 = vmatprep.subr.bf16.mxu0 0
      %4758 = vmatpush1.bf16.xpose.msra.mxu0 0
      %4759 = vmatprep.subr.bf16.mxu0 0
      %4760 = vmatpush1.bf16.xpose.msra.mxu0 0
      %4761 = vmatprep.subr.bf16.mxu0 0
      %4762 = vmatpush1.bf16.xpose.msra.mxu0 0
      %4763 = vmatprep.subr.bf16.mxu0 0
      %4764 = vmatpush1.bf16.xpose.msra.mxu0 0
      %4765 = vmatprep.subr.bf16.mxu0 0
      %4766 = vmatpush1.bf16.xpose.msra.mxu0 0
      %4767 = vmatprep.mubr.bf16.mxu0 0
      %4768 = vmatmul.mubr.bf16.gmra.mrb[0].mxu0 %v4730
      %v4769 = vpop.f32.mrb[0].mxu0
      %v4770 = vadd.f32 0.0, %v4769
      %v4771 = vpop.f32.mrb[0].mxu0
      %v4772 = vpop.f32.mrb[0].mxu0
      %v4773 = vadd.f32 0.0, %v4772
      %v4774 = vpop.f32.mrb[0].mxu0
      %4775 = vdwg.mxu0
      %v4777 = vsel %vm2096, %v1257, 0
      %v4780 = vsel %vm2096, %v1673, 0
      %4782 = vmatprep.subr.bf16.mxu0 0
      %4783 = vmatpush1.bf16.xpose.msra.mxu0 %v4780
      %4784 = vmatprep.subr.bf16.mxu0 0
      %4785 = vmatpush1.bf16.xpose.msra.mxu0 0
      %4786 = vmatprep.subr.bf16.mxu0 0
      %4787 = vmatpush1.bf16.xpose.msra.mxu0 0
      %4788 = vmatprep.subr.bf16.mxu0 0
      %4789 = vmatpush1.bf16.xpose.msra.mxu0 0
      %4790 = vmatprep.subr.bf16.mxu0 0
      %4791 = vmatpush1.bf16.xpose.msra.mxu0 0
      %4792 = vmatprep.subr.bf16.mxu0 0
      %4793 = vmatpush1.bf16.xpose.msra.mxu0 0
      %4794 = vmatprep.subr.bf16.mxu0 0
      %4795 = vmatpush1.bf16.xpose.msra.mxu0 0
      %4796 = vmatprep.subr.bf16.mxu0 0
      %4797 = vmatpush1.bf16.xpose.msra.mxu0 0
      %4798 = vmatprep.subr.bf16.mxu0 0
      %4799 = vmatpush1.bf16.xpose.msra.mxu0 0
      %4800 = vmatprep.subr.bf16.mxu0 0
      %4801 = vmatpush1.bf16.xpose.msra.mxu0 0
      %4802 = vmatprep.subr.bf16.mxu0 0
      %4803 = vmatpush1.bf16.xpose.msra.mxu0 0
      %4804 = vmatprep.subr.bf16.mxu0 0
      %4805 = vmatpush1.bf16.xpose.msra.mxu0 0
      %4806 = vmatprep.subr.bf16.mxu0 0
      %4807 = vmatpush1.bf16.xpose.msra.mxu0 0
      %4808 = vmatprep.subr.bf16.mxu0 0
      %4809 = vmatpush1.bf16.xpose.msra.mxu0 0
      %4810 = vmatprep.subr.bf16.mxu0 0
      %4811 = vmatpush1.bf16.xpose.msra.mxu0 0
      %4812 = vmatprep.subr.bf16.mxu0 0
      %4813 = vmatpush1.bf16.xpose.msra.mxu0 0
      %4814 = vmatprep.mubr.bf16.mxu0 0
      %4815 = vmatmul.mubr.bf16.gmra.mrb[0].mxu0 %v4777
      %v4816 = vpop.f32.mrb[0].mxu0
      %v4817 = vadd.f32 0.0, %v4816
      %v4818 = vpop.f32.mrb[0].mxu0
      %v4819 = vpop.f32.mrb[0].mxu0
      %v4820 = vadd.f32 0.0, %v4819
      %v4821 = vpop.f32.mrb[0].mxu0
      %4822 = vdwg.mxu0
      %v4824 = vsel %vm2096, %v1258, 0
      %v4827 = vsel %vm2096, %v1674, 0
      %4829 = vmatprep.subr.bf16.mxu0 0
      %4830 = vmatpush1.bf16.xpose.msra.mxu0 %v4827
      %4831 = vmatprep.subr.bf16.mxu0 0
      %4832 = vmatpush1.bf16.xpose.msra.mxu0 0
      %4833 = vmatprep.subr.bf16.mxu0 0
      %4834 = vmatpush1.bf16.xpose.msra.mxu0 0
      %4835 = vmatprep.subr.bf16.mxu0 0
      %4836 = vmatpush1.bf16.xpose.msra.mxu0 0
      %4837 = vmatprep.subr.bf16.mxu0 0
      %4838 = vmatpush1.bf16.xpose.msra.mxu0 0
      %4839 = vmatprep.subr.bf16.mxu0 0
      %4840 = vmatpush1.bf16.xpose.msra.mxu0 0
      %4841 = vmatprep.subr.bf16.mxu0 0
      %4842 = vmatpush1.bf16.xpose.msra.mxu0 0
      %4843 = vmatprep.subr.bf16.mxu0 0
      %4844 = vmatpush1.bf16.xpose.msra.mxu0 0
      %4845 = vmatprep.subr.bf16.mxu0 0
      %4846 = vmatpush1.bf16.xpose.msra.mxu0 0
      %4847 = vmatprep.subr.bf16.mxu0 0
      %4848 = vmatpush1.bf16.xpose.msra.mxu0 0
      %4849 = vmatprep.subr.bf16.mxu0 0
      %4850 = vmatpush1.bf16.xpose.msra.mxu0 0
      %4851 = vmatprep.subr.bf16.mxu0 0
      %4852 = vmatpush1.bf16.xpose.msra.mxu0 0
      %4853 = vmatprep.subr.bf16.mxu0 0
      %4854 = vmatpush1.bf16.xpose.msra.mxu0 0
      %4855 = vmatprep.subr.bf16.mxu0 0
      %4856 = vmatpush1.bf16.xpose.msra.mxu0 0
      %4857 = vmatprep.subr.bf16.mxu0 0
      %4858 = vmatpush1.bf16.xpose.msra.mxu0 0
      %4859 = vmatprep.subr.bf16.mxu0 0
      %4860 = vmatpush1.bf16.xpose.msra.mxu0 0
      %4861 = vmatprep.mubr.bf16.mxu0 0
      %4862 = vmatmul.mubr.bf16.gmra.mrb[0].mxu0 %v4824
      %v4863 = vpop.f32.mrb[0].mxu0
      %v4864 = vadd.f32 0.0, %v4863
      %v4865 = vpop.f32.mrb[0].mxu0
      %v4866 = vpop.f32.mrb[0].mxu0
      %v4867 = vadd.f32 0.0, %v4866
      %v4868 = vpop.f32.mrb[0].mxu0
      %4869 = vdwg.mxu0
      %v4871 = vsel %vm2096, %v1259, 0
      %v4874 = vsel %vm2096, %v1675, 0
      %4876 = vmatprep.subr.bf16.mxu0 0
      %4877 = vmatpush1.bf16.xpose.msra.mxu0 %v4874
      %4878 = vmatprep.subr.bf16.mxu0 0
      %4879 = vmatpush1.bf16.xpose.msra.mxu0 0
      %4880 = vmatprep.subr.bf16.mxu0 0
      %4881 = vmatpush1.bf16.xpose.msra.mxu0 0
      %4882 = vmatprep.subr.bf16.mxu0 0
      %4883 = vmatpush1.bf16.xpose.msra.mxu0 0
      %4884 = vmatprep.subr.bf16.mxu0 0
      %4885 = vmatpush1.bf16.xpose.msra.mxu0 0
      %4886 = vmatprep.subr.bf16.mxu0 0
      %4887 = vmatpush1.bf16.xpose.msra.mxu0 0
      %4888 = vmatprep.subr.bf16.mxu0 0
      %4889 = vmatpush1.bf16.xpose.msra.mxu0 0
      %4890 = vmatprep.subr.bf16.mxu0 0
      %4891 = vmatpush1.bf16.xpose.msra.mxu0 0
      %4892 = vmatprep.subr.bf16.mxu0 0
      %4893 = vmatpush1.bf16.xpose.msra.mxu0 0
      %4894 = vmatprep.subr.bf16.mxu0 0
      %4895 = vmatpush1.bf16.xpose.msra.mxu0 0
      %4896 = vmatprep.subr.bf16.mxu0 0
      %4897 = vmatpush1.bf16.xpose.msra.mxu0 0
      %4898 = vmatprep.subr.bf16.mxu0 0
      %4899 = vmatpush1.bf16.xpose.msra.mxu0 0
      %4900 = vmatprep.subr.bf16.mxu0 0
      %4901 = vmatpush1.bf16.xpose.msra.mxu0 0
      %4902 = vmatprep.subr.bf16.mxu0 0
      %4903 = vmatpush1.bf16.xpose.msra.mxu0 0
      %4904 = vmatprep.subr.bf16.mxu0 0
      %4905 = vmatpush1.bf16.xpose.msra.mxu0 0
      %4906 = vmatprep.subr.bf16.mxu0 0
      %4907 = vmatpush1.bf16.xpose.msra.mxu0 0
      %4908 = vmatprep.mubr.bf16.mxu0 0
      %4909 = vmatmul.mubr.bf16.gmra.mrb[0].mxu0 %v4871
      %v4910 = vpop.f32.mrb[0].mxu0
      %v4911 = vadd.f32 0.0, %v4910
      %v4912 = vpop.f32.mrb[0].mxu0
      %v4913 = vpop.f32.mrb[0].mxu0
      %v4914 = vadd.f32 0.0, %v4913
      %v4915 = vpop.f32.mrb[0].mxu0
      %4916 = vdwg.mxu0
      %v4918 = vsel %vm2096, %v1260, 0
      %v4921 = vsel %vm2096, %v1676, 0
      %4923 = vmatprep.subr.bf16.mxu0 0
      %4924 = vmatpush1.bf16.xpose.msra.mxu0 %v4921
      %4925 = vmatprep.subr.bf16.mxu0 0
      %4926 = vmatpush1.bf16.xpose.msra.mxu0 0
      %4927 = vmatprep.subr.bf16.mxu0 0
      %4928 = vmatpush1.bf16.xpose.msra.mxu0 0
      %4929 = vmatprep.subr.bf16.mxu0 0
      %4930 = vmatpush1.bf16.xpose.msra.mxu0 0
      %4931 = vmatprep.subr.bf16.mxu0 0
      %4932 = vmatpush1.bf16.xpose.msra.mxu0 0
      %4933 = vmatprep.subr.bf16.mxu0 0
      %4934 = vmatpush1.bf16.xpose.msra.mxu0 0
      %4935 = vmatprep.subr.bf16.mxu0 0
      %4936 = vmatpush1.bf16.xpose.msra.mxu0 0
      %4937 = vmatprep.subr.bf16.mxu0 0
      %4938 = vmatpush1.bf16.xpose.msra.mxu0 0
      %4939 = vmatprep.subr.bf16.mxu0 0
      %4940 = vmatpush1.bf16.xpose.msra.mxu0 0
      %4941 = vmatprep.subr.bf16.mxu0 0
      %4942 = vmatpush1.bf16.xpose.msra.mxu0 0
      %4943 = vmatprep.subr.bf16.mxu0 0
      %4944 = vmatpush1.bf16.xpose.msra.mxu0 0
      %4945 = vmatprep.subr.bf16.mxu0 0
      %4946 = vmatpush1.bf16.xpose.msra.mxu0 0
      %4947 = vmatprep.subr.bf16.mxu0 0
      %4948 = vmatpush1.bf16.xpose.msra.mxu0 0
      %4949 = vmatprep.subr.bf16.mxu0 0
      %4950 = vmatpush1.bf16.xpose.msra.mxu0 0
      %4951 = vmatprep.subr.bf16.mxu0 0
      %4952 = vmatpush1.bf16.xpose.msra.mxu0 0
      %4953 = vmatprep.subr.bf16.mxu0 0
      %4954 = vmatpush1.bf16.xpose.msra.mxu0 0
      %4955 = vmatprep.mubr.bf16.mxu0 0
      %4956 = vmatmul.mubr.bf16.gmra.mrb[0].mxu0 %v4918
      %v4957 = vpop.f32.mrb[0].mxu0
      %v4958 = vadd.f32 0.0, %v4957
      %v4959 = vpop.f32.mrb[0].mxu0
      %v4960 = vpop.f32.mrb[0].mxu0
      %v4961 = vadd.f32 0.0, %v4960
      %v4962 = vpop.f32.mrb[0].mxu0
      %4963 = vdwg.mxu0
      %v4965 = vsel %vm2096, %v1261, 0
      %v4968 = vsel %vm2096, %v1677, 0
      %4970 = vmatprep.subr.bf16.mxu0 0
      %4971 = vmatpush1.bf16.xpose.msra.mxu0 %v4968
      %4972 = vmatprep.subr.bf16.mxu0 0
      %4973 = vmatpush1.bf16.xpose.msra.mxu0 0
      %4974 = vmatprep.subr.bf16.mxu0 0
      %4975 = vmatpush1.bf16.xpose.msra.mxu0 0
      %4976 = vmatprep.subr.bf16.mxu0 0
      %4977 = vmatpush1.bf16.xpose.msra.mxu0 0
      %4978 = vmatprep.subr.bf16.mxu0 0
      %4979 = vmatpush1.bf16.xpose.msra.mxu0 0
      %4980 = vmatprep.subr.bf16.mxu0 0
      %4981 = vmatpush1.bf16.xpose.msra.mxu0 0
      %4982 = vmatprep.subr.bf16.mxu0 0
      %4983 = vmatpush1.bf16.xpose.msra.mxu0 0
      %4984 = vmatprep.subr.bf16.mxu0 0
      %4985 = vmatpush1.bf16.xpose.msra.mxu0 0
      %4986 = vmatprep.subr.bf16.mxu0 0
      %4987 = vmatpush1.bf16.xpose.msra.mxu0 0
      %4988 = vmatprep.subr.bf16.mxu0 0
      %4989 = vmatpush1.bf16.xpose.msra.mxu0 0
      %4990 = vmatprep.subr.bf16.mxu0 0
      %4991 = vmatpush1.bf16.xpose.msra.mxu0 0
      %4992 = vmatprep.subr.bf16.mxu0 0
      %4993 = vmatpush1.bf16.xpose.msra.mxu0 0
      %4994 = vmatprep.subr.bf16.mxu0 0
      %4995 = vmatpush1.bf16.xpose.msra.mxu0 0
      %4996 = vmatprep.subr.bf16.mxu0 0
      %4997 = vmatpush1.bf16.xpose.msra.mxu0 0
      %4998 = vmatprep.subr.bf16.mxu0 0
      %4999 = vmatpush1.bf16.xpose.msra.mxu0 0
      %5000 = vmatprep.subr.bf16.mxu0 0
      %5001 = vmatpush1.bf16.xpose.msra.mxu0 0
      %5002 = vmatprep.mubr.bf16.mxu0 0
      %5003 = vmatmul.mubr.bf16.gmra.mrb[0].mxu0 %v4965
      %v5004 = vpop.f32.mrb[0].mxu0
      %v5005 = vadd.f32 0.0, %v5004
      %v5006 = vpop.f32.mrb[0].mxu0
      %v5007 = vpop.f32.mrb[0].mxu0
      %v5008 = vadd.f32 0.0, %v5007
      %v5009 = vpop.f32.mrb[0].mxu0
      %5010 = vdwg.mxu0
      %v5012 = vsel %vm2096, %v1262, 0
      %v5015 = vsel %vm2096, %v1678, 0
      %5017 = vmatprep.subr.bf16.mxu0 0
      %5018 = vmatpush1.bf16.xpose.msra.mxu0 %v5015
      %5019 = vmatprep.subr.bf16.mxu0 0
      %5020 = vmatpush1.bf16.xpose.msra.mxu0 0
      %5021 = vmatprep.subr.bf16.mxu0 0
      %5022 = vmatpush1.bf16.xpose.msra.mxu0 0
      %5023 = vmatprep.subr.bf16.mxu0 0
      %5024 = vmatpush1.bf16.xpose.msra.mxu0 0
      %5025 = vmatprep.subr.bf16.mxu0 0
      %5026 = vmatpush1.bf16.xpose.msra.mxu0 0
      %5027 = vmatprep.subr.bf16.mxu0 0
      %5028 = vmatpush1.bf16.xpose.msra.mxu0 0
      %5029 = vmatprep.subr.bf16.mxu0 0
      %5030 = vmatpush1.bf16.xpose.msra.mxu0 0
      %5031 = vmatprep.subr.bf16.mxu0 0
      %5032 = vmatpush1.bf16.xpose.msra.mxu0 0
      %5033 = vmatprep.subr.bf16.mxu0 0
      %5034 = vmatpush1.bf16.xpose.msra.mxu0 0
      %5035 = vmatprep.subr.bf16.mxu0 0
      %5036 = vmatpush1.bf16.xpose.msra.mxu0 0
      %5037 = vmatprep.subr.bf16.mxu0 0
      %5038 = vmatpush1.bf16.xpose.msra.mxu0 0
      %5039 = vmatprep.subr.bf16.mxu0 0
      %5040 = vmatpush1.bf16.xpose.msra.mxu0 0
      %5041 = vmatprep.subr.bf16.mxu0 0
      %5042 = vmatpush1.bf16.xpose.msra.mxu0 0
      %5043 = vmatprep.subr.bf16.mxu0 0
      %5044 = vmatpush1.bf16.xpose.msra.mxu0 0
      %5045 = vmatprep.subr.bf16.mxu0 0
      %5046 = vmatpush1.bf16.xpose.msra.mxu0 0
      %5047 = vmatprep.subr.bf16.mxu0 0
      %5048 = vmatpush1.bf16.xpose.msra.mxu0 0
      %5049 = vmatprep.mubr.bf16.mxu0 0
      %5050 = vmatmul.mubr.bf16.gmra.mrb[0].mxu0 %v5012
      %v5051 = vpop.f32.mrb[0].mxu0
      %v5052 = vadd.f32 0.0, %v5051
      %v5053 = vpop.f32.mrb[0].mxu0
      %v5054 = vpop.f32.mrb[0].mxu0
      %v5055 = vadd.f32 0.0, %v5054
      %v5056 = vpop.f32.mrb[0].mxu0
      %5057 = vdwg.mxu0
      %v5059 = vsel %vm2096, %v1263, 0
      %v5062 = vsel %vm2096, %v1679, 0
      %5064 = vmatprep.subr.bf16.mxu0 0
      %5065 = vmatpush1.bf16.xpose.msra.mxu0 %v5062
      %5066 = vmatprep.subr.bf16.mxu0 0
      %5067 = vmatpush1.bf16.xpose.msra.mxu0 0
      %5068 = vmatprep.subr.bf16.mxu0 0
      %5069 = vmatpush1.bf16.xpose.msra.mxu0 0
      %5070 = vmatprep.subr.bf16.mxu0 0
      %5071 = vmatpush1.bf16.xpose.msra.mxu0 0
      %5072 = vmatprep.subr.bf16.mxu0 0
      %5073 = vmatpush1.bf16.xpose.msra.mxu0 0
      %5074 = vmatprep.subr.bf16.mxu0 0
      %5075 = vmatpush1.bf16.xpose.msra.mxu0 0
      %5076 = vmatprep.subr.bf16.mxu0 0
      %5077 = vmatpush1.bf16.xpose.msra.mxu0 0
      %5078 = vmatprep.subr.bf16.mxu0 0
      %5079 = vmatpush1.bf16.xpose.msra.mxu0 0
      %5080 = vmatprep.subr.bf16.mxu0 0
      %5081 = vmatpush1.bf16.xpose.msra.mxu0 0
      %5082 = vmatprep.subr.bf16.mxu0 0
      %5083 = vmatpush1.bf16.xpose.msra.mxu0 0
      %5084 = vmatprep.subr.bf16.mxu0 0
      %5085 = vmatpush1.bf16.xpose.msra.mxu0 0
      %5086 = vmatprep.subr.bf16.mxu0 0
      %5087 = vmatpush1.bf16.xpose.msra.mxu0 0
      %5088 = vmatprep.subr.bf16.mxu0 0
      %5089 = vmatpush1.bf16.xpose.msra.mxu0 0
      %5090 = vmatprep.subr.bf16.mxu0 0
      %5091 = vmatpush1.bf16.xpose.msra.mxu0 0
      %5092 = vmatprep.subr.bf16.mxu0 0
      %5093 = vmatpush1.bf16.xpose.msra.mxu0 0
      %5094 = vmatprep.subr.bf16.mxu0 0
      %5095 = vmatpush1.bf16.xpose.msra.mxu0 0
      %5096 = vmatprep.mubr.bf16.mxu0 0
      %5097 = vmatmul.mubr.bf16.gmra.mrb[0].mxu0 %v5059
      %v5098 = vpop.f32.mrb[0].mxu0
      %v5099 = vadd.f32 0.0, %v5098
      %v5100 = vpop.f32.mrb[0].mxu0
      %v5101 = vpop.f32.mrb[0].mxu0
      %v5102 = vadd.f32 0.0, %v5101
      %v5103 = vpop.f32.mrb[0].mxu0
      %5104 = vdwg.mxu0
      %vm5105 = vcmask 130048
      %v5106 = vsel %vm5105, %v2138, -inf
      %5107 = vmax.xlane.f32.xlu0 %v5106
      %v5108 = vpop.xlane.xlu0 %5107
      %v5109 = vsel %vm5105, %v2141, -inf
      %5110 = vmax.xlane.f32.xlu0 %v5109
      %v5111 = vpop.xlane.xlu0 %5110
      %v5112 = vsel %vm5105, %v2185, -inf
      %5113 = vmax.xlane.f32.xlu0 %v5112
      %v5114 = vpop.xlane.xlu0 %5113
      %v5115 = vsel %vm5105, %v2188, -inf
      %5116 = vmax.xlane.f32.xlu0 %v5115
      %v5117 = vpop.xlane.xlu0 %5116
      %v5118 = vsel %vm5105, %v2232, -inf
      %5119 = vmax.xlane.f32.xlu0 %v5118
      %v5120 = vpop.xlane.xlu0 %5119
      %v5121 = vsel %vm5105, %v2235, -inf
      %5122 = vmax.xlane.f32.xlu0 %v5121
      %v5123 = vpop.xlane.xlu0 %5122
      %v5124 = vsel %vm5105, %v2279, -inf
      %5125 = vmax.xlane.f32.xlu0 %v5124
      %v5126 = vpop.xlane.xlu0 %5125
      %v5127 = vsel %vm5105, %v2282, -inf
      %5128 = vmax.xlane.f32.xlu0 %v5127
      %v5129 = vpop.xlane.xlu0 %5128
      %v5130 = vsel %vm5105, %v2326, -inf
      %5131 = vmax.xlane.f32.xlu0 %v5130
      %v5132 = vpop.xlane.xlu0 %5131
      %v5133 = vsel %vm5105, %v2329, -inf
      %5134 = vmax.xlane.f32.xlu0 %v5133
      %v5135 = vpop.xlane.xlu0 %5134
      %v5136 = vsel %vm5105, %v2373, -inf
      %5137 = vmax.xlane.f32.xlu0 %v5136
      %v5138 = vpop.xlane.xlu0 %5137
      %v5139 = vsel %vm5105, %v2376, -inf
      %5140 = vmax.xlane.f32.xlu0 %v5139
      %v5141 = vpop.xlane.xlu0 %5140
      %v5142 = vsel %vm5105, %v2420, -inf
      %5143 = vmax.xlane.f32.xlu0 %v5142
      %v5144 = vpop.xlane.xlu0 %5143
      %v5145 = vsel %vm5105, %v2423, -inf
      %5146 = vmax.xlane.f32.xlu0 %v5145
      %v5147 = vpop.xlane.xlu0 %5146
      %v5148 = vsel %vm5105, %v2467, -inf
      %5149 = vmax.xlane.f32.xlu0 %v5148
      %v5150 = vpop.xlane.xlu0 %5149
      %v5151 = vsel %vm5105, %v2470, -inf
      %5152 = vmax.xlane.f32.xlu0 %v5151
      %v5153 = vpop.xlane.xlu0 %5152
      %v5154 = vsel %vm5105, %v2514, -inf
      %5155 = vmax.xlane.f32.xlu0 %v5154
      %v5156 = vpop.xlane.xlu0 %5155
      %v5157 = vsel %vm5105, %v2517, -inf
      %5158 = vmax.xlane.f32.xlu0 %v5157
      %v5159 = vpop.xlane.xlu0 %5158
      %v5160 = vsel %vm5105, %v2561, -inf
      %5161 = vmax.xlane.f32.xlu0 %v5160
      %v5162 = vpop.xlane.xlu0 %5161
      %v5163 = vsel %vm5105, %v2564, -inf
      %5164 = vmax.xlane.f32.xlu0 %v5163
      %v5165 = vpop.xlane.xlu0 %5164
      %v5166 = vsel %vm5105, %v2608, -inf
      %5167 = vmax.xlane.f32.xlu0 %v5166
      %v5168 = vpop.xlane.xlu0 %5167
      %v5169 = vsel %vm5105, %v2611, -inf
      %5170 = vmax.xlane.f32.xlu0 %v5169
      %v5171 = vpop.xlane.xlu0 %5170
      %v5172 = vsel %vm5105, %v2655, -inf
      %5173 = vmax.xlane.f32.xlu0 %v5172
      %v5174 = vpop.xlane.xlu0 %5173
      %v5175 = vsel %vm5105, %v2658, -inf
      %5176 = vmax.xlane.f32.xlu0 %v5175
      %v5177 = vpop.xlane.xlu0 %5176
      %v5178 = vsel %vm5105, %v2702, -inf
      %5179 = vmax.xlane.f32.xlu0 %v5178
      %v5180 = vpop.xlane.xlu0 %5179
      %v5181 = vsel %vm5105, %v2705, -inf
      %5182 = vmax.xlane.f32.xlu0 %v5181
      %v5183 = vpop.xlane.xlu0 %5182
      %v5184 = vsel %vm5105, %v2749, -inf
      %5185 = vmax.xlane.f32.xlu0 %v5184
      %v5186 = vpop.xlane.xlu0 %5185
      %v5187 = vsel %vm5105, %v2752, -inf
      %5188 = vmax.xlane.f32.xlu0 %v5187
      %v5189 = vpop.xlane.xlu0 %5188
      %v5190 = vsel %vm5105, %v2796, -inf
      %5191 = vmax.xlane.f32.xlu0 %v5190
      %v5192 = vpop.xlane.xlu0 %5191
      %v5193 = vsel %vm5105, %v2799, -inf
      %5194 = vmax.xlane.f32.xlu0 %v5193
      %v5195 = vpop.xlane.xlu0 %5194
      %v5196 = vsel %vm5105, %v2843, -inf
      %5197 = vmax.xlane.f32.xlu0 %v5196
      %v5198 = vpop.xlane.xlu0 %5197
      %v5199 = vsel %vm5105, %v2846, -inf
      %5200 = vmax.xlane.f32.xlu0 %v5199
      %v5201 = vpop.xlane.xlu0 %5200
      %v5202 = vsel %vm5105, %v2890, -inf
      %5203 = vmax.xlane.f32.xlu0 %v5202
      %v5204 = vpop.xlane.xlu0 %5203
      %v5205 = vsel %vm5105, %v2893, -inf
      %5206 = vmax.xlane.f32.xlu0 %v5205
      %v5207 = vpop.xlane.xlu0 %5206
      %v5208 = vsel %vm5105, %v2937, -inf
      %5209 = vmax.xlane.f32.xlu0 %v5208
      %v5210 = vpop.xlane.xlu0 %5209
      %v5211 = vsel %vm5105, %v2940, -inf
      %5212 = vmax.xlane.f32.xlu0 %v5211
      %v5213 = vpop.xlane.xlu0 %5212
      %v5214 = vsel %vm5105, %v2984, -inf
      %5215 = vmax.xlane.f32.xlu0 %v5214
      %v5216 = vpop.xlane.xlu0 %5215
      %v5217 = vsel %vm5105, %v2987, -inf
      %5218 = vmax.xlane.f32.xlu0 %v5217
      %v5219 = vpop.xlane.xlu0 %5218
      %v5220 = vsel %vm5105, %v3031, -inf
      %5221 = vmax.xlane.f32.xlu0 %v5220
      %v5222 = vpop.xlane.xlu0 %5221
      %v5223 = vsel %vm5105, %v3034, -inf
      %5224 = vmax.xlane.f32.xlu0 %v5223
      %v5225 = vpop.xlane.xlu0 %5224
      %v5226 = vsel %vm5105, %v3078, -inf
      %5227 = vmax.xlane.f32.xlu0 %v5226
      %v5228 = vpop.xlane.xlu0 %5227
      %v5229 = vsel %vm5105, %v3081, -inf
      %5230 = vmax.xlane.f32.xlu0 %v5229
      %v5231 = vpop.xlane.xlu0 %5230
      %v5232 = vsel %vm5105, %v3125, -inf
      %5233 = vmax.xlane.f32.xlu0 %v5232
      %v5234 = vpop.xlane.xlu0 %5233
      %v5235 = vsel %vm5105, %v3128, -inf
      %5236 = vmax.xlane.f32.xlu0 %v5235
      %v5237 = vpop.xlane.xlu0 %5236
      %v5238 = vsel %vm5105, %v3172, -inf
      %5239 = vmax.xlane.f32.xlu0 %v5238
      %v5240 = vpop.xlane.xlu0 %5239
      %v5241 = vsel %vm5105, %v3175, -inf
      %5242 = vmax.xlane.f32.xlu0 %v5241
      %v5243 = vpop.xlane.xlu0 %5242
      %v5244 = vsel %vm5105, %v3219, -inf
      %5245 = vmax.xlane.f32.xlu0 %v5244
      %v5246 = vpop.xlane.xlu0 %5245
      %v5247 = vsel %vm5105, %v3222, -inf
      %5248 = vmax.xlane.f32.xlu0 %v5247
      %v5249 = vpop.xlane.xlu0 %5248
      %v5250 = vsel %vm5105, %v3266, -inf
      %5251 = vmax.xlane.f32.xlu0 %v5250
      %v5252 = vpop.xlane.xlu0 %5251
      %v5253 = vsel %vm5105, %v3269, -inf
      %5254 = vmax.xlane.f32.xlu0 %v5253
      %v5255 = vpop.xlane.xlu0 %5254
      %v5256 = vsel %vm5105, %v3313, -inf
      %5257 = vmax.xlane.f32.xlu0 %v5256
      %v5258 = vpop.xlane.xlu0 %5257
      %v5259 = vsel %vm5105, %v3316, -inf
      %5260 = vmax.xlane.f32.xlu0 %v5259
      %v5261 = vpop.xlane.xlu0 %5260
      %v5262 = vsel %vm5105, %v3360, -inf
      %5263 = vmax.xlane.f32.xlu0 %v5262
      %v5264 = vpop.xlane.xlu0 %5263
      %v5265 = vsel %vm5105, %v3363, -inf
      %5266 = vmax.xlane.f32.xlu0 %v5265
      %v5267 = vpop.xlane.xlu0 %5266
      %v5268 = vsel %vm5105, %v3407, -inf
      %5269 = vmax.xlane.f32.xlu0 %v5268
      %v5270 = vpop.xlane.xlu0 %5269
      %v5271 = vsel %vm5105, %v3410, -inf
      %5272 = vmax.xlane.f32.xlu0 %v5271
      %v5273 = vpop.xlane.xlu0 %5272
      %v5274 = vsel %vm5105, %v3454, -inf
      %5275 = vmax.xlane.f32.xlu0 %v5274
      %v5276 = vpop.xlane.xlu0 %5275
      %v5277 = vsel %vm5105, %v3457, -inf
      %5278 = vmax.xlane.f32.xlu0 %v5277
      %v5279 = vpop.xlane.xlu0 %5278
      %v5280 = vsel %vm5105, %v3501, -inf
      %5281 = vmax.xlane.f32.xlu0 %v5280
      %v5282 = vpop.xlane.xlu0 %5281
      %v5283 = vsel %vm5105, %v3504, -inf
      %5284 = vmax.xlane.f32.xlu0 %v5283
      %v5285 = vpop.xlane.xlu0 %5284
      %v5286 = vsel %vm5105, %v3548, -inf
      %5287 = vmax.xlane.f32.xlu0 %v5286
      %v5288 = vpop.xlane.xlu0 %5287
      %v5289 = vsel %vm5105, %v3551, -inf
      %5290 = vmax.xlane.f32.xlu0 %v5289
      %v5291 = vpop.xlane.xlu0 %5290
      %v5292 = vsel %vm5105, %v3595, -inf
      %5293 = vmax.xlane.f32.xlu0 %v5292
      %v5294 = vpop.xlane.xlu0 %5293
      %v5295 = vsel %vm5105, %v3598, -inf
      %5296 = vmax.xlane.f32.xlu0 %v5295
      %v5297 = vpop.xlane.xlu0 %5296
      %v5298 = vsel %vm5105, %v3642, -inf
      %5299 = vmax.xlane.f32.xlu0 %v5298
      %v5300 = vpop.xlane.xlu0 %5299
      %v5301 = vsel %vm5105, %v3645, -inf
      %5302 = vmax.xlane.f32.xlu0 %v5301
      %v5303 = vpop.xlane.xlu0 %5302
      %v5304 = vsel %vm5105, %v3689, -inf
      %5305 = vmax.xlane.f32.xlu0 %v5304
      %v5306 = vpop.xlane.xlu0 %5305
      %v5307 = vsel %vm5105, %v3692, -inf
      %5308 = vmax.xlane.f32.xlu0 %v5307
      %v5309 = vpop.xlane.xlu0 %5308
      %v5310 = vsel %vm5105, %v3736, -inf
      %5311 = vmax.xlane.f32.xlu0 %v5310
      %v5312 = vpop.xlane.xlu0 %5311
      %v5313 = vsel %vm5105, %v3739, -inf
      %5314 = vmax.xlane.f32.xlu0 %v5313
      %v5315 = vpop.xlane.xlu0 %5314
      %v5316 = vsel %vm5105, %v3783, -inf
      %5317 = vmax.xlane.f32.xlu0 %v5316
      %v5318 = vpop.xlane.xlu0 %5317
      %v5319 = vsel %vm5105, %v3786, -inf
      %5320 = vmax.xlane.f32.xlu0 %v5319
      %v5321 = vpop.xlane.xlu0 %5320
      %v5322 = vsel %vm5105, %v3830, -inf
      %5323 = vmax.xlane.f32.xlu0 %v5322
      %v5324 = vpop.xlane.xlu0 %5323
      %v5325 = vsel %vm5105, %v3833, -inf
      %5326 = vmax.xlane.f32.xlu0 %v5325
      %v5327 = vpop.xlane.xlu0 %5326
      %v5328 = vsel %vm5105, %v3877, -inf
      %5329 = vmax.xlane.f32.xlu0 %v5328
      %v5330 = vpop.xlane.xlu0 %5329
      %v5331 = vsel %vm5105, %v3880, -inf
      %5332 = vmax.xlane.f32.xlu0 %v5331
      %v5333 = vpop.xlane.xlu0 %5332
      %v5334 = vsel %vm5105, %v3924, -inf
      %5335 = vmax.xlane.f32.xlu0 %v5334
      %v5336 = vpop.xlane.xlu0 %5335
      %v5337 = vsel %vm5105, %v3927, -inf
      %5338 = vmax.xlane.f32.xlu0 %v5337
      %v5339 = vpop.xlane.xlu0 %5338
      %v5340 = vsel %vm5105, %v3971, -inf
      %5341 = vmax.xlane.f32.xlu0 %v5340
      %v5342 = vpop.xlane.xlu0 %5341
      %v5343 = vsel %vm5105, %v3974, -inf
      %5344 = vmax.xlane.f32.xlu0 %v5343
      %v5345 = vpop.xlane.xlu0 %5344
      %v5346 = vsel %vm5105, %v4018, -inf
      %5347 = vmax.xlane.f32.xlu0 %v5346
      %v5348 = vpop.xlane.xlu0 %5347
      %v5349 = vsel %vm5105, %v4021, -inf
      %5350 = vmax.xlane.f32.xlu0 %v5349
      %v5351 = vpop.xlane.xlu0 %5350
      %v5352 = vsel %vm5105, %v4065, -inf
      %5353 = vmax.xlane.f32.xlu0 %v5352
      %v5354 = vpop.xlane.xlu0 %5353
      %v5355 = vsel %vm5105, %v4068, -inf
      %5356 = vmax.xlane.f32.xlu0 %v5355
      %v5357 = vpop.xlane.xlu0 %5356
      %v5358 = vsel %vm5105, %v4112, -inf
      %5359 = vmax.xlane.f32.xlu0 %v5358
      %v5360 = vpop.xlane.xlu0 %5359
      %v5361 = vsel %vm5105, %v4115, -inf
      %5362 = vmax.xlane.f32.xlu0 %v5361
      %v5363 = vpop.xlane.xlu0 %5362
      %v5364 = vsel %vm5105, %v4159, -inf
      %5365 = vmax.xlane.f32.xlu0 %v5364
      %v5366 = vpop.xlane.xlu0 %5365
      %v5367 = vsel %vm5105, %v4162, -inf
      %5368 = vmax.xlane.f32.xlu0 %v5367
      %v5369 = vpop.xlane.xlu0 %5368
      %v5370 = vsel %vm5105, %v4206, -inf
      %5371 = vmax.xlane.f32.xlu0 %v5370
      %v5372 = vpop.xlane.xlu0 %5371
      %v5373 = vsel %vm5105, %v4209, -inf
      %5374 = vmax.xlane.f32.xlu0 %v5373
      %v5375 = vpop.xlane.xlu0 %5374
      %v5376 = vsel %vm5105, %v4253, -inf
      %5377 = vmax.xlane.f32.xlu0 %v5376
      %v5378 = vpop.xlane.xlu0 %5377
      %v5379 = vsel %vm5105, %v4256, -inf
      %5380 = vmax.xlane.f32.xlu0 %v5379
      %v5381 = vpop.xlane.xlu0 %5380
      %v5382 = vsel %vm5105, %v4300, -inf
      %5383 = vmax.xlane.f32.xlu0 %v5382
      %v5384 = vpop.xlane.xlu0 %5383
      %v5385 = vsel %vm5105, %v4303, -inf
      %5386 = vmax.xlane.f32.xlu0 %v5385
      %v5387 = vpop.xlane.xlu0 %5386
      %v5388 = vsel %vm5105, %v4347, -inf
      %5389 = vmax.xlane.f32.xlu0 %v5388
      %v5390 = vpop.xlane.xlu0 %5389
      %v5391 = vsel %vm5105, %v4350, -inf
      %5392 = vmax.xlane.f32.xlu0 %v5391
      %v5393 = vpop.xlane.xlu0 %5392
      %v5394 = vsel %vm5105, %v4394, -inf
      %5395 = vmax.xlane.f32.xlu0 %v5394
      %v5396 = vpop.xlane.xlu0 %5395
      %v5397 = vsel %vm5105, %v4397, -inf
      %5398 = vmax.xlane.f32.xlu0 %v5397
      %v5399 = vpop.xlane.xlu0 %5398
      %v5400 = vsel %vm5105, %v4441, -inf
      %5401 = vmax.xlane.f32.xlu0 %v5400
      %v5402 = vpop.xlane.xlu0 %5401
      %v5403 = vsel %vm5105, %v4444, -inf
      %5404 = vmax.xlane.f32.xlu0 %v5403
      %v5405 = vpop.xlane.xlu0 %5404
      %v5406 = vsel %vm5105, %v4488, -inf
      %5407 = vmax.xlane.f32.xlu0 %v5406
      %v5408 = vpop.xlane.xlu0 %5407
      %v5409 = vsel %vm5105, %v4491, -inf
      %5410 = vmax.xlane.f32.xlu0 %v5409
      %v5411 = vpop.xlane.xlu0 %5410
      %v5412 = vsel %vm5105, %v4535, -inf
      %5413 = vmax.xlane.f32.xlu0 %v5412
      %v5414 = vpop.xlane.xlu0 %5413
      %v5415 = vsel %vm5105, %v4538, -inf
      %5416 = vmax.xlane.f32.xlu0 %v5415
      %v5417 = vpop.xlane.xlu0 %5416
      %v5418 = vsel %vm5105, %v4582, -inf
      %5419 = vmax.xlane.f32.xlu0 %v5418
      %v5420 = vpop.xlane.xlu0 %5419
      %v5421 = vsel %vm5105, %v4585, -inf
      %5422 = vmax.xlane.f32.xlu0 %v5421
      %v5423 = vpop.xlane.xlu0 %5422
      %v5424 = vsel %vm5105, %v4629, -inf
      %5425 = vmax.xlane.f32.xlu0 %v5424
      %v5426 = vpop.xlane.xlu0 %5425
      %v5427 = vsel %vm5105, %v4632, -inf
      %5428 = vmax.xlane.f32.xlu0 %v5427
      %v5429 = vpop.xlane.xlu0 %5428
      %v5430 = vsel %vm5105, %v4676, -inf
      %5431 = vmax.xlane.f32.xlu0 %v5430
      %v5432 = vpop.xlane.xlu0 %5431
      %v5433 = vsel %vm5105, %v4679, -inf
      %5434 = vmax.xlane.f32.xlu0 %v5433
      %v5435 = vpop.xlane.xlu0 %5434
      %v5436 = vsel %vm5105, %v4723, -inf
      %5437 = vmax.xlane.f32.xlu0 %v5436
      %v5438 = vpop.xlane.xlu0 %5437
      %v5439 = vsel %vm5105, %v4726, -inf
      %5440 = vmax.xlane.f32.xlu0 %v5439
      %v5441 = vpop.xlane.xlu0 %5440
      %v5442 = vsel %vm5105, %v4770, -inf
      %5443 = vmax.xlane.f32.xlu0 %v5442
      %v5444 = vpop.xlane.xlu0 %5443
      %v5445 = vsel %vm5105, %v4773, -inf
      %5446 = vmax.xlane.f32.xlu0 %v5445
      %v5447 = vpop.xlane.xlu0 %5446
      %v5448 = vsel %vm5105, %v4817, -inf
      %5449 = vmax.xlane.f32.xlu0 %v5448
      %v5450 = vpop.xlane.xlu0 %5449
      %v5451 = vsel %vm5105, %v4820, -inf
      %5452 = vmax.xlane.f32.xlu0 %v5451
      %v5453 = vpop.xlane.xlu0 %5452
      %v5454 = vsel %vm5105, %v4864, -inf
      %5455 = vmax.xlane.f32.xlu0 %v5454
      %v5456 = vpop.xlane.xlu0 %5455
      %v5457 = vsel %vm5105, %v4867, -inf
      %5458 = vmax.xlane.f32.xlu0 %v5457
      %v5459 = vpop.xlane.xlu0 %5458
      %v5460 = vsel %vm5105, %v4911, -inf
      %5461 = vmax.xlane.f32.xlu0 %v5460
      %v5462 = vpop.xlane.xlu0 %5461
      %v5463 = vsel %vm5105, %v4914, -inf
      %5464 = vmax.xlane.f32.xlu0 %v5463
      %v5465 = vpop.xlane.xlu0 %5464
      %v5466 = vsel %vm5105, %v4958, -inf
      %5467 = vmax.xlane.f32.xlu0 %v5466
      %v5468 = vpop.xlane.xlu0 %5467
      %v5469 = vsel %vm5105, %v4961, -inf
      %5470 = vmax.xlane.f32.xlu0 %v5469
      %v5471 = vpop.xlane.xlu0 %5470
      %v5472 = vsel %vm5105, %v5005, -inf
      %5473 = vmax.xlane.f32.xlu0 %v5472
      %v5474 = vpop.xlane.xlu0 %5473
      %v5475 = vsel %vm5105, %v5008, -inf
      %5476 = vmax.xlane.f32.xlu0 %v5475
      %v5477 = vpop.xlane.xlu0 %5476
      %v5478 = vsel %vm5105, %v5052, -inf
      %5479 = vmax.xlane.f32.xlu0 %v5478
      %v5480 = vpop.xlane.xlu0 %5479
      %v5481 = vsel %vm5105, %v5055, -inf
      %5482 = vmax.xlane.f32.xlu0 %v5481
      %v5483 = vpop.xlane.xlu0 %5482
      %v5484 = vsel %vm5105, %v5099, -inf
      %5485 = vmax.xlane.f32.xlu0 %v5484
      %v5486 = vpop.xlane.xlu0 %5485
      %v5487 = vsel %vm5105, %v5102, -inf
      %5488 = vmax.xlane.f32.xlu0 %v5487
      %v5489 = vpop.xlane.xlu0 %5488
      %v5490 = vsub.f32 %v2138, %v5108
      %v5491 = vsub.f32 %v2141, %v5111
      %v5492 = vsub.f32 %v2185, %v5114
      %v5493 = vsub.f32 %v2188, %v5117
      %v5494 = vsub.f32 %v2232, %v5120
      %v5495 = vsub.f32 %v2235, %v5123
      %v5496 = vsub.f32 %v2279, %v5126
      %v5497 = vsub.f32 %v2282, %v5129
      %v5498 = vsub.f32 %v2326, %v5132
      %v5499 = vsub.f32 %v2329, %v5135
      %v5500 = vsub.f32 %v2373, %v5138
      %v5501 = vsub.f32 %v2376, %v5141
      %v5502 = vsub.f32 %v2420, %v5144
      %v5503 = vsub.f32 %v2423, %v5147
      %v5504 = vsub.f32 %v2467, %v5150
      %v5505 = vsub.f32 %v2470, %v5153
      %v5506 = vsub.f32 %v2514, %v5156
      %v5507 = vsub.f32 %v2517, %v5159
      %v5508 = vsub.f32 %v2561, %v5162
      %v5509 = vsub.f32 %v2564, %v5165
      %v5510 = vsub.f32 %v2608, %v5168
      %v5511 = vsub.f32 %v2611, %v5171
      %v5512 = vsub.f32 %v2655, %v5174
      %v5513 = vsub.f32 %v2658, %v5177
      %v5514 = vsub.f32 %v2702, %v5180
      %v5515 = vsub.f32 %v2705, %v5183
      %v5516 = vsub.f32 %v2749, %v5186
      %v5517 = vsub.f32 %v2752, %v5189
      %v5518 = vsub.f32 %v2796, %v5192
      %v5519 = vsub.f32 %v2799, %v5195
      %v5520 = vsub.f32 %v2843, %v5198
      %v5521 = vsub.f32 %v2846, %v5201
      %v5522 = vsub.f32 %v2890, %v5204
      %v5523 = vsub.f32 %v2893, %v5207
      %v5524 = vsub.f32 %v2937, %v5210
      %v5525 = vsub.f32 %v2940, %v5213
      %v5526 = vsub.f32 %v2984, %v5216
      %v5527 = vsub.f32 %v2987, %v5219
      %v5528 = vsub.f32 %v3031, %v5222
      %v5529 = vsub.f32 %v3034, %v5225
      %v5530 = vsub.f32 %v3078, %v5228
      %v5531 = vsub.f32 %v3081, %v5231
      %v5532 = vsub.f32 %v3125, %v5234
      %v5533 = vsub.f32 %v3128, %v5237
      %v5534 = vsub.f32 %v3172, %v5240
      %v5535 = vsub.f32 %v3175, %v5243
      %v5536 = vsub.f32 %v3219, %v5246
      %v5537 = vsub.f32 %v3222, %v5249
      %v5538 = vsub.f32 %v3266, %v5252
      %v5539 = vsub.f32 %v3269, %v5255
      %v5540 = vsub.f32 %v3313, %v5258
      %v5541 = vsub.f32 %v3316, %v5261
      %v5542 = vsub.f32 %v3360, %v5264
      %v5543 = vsub.f32 %v3363, %v5267
      %v5544 = vsub.f32 %v3407, %v5270
      %v5545 = vsub.f32 %v3410, %v5273
      %v5546 = vsub.f32 %v3454, %v5276
      %v5547 = vsub.f32 %v3457, %v5279
      %v5548 = vsub.f32 %v3501, %v5282
      %v5549 = vsub.f32 %v3504, %v5285
      %v5550 = vsub.f32 %v3548, %v5288
      %v5551 = vsub.f32 %v3551, %v5291
      %v5552 = vsub.f32 %v3595, %v5294
      %v5553 = vsub.f32 %v3598, %v5297
      %v5554 = vsub.f32 %v3642, %v5300
      %v5555 = vsub.f32 %v3645, %v5303
      %v5556 = vsub.f32 %v3689, %v5306
      %v5557 = vsub.f32 %v3692, %v5309
      %v5558 = vsub.f32 %v3736, %v5312
      %v5559 = vsub.f32 %v3739, %v5315
      %v5560 = vsub.f32 %v3783, %v5318
      %v5561 = vsub.f32 %v3786, %v5321
      %v5562 = vsub.f32 %v3830, %v5324
      %v5563 = vsub.f32 %v3833, %v5327
      %v5564 = vsub.f32 %v3877, %v5330
      %v5565 = vsub.f32 %v3880, %v5333
      %v5566 = vsub.f32 %v3924, %v5336
      %v5567 = vsub.f32 %v3927, %v5339
      %v5568 = vsub.f32 %v3971, %v5342
      %v5569 = vsub.f32 %v3974, %v5345
      %v5570 = vsub.f32 %v4018, %v5348
      %v5571 = vsub.f32 %v4021, %v5351
      %v5572 = vsub.f32 %v4065, %v5354
      %v5573 = vsub.f32 %v4068, %v5357
      %v5574 = vsub.f32 %v4112, %v5360
      %v5575 = vsub.f32 %v4115, %v5363
      %v5576 = vsub.f32 %v4159, %v5366
      %v5577 = vsub.f32 %v4162, %v5369
      %v5578 = vsub.f32 %v4206, %v5372
      %v5579 = vsub.f32 %v4209, %v5375
      %v5580 = vsub.f32 %v4253, %v5378
      %v5581 = vsub.f32 %v4256, %v5381
      %v5582 = vsub.f32 %v4300, %v5384
      %v5583 = vsub.f32 %v4303, %v5387
      %v5584 = vsub.f32 %v4347, %v5390
      %v5585 = vsub.f32 %v4350, %v5393
      %v5586 = vsub.f32 %v4394, %v5396
      %v5587 = vsub.f32 %v4397, %v5399
      %v5588 = vsub.f32 %v4441, %v5402
      %v5589 = vsub.f32 %v4444, %v5405
      %v5590 = vsub.f32 %v4488, %v5408
      %v5591 = vsub.f32 %v4491, %v5411
      %v5592 = vsub.f32 %v4535, %v5414
      %v5593 = vsub.f32 %v4538, %v5417
      %v5594 = vsub.f32 %v4582, %v5420
      %v5595 = vsub.f32 %v4585, %v5423
      %v5596 = vsub.f32 %v4629, %v5426
      %v5597 = vsub.f32 %v4632, %v5429
      %v5598 = vsub.f32 %v4676, %v5432
      %v5599 = vsub.f32 %v4679, %v5435
      %v5600 = vsub.f32 %v4723, %v5438
      %v5601 = vsub.f32 %v4726, %v5441
      %v5602 = vsub.f32 %v4770, %v5444
      %v5603 = vsub.f32 %v4773, %v5447
      %v5604 = vsub.f32 %v4817, %v5450
      %v5605 = vsub.f32 %v4820, %v5453
      %v5606 = vsub.f32 %v4864, %v5456
      %v5607 = vsub.f32 %v4867, %v5459
      %v5608 = vsub.f32 %v4911, %v5462
      %v5609 = vsub.f32 %v4914, %v5465
      %v5610 = vsub.f32 %v4958, %v5468
      %v5611 = vsub.f32 %v4961, %v5471
      %v5612 = vsub.f32 %v5005, %v5474
      %v5613 = vsub.f32 %v5008, %v5477
      %v5614 = vsub.f32 %v5052, %v5480
      %v5615 = vsub.f32 %v5055, %v5483
      %v5616 = vsub.f32 %v5099, %v5486
      %v5617 = vsub.f32 %v5102, %v5489
      %v5618 = vmul.f32 %v5490, 1.442695
      %v5619 = vpow.pop %v5618
      %v5620 = vmul.f32 %v5491, 1.442695
      %v5621 = vpow.pop %v5620
      %v5622 = vmul.f32 %v5492, 1.442695
      %v5623 = vpow.pop %v5622
      %v5624 = vmul.f32 %v5493, 1.442695
      %v5625 = vpow.pop %v5624
      %v5626 = vmul.f32 %v5494, 1.442695
      %v5627 = vpow.pop %v5626
      %v5628 = vmul.f32 %v5495, 1.442695
      %v5629 = vpow.pop %v5628
      %v5630 = vmul.f32 %v5496, 1.442695
      %v5631 = vpow.pop %v5630
      %v5632 = vmul.f32 %v5497, 1.442695
      %v5633 = vpow.pop %v5632
      %v5634 = vmul.f32 %v5498, 1.442695
      %v5635 = vpow.pop %v5634
      %v5636 = vmul.f32 %v5499, 1.442695
      %v5637 = vpow.pop %v5636
      %v5638 = vmul.f32 %v5500, 1.442695
      %v5639 = vpow.pop %v5638
      %v5640 = vmul.f32 %v5501, 1.442695
      %v5641 = vpow.pop %v5640
      %v5642 = vmul.f32 %v5502, 1.442695
      %v5643 = vpow.pop %v5642
      %v5644 = vmul.f32 %v5503, 1.442695
      %v5645 = vpow.pop %v5644
      %v5646 = vmul.f32 %v5504, 1.442695
      %v5647 = vpow.pop %v5646
      %v5648 = vmul.f32 %v5505, 1.442695
      %v5649 = vpow.pop %v5648
      %v5650 = vmul.f32 %v5506, 1.442695
      %v5651 = vpow.pop %v5650
      %v5652 = vmul.f32 %v5507, 1.442695
      %v5653 = vpow.pop %v5652
      %v5654 = vmul.f32 %v5508, 1.442695
      %v5655 = vpow.pop %v5654
      %v5656 = vmul.f32 %v5509, 1.442695
      %v5657 = vpow.pop %v5656
      %v5658 = vmul.f32 %v5510, 1.442695
      %v5659 = vpow.pop %v5658
      %v5660 = vmul.f32 %v5511, 1.442695
      %v5661 = vpow.pop %v5660
      %v5662 = vmul.f32 %v5512, 1.442695
      %v5663 = vpow.pop %v5662
      %v5664 = vmul.f32 %v5513, 1.442695
      %v5665 = vpow.pop %v5664
      %v5666 = vmul.f32 %v5514, 1.442695
      %v5667 = vpow.pop %v5666
      %v5668 = vmul.f32 %v5515, 1.442695
      %v5669 = vpow.pop %v5668
      %v5670 = vmul.f32 %v5516, 1.442695
      %v5671 = vpow.pop %v5670
      %v5672 = vmul.f32 %v5517, 1.442695
      %v5673 = vpow.pop %v5672
      %v5674 = vmul.f32 %v5518, 1.442695
      %v5675 = vpow.pop %v5674
      %v5676 = vmul.f32 %v5519, 1.442695
      %v5677 = vpow.pop %v5676
      %v5678 = vmul.f32 %v5520, 1.442695
      %v5679 = vpow.pop %v5678
      %v5680 = vmul.f32 %v5521, 1.442695
      %v5681 = vpow.pop %v5680
      %v5682 = vmul.f32 %v5522, 1.442695
      %v5683 = vpow.pop %v5682
      %v5684 = vmul.f32 %v5523, 1.442695
      %v5685 = vpow.pop %v5684
      %v5686 = vmul.f32 %v5524, 1.442695
      %v5687 = vpow.pop %v5686
      %v5688 = vmul.f32 %v5525, 1.442695
      %v5689 = vpow.pop %v5688
      %v5690 = vmul.f32 %v5526, 1.442695
      %v5691 = vpow.pop %v5690
      %v5692 = vmul.f32 %v5527, 1.442695
      %v5693 = vpow.pop %v5692
      %v5694 = vmul.f32 %v5528, 1.442695
      %v5695 = vpow.pop %v5694
      %v5696 = vmul.f32 %v5529, 1.442695
      %v5697 = vpow.pop %v5696
      %v5698 = vmul.f32 %v5530, 1.442695
      %v5699 = vpow.pop %v5698
      %v5700 = vmul.f32 %v5531, 1.442695
      %v5701 = vpow.pop %v5700
      %v5702 = vmul.f32 %v5532, 1.442695
      %v5703 = vpow.pop %v5702
      %v5704 = vmul.f32 %v5533, 1.442695
      %v5705 = vpow.pop %v5704
      %v5706 = vmul.f32 %v5534, 1.442695
      %v5707 = vpow.pop %v5706
      %v5708 = vmul.f32 %v5535, 1.442695
      %v5709 = vpow.pop %v5708
      %v5710 = vmul.f32 %v5536, 1.442695
      %v5711 = vpow.pop %v5710
      %v5712 = vmul.f32 %v5537, 1.442695
      %v5713 = vpow.pop %v5712
      %v5714 = vmul.f32 %v5538, 1.442695
      %v5715 = vpow.pop %v5714
      %v5716 = vmul.f32 %v5539, 1.442695
      %v5717 = vpow.pop %v5716
      %v5718 = vmul.f32 %v5540, 1.442695
      %v5719 = vpow.pop %v5718
      %v5720 = vmul.f32 %v5541, 1.442695
      %v5721 = vpow.pop %v5720
      %v5722 = vmul.f32 %v5542, 1.442695
      %v5723 = vpow.pop %v5722
      %v5724 = vmul.f32 %v5543, 1.442695
      %v5725 = vpow.pop %v5724
      %v5726 = vmul.f32 %v5544, 1.442695
      %v5727 = vpow.pop %v5726
      %v5728 = vmul.f32 %v5545, 1.442695
      %v5729 = vpow.pop %v5728
      %v5730 = vmul.f32 %v5546, 1.442695
      %v5731 = vpow.pop %v5730
      %v5732 = vmul.f32 %v5547, 1.442695
      %v5733 = vpow.pop %v5732
      %v5734 = vmul.f32 %v5548, 1.442695
      %v5735 = vpow.pop %v5734
      %v5736 = vmul.f32 %v5549, 1.442695
      %v5737 = vpow.pop %v5736
      %v5738 = vmul.f32 %v5550, 1.442695
      %v5739 = vpow.pop %v5738
      %v5740 = vmul.f32 %v5551, 1.442695
      %v5741 = vpow.pop %v5740
      %v5742 = vmul.f32 %v5552, 1.442695
      %v5743 = vpow.pop %v5742
      %v5744 = vmul.f32 %v5553, 1.442695
      %v5745 = vpow.pop %v5744
      %v5746 = vmul.f32 %v5554, 1.442695
      %v5747 = vpow.pop %v5746
      %v5748 = vmul.f32 %v5555, 1.442695
      %v5749 = vpow.pop %v5748
      %v5750 = vmul.f32 %v5556, 1.442695
      %v5751 = vpow.pop %v5750
      %v5752 = vmul.f32 %v5557, 1.442695
      %v5753 = vpow.pop %v5752
      %v5754 = vmul.f32 %v5558, 1.442695
      %v5755 = vpow.pop %v5754
      %v5756 = vmul.f32 %v5559, 1.442695
      %v5757 = vpow.pop %v5756
      %v5758 = vmul.f32 %v5560, 1.442695
      %v5759 = vpow.pop %v5758
      %v5760 = vmul.f32 %v5561, 1.442695
      %v5761 = vpow.pop %v5760
      %v5762 = vmul.f32 %v5562, 1.442695
      %v5763 = vpow.pop %v5762
      %v5764 = vmul.f32 %v5563, 1.442695
      %v5765 = vpow.pop %v5764
      %v5766 = vmul.f32 %v5564, 1.442695
      %v5767 = vpow.pop %v5766
      %v5768 = vmul.f32 %v5565, 1.442695
      %v5769 = vpow.pop %v5768
      %v5770 = vmul.f32 %v5566, 1.442695
      %v5771 = vpow.pop %v5770
      %v5772 = vmul.f32 %v5567, 1.442695
      %v5773 = vpow.pop %v5772
      %v5774 = vmul.f32 %v5568, 1.442695
      %v5775 = vpow.pop %v5774
      %v5776 = vmul.f32 %v5569, 1.442695
      %v5777 = vpow.pop %v5776
      %v5778 = vmul.f32 %v5570, 1.442695
      %v5779 = vpow.pop %v5778
      %v5780 = vmul.f32 %v5571, 1.442695
      %v5781 = vpow.pop %v5780
      %v5782 = vmul.f32 %v5572, 1.442695
      %v5783 = vpow.pop %v5782
      %v5784 = vmul.f32 %v5573, 1.442695
      %v5785 = vpow.pop %v5784
      %v5786 = vmul.f32 %v5574, 1.442695
      %v5787 = vpow.pop %v5786
      %v5788 = vmul.f32 %v5575, 1.442695
      %v5789 = vpow.pop %v5788
      %v5790 = vmul.f32 %v5576, 1.442695
      %v5791 = vpow.pop %v5790
      %v5792 = vmul.f32 %v5577, 1.442695
      %v5793 = vpow.pop %v5792
      %v5794 = vmul.f32 %v5578, 1.442695
      %v5795 = vpow.pop %v5794
      %v5796 = vmul.f32 %v5579, 1.442695
      %v5797 = vpow.pop %v5796
      %v5798 = vmul.f32 %v5580, 1.442695
      %v5799 = vpow.pop %v5798
      %v5800 = vmul.f32 %v5581, 1.442695
      %v5801 = vpow.pop %v5800
      %v5802 = vmul.f32 %v5582, 1.442695
      %v5803 = vpow.pop %v5802
      %v5804 = vmul.f32 %v5583, 1.442695
      %v5805 = vpow.pop %v5804
      %v5806 = vmul.f32 %v5584, 1.442695
      %v5807 = vpow.pop %v5806
      %v5808 = vmul.f32 %v5585, 1.442695
      %v5809 = vpow.pop %v5808
      %v5810 = vmul.f32 %v5586, 1.442695
      %v5811 = vpow.pop %v5810
      %v5812 = vmul.f32 %v5587, 1.442695
      %v5813 = vpow.pop %v5812
      %v5814 = vmul.f32 %v5588, 1.442695
      %v5815 = vpow.pop %v5814
      %v5816 = vmul.f32 %v5589, 1.442695
      %v5817 = vpow.pop %v5816
      %v5818 = vmul.f32 %v5590, 1.442695
      %v5819 = vpow.pop %v5818
      %v5820 = vmul.f32 %v5591, 1.442695
      %v5821 = vpow.pop %v5820
      %v5822 = vmul.f32 %v5592, 1.442695
      %v5823 = vpow.pop %v5822
      %v5824 = vmul.f32 %v5593, 1.442695
      %v5825 = vpow.pop %v5824
      %v5826 = vmul.f32 %v5594, 1.442695
      %v5827 = vpow.pop %v5826
      %v5828 = vmul.f32 %v5595, 1.442695
      %v5829 = vpow.pop %v5828
      %v5830 = vmul.f32 %v5596, 1.442695
      %v5831 = vpow.pop %v5830
      %v5832 = vmul.f32 %v5597, 1.442695
      %v5833 = vpow.pop %v5832
      %v5834 = vmul.f32 %v5598, 1.442695
      %v5835 = vpow.pop %v5834
      %v5836 = vmul.f32 %v5599, 1.442695
      %v5837 = vpow.pop %v5836
      %v5838 = vmul.f32 %v5600, 1.442695
      %v5839 = vpow.pop %v5838
      %v5840 = vmul.f32 %v5601, 1.442695
      %v5841 = vpow.pop %v5840
      %v5842 = vmul.f32 %v5602, 1.442695
      %v5843 = vpow.pop %v5842
      %v5844 = vmul.f32 %v5603, 1.442695
      %v5845 = vpow.pop %v5844
      %v5846 = vmul.f32 %v5604, 1.442695
      %v5847 = vpow.pop %v5846
      %v5848 = vmul.f32 %v5605, 1.442695
      %v5849 = vpow.pop %v5848
      %v5850 = vmul.f32 %v5606, 1.442695
      %v5851 = vpow.pop %v5850
      %v5852 = vmul.f32 %v5607, 1.442695
      %v5853 = vpow.pop %v5852
      %v5854 = vmul.f32 %v5608, 1.442695
      %v5855 = vpow.pop %v5854
      %v5856 = vmul.f32 %v5609, 1.442695
      %v5857 = vpow.pop %v5856
      %v5858 = vmul.f32 %v5610, 1.442695
      %v5859 = vpow.pop %v5858
      %v5860 = vmul.f32 %v5611, 1.442695
      %v5861 = vpow.pop %v5860
      %v5862 = vmul.f32 %v5612, 1.442695
      %v5863 = vpow.pop %v5862
      %v5864 = vmul.f32 %v5613, 1.442695
      %v5865 = vpow.pop %v5864
      %v5866 = vmul.f32 %v5614, 1.442695
      %v5867 = vpow.pop %v5866
      %v5868 = vmul.f32 %v5615, 1.442695
      %v5869 = vpow.pop %v5868
      %v5870 = vmul.f32 %v5616, 1.442695
      %v5871 = vpow.pop %v5870
      %v5872 = vmul.f32 %v5617, 1.442695
      %v5873 = vpow.pop %v5872
      %v5874 = vsel %vm5105, %v5619, 0.0
      %5875 = vadd.xlane.f32.xlu0 %v5874
      %v5876 = vpop.xlane.xlu0 %5875
      %v5877 = vsel %vm5105, %v5621, 0.0
      %5878 = vadd.xlane.f32.xlu0 %v5877
      %v5879 = vpop.xlane.xlu0 %5878
      %v5880 = vsel %vm5105, %v5623, 0.0
      %5881 = vadd.xlane.f32.xlu0 %v5880
      %v5882 = vpop.xlane.xlu0 %5881
      %v5883 = vsel %vm5105, %v5625, 0.0
      %5884 = vadd.xlane.f32.xlu0 %v5883
      %v5885 = vpop.xlane.xlu0 %5884
      %v5886 = vsel %vm5105, %v5627, 0.0
      %5887 = vadd.xlane.f32.xlu0 %v5886
      %v5888 = vpop.xlane.xlu0 %5887
      %v5889 = vsel %vm5105, %v5629, 0.0
      %5890 = vadd.xlane.f32.xlu0 %v5889
      %v5891 = vpop.xlane.xlu0 %5890
      %v5892 = vsel %vm5105, %v5631, 0.0
      %5893 = vadd.xlane.f32.xlu0 %v5892
      %v5894 = vpop.xlane.xlu0 %5893
      %v5895 = vsel %vm5105, %v5633, 0.0
      %5896 = vadd.xlane.f32.xlu0 %v5895
      %v5897 = vpop.xlane.xlu0 %5896
      %v5898 = vsel %vm5105, %v5635, 0.0
      %5899 = vadd.xlane.f32.xlu0 %v5898
      %v5900 = vpop.xlane.xlu0 %5899
      %v5901 = vsel %vm5105, %v5637, 0.0
      %5902 = vadd.xlane.f32.xlu0 %v5901
      %v5903 = vpop.xlane.xlu0 %5902
      %v5904 = vsel %vm5105, %v5639, 0.0
      %5905 = vadd.xlane.f32.xlu0 %v5904
      %v5906 = vpop.xlane.xlu0 %5905
      %v5907 = vsel %vm5105, %v5641, 0.0
      %5908 = vadd.xlane.f32.xlu0 %v5907
      %v5909 = vpop.xlane.xlu0 %5908
      %v5910 = vsel %vm5105, %v5643, 0.0
      %5911 = vadd.xlane.f32.xlu0 %v5910
      %v5912 = vpop.xlane.xlu0 %5911
      %v5913 = vsel %vm5105, %v5645, 0.0
      %5914 = vadd.xlane.f32.xlu0 %v5913
      %v5915 = vpop.xlane.xlu0 %5914
      %v5916 = vsel %vm5105, %v5647, 0.0
      %5917 = vadd.xlane.f32.xlu0 %v5916
      %v5918 = vpop.xlane.xlu0 %5917
      %v5919 = vsel %vm5105, %v5649, 0.0
      %5920 = vadd.xlane.f32.xlu0 %v5919
      %v5921 = vpop.xlane.xlu0 %5920
      %v5922 = vsel %vm5105, %v5651, 0.0
      %5923 = vadd.xlane.f32.xlu0 %v5922
      %v5924 = vpop.xlane.xlu0 %5923
      %v5925 = vsel %vm5105, %v5653, 0.0
      %5926 = vadd.xlane.f32.xlu0 %v5925
      %v5927 = vpop.xlane.xlu0 %5926
      %v5928 = vsel %vm5105, %v5655, 0.0
      %5929 = vadd.xlane.f32.xlu0 %v5928
      %v5930 = vpop.xlane.xlu0 %5929
      %v5931 = vsel %vm5105, %v5657, 0.0
      %5932 = vadd.xlane.f32.xlu0 %v5931
      %v5933 = vpop.xlane.xlu0 %5932
      %v5934 = vsel %vm5105, %v5659, 0.0
      %5935 = vadd.xlane.f32.xlu0 %v5934
      %v5936 = vpop.xlane.xlu0 %5935
      %v5937 = vsel %vm5105, %v5661, 0.0
      %5938 = vadd.xlane.f32.xlu0 %v5937
      %v5939 = vpop.xlane.xlu0 %5938
      %v5940 = vsel %vm5105, %v5663, 0.0
      %5941 = vadd.xlane.f32.xlu0 %v5940
      %v5942 = vpop.xlane.xlu0 %5941
      %v5943 = vsel %vm5105, %v5665, 0.0
      %5944 = vadd.xlane.f32.xlu0 %v5943
      %v5945 = vpop.xlane.xlu0 %5944
      %v5946 = vsel %vm5105, %v5667, 0.0
      %5947 = vadd.xlane.f32.xlu0 %v5946
      %v5948 = vpop.xlane.xlu0 %5947
      %v5949 = vsel %vm5105, %v5669, 0.0
      %5950 = vadd.xlane.f32.xlu0 %v5949
      %v5951 = vpop.xlane.xlu0 %5950
      %v5952 = vsel %vm5105, %v5671, 0.0
      %5953 = vadd.xlane.f32.xlu0 %v5952
      %v5954 = vpop.xlane.xlu0 %5953
      %v5955 = vsel %vm5105, %v5673, 0.0
      %5956 = vadd.xlane.f32.xlu0 %v5955
      %v5957 = vpop.xlane.xlu0 %5956
      %v5958 = vsel %vm5105, %v5675, 0.0
      %5959 = vadd.xlane.f32.xlu0 %v5958
      %v5960 = vpop.xlane.xlu0 %5959
      %v5961 = vsel %vm5105, %v5677, 0.0
      %5962 = vadd.xlane.f32.xlu0 %v5961
      %v5963 = vpop.xlane.xlu0 %5962
      %v5964 = vsel %vm5105, %v5679, 0.0
      %5965 = vadd.xlane.f32.xlu0 %v5964
      %v5966 = vpop.xlane.xlu0 %5965
      %v5967 = vsel %vm5105, %v5681, 0.0
      %5968 = vadd.xlane.f32.xlu0 %v5967
      %v5969 = vpop.xlane.xlu0 %5968
      %v5970 = vsel %vm5105, %v5683, 0.0
      %5971 = vadd.xlane.f32.xlu0 %v5970
      %v5972 = vpop.xlane.xlu0 %5971
      %v5973 = vsel %vm5105, %v5685, 0.0
      %5974 = vadd.xlane.f32.xlu0 %v5973
      %v5975 = vpop.xlane.xlu0 %5974
      %v5976 = vsel %vm5105, %v5687, 0.0
      %5977 = vadd.xlane.f32.xlu0 %v5976
      %v5978 = vpop.xlane.xlu0 %5977
      %v5979 = vsel %vm5105, %v5689, 0.0
      %5980 = vadd.xlane.f32.xlu0 %v5979
      %v5981 = vpop.xlane.xlu0 %5980
      %v5982 = vsel %vm5105, %v5691, 0.0
      %5983 = vadd.xlane.f32.xlu0 %v5982
      %v5984 = vpop.xlane.xlu0 %5983
      %v5985 = vsel %vm5105, %v5693, 0.0
      %5986 = vadd.xlane.f32.xlu0 %v5985
      %v5987 = vpop.xlane.xlu0 %5986
      %v5988 = vsel %vm5105, %v5695, 0.0
      %5989 = vadd.xlane.f32.xlu0 %v5988
      %v5990 = vpop.xlane.xlu0 %5989
      %v5991 = vsel %vm5105, %v5697, 0.0
      %5992 = vadd.xlane.f32.xlu0 %v5991
      %v5993 = vpop.xlane.xlu0 %5992
      %v5994 = vsel %vm5105, %v5699, 0.0
      %5995 = vadd.xlane.f32.xlu0 %v5994
      %v5996 = vpop.xlane.xlu0 %5995
      %v5997 = vsel %vm5105, %v5701, 0.0
      %5998 = vadd.xlane.f32.xlu0 %v5997
      %v5999 = vpop.xlane.xlu0 %5998
      %v6000 = vsel %vm5105, %v5703, 0.0
      %6001 = vadd.xlane.f32.xlu0 %v6000
      %v6002 = vpop.xlane.xlu0 %6001
      %v6003 = vsel %vm5105, %v5705, 0.0
      %6004 = vadd.xlane.f32.xlu0 %v6003
      %v6005 = vpop.xlane.xlu0 %6004
      %v6006 = vsel %vm5105, %v5707, 0.0
      %6007 = vadd.xlane.f32.xlu0 %v6006
      %v6008 = vpop.xlane.xlu0 %6007
      %v6009 = vsel %vm5105, %v5709, 0.0
      %6010 = vadd.xlane.f32.xlu0 %v6009
      %v6011 = vpop.xlane.xlu0 %6010
      %v6012 = vsel %vm5105, %v5711, 0.0
      %6013 = vadd.xlane.f32.xlu0 %v6012
      %v6014 = vpop.xlane.xlu0 %6013
      %v6015 = vsel %vm5105, %v5713, 0.0
      %6016 = vadd.xlane.f32.xlu0 %v6015
      %v6017 = vpop.xlane.xlu0 %6016
      %v6018 = vsel %vm5105, %v5715, 0.0
      %6019 = vadd.xlane.f32.xlu0 %v6018
      %v6020 = vpop.xlane.xlu0 %6019
      %v6021 = vsel %vm5105, %v5717, 0.0
      %6022 = vadd.xlane.f32.xlu0 %v6021
      %v6023 = vpop.xlane.xlu0 %6022
      %v6024 = vsel %vm5105, %v5719, 0.0
      %6025 = vadd.xlane.f32.xlu0 %v6024
      %v6026 = vpop.xlane.xlu0 %6025
      %v6027 = vsel %vm5105, %v5721, 0.0
      %6028 = vadd.xlane.f32.xlu0 %v6027
      %v6029 = vpop.xlane.xlu0 %6028
      %v6030 = vsel %vm5105, %v5723, 0.0
      %6031 = vadd.xlane.f32.xlu0 %v6030
      %v6032 = vpop.xlane.xlu0 %6031
      %v6033 = vsel %vm5105, %v5725, 0.0
      %6034 = vadd.xlane.f32.xlu0 %v6033
      %v6035 = vpop.xlane.xlu0 %6034
      %v6036 = vsel %vm5105, %v5727, 0.0
      %6037 = vadd.xlane.f32.xlu0 %v6036
      %v6038 = vpop.xlane.xlu0 %6037
      %v6039 = vsel %vm5105, %v5729, 0.0
      %6040 = vadd.xlane.f32.xlu0 %v6039
      %v6041 = vpop.xlane.xlu0 %6040
      %v6042 = vsel %vm5105, %v5731, 0.0
      %6043 = vadd.xlane.f32.xlu0 %v6042
      %v6044 = vpop.xlane.xlu0 %6043
      %v6045 = vsel %vm5105, %v5733, 0.0
      %6046 = vadd.xlane.f32.xlu0 %v6045
      %v6047 = vpop.xlane.xlu0 %6046
      %v6048 = vsel %vm5105, %v5735, 0.0
      %6049 = vadd.xlane.f32.xlu0 %v6048
      %v6050 = vpop.xlane.xlu0 %6049
      %v6051 = vsel %vm5105, %v5737, 0.0
      %6052 = vadd.xlane.f32.xlu0 %v6051
      %v6053 = vpop.xlane.xlu0 %6052
      %v6054 = vsel %vm5105, %v5739, 0.0
      %6055 = vadd.xlane.f32.xlu0 %v6054
      %v6056 = vpop.xlane.xlu0 %6055
      %v6057 = vsel %vm5105, %v5741, 0.0
      %6058 = vadd.xlane.f32.xlu0 %v6057
      %v6059 = vpop.xlane.xlu0 %6058
      %v6060 = vsel %vm5105, %v5743, 0.0
      %6061 = vadd.xlane.f32.xlu0 %v6060
      %v6062 = vpop.xlane.xlu0 %6061
      %v6063 = vsel %vm5105, %v5745, 0.0
      %6064 = vadd.xlane.f32.xlu0 %v6063
      %v6065 = vpop.xlane.xlu0 %6064
      %v6066 = vsel %vm5105, %v5747, 0.0
      %6067 = vadd.xlane.f32.xlu0 %v6066
      %v6068 = vpop.xlane.xlu0 %6067
      %v6069 = vsel %vm5105, %v5749, 0.0
      %6070 = vadd.xlane.f32.xlu0 %v6069
      %v6071 = vpop.xlane.xlu0 %6070
      %v6072 = vsel %vm5105, %v5751, 0.0
      %6073 = vadd.xlane.f32.xlu0 %v6072
      %v6074 = vpop.xlane.xlu0 %6073
      %v6075 = vsel %vm5105, %v5753, 0.0
      %6076 = vadd.xlane.f32.xlu0 %v6075
      %v6077 = vpop.xlane.xlu0 %6076
      %v6078 = vsel %vm5105, %v5755, 0.0
      %6079 = vadd.xlane.f32.xlu0 %v6078
      %v6080 = vpop.xlane.xlu0 %6079
      %v6081 = vsel %vm5105, %v5757, 0.0
      %6082 = vadd.xlane.f32.xlu0 %v6081
      %v6083 = vpop.xlane.xlu0 %6082
      %v6084 = vsel %vm5105, %v5759, 0.0
      %6085 = vadd.xlane.f32.xlu0 %v6084
      %v6086 = vpop.xlane.xlu0 %6085
      %v6087 = vsel %vm5105, %v5761, 0.0
      %6088 = vadd.xlane.f32.xlu0 %v6087
      %v6089 = vpop.xlane.xlu0 %6088
      %v6090 = vsel %vm5105, %v5763, 0.0
      %6091 = vadd.xlane.f32.xlu0 %v6090
      %v6092 = vpop.xlane.xlu0 %6091
      %v6093 = vsel %vm5105, %v5765, 0.0
      %6094 = vadd.xlane.f32.xlu0 %v6093
      %v6095 = vpop.xlane.xlu0 %6094
      %v6096 = vsel %vm5105, %v5767, 0.0
      %6097 = vadd.xlane.f32.xlu0 %v6096
      %v6098 = vpop.xlane.xlu0 %6097
      %v6099 = vsel %vm5105, %v5769, 0.0
      %6100 = vadd.xlane.f32.xlu0 %v6099
      %v6101 = vpop.xlane.xlu0 %6100
      %v6102 = vsel %vm5105, %v5771, 0.0
      %6103 = vadd.xlane.f32.xlu0 %v6102
      %v6104 = vpop.xlane.xlu0 %6103
      %v6105 = vsel %vm5105, %v5773, 0.0
      %6106 = vadd.xlane.f32.xlu0 %v6105
      %v6107 = vpop.xlane.xlu0 %6106
      %v6108 = vsel %vm5105, %v5775, 0.0
      %6109 = vadd.xlane.f32.xlu0 %v6108
      %v6110 = vpop.xlane.xlu0 %6109
      %v6111 = vsel %vm5105, %v5777, 0.0
      %6112 = vadd.xlane.f32.xlu0 %v6111
      %v6113 = vpop.xlane.xlu0 %6112
      %v6114 = vsel %vm5105, %v5779, 0.0
      %6115 = vadd.xlane.f32.xlu0 %v6114
      %v6116 = vpop.xlane.xlu0 %6115
      %v6117 = vsel %vm5105, %v5781, 0.0
      %6118 = vadd.xlane.f32.xlu0 %v6117
      %v6119 = vpop.xlane.xlu0 %6118
      %v6120 = vsel %vm5105, %v5783, 0.0
      %6121 = vadd.xlane.f32.xlu0 %v6120
      %v6122 = vpop.xlane.xlu0 %6121
      %v6123 = vsel %vm5105, %v5785, 0.0
      %6124 = vadd.xlane.f32.xlu0 %v6123
      %v6125 = vpop.xlane.xlu0 %6124
      %v6126 = vsel %vm5105, %v5787, 0.0
      %6127 = vadd.xlane.f32.xlu0 %v6126
      %v6128 = vpop.xlane.xlu0 %6127
      %v6129 = vsel %vm5105, %v5789, 0.0
      %6130 = vadd.xlane.f32.xlu0 %v6129
      %v6131 = vpop.xlane.xlu0 %6130
      %v6132 = vsel %vm5105, %v5791, 0.0
      %6133 = vadd.xlane.f32.xlu0 %v6132
      %v6134 = vpop.xlane.xlu0 %6133
      %v6135 = vsel %vm5105, %v5793, 0.0
      %6136 = vadd.xlane.f32.xlu0 %v6135
      %v6137 = vpop.xlane.xlu0 %6136
      %v6138 = vsel %vm5105, %v5795, 0.0
      %6139 = vadd.xlane.f32.xlu0 %v6138
      %v6140 = vpop.xlane.xlu0 %6139
      %v6141 = vsel %vm5105, %v5797, 0.0
      %6142 = vadd.xlane.f32.xlu0 %v6141
      %v6143 = vpop.xlane.xlu0 %6142
      %v6144 = vsel %vm5105, %v5799, 0.0
      %6145 = vadd.xlane.f32.xlu0 %v6144
      %v6146 = vpop.xlane.xlu0 %6145
      %v6147 = vsel %vm5105, %v5801, 0.0
      %6148 = vadd.xlane.f32.xlu0 %v6147
      %v6149 = vpop.xlane.xlu0 %6148
      %v6150 = vsel %vm5105, %v5803, 0.0
      %6151 = vadd.xlane.f32.xlu0 %v6150
      %v6152 = vpop.xlane.xlu0 %6151
      %v6153 = vsel %vm5105, %v5805, 0.0
      %6154 = vadd.xlane.f32.xlu0 %v6153
      %v6155 = vpop.xlane.xlu0 %6154
      %v6156 = vsel %vm5105, %v5807, 0.0
      %6157 = vadd.xlane.f32.xlu0 %v6156
      %v6158 = vpop.xlane.xlu0 %6157
      %v6159 = vsel %vm5105, %v5809, 0.0
      %6160 = vadd.xlane.f32.xlu0 %v6159
      %v6161 = vpop.xlane.xlu0 %6160
      %v6162 = vsel %vm5105, %v5811, 0.0
      %6163 = vadd.xlane.f32.xlu0 %v6162
      %v6164 = vpop.xlane.xlu0 %6163
      %v6165 = vsel %vm5105, %v5813, 0.0
      %6166 = vadd.xlane.f32.xlu0 %v6165
      %v6167 = vpop.xlane.xlu0 %6166
      %v6168 = vsel %vm5105, %v5815, 0.0
      %6169 = vadd.xlane.f32.xlu0 %v6168
      %v6170 = vpop.xlane.xlu0 %6169
      %v6171 = vsel %vm5105, %v5817, 0.0
      %6172 = vadd.xlane.f32.xlu0 %v6171
      %v6173 = vpop.xlane.xlu0 %6172
      %v6174 = vsel %vm5105, %v5819, 0.0
      %6175 = vadd.xlane.f32.xlu0 %v6174
      %v6176 = vpop.xlane.xlu0 %6175
      %v6177 = vsel %vm5105, %v5821, 0.0
      %6178 = vadd.xlane.f32.xlu0 %v6177
      %v6179 = vpop.xlane.xlu0 %6178
      %v6180 = vsel %vm5105, %v5823, 0.0
      %6181 = vadd.xlane.f32.xlu0 %v6180
      %v6182 = vpop.xlane.xlu0 %6181
      %v6183 = vsel %vm5105, %v5825, 0.0
      %6184 = vadd.xlane.f32.xlu0 %v6183
      %v6185 = vpop.xlane.xlu0 %6184
      %v6186 = vsel %vm5105, %v5827, 0.0
      %6187 = vadd.xlane.f32.xlu0 %v6186
      %v6188 = vpop.xlane.xlu0 %6187
      %v6189 = vsel %vm5105, %v5829, 0.0
      %6190 = vadd.xlane.f32.xlu0 %v6189
      %v6191 = vpop.xlane.xlu0 %6190
      %v6192 = vsel %vm5105, %v5831, 0.0
      %6193 = vadd.xlane.f32.xlu0 %v6192
      %v6194 = vpop.xlane.xlu0 %6193
      %v6195 = vsel %vm5105, %v5833, 0.0
      %6196 = vadd.xlane.f32.xlu0 %v6195
      %v6197 = vpop.xlane.xlu0 %6196
      %v6198 = vsel %vm5105, %v5835, 0.0
      %6199 = vadd.xlane.f32.xlu0 %v6198
      %v6200 = vpop.xlane.xlu0 %6199
      %v6201 = vsel %vm5105, %v5837, 0.0
      %6202 = vadd.xlane.f32.xlu0 %v6201
      %v6203 = vpop.xlane.xlu0 %6202
      %v6204 = vsel %vm5105, %v5839, 0.0
      %6205 = vadd.xlane.f32.xlu0 %v6204
      %v6206 = vpop.xlane.xlu0 %6205
      %v6207 = vsel %vm5105, %v5841, 0.0
      %6208 = vadd.xlane.f32.xlu0 %v6207
      %v6209 = vpop.xlane.xlu0 %6208
      %v6210 = vsel %vm5105, %v5843, 0.0
      %6211 = vadd.xlane.f32.xlu0 %v6210
      %v6212 = vpop.xlane.xlu0 %6211
      %v6213 = vsel %vm5105, %v5845, 0.0
      %6214 = vadd.xlane.f32.xlu0 %v6213
      %v6215 = vpop.xlane.xlu0 %6214
      %v6216 = vsel %vm5105, %v5847, 0.0
      %6217 = vadd.xlane.f32.xlu0 %v6216
      %v6218 = vpop.xlane.xlu0 %6217
      %v6219 = vsel %vm5105, %v5849, 0.0
      %6220 = vadd.xlane.f32.xlu0 %v6219
      %v6221 = vpop.xlane.xlu0 %6220
      %v6222 = vsel %vm5105, %v5851, 0.0
      %6223 = vadd.xlane.f32.xlu0 %v6222
      %v6224 = vpop.xlane.xlu0 %6223
      %v6225 = vsel %vm5105, %v5853, 0.0
      %6226 = vadd.xlane.f32.xlu0 %v6225
      %v6227 = vpop.xlane.xlu0 %6226
      %v6228 = vsel %vm5105, %v5855, 0.0
      %6229 = vadd.xlane.f32.xlu0 %v6228
      %v6230 = vpop.xlane.xlu0 %6229
      %v6231 = vsel %vm5105, %v5857, 0.0
      %6232 = vadd.xlane.f32.xlu0 %v6231
      %v6233 = vpop.xlane.xlu0 %6232
      %v6234 = vsel %vm5105, %v5859, 0.0
      %6235 = vadd.xlane.f32.xlu0 %v6234
      %v6236 = vpop.xlane.xlu0 %6235
      %v6237 = vsel %vm5105, %v5861, 0.0
      %6238 = vadd.xlane.f32.xlu0 %v6237
      %v6239 = vpop.xlane.xlu0 %6238
      %v6240 = vsel %vm5105, %v5863, 0.0
      %6241 = vadd.xlane.f32.xlu0 %v6240
      %v6242 = vpop.xlane.xlu0 %6241
      %v6243 = vsel %vm5105, %v5865, 0.0
      %6244 = vadd.xlane.f32.xlu0 %v6243
      %v6245 = vpop.xlane.xlu0 %6244
      %v6246 = vsel %vm5105, %v5867, 0.0
      %6247 = vadd.xlane.f32.xlu0 %v6246
      %v6248 = vpop.xlane.xlu0 %6247
      %v6249 = vsel %vm5105, %v5869, 0.0
      %6250 = vadd.xlane.f32.xlu0 %v6249
      %v6251 = vpop.xlane.xlu0 %6250
      %v6252 = vsel %vm5105, %v5871, 0.0
      %6253 = vadd.xlane.f32.xlu0 %v6252
      %v6254 = vpop.xlane.xlu0 %6253
      %v6255 = vsel %vm5105, %v5873, 0.0
      %6256 = vadd.xlane.f32.xlu0 %v6255
      %v6257 = vpop.xlane.xlu0 %6256
      %v6258 = vrcp.pop %v5876
      %v6259 = vrcp.pop %v5879
      %v6260 = vrcp.pop %v5882
      %v6261 = vrcp.pop %v5885
      %v6262 = vrcp.pop %v5888
      %v6263 = vrcp.pop %v5891
      %v6264 = vrcp.pop %v5894
      %v6265 = vrcp.pop %v5897
      %v6266 = vrcp.pop %v5900
      %v6267 = vrcp.pop %v5903
      %v6268 = vrcp.pop %v5906
      %v6269 = vrcp.pop %v5909
      %v6270 = vrcp.pop %v5912
      %v6271 = vrcp.pop %v5915
      %v6272 = vrcp.pop %v5918
      %v6273 = vrcp.pop %v5921
      %v6274 = vrcp.pop %v5924
      %v6275 = vrcp.pop %v5927
      %v6276 = vrcp.pop %v5930
      %v6277 = vrcp.pop %v5933
      %v6278 = vrcp.pop %v5936
      %v6279 = vrcp.pop %v5939
      %v6280 = vrcp.pop %v5942
      %v6281 = vrcp.pop %v5945
      %v6282 = vrcp.pop %v5948
      %v6283 = vrcp.pop %v5951
      %v6284 = vrcp.pop %v5954
      %v6285 = vrcp.pop %v5957
      %v6286 = vrcp.pop %v5960
      %v6287 = vrcp.pop %v5963
      %v6288 = vrcp.pop %v5966
      %v6289 = vrcp.pop %v5969
      %v6290 = vrcp.pop %v5972
      %v6291 = vrcp.pop %v5975
      %v6292 = vrcp.pop %v5978
      %v6293 = vrcp.pop %v5981
      %v6294 = vrcp.pop %v5984
      %v6295 = vrcp.pop %v5987
      %v6296 = vrcp.pop %v5990
      %v6297 = vrcp.pop %v5993
      %v6298 = vrcp.pop %v5996
      %v6299 = vrcp.pop %v5999
      %v6300 = vrcp.pop %v6002
      %v6301 = vrcp.pop %v6005
      %v6302 = vrcp.pop %v6008
      %v6303 = vrcp.pop %v6011
      %v6304 = vrcp.pop %v6014
      %v6305 = vrcp.pop %v6017
      %v6306 = vrcp.pop %v6020
      %v6307 = vrcp.pop %v6023
      %v6308 = vrcp.pop %v6026
      %v6309 = vrcp.pop %v6029
      %v6310 = vrcp.pop %v6032
      %v6311 = vrcp.pop %v6035
      %v6312 = vrcp.pop %v6038
      %v6313 = vrcp.pop %v6041
      %v6314 = vrcp.pop %v6044
      %v6315 = vrcp.pop %v6047
      %v6316 = vrcp.pop %v6050
      %v6317 = vrcp.pop %v6053
      %v6318 = vrcp.pop %v6056
      %v6319 = vrcp.pop %v6059
      %v6320 = vrcp.pop %v6062
      %v6321 = vrcp.pop %v6065
      %v6322 = vrcp.pop %v6068
      %v6323 = vrcp.pop %v6071
      %v6324 = vrcp.pop %v6074
      %v6325 = vrcp.pop %v6077
      %v6326 = vrcp.pop %v6080
      %v6327 = vrcp.pop %v6083
      %v6328 = vrcp.pop %v6086
      %v6329 = vrcp.pop %v6089
      %v6330 = vrcp.pop %v6092
      %v6331 = vrcp.pop %v6095
      %v6332 = vrcp.pop %v6098
      %v6333 = vrcp.pop %v6101
      %v6334 = vrcp.pop %v6104
      %v6335 = vrcp.pop %v6107
      %v6336 = vrcp.pop %v6110
      %v6337 = vrcp.pop %v6113
      %v6338 = vrcp.pop %v6116
      %v6339 = vrcp.pop %v6119
      %v6340 = vrcp.pop %v6122
      %v6341 = vrcp.pop %v6125
      %v6342 = vrcp.pop %v6128
      %v6343 = vrcp.pop %v6131
      %v6344 = vrcp.pop %v6134
      %v6345 = vrcp.pop %v6137
      %v6346 = vrcp.pop %v6140
      %v6347 = vrcp.pop %v6143
      %v6348 = vrcp.pop %v6146
      %v6349 = vrcp.pop %v6149
      %v6350 = vrcp.pop %v6152
      %v6351 = vrcp.pop %v6155
      %v6352 = vrcp.pop %v6158
      %v6353 = vrcp.pop %v6161
      %v6354 = vrcp.pop %v6164
      %v6355 = vrcp.pop %v6167
      %v6356 = vrcp.pop %v6170
      %v6357 = vrcp.pop %v6173
      %v6358 = vrcp.pop %v6176
      %v6359 = vrcp.pop %v6179
      %v6360 = vrcp.pop %v6182
      %v6361 = vrcp.pop %v6185
      %v6362 = vrcp.pop %v6188
      %v6363 = vrcp.pop %v6191
      %v6364 = vrcp.pop %v6194
      %v6365 = vrcp.pop %v6197
      %v6366 = vrcp.pop %v6200
      %v6367 = vrcp.pop %v6203
      %v6368 = vrcp.pop %v6206
      %v6369 = vrcp.pop %v6209
      %v6370 = vrcp.pop %v6212
      %v6371 = vrcp.pop %v6215
      %v6372 = vrcp.pop %v6218
      %v6373 = vrcp.pop %v6221
      %v6374 = vrcp.pop %v6224
      %v6375 = vrcp.pop %v6227
      %v6376 = vrcp.pop %v6230
      %v6377 = vrcp.pop %v6233
      %v6378 = vrcp.pop %v6236
      %v6379 = vrcp.pop %v6239
      %v6380 = vrcp.pop %v6242
      %v6381 = vrcp.pop %v6245
      %v6382 = vrcp.pop %v6248
      %v6383 = vrcp.pop %v6251
      %v6384 = vrcp.pop %v6254
      %v6385 = vrcp.pop %v6257
      %v6386 = vmul.f32 %v5619, %v6258
      %v6387 = vmul.f32 %v5621, %v6259
      %v6388 = vmul.f32 %v5623, %v6260
      %v6389 = vmul.f32 %v5625, %v6261
      %v6390 = vmul.f32 %v5627, %v6262
      %v6391 = vmul.f32 %v5629, %v6263
      %v6392 = vmul.f32 %v5631, %v6264
      %v6393 = vmul.f32 %v5633, %v6265
      %v6394 = vmul.f32 %v5635, %v6266
      %v6395 = vmul.f32 %v5637, %v6267
      %v6396 = vmul.f32 %v5639, %v6268
      %v6397 = vmul.f32 %v5641, %v6269
      %v6398 = vmul.f32 %v5643, %v6270
      %v6399 = vmul.f32 %v5645, %v6271
      %v6400 = vmul.f32 %v5647, %v6272
      %v6401 = vmul.f32 %v5649, %v6273
      %v6402 = vmul.f32 %v5651, %v6274
      %v6403 = vmul.f32 %v5653, %v6275
      %v6404 = vmul.f32 %v5655, %v6276
      %v6405 = vmul.f32 %v5657, %v6277
      %v6406 = vmul.f32 %v5659, %v6278
      %v6407 = vmul.f32 %v5661, %v6279
      %v6408 = vmul.f32 %v5663, %v6280
      %v6409 = vmul.f32 %v5665, %v6281
      %v6410 = vmul.f32 %v5667, %v6282
      %v6411 = vmul.f32 %v5669, %v6283
      %v6412 = vmul.f32 %v5671, %v6284
      %v6413 = vmul.f32 %v5673, %v6285
      %v6414 = vmul.f32 %v5675, %v6286
      %v6415 = vmul.f32 %v5677, %v6287
      %v6416 = vmul.f32 %v5679, %v6288
      %v6417 = vmul.f32 %v5681, %v6289
      %v6418 = vmul.f32 %v5683, %v6290
      %v6419 = vmul.f32 %v5685, %v6291
      %v6420 = vmul.f32 %v5687, %v6292
      %v6421 = vmul.f32 %v5689, %v6293
      %v6422 = vmul.f32 %v5691, %v6294
      %v6423 = vmul.f32 %v5693, %v6295
      %v6424 = vmul.f32 %v5695, %v6296
      %v6425 = vmul.f32 %v5697, %v6297
      %v6426 = vmul.f32 %v5699, %v6298
      %v6427 = vmul.f32 %v5701, %v6299
      %v6428 = vmul.f32 %v5703, %v6300
      %v6429 = vmul.f32 %v5705, %v6301
      %v6430 = vmul.f32 %v5707, %v6302
      %v6431 = vmul.f32 %v5709, %v6303
      %v6432 = vmul.f32 %v5711, %v6304
      %v6433 = vmul.f32 %v5713, %v6305
      %v6434 = vmul.f32 %v5715, %v6306
      %v6435 = vmul.f32 %v5717, %v6307
      %v6436 = vmul.f32 %v5719, %v6308
      %v6437 = vmul.f32 %v5721, %v6309
      %v6438 = vmul.f32 %v5723, %v6310
      %v6439 = vmul.f32 %v5725, %v6311
      %v6440 = vmul.f32 %v5727, %v6312
      %v6441 = vmul.f32 %v5729, %v6313
      %v6442 = vmul.f32 %v5731, %v6314
      %v6443 = vmul.f32 %v5733, %v6315
      %v6444 = vmul.f32 %v5735, %v6316
      %v6445 = vmul.f32 %v5737, %v6317
      %v6446 = vmul.f32 %v5739, %v6318
      %v6447 = vmul.f32 %v5741, %v6319
      %v6448 = vmul.f32 %v5743, %v6320
      %v6449 = vmul.f32 %v5745, %v6321
      %v6450 = vmul.f32 %v5747, %v6322
      %v6451 = vmul.f32 %v5749, %v6323
      %v6452 = vmul.f32 %v5751, %v6324
      %v6453 = vmul.f32 %v5753, %v6325
      %v6454 = vmul.f32 %v5755, %v6326
      %v6455 = vmul.f32 %v5757, %v6327
      %v6456 = vmul.f32 %v5759, %v6328
      %v6457 = vmul.f32 %v5761, %v6329
      %v6458 = vmul.f32 %v5763, %v6330
      %v6459 = vmul.f32 %v5765, %v6331
      %v6460 = vmul.f32 %v5767, %v6332
      %v6461 = vmul.f32 %v5769, %v6333
      %v6462 = vmul.f32 %v5771, %v6334
      %v6463 = vmul.f32 %v5773, %v6335
      %v6464 = vmul.f32 %v5775, %v6336
      %v6465 = vmul.f32 %v5777, %v6337
      %v6466 = vmul.f32 %v5779, %v6338
      %v6467 = vmul.f32 %v5781, %v6339
      %v6468 = vmul.f32 %v5783, %v6340
      %v6469 = vmul.f32 %v5785, %v6341
      %v6470 = vmul.f32 %v5787, %v6342
      %v6471 = vmul.f32 %v5789, %v6343
      %v6472 = vmul.f32 %v5791, %v6344
      %v6473 = vmul.f32 %v5793, %v6345
      %v6474 = vmul.f32 %v5795, %v6346
      %v6475 = vmul.f32 %v5797, %v6347
      %v6476 = vmul.f32 %v5799, %v6348
      %v6477 = vmul.f32 %v5801, %v6349
      %v6478 = vmul.f32 %v5803, %v6350
      %v6479 = vmul.f32 %v5805, %v6351
      %v6480 = vmul.f32 %v5807, %v6352
      %v6481 = vmul.f32 %v5809, %v6353
      %v6482 = vmul.f32 %v5811, %v6354
      %v6483 = vmul.f32 %v5813, %v6355
      %v6484 = vmul.f32 %v5815, %v6356
      %v6485 = vmul.f32 %v5817, %v6357
      %v6486 = vmul.f32 %v5819, %v6358
      %v6487 = vmul.f32 %v5821, %v6359
      %v6488 = vmul.f32 %v5823, %v6360
      %v6489 = vmul.f32 %v5825, %v6361
      %v6490 = vmul.f32 %v5827, %v6362
      %v6491 = vmul.f32 %v5829, %v6363
      %v6492 = vmul.f32 %v5831, %v6364
      %v6493 = vmul.f32 %v5833, %v6365
      %v6494 = vmul.f32 %v5835, %v6366
      %v6495 = vmul.f32 %v5837, %v6367
      %v6496 = vmul.f32 %v5839, %v6368
      %v6497 = vmul.f32 %v5841, %v6369
      %v6498 = vmul.f32 %v5843, %v6370
      %v6499 = vmul.f32 %v5845, %v6371
      %v6500 = vmul.f32 %v5847, %v6372
      %v6501 = vmul.f32 %v5849, %v6373
      %v6502 = vmul.f32 %v5851, %v6374
      %v6503 = vmul.f32 %v5853, %v6375
      %v6504 = vmul.f32 %v5855, %v6376
      %v6505 = vmul.f32 %v5857, %v6377
      %v6506 = vmul.f32 %v5859, %v6378
      %v6507 = vmul.f32 %v5861, %v6379
      %v6508 = vmul.f32 %v5863, %v6380
      %v6509 = vmul.f32 %v5865, %v6381
      %v6510 = vmul.f32 %v5867, %v6382
      %v6511 = vmul.f32 %v5869, %v6383
      %v6512 = vmul.f32 %v5871, %v6384
      %v6513 = vmul.f32 %v5873, %v6385
      %v6514 = vpack.c.bf16 %v6387, %v6386
      %v6515 = vpack.c.bf16 %v6389, %v6388
      %v6516 = vpack.c.bf16 %v6391, %v6390
      %v6517 = vpack.c.bf16 %v6393, %v6392
      %v6518 = vpack.c.bf16 %v6395, %v6394
      %v6519 = vpack.c.bf16 %v6397, %v6396
      %v6520 = vpack.c.bf16 %v6399, %v6398
      %v6521 = vpack.c.bf16 %v6401, %v6400
      %v6522 = vpack.c.bf16 %v6403, %v6402
      %v6523 = vpack.c.bf16 %v6405, %v6404
      %v6524 = vpack.c.bf16 %v6407, %v6406
      %v6525 = vpack.c.bf16 %v6409, %v6408
      %v6526 = vpack.c.bf16 %v6411, %v6410
      %v6527 = vpack.c.bf16 %v6413, %v6412
      %v6528 = vpack.c.bf16 %v6415, %v6414
      %v6529 = vpack.c.bf16 %v6417, %v6416
      %v6530 = vpack.c.bf16 %v6419, %v6418
      %v6531 = vpack.c.bf16 %v6421, %v6420
      %v6532 = vpack.c.bf16 %v6423, %v6422
      %v6533 = vpack.c.bf16 %v6425, %v6424
      %v6534 = vpack.c.bf16 %v6427, %v6426
      %v6535 = vpack.c.bf16 %v6429, %v6428
      %v6536 = vpack.c.bf16 %v6431, %v6430
      %v6537 = vpack.c.bf16 %v6433, %v6432
      %v6538 = vpack.c.bf16 %v6435, %v6434
      %v6539 = vpack.c.bf16 %v6437, %v6436
      %v6540 = vpack.c.bf16 %v6439, %v6438
      %v6541 = vpack.c.bf16 %v6441, %v6440
      %v6542 = vpack.c.bf16 %v6443, %v6442
      %v6543 = vpack.c.bf16 %v6445, %v6444
      %v6544 = vpack.c.bf16 %v6447, %v6446
      %v6545 = vpack.c.bf16 %v6449, %v6448
      %v6546 = vpack.c.bf16 %v6451, %v6450
      %v6547 = vpack.c.bf16 %v6453, %v6452
      %v6548 = vpack.c.bf16 %v6455, %v6454
      %v6549 = vpack.c.bf16 %v6457, %v6456
      %v6550 = vpack.c.bf16 %v6459, %v6458
      %v6551 = vpack.c.bf16 %v6461, %v6460
      %v6552 = vpack.c.bf16 %v6463, %v6462
      %v6553 = vpack.c.bf16 %v6465, %v6464
      %v6554 = vpack.c.bf16 %v6467, %v6466
      %v6555 = vpack.c.bf16 %v6469, %v6468
      %v6556 = vpack.c.bf16 %v6471, %v6470
      %v6557 = vpack.c.bf16 %v6473, %v6472
      %v6558 = vpack.c.bf16 %v6475, %v6474
      %v6559 = vpack.c.bf16 %v6477, %v6476
      %v6560 = vpack.c.bf16 %v6479, %v6478
      %v6561 = vpack.c.bf16 %v6481, %v6480
      %v6562 = vpack.c.bf16 %v6483, %v6482
      %v6563 = vpack.c.bf16 %v6485, %v6484
      %v6564 = vpack.c.bf16 %v6487, %v6486
      %v6565 = vpack.c.bf16 %v6489, %v6488
      %v6566 = vpack.c.bf16 %v6491, %v6490
      %v6567 = vpack.c.bf16 %v6493, %v6492
      %v6568 = vpack.c.bf16 %v6495, %v6494
      %v6569 = vpack.c.bf16 %v6497, %v6496
      %v6570 = vpack.c.bf16 %v6499, %v6498
      %v6571 = vpack.c.bf16 %v6501, %v6500
      %v6572 = vpack.c.bf16 %v6503, %v6502
      %v6573 = vpack.c.bf16 %v6505, %v6504
      %v6574 = vpack.c.bf16 %v6507, %v6506
      %v6575 = vpack.c.bf16 %v6509, %v6508
      %v6576 = vpack.c.bf16 %v6511, %v6510
      %v6577 = vpack.c.bf16 %v6513, %v6512
      %v6579 = vsel %vm5105, %v6514, 0
      %6581 = vmatprep.subr.bf16.mxu0 0
      %6582 = vmatpush1.bf16.msra.mxu0 %v2032
      %6583 = vmatprep.subr.bf16.mxu0 0
      %6584 = vmatpush1.bf16.msra.mxu0 0
      %6585 = vmatprep.subr.bf16.mxu0 0
      %6586 = vmatpush1.bf16.msra.mxu0 0
      %6587 = vmatprep.subr.bf16.mxu0 0
      %6588 = vmatpush1.bf16.msra.mxu0 0
      %6589 = vmatprep.subr.bf16.mxu0 0
      %6590 = vmatpush1.bf16.msra.mxu0 0
      %6591 = vmatprep.subr.bf16.mxu0 0
      %6592 = vmatpush1.bf16.msra.mxu0 0
      %6593 = vmatprep.subr.bf16.mxu0 0
      %6594 = vmatpush1.bf16.msra.mxu0 0
      %6595 = vmatprep.subr.bf16.mxu0 0
      %6596 = vmatpush1.bf16.msra.mxu0 0
      %6597 = vmatprep.subr.bf16.mxu0 0
      %6598 = vmatpush1.bf16.msra.mxu0 0
      %6599 = vmatprep.subr.bf16.mxu0 0
      %6600 = vmatpush1.bf16.msra.mxu0 0
      %6601 = vmatprep.subr.bf16.mxu0 0
      %6602 = vmatpush1.bf16.msra.mxu0 0
      %6603 = vmatprep.subr.bf16.mxu0 0
      %6604 = vmatpush1.bf16.msra.mxu0 0
      %6605 = vmatprep.subr.bf16.mxu0 0
      %6606 = vmatpush1.bf16.msra.mxu0 0
      %6607 = vmatprep.subr.bf16.mxu0 0
      %6608 = vmatpush1.bf16.msra.mxu0 0
      %6609 = vmatprep.subr.bf16.mxu0 0
      %6610 = vmatpush1.bf16.msra.mxu0 0
      %6611 = vmatprep.subr.bf16.mxu0 0
      %6612 = vmatpush1.bf16.msra.mxu0 0
      %6613 = vmatprep.mubr.bf16.mxu0 0
      %6614 = vmatmul.mubr.bf16.gmra.mrb[0].mxu0 %v6579
      %v6615 = vpop.f32.mrb[0].mxu0
      %v6616 = vadd.f32 0.0, %v6615
      %v6617 = vpop.f32.mrb[0].mxu0
      %v6618 = vpop.f32.mrb[0].mxu0
      %v6619 = vadd.f32 0.0, %v6618
      %v6620 = vpop.f32.mrb[0].mxu0
      %6621 = vdwg.mxu0
      %v6623 = vsel %vm5105, %v6515, 0
      %6625 = vmatprep.subr.bf16.mxu0 0
      %6626 = vmatpush1.bf16.msra.mxu0 %v2033
      %6627 = vmatprep.subr.bf16.mxu0 0
      %6628 = vmatpush1.bf16.msra.mxu0 0
      %6629 = vmatprep.subr.bf16.mxu0 0
      %6630 = vmatpush1.bf16.msra.mxu0 0
      %6631 = vmatprep.subr.bf16.mxu0 0
      %6632 = vmatpush1.bf16.msra.mxu0 0
      %6633 = vmatprep.subr.bf16.mxu0 0
      %6634 = vmatpush1.bf16.msra.mxu0 0
      %6635 = vmatprep.subr.bf16.mxu0 0
      %6636 = vmatpush1.bf16.msra.mxu0 0
      %6637 = vmatprep.subr.bf16.mxu0 0
      %6638 = vmatpush1.bf16.msra.mxu0 0
      %6639 = vmatprep.subr.bf16.mxu0 0
      %6640 = vmatpush1.bf16.msra.mxu0 0
      %6641 = vmatprep.subr.bf16.mxu0 0
      %6642 = vmatpush1.bf16.msra.mxu0 0
      %6643 = vmatprep.subr.bf16.mxu0 0
      %6644 = vmatpush1.bf16.msra.mxu0 0
      %6645 = vmatprep.subr.bf16.mxu0 0
      %6646 = vmatpush1.bf16.msra.mxu0 0
      %6647 = vmatprep.subr.bf16.mxu0 0
      %6648 = vmatpush1.bf16.msra.mxu0 0
      %6649 = vmatprep.subr.bf16.mxu0 0
      %6650 = vmatpush1.bf16.msra.mxu0 0
      %6651 = vmatprep.subr.bf16.mxu0 0
      %6652 = vmatpush1.bf16.msra.mxu0 0
      %6653 = vmatprep.subr.bf16.mxu0 0
      %6654 = vmatpush1.bf16.msra.mxu0 0
      %6655 = vmatprep.subr.bf16.mxu0 0
      %6656 = vmatpush1.bf16.msra.mxu0 0
      %6657 = vmatprep.mubr.bf16.mxu0 0
      %6658 = vmatmul.mubr.bf16.gmra.mrb[0].mxu0 %v6623
      %v6659 = vpop.f32.mrb[0].mxu0
      %v6660 = vadd.f32 0.0, %v6659
      %v6661 = vpop.f32.mrb[0].mxu0
      %v6662 = vpop.f32.mrb[0].mxu0
      %v6663 = vadd.f32 0.0, %v6662
      %v6664 = vpop.f32.mrb[0].mxu0
      %6665 = vdwg.mxu0
      %v6667 = vsel %vm5105, %v6516, 0
      %6669 = vmatprep.subr.bf16.mxu0 0
      %6670 = vmatpush1.bf16.msra.mxu0 %v2034
      %6671 = vmatprep.subr.bf16.mxu0 0
      %6672 = vmatpush1.bf16.msra.mxu0 0
      %6673 = vmatprep.subr.bf16.mxu0 0
      %6674 = vmatpush1.bf16.msra.mxu0 0
      %6675 = vmatprep.subr.bf16.mxu0 0
      %6676 = vmatpush1.bf16.msra.mxu0 0
      %6677 = vmatprep.subr.bf16.mxu0 0
      %6678 = vmatpush1.bf16.msra.mxu0 0
      %6679 = vmatprep.subr.bf16.mxu0 0
      %6680 = vmatpush1.bf16.msra.mxu0 0
      %6681 = vmatprep.subr.bf16.mxu0 0
      %6682 = vmatpush1.bf16.msra.mxu0 0
      %6683 = vmatprep.subr.bf16.mxu0 0
      %6684 = vmatpush1.bf16.msra.mxu0 0
      %6685 = vmatprep.subr.bf16.mxu0 0
      %6686 = vmatpush1.bf16.msra.mxu0 0
      %6687 = vmatprep.subr.bf16.mxu0 0
      %6688 = vmatpush1.bf16.msra.mxu0 0
      %6689 = vmatprep.subr.bf16.mxu0 0
      %6690 = vmatpush1.bf16.msra.mxu0 0
      %6691 = vmatprep.subr.bf16.mxu0 0
      %6692 = vmatpush1.bf16.msra.mxu0 0
      %6693 = vmatprep.subr.bf16.mxu0 0
      %6694 = vmatpush1.bf16.msra.mxu0 0
      %6695 = vmatprep.subr.bf16.mxu0 0
      %6696 = vmatpush1.bf16.msra.mxu0 0
      %6697 = vmatprep.subr.bf16.mxu0 0
      %6698 = vmatpush1.bf16.msra.mxu0 0
      %6699 = vmatprep.subr.bf16.mxu0 0
      %6700 = vmatpush1.bf16.msra.mxu0 0
      %6701 = vmatprep.mubr.bf16.mxu0 0
      %6702 = vmatmul.mubr.bf16.gmra.mrb[0].mxu0 %v6667
      %v6703 = vpop.f32.mrb[0].mxu0
      %v6704 = vadd.f32 0.0, %v6703
      %v6705 = vpop.f32.mrb[0].mxu0
      %v6706 = vpop.f32.mrb[0].mxu0
      %v6707 = vadd.f32 0.0, %v6706
      %v6708 = vpop.f32.mrb[0].mxu0
      %6709 = vdwg.mxu0
      %v6711 = vsel %vm5105, %v6517, 0
      %6713 = vmatprep.subr.bf16.mxu0 0
      %6714 = vmatpush1.bf16.msra.mxu0 %v2035
      %6715 = vmatprep.subr.bf16.mxu0 0
      %6716 = vmatpush1.bf16.msra.mxu0 0
      %6717 = vmatprep.subr.bf16.mxu0 0
      %6718 = vmatpush1.bf16.msra.mxu0 0
      %6719 = vmatprep.subr.bf16.mxu0 0
      %6720 = vmatpush1.bf16.msra.mxu0 0
      %6721 = vmatprep.subr.bf16.mxu0 0
      %6722 = vmatpush1.bf16.msra.mxu0 0
      %6723 = vmatprep.subr.bf16.mxu0 0
      %6724 = vmatpush1.bf16.msra.mxu0 0
      %6725 = vmatprep.subr.bf16.mxu0 0
      %6726 = vmatpush1.bf16.msra.mxu0 0
      %6727 = vmatprep.subr.bf16.mxu0 0
      %6728 = vmatpush1.bf16.msra.mxu0 0
      %6729 = vmatprep.subr.bf16.mxu0 0
      %6730 = vmatpush1.bf16.msra.mxu0 0
      %6731 = vmatprep.subr.bf16.mxu0 0
      %6732 = vmatpush1.bf16.msra.mxu0 0
      %6733 = vmatprep.subr.bf16.mxu0 0
      %6734 = vmatpush1.bf16.msra.mxu0 0
      %6735 = vmatprep.subr.bf16.mxu0 0
      %6736 = vmatpush1.bf16.msra.mxu0 0
      %6737 = vmatprep.subr.bf16.mxu0 0
      %6738 = vmatpush1.bf16.msra.mxu0 0
      %6739 = vmatprep.subr.bf16.mxu0 0
      %6740 = vmatpush1.bf16.msra.mxu0 0
      %6741 = vmatprep.subr.bf16.mxu0 0
      %6742 = vmatpush1.bf16.msra.mxu0 0
      %6743 = vmatprep.subr.bf16.mxu0 0
      %6744 = vmatpush1.bf16.msra.mxu0 0
      %6745 = vmatprep.mubr.bf16.mxu0 0
      %6746 = vmatmul.mubr.bf16.gmra.mrb[0].mxu0 %v6711
      %v6747 = vpop.f32.mrb[0].mxu0
      %v6748 = vadd.f32 0.0, %v6747
      %v6749 = vpop.f32.mrb[0].mxu0
      %v6750 = vpop.f32.mrb[0].mxu0
      %v6751 = vadd.f32 0.0, %v6750
      %v6752 = vpop.f32.mrb[0].mxu0
      %6753 = vdwg.mxu0
      %v6755 = vsel %vm5105, %v6518, 0
      %6757 = vmatprep.subr.bf16.mxu0 0
      %6758 = vmatpush1.bf16.msra.mxu0 %v2036
      %6759 = vmatprep.subr.bf16.mxu0 0
      %6760 = vmatpush1.bf16.msra.mxu0 0
      %6761 = vmatprep.subr.bf16.mxu0 0
      %6762 = vmatpush1.bf16.msra.mxu0 0
      %6763 = vmatprep.subr.bf16.mxu0 0
      %6764 = vmatpush1.bf16.msra.mxu0 0
      %6765 = vmatprep.subr.bf16.mxu0 0
      %6766 = vmatpush1.bf16.msra.mxu0 0
      %6767 = vmatprep.subr.bf16.mxu0 0
      %6768 = vmatpush1.bf16.msra.mxu0 0
      %6769 = vmatprep.subr.bf16.mxu0 0
      %6770 = vmatpush1.bf16.msra.mxu0 0
      %6771 = vmatprep.subr.bf16.mxu0 0
      %6772 = vmatpush1.bf16.msra.mxu0 0
      %6773 = vmatprep.subr.bf16.mxu0 0
      %6774 = vmatpush1.bf16.msra.mxu0 0
      %6775 = vmatprep.subr.bf16.mxu0 0
      %6776 = vmatpush1.bf16.msra.mxu0 0
      %6777 = vmatprep.subr.bf16.mxu0 0
      %6778 = vmatpush1.bf16.msra.mxu0 0
      %6779 = vmatprep.subr.bf16.mxu0 0
      %6780 = vmatpush1.bf16.msra.mxu0 0
      %6781 = vmatprep.subr.bf16.mxu0 0
      %6782 = vmatpush1.bf16.msra.mxu0 0
      %6783 = vmatprep.subr.bf16.mxu0 0
      %6784 = vmatpush1.bf16.msra.mxu0 0
      %6785 = vmatprep.subr.bf16.mxu0 0
      %6786 = vmatpush1.bf16.msra.mxu0 0
      %6787 = vmatprep.subr.bf16.mxu0 0
      %6788 = vmatpush1.bf16.msra.mxu0 0
      %6789 = vmatprep.mubr.bf16.mxu0 0
      %6790 = vmatmul.mubr.bf16.gmra.mrb[0].mxu0 %v6755
      %v6791 = vpop.f32.mrb[0].mxu0
      %v6792 = vadd.f32 0.0, %v6791
      %v6793 = vpop.f32.mrb[0].mxu0
      %v6794 = vpop.f32.mrb[0].mxu0
      %v6795 = vadd.f32 0.0, %v6794
      %v6796 = vpop.f32.mrb[0].mxu0
      %6797 = vdwg.mxu0
      %v6799 = vsel %vm5105, %v6519, 0
      %6801 = vmatprep.subr.bf16.mxu0 0
      %6802 = vmatpush1.bf16.msra.mxu0 %v2037
      %6803 = vmatprep.subr.bf16.mxu0 0
      %6804 = vmatpush1.bf16.msra.mxu0 0
      %6805 = vmatprep.subr.bf16.mxu0 0
      %6806 = vmatpush1.bf16.msra.mxu0 0
      %6807 = vmatprep.subr.bf16.mxu0 0
      %6808 = vmatpush1.bf16.msra.mxu0 0
      %6809 = vmatprep.subr.bf16.mxu0 0
      %6810 = vmatpush1.bf16.msra.mxu0 0
      %6811 = vmatprep.subr.bf16.mxu0 0
      %6812 = vmatpush1.bf16.msra.mxu0 0
      %6813 = vmatprep.subr.bf16.mxu0 0
      %6814 = vmatpush1.bf16.msra.mxu0 0
      %6815 = vmatprep.subr.bf16.mxu0 0
      %6816 = vmatpush1.bf16.msra.mxu0 0
      %6817 = vmatprep.subr.bf16.mxu0 0
      %6818 = vmatpush1.bf16.msra.mxu0 0
      %6819 = vmatprep.subr.bf16.mxu0 0
      %6820 = vmatpush1.bf16.msra.mxu0 0
      %6821 = vmatprep.subr.bf16.mxu0 0
      %6822 = vmatpush1.bf16.msra.mxu0 0
      %6823 = vmatprep.subr.bf16.mxu0 0
      %6824 = vmatpush1.bf16.msra.mxu0 0
      %6825 = vmatprep.subr.bf16.mxu0 0
      %6826 = vmatpush1.bf16.msra.mxu0 0
      %6827 = vmatprep.subr.bf16.mxu0 0
      %6828 = vmatpush1.bf16.msra.mxu0 0
      %6829 = vmatprep.subr.bf16.mxu0 0
      %6830 = vmatpush1.bf16.msra.mxu0 0
      %6831 = vmatprep.subr.bf16.mxu0 0
      %6832 = vmatpush1.bf16.msra.mxu0 0
      %6833 = vmatprep.mubr.bf16.mxu0 0
      %6834 = vmatmul.mubr.bf16.gmra.mrb[0].mxu0 %v6799
      %v6835 = vpop.f32.mrb[0].mxu0
      %v6836 = vadd.f32 0.0, %v6835
      %v6837 = vpop.f32.mrb[0].mxu0
      %v6838 = vpop.f32.mrb[0].mxu0
      %v6839 = vadd.f32 0.0, %v6838
      %v6840 = vpop.f32.mrb[0].mxu0
      %6841 = vdwg.mxu0
      %v6843 = vsel %vm5105, %v6520, 0
      %6845 = vmatprep.subr.bf16.mxu0 0
      %6846 = vmatpush1.bf16.msra.mxu0 %v2038
      %6847 = vmatprep.subr.bf16.mxu0 0
      %6848 = vmatpush1.bf16.msra.mxu0 0
      %6849 = vmatprep.subr.bf16.mxu0 0
      %6850 = vmatpush1.bf16.msra.mxu0 0
      %6851 = vmatprep.subr.bf16.mxu0 0
      %6852 = vmatpush1.bf16.msra.mxu0 0
      %6853 = vmatprep.subr.bf16.mxu0 0
      %6854 = vmatpush1.bf16.msra.mxu0 0
      %6855 = vmatprep.subr.bf16.mxu0 0
      %6856 = vmatpush1.bf16.msra.mxu0 0
      %6857 = vmatprep.subr.bf16.mxu0 0
      %6858 = vmatpush1.bf16.msra.mxu0 0
      %6859 = vmatprep.subr.bf16.mxu0 0
      %6860 = vmatpush1.bf16.msra.mxu0 0
      %6861 = vmatprep.subr.bf16.mxu0 0
      %6862 = vmatpush1.bf16.msra.mxu0 0
      %6863 = vmatprep.subr.bf16.mxu0 0
      %6864 = vmatpush1.bf16.msra.mxu0 0
      %6865 = vmatprep.subr.bf16.mxu0 0
      %6866 = vmatpush1.bf16.msra.mxu0 0
      %6867 = vmatprep.subr.bf16.mxu0 0
      %6868 = vmatpush1.bf16.msra.mxu0 0
      %6869 = vmatprep.subr.bf16.mxu0 0
      %6870 = vmatpush1.bf16.msra.mxu0 0
      %6871 = vmatprep.subr.bf16.mxu0 0
      %6872 = vmatpush1.bf16.msra.mxu0 0
      %6873 = vmatprep.subr.bf16.mxu0 0
      %6874 = vmatpush1.bf16.msra.mxu0 0
      %6875 = vmatprep.subr.bf16.mxu0 0
      %6876 = vmatpush1.bf16.msra.mxu0 0
      %6877 = vmatprep.mubr.bf16.mxu0 0
      %6878 = vmatmul.mubr.bf16.gmra.mrb[0].mxu0 %v6843
      %v6879 = vpop.f32.mrb[0].mxu0
      %v6880 = vadd.f32 0.0, %v6879
      %v6881 = vpop.f32.mrb[0].mxu0
      %v6882 = vpop.f32.mrb[0].mxu0
      %v6883 = vadd.f32 0.0, %v6882
      %v6884 = vpop.f32.mrb[0].mxu0
      %6885 = vdwg.mxu0
      %v6887 = vsel %vm5105, %v6521, 0
      %6889 = vmatprep.subr.bf16.mxu0 0
      %6890 = vmatpush1.bf16.msra.mxu0 %v2039
      %6891 = vmatprep.subr.bf16.mxu0 0
      %6892 = vmatpush1.bf16.msra.mxu0 0
      %6893 = vmatprep.subr.bf16.mxu0 0
      %6894 = vmatpush1.bf16.msra.mxu0 0
      %6895 = vmatprep.subr.bf16.mxu0 0
      %6896 = vmatpush1.bf16.msra.mxu0 0
      %6897 = vmatprep.subr.bf16.mxu0 0
      %6898 = vmatpush1.bf16.msra.mxu0 0
      %6899 = vmatprep.subr.bf16.mxu0 0
      %6900 = vmatpush1.bf16.msra.mxu0 0
      %6901 = vmatprep.subr.bf16.mxu0 0
      %6902 = vmatpush1.bf16.msra.mxu0 0
      %6903 = vmatprep.subr.bf16.mxu0 0
      %6904 = vmatpush1.bf16.msra.mxu0 0
      %6905 = vmatprep.subr.bf16.mxu0 0
      %6906 = vmatpush1.bf16.msra.mxu0 0
      %6907 = vmatprep.subr.bf16.mxu0 0
      %6908 = vmatpush1.bf16.msra.mxu0 0
      %6909 = vmatprep.subr.bf16.mxu0 0
      %6910 = vmatpush1.bf16.msra.mxu0 0
      %6911 = vmatprep.subr.bf16.mxu0 0
      %6912 = vmatpush1.bf16.msra.mxu0 0
      %6913 = vmatprep.subr.bf16.mxu0 0
      %6914 = vmatpush1.bf16.msra.mxu0 0
      %6915 = vmatprep.subr.bf16.mxu0 0
      %6916 = vmatpush1.bf16.msra.mxu0 0
      %6917 = vmatprep.subr.bf16.mxu0 0
      %6918 = vmatpush1.bf16.msra.mxu0 0
      %6919 = vmatprep.subr.bf16.mxu0 0
      %6920 = vmatpush1.bf16.msra.mxu0 0
      %6921 = vmatprep.mubr.bf16.mxu0 0
      %6922 = vmatmul.mubr.bf16.gmra.mrb[0].mxu0 %v6887
      %v6923 = vpop.f32.mrb[0].mxu0
      %v6924 = vadd.f32 0.0, %v6923
      %v6925 = vpop.f32.mrb[0].mxu0
      %v6926 = vpop.f32.mrb[0].mxu0
      %v6927 = vadd.f32 0.0, %v6926
      %v6928 = vpop.f32.mrb[0].mxu0
      %6929 = vdwg.mxu0
      %v6931 = vsel %vm5105, %v6522, 0
      %6933 = vmatprep.subr.bf16.mxu0 0
      %6934 = vmatpush1.bf16.msra.mxu0 %v2040
      %6935 = vmatprep.subr.bf16.mxu0 0
      %6936 = vmatpush1.bf16.msra.mxu0 0
      %6937 = vmatprep.subr.bf16.mxu0 0
      %6938 = vmatpush1.bf16.msra.mxu0 0
      %6939 = vmatprep.subr.bf16.mxu0 0
      %6940 = vmatpush1.bf16.msra.mxu0 0
      %6941 = vmatprep.subr.bf16.mxu0 0
      %6942 = vmatpush1.bf16.msra.mxu0 0
      %6943 = vmatprep.subr.bf16.mxu0 0
      %6944 = vmatpush1.bf16.msra.mxu0 0
      %6945 = vmatprep.subr.bf16.mxu0 0
      %6946 = vmatpush1.bf16.msra.mxu0 0
      %6947 = vmatprep.subr.bf16.mxu0 0
      %6948 = vmatpush1.bf16.msra.mxu0 0
      %6949 = vmatprep.subr.bf16.mxu0 0
      %6950 = vmatpush1.bf16.msra.mxu0 0
      %6951 = vmatprep.subr.bf16.mxu0 0
      %6952 = vmatpush1.bf16.msra.mxu0 0
      %6953 = vmatprep.subr.bf16.mxu0 0
      %6954 = vmatpush1.bf16.msra.mxu0 0
      %6955 = vmatprep.subr.bf16.mxu0 0
      %6956 = vmatpush1.bf16.msra.mxu0 0
      %6957 = vmatprep.subr.bf16.mxu0 0
      %6958 = vmatpush1.bf16.msra.mxu0 0
      %6959 = vmatprep.subr.bf16.mxu0 0
      %6960 = vmatpush1.bf16.msra.mxu0 0
      %6961 = vmatprep.subr.bf16.mxu0 0
      %6962 = vmatpush1.bf16.msra.mxu0 0
      %6963 = vmatprep.subr.bf16.mxu0 0
      %6964 = vmatpush1.bf16.msra.mxu0 0
      %6965 = vmatprep.mubr.bf16.mxu0 0
      %6966 = vmatmul.mubr.bf16.gmra.mrb[0].mxu0 %v6931
      %v6967 = vpop.f32.mrb[0].mxu0
      %v6968 = vadd.f32 0.0, %v6967
      %v6969 = vpop.f32.mrb[0].mxu0
      %v6970 = vpop.f32.mrb[0].mxu0
      %v6971 = vadd.f32 0.0, %v6970
      %v6972 = vpop.f32.mrb[0].mxu0
      %6973 = vdwg.mxu0
      %v6975 = vsel %vm5105, %v6523, 0
      %6977 = vmatprep.subr.bf16.mxu0 0
      %6978 = vmatpush1.bf16.msra.mxu0 %v2041
      %6979 = vmatprep.subr.bf16.mxu0 0
      %6980 = vmatpush1.bf16.msra.mxu0 0
      %6981 = vmatprep.subr.bf16.mxu0 0
      %6982 = vmatpush1.bf16.msra.mxu0 0
      %6983 = vmatprep.subr.bf16.mxu0 0
      %6984 = vmatpush1.bf16.msra.mxu0 0
      %6985 = vmatprep.subr.bf16.mxu0 0
      %6986 = vmatpush1.bf16.msra.mxu0 0
      %6987 = vmatprep.subr.bf16.mxu0 0
      %6988 = vmatpush1.bf16.msra.mxu0 0
      %6989 = vmatprep.subr.bf16.mxu0 0
      %6990 = vmatpush1.bf16.msra.mxu0 0
      %6991 = vmatprep.subr.bf16.mxu0 0
      %6992 = vmatpush1.bf16.msra.mxu0 0
      %6993 = vmatprep.subr.bf16.mxu0 0
      %6994 = vmatpush1.bf16.msra.mxu0 0
      %6995 = vmatprep.subr.bf16.mxu0 0
      %6996 = vmatpush1.bf16.msra.mxu0 0
      %6997 = vmatprep.subr.bf16.mxu0 0
      %6998 = vmatpush1.bf16.msra.mxu0 0
      %6999 = vmatprep.subr.bf16.mxu0 0
      %7000 = vmatpush1.bf16.msra.mxu0 0
      %7001 = vmatprep.subr.bf16.mxu0 0
      %7002 = vmatpush1.bf16.msra.mxu0 0
      %7003 = vmatprep.subr.bf16.mxu0 0
      %7004 = vmatpush1.bf16.msra.mxu0 0
      %7005 = vmatprep.subr.bf16.mxu0 0
      %7006 = vmatpush1.bf16.msra.mxu0 0
      %7007 = vmatprep.subr.bf16.mxu0 0
      %7008 = vmatpush1.bf16.msra.mxu0 0
      %7009 = vmatprep.mubr.bf16.mxu0 0
      %7010 = vmatmul.mubr.bf16.gmra.mrb[0].mxu0 %v6975
      %v7011 = vpop.f32.mrb[0].mxu0
      %v7012 = vadd.f32 0.0, %v7011
      %v7013 = vpop.f32.mrb[0].mxu0
      %v7014 = vpop.f32.mrb[0].mxu0
      %v7015 = vadd.f32 0.0, %v7014
      %v7016 = vpop.f32.mrb[0].mxu0
      %7017 = vdwg.mxu0
      %v7019 = vsel %vm5105, %v6524, 0
      %7021 = vmatprep.subr.bf16.mxu0 0
      %7022 = vmatpush1.bf16.msra.mxu0 %v2042
      %7023 = vmatprep.subr.bf16.mxu0 0
      %7024 = vmatpush1.bf16.msra.mxu0 0
      %7025 = vmatprep.subr.bf16.mxu0 0
      %7026 = vmatpush1.bf16.msra.mxu0 0
      %7027 = vmatprep.subr.bf16.mxu0 0
      %7028 = vmatpush1.bf16.msra.mxu0 0
      %7029 = vmatprep.subr.bf16.mxu0 0
      %7030 = vmatpush1.bf16.msra.mxu0 0
      %7031 = vmatprep.subr.bf16.mxu0 0
      %7032 = vmatpush1.bf16.msra.mxu0 0
      %7033 = vmatprep.subr.bf16.mxu0 0
      %7034 = vmatpush1.bf16.msra.mxu0 0
      %7035 = vmatprep.subr.bf16.mxu0 0
      %7036 = vmatpush1.bf16.msra.mxu0 0
      %7037 = vmatprep.subr.bf16.mxu0 0
      %7038 = vmatpush1.bf16.msra.mxu0 0
      %7039 = vmatprep.subr.bf16.mxu0 0
      %7040 = vmatpush1.bf16.msra.mxu0 0
      %7041 = vmatprep.subr.bf16.mxu0 0
      %7042 = vmatpush1.bf16.msra.mxu0 0
      %7043 = vmatprep.subr.bf16.mxu0 0
      %7044 = vmatpush1.bf16.msra.mxu0 0
      %7045 = vmatprep.subr.bf16.mxu0 0
      %7046 = vmatpush1.bf16.msra.mxu0 0
      %7047 = vmatprep.subr.bf16.mxu0 0
      %7048 = vmatpush1.bf16.msra.mxu0 0
      %7049 = vmatprep.subr.bf16.mxu0 0
      %7050 = vmatpush1.bf16.msra.mxu0 0
      %7051 = vmatprep.subr.bf16.mxu0 0
      %7052 = vmatpush1.bf16.msra.mxu0 0
      %7053 = vmatprep.mubr.bf16.mxu0 0
      %7054 = vmatmul.mubr.bf16.gmra.mrb[0].mxu0 %v7019
      %v7055 = vpop.f32.mrb[0].mxu0
      %v7056 = vadd.f32 0.0, %v7055
      %v7057 = vpop.f32.mrb[0].mxu0
      %v7058 = vpop.f32.mrb[0].mxu0
      %v7059 = vadd.f32 0.0, %v7058
      %v7060 = vpop.f32.mrb[0].mxu0
      %7061 = vdwg.mxu0
      %v7063 = vsel %vm5105, %v6525, 0
      %7065 = vmatprep.subr.bf16.mxu0 0
      %7066 = vmatpush1.bf16.msra.mxu0 %v2043
      %7067 = vmatprep.subr.bf16.mxu0 0
      %7068 = vmatpush1.bf16.msra.mxu0 0
      %7069 = vmatprep.subr.bf16.mxu0 0
      %7070 = vmatpush1.bf16.msra.mxu0 0
      %7071 = vmatprep.subr.bf16.mxu0 0
      %7072 = vmatpush1.bf16.msra.mxu0 0
      %7073 = vmatprep.subr.bf16.mxu0 0
      %7074 = vmatpush1.bf16.msra.mxu0 0
      %7075 = vmatprep.subr.bf16.mxu0 0
      %7076 = vmatpush1.bf16.msra.mxu0 0
      %7077 = vmatprep.subr.bf16.mxu0 0
      %7078 = vmatpush1.bf16.msra.mxu0 0
      %7079 = vmatprep.subr.bf16.mxu0 0
      %7080 = vmatpush1.bf16.msra.mxu0 0
      %7081 = vmatprep.subr.bf16.mxu0 0
      %7082 = vmatpush1.bf16.msra.mxu0 0
      %7083 = vmatprep.subr.bf16.mxu0 0
      %7084 = vmatpush1.bf16.msra.mxu0 0
      %7085 = vmatprep.subr.bf16.mxu0 0
      %7086 = vmatpush1.bf16.msra.mxu0 0
      %7087 = vmatprep.subr.bf16.mxu0 0
      %7088 = vmatpush1.bf16.msra.mxu0 0
      %7089 = vmatprep.subr.bf16.mxu0 0
      %7090 = vmatpush1.bf16.msra.mxu0 0
      %7091 = vmatprep.subr.bf16.mxu0 0
      %7092 = vmatpush1.bf16.msra.mxu0 0
      %7093 = vmatprep.subr.bf16.mxu0 0
      %7094 = vmatpush1.bf16.msra.mxu0 0
      %7095 = vmatprep.subr.bf16.mxu0 0
      %7096 = vmatpush1.bf16.msra.mxu0 0
      %7097 = vmatprep.mubr.bf16.mxu0 0
      %7098 = vmatmul.mubr.bf16.gmra.mrb[0].mxu0 %v7063
      %v7099 = vpop.f32.mrb[0].mxu0
      %v7100 = vadd.f32 0.0, %v7099
      %v7101 = vpop.f32.mrb[0].mxu0
      %v7102 = vpop.f32.mrb[0].mxu0
      %v7103 = vadd.f32 0.0, %v7102
      %v7104 = vpop.f32.mrb[0].mxu0
      %7105 = vdwg.mxu0
      %v7107 = vsel %vm5105, %v6526, 0
      %7109 = vmatprep.subr.bf16.mxu0 0
      %7110 = vmatpush1.bf16.msra.mxu0 %v2044
      %7111 = vmatprep.subr.bf16.mxu0 0
      %7112 = vmatpush1.bf16.msra.mxu0 0
      %7113 = vmatprep.subr.bf16.mxu0 0
      %7114 = vmatpush1.bf16.msra.mxu0 0
      %7115 = vmatprep.subr.bf16.mxu0 0
      %7116 = vmatpush1.bf16.msra.mxu0 0
      %7117 = vmatprep.subr.bf16.mxu0 0
      %7118 = vmatpush1.bf16.msra.mxu0 0
      %7119 = vmatprep.subr.bf16.mxu0 0
      %7120 = vmatpush1.bf16.msra.mxu0 0
      %7121 = vmatprep.subr.bf16.mxu0 0
      %7122 = vmatpush1.bf16.msra.mxu0 0
      %7123 = vmatprep.subr.bf16.mxu0 0
      %7124 = vmatpush1.bf16.msra.mxu0 0
      %7125 = vmatprep.subr.bf16.mxu0 0
      %7126 = vmatpush1.bf16.msra.mxu0 0
      %7127 = vmatprep.subr.bf16.mxu0 0
      %7128 = vmatpush1.bf16.msra.mxu0 0
      %7129 = vmatprep.subr.bf16.mxu0 0
      %7130 = vmatpush1.bf16.msra.mxu0 0
      %7131 = vmatprep.subr.bf16.mxu0 0
      %7132 = vmatpush1.bf16.msra.mxu0 0
      %7133 = vmatprep.subr.bf16.mxu0 0
      %7134 = vmatpush1.bf16.msra.mxu0 0
      %7135 = vmatprep.subr.bf16.mxu0 0
      %7136 = vmatpush1.bf16.msra.mxu0 0
      %7137 = vmatprep.subr.bf16.mxu0 0
      %7138 = vmatpush1.bf16.msra.mxu0 0
      %7139 = vmatprep.subr.bf16.mxu0 0
      %7140 = vmatpush1.bf16.msra.mxu0 0
      %7141 = vmatprep.mubr.bf16.mxu0 0
      %7142 = vmatmul.mubr.bf16.gmra.mrb[0].mxu0 %v7107
      %v7143 = vpop.f32.mrb[0].mxu0
      %v7144 = vadd.f32 0.0, %v7143
      %v7145 = vpop.f32.mrb[0].mxu0
      %v7146 = vpop.f32.mrb[0].mxu0
      %v7147 = vadd.f32 0.0, %v7146
      %v7148 = vpop.f32.mrb[0].mxu0
      %7149 = vdwg.mxu0
      %v7151 = vsel %vm5105, %v6527, 0
      %7153 = vmatprep.subr.bf16.mxu0 0
      %7154 = vmatpush1.bf16.msra.mxu0 %v2045
      %7155 = vmatprep.subr.bf16.mxu0 0
      %7156 = vmatpush1.bf16.msra.mxu0 0
      %7157 = vmatprep.subr.bf16.mxu0 0
      %7158 = vmatpush1.bf16.msra.mxu0 0
      %7159 = vmatprep.subr.bf16.mxu0 0
      %7160 = vmatpush1.bf16.msra.mxu0 0
      %7161 = vmatprep.subr.bf16.mxu0 0
      %7162 = vmatpush1.bf16.msra.mxu0 0
      %7163 = vmatprep.subr.bf16.mxu0 0
      %7164 = vmatpush1.bf16.msra.mxu0 0
      %7165 = vmatprep.subr.bf16.mxu0 0
      %7166 = vmatpush1.bf16.msra.mxu0 0
      %7167 = vmatprep.subr.bf16.mxu0 0
      %7168 = vmatpush1.bf16.msra.mxu0 0
      %7169 = vmatprep.subr.bf16.mxu0 0
      %7170 = vmatpush1.bf16.msra.mxu0 0
      %7171 = vmatprep.subr.bf16.mxu0 0
      %7172 = vmatpush1.bf16.msra.mxu0 0
      %7173 = vmatprep.subr.bf16.mxu0 0
      %7174 = vmatpush1.bf16.msra.mxu0 0
      %7175 = vmatprep.subr.bf16.mxu0 0
      %7176 = vmatpush1.bf16.msra.mxu0 0
      %7177 = vmatprep.subr.bf16.mxu0 0
      %7178 = vmatpush1.bf16.msra.mxu0 0
      %7179 = vmatprep.subr.bf16.mxu0 0
      %7180 = vmatpush1.bf16.msra.mxu0 0
      %7181 = vmatprep.subr.bf16.mxu0 0
      %7182 = vmatpush1.bf16.msra.mxu0 0
      %7183 = vmatprep.subr.bf16.mxu0 0
      %7184 = vmatpush1.bf16.msra.mxu0 0
      %7185 = vmatprep.mubr.bf16.mxu0 0
      %7186 = vmatmul.mubr.bf16.gmra.mrb[0].mxu0 %v7151
      %v7187 = vpop.f32.mrb[0].mxu0
      %v7188 = vadd.f32 0.0, %v7187
      %v7189 = vpop.f32.mrb[0].mxu0
      %v7190 = vpop.f32.mrb[0].mxu0
      %v7191 = vadd.f32 0.0, %v7190
      %v7192 = vpop.f32.mrb[0].mxu0
      %7193 = vdwg.mxu0
      %v7195 = vsel %vm5105, %v6528, 0
      %7197 = vmatprep.subr.bf16.mxu0 0
      %7198 = vmatpush1.bf16.msra.mxu0 %v2046
      %7199 = vmatprep.subr.bf16.mxu0 0
      %7200 = vmatpush1.bf16.msra.mxu0 0
      %7201 = vmatprep.subr.bf16.mxu0 0
      %7202 = vmatpush1.bf16.msra.mxu0 0
      %7203 = vmatprep.subr.bf16.mxu0 0
      %7204 = vmatpush1.bf16.msra.mxu0 0
      %7205 = vmatprep.subr.bf16.mxu0 0
      %7206 = vmatpush1.bf16.msra.mxu0 0
      %7207 = vmatprep.subr.bf16.mxu0 0
      %7208 = vmatpush1.bf16.msra.mxu0 0
      %7209 = vmatprep.subr.bf16.mxu0 0
      %7210 = vmatpush1.bf16.msra.mxu0 0
      %7211 = vmatprep.subr.bf16.mxu0 0
      %7212 = vmatpush1.bf16.msra.mxu0 0
      %7213 = vmatprep.subr.bf16.mxu0 0
      %7214 = vmatpush1.bf16.msra.mxu0 0
      %7215 = vmatprep.subr.bf16.mxu0 0
      %7216 = vmatpush1.bf16.msra.mxu0 0
      %7217 = vmatprep.subr.bf16.mxu0 0
      %7218 = vmatpush1.bf16.msra.mxu0 0
      %7219 = vmatprep.subr.bf16.mxu0 0
      %7220 = vmatpush1.bf16.msra.mxu0 0
      %7221 = vmatprep.subr.bf16.mxu0 0
      %7222 = vmatpush1.bf16.msra.mxu0 0
      %7223 = vmatprep.subr.bf16.mxu0 0
      %7224 = vmatpush1.bf16.msra.mxu0 0
      %7225 = vmatprep.subr.bf16.mxu0 0
      %7226 = vmatpush1.bf16.msra.mxu0 0
      %7227 = vmatprep.subr.bf16.mxu0 0
      %7228 = vmatpush1.bf16.msra.mxu0 0
      %7229 = vmatprep.mubr.bf16.mxu0 0
      %7230 = vmatmul.mubr.bf16.gmra.mrb[0].mxu0 %v7195
      %v7231 = vpop.f32.mrb[0].mxu0
      %v7232 = vadd.f32 0.0, %v7231
      %v7233 = vpop.f32.mrb[0].mxu0
      %v7234 = vpop.f32.mrb[0].mxu0
      %v7235 = vadd.f32 0.0, %v7234
      %v7236 = vpop.f32.mrb[0].mxu0
      %7237 = vdwg.mxu0
      %v7239 = vsel %vm5105, %v6529, 0
      %7241 = vmatprep.subr.bf16.mxu0 0
      %7242 = vmatpush1.bf16.msra.mxu0 %v2047
      %7243 = vmatprep.subr.bf16.mxu0 0
      %7244 = vmatpush1.bf16.msra.mxu0 0
      %7245 = vmatprep.subr.bf16.mxu0 0
      %7246 = vmatpush1.bf16.msra.mxu0 0
      %7247 = vmatprep.subr.bf16.mxu0 0
      %7248 = vmatpush1.bf16.msra.mxu0 0
      %7249 = vmatprep.subr.bf16.mxu0 0
      %7250 = vmatpush1.bf16.msra.mxu0 0
      %7251 = vmatprep.subr.bf16.mxu0 0
      %7252 = vmatpush1.bf16.msra.mxu0 0
      %7253 = vmatprep.subr.bf16.mxu0 0
      %7254 = vmatpush1.bf16.msra.mxu0 0
      %7255 = vmatprep.subr.bf16.mxu0 0
      %7256 = vmatpush1.bf16.msra.mxu0 0
      %7257 = vmatprep.subr.bf16.mxu0 0
      %7258 = vmatpush1.bf16.msra.mxu0 0
      %7259 = vmatprep.subr.bf16.mxu0 0
      %7260 = vmatpush1.bf16.msra.mxu0 0
      %7261 = vmatprep.subr.bf16.mxu0 0
      %7262 = vmatpush1.bf16.msra.mxu0 0
      %7263 = vmatprep.subr.bf16.mxu0 0
      %7264 = vmatpush1.bf16.msra.mxu0 0
      %7265 = vmatprep.subr.bf16.mxu0 0
      %7266 = vmatpush1.bf16.msra.mxu0 0
      %7267 = vmatprep.subr.bf16.mxu0 0
      %7268 = vmatpush1.bf16.msra.mxu0 0
      %7269 = vmatprep.subr.bf16.mxu0 0
      %7270 = vmatpush1.bf16.msra.mxu0 0
      %7271 = vmatprep.subr.bf16.mxu0 0
      %7272 = vmatpush1.bf16.msra.mxu0 0
      %7273 = vmatprep.mubr.bf16.mxu0 0
      %7274 = vmatmul.mubr.bf16.gmra.mrb[0].mxu0 %v7239
      %v7275 = vpop.f32.mrb[0].mxu0
      %v7276 = vadd.f32 0.0, %v7275
      %v7277 = vpop.f32.mrb[0].mxu0
      %v7278 = vpop.f32.mrb[0].mxu0
      %v7279 = vadd.f32 0.0, %v7278
      %v7280 = vpop.f32.mrb[0].mxu0
      %7281 = vdwg.mxu0
      %v7283 = vsel %vm5105, %v6530, 0
      %7285 = vmatprep.subr.bf16.mxu0 0
      %7286 = vmatpush1.bf16.msra.mxu0 %v2048
      %7287 = vmatprep.subr.bf16.mxu0 0
      %7288 = vmatpush1.bf16.msra.mxu0 0
      %7289 = vmatprep.subr.bf16.mxu0 0
      %7290 = vmatpush1.bf16.msra.mxu0 0
      %7291 = vmatprep.subr.bf16.mxu0 0
      %7292 = vmatpush1.bf16.msra.mxu0 0
      %7293 = vmatprep.subr.bf16.mxu0 0
      %7294 = vmatpush1.bf16.msra.mxu0 0
      %7295 = vmatprep.subr.bf16.mxu0 0
      %7296 = vmatpush1.bf16.msra.mxu0 0
      %7297 = vmatprep.subr.bf16.mxu0 0
      %7298 = vmatpush1.bf16.msra.mxu0 0
      %7299 = vmatprep.subr.bf16.mxu0 0
      %7300 = vmatpush1.bf16.msra.mxu0 0
      %7301 = vmatprep.subr.bf16.mxu0 0
      %7302 = vmatpush1.bf16.msra.mxu0 0
      %7303 = vmatprep.subr.bf16.mxu0 0
      %7304 = vmatpush1.bf16.msra.mxu0 0
      %7305 = vmatprep.subr.bf16.mxu0 0
      %7306 = vmatpush1.bf16.msra.mxu0 0
      %7307 = vmatprep.subr.bf16.mxu0 0
      %7308 = vmatpush1.bf16.msra.mxu0 0
      %7309 = vmatprep.subr.bf16.mxu0 0
      %7310 = vmatpush1.bf16.msra.mxu0 0
      %7311 = vmatprep.subr.bf16.mxu0 0
      %7312 = vmatpush1.bf16.msra.mxu0 0
      %7313 = vmatprep.subr.bf16.mxu0 0
      %7314 = vmatpush1.bf16.msra.mxu0 0
      %7315 = vmatprep.subr.bf16.mxu0 0
      %7316 = vmatpush1.bf16.msra.mxu0 0
      %7317 = vmatprep.mubr.bf16.mxu0 0
      %7318 = vmatmul.mubr.bf16.gmra.mrb[0].mxu0 %v7283
      %v7319 = vpop.f32.mrb[0].mxu0
      %v7320 = vadd.f32 0.0, %v7319
      %v7321 = vpop.f32.mrb[0].mxu0
      %v7322 = vpop.f32.mrb[0].mxu0
      %v7323 = vadd.f32 0.0, %v7322
      %v7324 = vpop.f32.mrb[0].mxu0
      %7325 = vdwg.mxu0
      %v7327 = vsel %vm5105, %v6531, 0
      %7329 = vmatprep.subr.bf16.mxu0 0
      %7330 = vmatpush1.bf16.msra.mxu0 %v2049
      %7331 = vmatprep.subr.bf16.mxu0 0
      %7332 = vmatpush1.bf16.msra.mxu0 0
      %7333 = vmatprep.subr.bf16.mxu0 0
      %7334 = vmatpush1.bf16.msra.mxu0 0
      %7335 = vmatprep.subr.bf16.mxu0 0
      %7336 = vmatpush1.bf16.msra.mxu0 0
      %7337 = vmatprep.subr.bf16.mxu0 0
      %7338 = vmatpush1.bf16.msra.mxu0 0
      %7339 = vmatprep.subr.bf16.mxu0 0
      %7340 = vmatpush1.bf16.msra.mxu0 0
      %7341 = vmatprep.subr.bf16.mxu0 0
      %7342 = vmatpush1.bf16.msra.mxu0 0
      %7343 = vmatprep.subr.bf16.mxu0 0
      %7344 = vmatpush1.bf16.msra.mxu0 0
      %7345 = vmatprep.subr.bf16.mxu0 0
      %7346 = vmatpush1.bf16.msra.mxu0 0
      %7347 = vmatprep.subr.bf16.mxu0 0
      %7348 = vmatpush1.bf16.msra.mxu0 0
      %7349 = vmatprep.subr.bf16.mxu0 0
      %7350 = vmatpush1.bf16.msra.mxu0 0
      %7351 = vmatprep.subr.bf16.mxu0 0
      %7352 = vmatpush1.bf16.msra.mxu0 0
      %7353 = vmatprep.subr.bf16.mxu0 0
      %7354 = vmatpush1.bf16.msra.mxu0 0
      %7355 = vmatprep.subr.bf16.mxu0 0
      %7356 = vmatpush1.bf16.msra.mxu0 0
      %7357 = vmatprep.subr.bf16.mxu0 0
      %7358 = vmatpush1.bf16.msra.mxu0 0
      %7359 = vmatprep.subr.bf16.mxu0 0
      %7360 = vmatpush1.bf16.msra.mxu0 0
      %7361 = vmatprep.mubr.bf16.mxu0 0
      %7362 = vmatmul.mubr.bf16.gmra.mrb[0].mxu0 %v7327
      %v7363 = vpop.f32.mrb[0].mxu0
      %v7364 = vadd.f32 0.0, %v7363
      %v7365 = vpop.f32.mrb[0].mxu0
      %v7366 = vpop.f32.mrb[0].mxu0
      %v7367 = vadd.f32 0.0, %v7366
      %v7368 = vpop.f32.mrb[0].mxu0
      %7369 = vdwg.mxu0
      %v7371 = vsel %vm5105, %v6532, 0
      %7373 = vmatprep.subr.bf16.mxu0 0
      %7374 = vmatpush1.bf16.msra.mxu0 %v2050
      %7375 = vmatprep.subr.bf16.mxu0 0
      %7376 = vmatpush1.bf16.msra.mxu0 0
      %7377 = vmatprep.subr.bf16.mxu0 0
      %7378 = vmatpush1.bf16.msra.mxu0 0
      %7379 = vmatprep.subr.bf16.mxu0 0
      %7380 = vmatpush1.bf16.msra.mxu0 0
      %7381 = vmatprep.subr.bf16.mxu0 0
      %7382 = vmatpush1.bf16.msra.mxu0 0
      %7383 = vmatprep.subr.bf16.mxu0 0
      %7384 = vmatpush1.bf16.msra.mxu0 0
      %7385 = vmatprep.subr.bf16.mxu0 0
      %7386 = vmatpush1.bf16.msra.mxu0 0
      %7387 = vmatprep.subr.bf16.mxu0 0
      %7388 = vmatpush1.bf16.msra.mxu0 0
      %7389 = vmatprep.subr.bf16.mxu0 0
      %7390 = vmatpush1.bf16.msra.mxu0 0
      %7391 = vmatprep.subr.bf16.mxu0 0
      %7392 = vmatpush1.bf16.msra.mxu0 0
      %7393 = vmatprep.subr.bf16.mxu0 0
      %7394 = vmatpush1.bf16.msra.mxu0 0
      %7395 = vmatprep.subr.bf16.mxu0 0
      %7396 = vmatpush1.bf16.msra.mxu0 0
      %7397 = vmatprep.subr.bf16.mxu0 0
      %7398 = vmatpush1.bf16.msra.mxu0 0
      %7399 = vmatprep.subr.bf16.mxu0 0
      %7400 = vmatpush1.bf16.msra.mxu0 0
      %7401 = vmatprep.subr.bf16.mxu0 0
      %7402 = vmatpush1.bf16.msra.mxu0 0
      %7403 = vmatprep.subr.bf16.mxu0 0
      %7404 = vmatpush1.bf16.msra.mxu0 0
      %7405 = vmatprep.mubr.bf16.mxu0 0
      %7406 = vmatmul.mubr.bf16.gmra.mrb[0].mxu0 %v7371
      %v7407 = vpop.f32.mrb[0].mxu0
      %v7408 = vadd.f32 0.0, %v7407
      %v7409 = vpop.f32.mrb[0].mxu0
      %v7410 = vpop.f32.mrb[0].mxu0
      %v7411 = vadd.f32 0.0, %v7410
      %v7412 = vpop.f32.mrb[0].mxu0
      %7413 = vdwg.mxu0
      %v7415 = vsel %vm5105, %v6533, 0
      %7417 = vmatprep.subr.bf16.mxu0 0
      %7418 = vmatpush1.bf16.msra.mxu0 %v2051
      %7419 = vmatprep.subr.bf16.mxu0 0
      %7420 = vmatpush1.bf16.msra.mxu0 0
      %7421 = vmatprep.subr.bf16.mxu0 0
      %7422 = vmatpush1.bf16.msra.mxu0 0
      %7423 = vmatprep.subr.bf16.mxu0 0
      %7424 = vmatpush1.bf16.msra.mxu0 0
      %7425 = vmatprep.subr.bf16.mxu0 0
      %7426 = vmatpush1.bf16.msra.mxu0 0
      %7427 = vmatprep.subr.bf16.mxu0 0
      %7428 = vmatpush1.bf16.msra.mxu0 0
      %7429 = vmatprep.subr.bf16.mxu0 0
      %7430 = vmatpush1.bf16.msra.mxu0 0
      %7431 = vmatprep.subr.bf16.mxu0 0
      %7432 = vmatpush1.bf16.msra.mxu0 0
      %7433 = vmatprep.subr.bf16.mxu0 0
      %7434 = vmatpush1.bf16.msra.mxu0 0
      %7435 = vmatprep.subr.bf16.mxu0 0
      %7436 = vmatpush1.bf16.msra.mxu0 0
      %7437 = vmatprep.subr.bf16.mxu0 0
      %7438 = vmatpush1.bf16.msra.mxu0 0
      %7439 = vmatprep.subr.bf16.mxu0 0
      %7440 = vmatpush1.bf16.msra.mxu0 0
      %7441 = vmatprep.subr.bf16.mxu0 0
      %7442 = vmatpush1.bf16.msra.mxu0 0
      %7443 = vmatprep.subr.bf16.mxu0 0
      %7444 = vmatpush1.bf16.msra.mxu0 0
      %7445 = vmatprep.subr.bf16.mxu0 0
      %7446 = vmatpush1.bf16.msra.mxu0 0
      %7447 = vmatprep.subr.bf16.mxu0 0
      %7448 = vmatpush1.bf16.msra.mxu0 0
      %7449 = vmatprep.mubr.bf16.mxu0 0
      %7450 = vmatmul.mubr.bf16.gmra.mrb[0].mxu0 %v7415
      %v7451 = vpop.f32.mrb[0].mxu0
      %v7452 = vadd.f32 0.0, %v7451
      %v7453 = vpop.f32.mrb[0].mxu0
      %v7454 = vpop.f32.mrb[0].mxu0
      %v7455 = vadd.f32 0.0, %v7454
      %v7456 = vpop.f32.mrb[0].mxu0
      %7457 = vdwg.mxu0
      %v7459 = vsel %vm5105, %v6534, 0
      %7461 = vmatprep.subr.bf16.mxu0 0
      %7462 = vmatpush1.bf16.msra.mxu0 %v2052
      %7463 = vmatprep.subr.bf16.mxu0 0
      %7464 = vmatpush1.bf16.msra.mxu0 0
      %7465 = vmatprep.subr.bf16.mxu0 0
      %7466 = vmatpush1.bf16.msra.mxu0 0
      %7467 = vmatprep.subr.bf16.mxu0 0
      %7468 = vmatpush1.bf16.msra.mxu0 0
      %7469 = vmatprep.subr.bf16.mxu0 0
      %7470 = vmatpush1.bf16.msra.mxu0 0
      %7471 = vmatprep.subr.bf16.mxu0 0
      %7472 = vmatpush1.bf16.msra.mxu0 0
      %7473 = vmatprep.subr.bf16.mxu0 0
      %7474 = vmatpush1.bf16.msra.mxu0 0
      %7475 = vmatprep.subr.bf16.mxu0 0
      %7476 = vmatpush1.bf16.msra.mxu0 0
      %7477 = vmatprep.subr.bf16.mxu0 0
      %7478 = vmatpush1.bf16.msra.mxu0 0
      %7479 = vmatprep.subr.bf16.mxu0 0
      %7480 = vmatpush1.bf16.msra.mxu0 0
      %7481 = vmatprep.subr.bf16.mxu0 0
      %7482 = vmatpush1.bf16.msra.mxu0 0
      %7483 = vmatprep.subr.bf16.mxu0 0
      %7484 = vmatpush1.bf16.msra.mxu0 0
      %7485 = vmatprep.subr.bf16.mxu0 0
      %7486 = vmatpush1.bf16.msra.mxu0 0
      %7487 = vmatprep.subr.bf16.mxu0 0
      %7488 = vmatpush1.bf16.msra.mxu0 0
      %7489 = vmatprep.subr.bf16.mxu0 0
      %7490 = vmatpush1.bf16.msra.mxu0 0
      %7491 = vmatprep.subr.bf16.mxu0 0
      %7492 = vmatpush1.bf16.msra.mxu0 0
      %7493 = vmatprep.mubr.bf16.mxu0 0
      %7494 = vmatmul.mubr.bf16.gmra.mrb[0].mxu0 %v7459
      %v7495 = vpop.f32.mrb[0].mxu0
      %v7496 = vadd.f32 0.0, %v7495
      %v7497 = vpop.f32.mrb[0].mxu0
      %v7498 = vpop.f32.mrb[0].mxu0
      %v7499 = vadd.f32 0.0, %v7498
      %v7500 = vpop.f32.mrb[0].mxu0
      %7501 = vdwg.mxu0
      %v7503 = vsel %vm5105, %v6535, 0
      %7505 = vmatprep.subr.bf16.mxu0 0
      %7506 = vmatpush1.bf16.msra.mxu0 %v2053
      %7507 = vmatprep.subr.bf16.mxu0 0
      %7508 = vmatpush1.bf16.msra.mxu0 0
      %7509 = vmatprep.subr.bf16.mxu0 0
      %7510 = vmatpush1.bf16.msra.mxu0 0
      %7511 = vmatprep.subr.bf16.mxu0 0
      %7512 = vmatpush1.bf16.msra.mxu0 0
      %7513 = vmatprep.subr.bf16.mxu0 0
      %7514 = vmatpush1.bf16.msra.mxu0 0
      %7515 = vmatprep.subr.bf16.mxu0 0
      %7516 = vmatpush1.bf16.msra.mxu0 0
      %7517 = vmatprep.subr.bf16.mxu0 0
      %7518 = vmatpush1.bf16.msra.mxu0 0
      %7519 = vmatprep.subr.bf16.mxu0 0
      %7520 = vmatpush1.bf16.msra.mxu0 0
      %7521 = vmatprep.subr.bf16.mxu0 0
      %7522 = vmatpush1.bf16.msra.mxu0 0
      %7523 = vmatprep.subr.bf16.mxu0 0
      %7524 = vmatpush1.bf16.msra.mxu0 0
      %7525 = vmatprep.subr.bf16.mxu0 0
      %7526 = vmatpush1.bf16.msra.mxu0 0
      %7527 = vmatprep.subr.bf16.mxu0 0
      %7528 = vmatpush1.bf16.msra.mxu0 0
      %7529 = vmatprep.subr.bf16.mxu0 0
      %7530 = vmatpush1.bf16.msra.mxu0 0
      %7531 = vmatprep.subr.bf16.mxu0 0
      %7532 = vmatpush1.bf16.msra.mxu0 0
      %7533 = vmatprep.subr.bf16.mxu0 0
      %7534 = vmatpush1.bf16.msra.mxu0 0
      %7535 = vmatprep.subr.bf16.mxu0 0
      %7536 = vmatpush1.bf16.msra.mxu0 0
      %7537 = vmatprep.mubr.bf16.mxu0 0
      %7538 = vmatmul.mubr.bf16.gmra.mrb[0].mxu0 %v7503
      %v7539 = vpop.f32.mrb[0].mxu0
      %v7540 = vadd.f32 0.0, %v7539
      %v7541 = vpop.f32.mrb[0].mxu0
      %v7542 = vpop.f32.mrb[0].mxu0
      %v7543 = vadd.f32 0.0, %v7542
      %v7544 = vpop.f32.mrb[0].mxu0
      %7545 = vdwg.mxu0
      %v7547 = vsel %vm5105, %v6536, 0
      %7549 = vmatprep.subr.bf16.mxu0 0
      %7550 = vmatpush1.bf16.msra.mxu0 %v2054
      %7551 = vmatprep.subr.bf16.mxu0 0
      %7552 = vmatpush1.bf16.msra.mxu0 0
      %7553 = vmatprep.subr.bf16.mxu0 0
      %7554 = vmatpush1.bf16.msra.mxu0 0
      %7555 = vmatprep.subr.bf16.mxu0 0
      %7556 = vmatpush1.bf16.msra.mxu0 0
      %7557 = vmatprep.subr.bf16.mxu0 0
      %7558 = vmatpush1.bf16.msra.mxu0 0
      %7559 = vmatprep.subr.bf16.mxu0 0
      %7560 = vmatpush1.bf16.msra.mxu0 0
      %7561 = vmatprep.subr.bf16.mxu0 0
      %7562 = vmatpush1.bf16.msra.mxu0 0
      %7563 = vmatprep.subr.bf16.mxu0 0
      %7564 = vmatpush1.bf16.msra.mxu0 0
      %7565 = vmatprep.subr.bf16.mxu0 0
      %7566 = vmatpush1.bf16.msra.mxu0 0
      %7567 = vmatprep.subr.bf16.mxu0 0
      %7568 = vmatpush1.bf16.msra.mxu0 0
      %7569 = vmatprep.subr.bf16.mxu0 0
      %7570 = vmatpush1.bf16.msra.mxu0 0
      %7571 = vmatprep.subr.bf16.mxu0 0
      %7572 = vmatpush1.bf16.msra.mxu0 0
      %7573 = vmatprep.subr.bf16.mxu0 0
      %7574 = vmatpush1.bf16.msra.mxu0 0
      %7575 = vmatprep.subr.bf16.mxu0 0
      %7576 = vmatpush1.bf16.msra.mxu0 0
      %7577 = vmatprep.subr.bf16.mxu0 0
      %7578 = vmatpush1.bf16.msra.mxu0 0
      %7579 = vmatprep.subr.bf16.mxu0 0
      %7580 = vmatpush1.bf16.msra.mxu0 0
      %7581 = vmatprep.mubr.bf16.mxu0 0
      %7582 = vmatmul.mubr.bf16.gmra.mrb[0].mxu0 %v7547
      %v7583 = vpop.f32.mrb[0].mxu0
      %v7584 = vadd.f32 0.0, %v7583
      %v7585 = vpop.f32.mrb[0].mxu0
      %v7586 = vpop.f32.mrb[0].mxu0
      %v7587 = vadd.f32 0.0, %v7586
      %v7588 = vpop.f32.mrb[0].mxu0
      %7589 = vdwg.mxu0
      %v7591 = vsel %vm5105, %v6537, 0
      %7593 = vmatprep.subr.bf16.mxu0 0
      %7594 = vmatpush1.bf16.msra.mxu0 %v2055
      %7595 = vmatprep.subr.bf16.mxu0 0
      %7596 = vmatpush1.bf16.msra.mxu0 0
      %7597 = vmatprep.subr.bf16.mxu0 0
      %7598 = vmatpush1.bf16.msra.mxu0 0
      %7599 = vmatprep.subr.bf16.mxu0 0
      %7600 = vmatpush1.bf16.msra.mxu0 0
      %7601 = vmatprep.subr.bf16.mxu0 0
      %7602 = vmatpush1.bf16.msra.mxu0 0
      %7603 = vmatprep.subr.bf16.mxu0 0
      %7604 = vmatpush1.bf16.msra.mxu0 0
      %7605 = vmatprep.subr.bf16.mxu0 0
      %7606 = vmatpush1.bf16.msra.mxu0 0
      %7607 = vmatprep.subr.bf16.mxu0 0
      %7608 = vmatpush1.bf16.msra.mxu0 0
      %7609 = vmatprep.subr.bf16.mxu0 0
      %7610 = vmatpush1.bf16.msra.mxu0 0
      %7611 = vmatprep.subr.bf16.mxu0 0
      %7612 = vmatpush1.bf16.msra.mxu0 0
      %7613 = vmatprep.subr.bf16.mxu0 0
      %7614 = vmatpush1.bf16.msra.mxu0 0
      %7615 = vmatprep.subr.bf16.mxu0 0
      %7616 = vmatpush1.bf16.msra.mxu0 0
      %7617 = vmatprep.subr.bf16.mxu0 0
      %7618 = vmatpush1.bf16.msra.mxu0 0
      %7619 = vmatprep.subr.bf16.mxu0 0
      %7620 = vmatpush1.bf16.msra.mxu0 0
      %7621 = vmatprep.subr.bf16.mxu0 0
      %7622 = vmatpush1.bf16.msra.mxu0 0
      %7623 = vmatprep.subr.bf16.mxu0 0
      %7624 = vmatpush1.bf16.msra.mxu0 0
      %7625 = vmatprep.mubr.bf16.mxu0 0
      %7626 = vmatmul.mubr.bf16.gmra.mrb[0].mxu0 %v7591
      %v7627 = vpop.f32.mrb[0].mxu0
      %v7628 = vadd.f32 0.0, %v7627
      %v7629 = vpop.f32.mrb[0].mxu0
      %v7630 = vpop.f32.mrb[0].mxu0
      %v7631 = vadd.f32 0.0, %v7630
      %v7632 = vpop.f32.mrb[0].mxu0
      %7633 = vdwg.mxu0
      %v7635 = vsel %vm5105, %v6538, 0
      %7637 = vmatprep.subr.bf16.mxu0 0
      %7638 = vmatpush1.bf16.msra.mxu0 %v2056
      %7639 = vmatprep.subr.bf16.mxu0 0
      %7640 = vmatpush1.bf16.msra.mxu0 0
      %7641 = vmatprep.subr.bf16.mxu0 0
      %7642 = vmatpush1.bf16.msra.mxu0 0
      %7643 = vmatprep.subr.bf16.mxu0 0
      %7644 = vmatpush1.bf16.msra.mxu0 0
      %7645 = vmatprep.subr.bf16.mxu0 0
      %7646 = vmatpush1.bf16.msra.mxu0 0
      %7647 = vmatprep.subr.bf16.mxu0 0
      %7648 = vmatpush1.bf16.msra.mxu0 0
      %7649 = vmatprep.subr.bf16.mxu0 0
      %7650 = vmatpush1.bf16.msra.mxu0 0
      %7651 = vmatprep.subr.bf16.mxu0 0
      %7652 = vmatpush1.bf16.msra.mxu0 0
      %7653 = vmatprep.subr.bf16.mxu0 0
      %7654 = vmatpush1.bf16.msra.mxu0 0
      %7655 = vmatprep.subr.bf16.mxu0 0
      %7656 = vmatpush1.bf16.msra.mxu0 0
      %7657 = vmatprep.subr.bf16.mxu0 0
      %7658 = vmatpush1.bf16.msra.mxu0 0
      %7659 = vmatprep.subr.bf16.mxu0 0
      %7660 = vmatpush1.bf16.msra.mxu0 0
      %7661 = vmatprep.subr.bf16.mxu0 0
      %7662 = vmatpush1.bf16.msra.mxu0 0
      %7663 = vmatprep.subr.bf16.mxu0 0
      %7664 = vmatpush1.bf16.msra.mxu0 0
      %7665 = vmatprep.subr.bf16.mxu0 0
      %7666 = vmatpush1.bf16.msra.mxu0 0
      %7667 = vmatprep.subr.bf16.mxu0 0
      %7668 = vmatpush1.bf16.msra.mxu0 0
      %7669 = vmatprep.mubr.bf16.mxu0 0
      %7670 = vmatmul.mubr.bf16.gmra.mrb[0].mxu0 %v7635
      %v7671 = vpop.f32.mrb[0].mxu0
      %v7672 = vadd.f32 0.0, %v7671
      %v7673 = vpop.f32.mrb[0].mxu0
      %v7674 = vpop.f32.mrb[0].mxu0
      %v7675 = vadd.f32 0.0, %v7674
      %v7676 = vpop.f32.mrb[0].mxu0
      %7677 = vdwg.mxu0
      %v7679 = vsel %vm5105, %v6539, 0
      %7681 = vmatprep.subr.bf16.mxu0 0
      %7682 = vmatpush1.bf16.msra.mxu0 %v2057
      %7683 = vmatprep.subr.bf16.mxu0 0
      %7684 = vmatpush1.bf16.msra.mxu0 0
      %7685 = vmatprep.subr.bf16.mxu0 0
      %7686 = vmatpush1.bf16.msra.mxu0 0
      %7687 = vmatprep.subr.bf16.mxu0 0
      %7688 = vmatpush1.bf16.msra.mxu0 0
      %7689 = vmatprep.subr.bf16.mxu0 0
      %7690 = vmatpush1.bf16.msra.mxu0 0
      %7691 = vmatprep.subr.bf16.mxu0 0
      %7692 = vmatpush1.bf16.msra.mxu0 0
      %7693 = vmatprep.subr.bf16.mxu0 0
      %7694 = vmatpush1.bf16.msra.mxu0 0
      %7695 = vmatprep.subr.bf16.mxu0 0
      %7696 = vmatpush1.bf16.msra.mxu0 0
      %7697 = vmatprep.subr.bf16.mxu0 0
      %7698 = vmatpush1.bf16.msra.mxu0 0
      %7699 = vmatprep.subr.bf16.mxu0 0
      %7700 = vmatpush1.bf16.msra.mxu0 0
      %7701 = vmatprep.subr.bf16.mxu0 0
      %7702 = vmatpush1.bf16.msra.mxu0 0
      %7703 = vmatprep.subr.bf16.mxu0 0
      %7704 = vmatpush1.bf16.msra.mxu0 0
      %7705 = vmatprep.subr.bf16.mxu0 0
      %7706 = vmatpush1.bf16.msra.mxu0 0
      %7707 = vmatprep.subr.bf16.mxu0 0
      %7708 = vmatpush1.bf16.msra.mxu0 0
      %7709 = vmatprep.subr.bf16.mxu0 0
      %7710 = vmatpush1.bf16.msra.mxu0 0
      %7711 = vmatprep.subr.bf16.mxu0 0
      %7712 = vmatpush1.bf16.msra.mxu0 0
      %7713 = vmatprep.mubr.bf16.mxu0 0
      %7714 = vmatmul.mubr.bf16.gmra.mrb[0].mxu0 %v7679
      %v7715 = vpop.f32.mrb[0].mxu0
      %v7716 = vadd.f32 0.0, %v7715
      %v7717 = vpop.f32.mrb[0].mxu0
      %v7718 = vpop.f32.mrb[0].mxu0
      %v7719 = vadd.f32 0.0, %v7718
      %v7720 = vpop.f32.mrb[0].mxu0
      %7721 = vdwg.mxu0
      %v7723 = vsel %vm5105, %v6540, 0
      %7725 = vmatprep.subr.bf16.mxu0 0
      %7726 = vmatpush1.bf16.msra.mxu0 %v2058
      %7727 = vmatprep.subr.bf16.mxu0 0
      %7728 = vmatpush1.bf16.msra.mxu0 0
      %7729 = vmatprep.subr.bf16.mxu0 0
      %7730 = vmatpush1.bf16.msra.mxu0 0
      %7731 = vmatprep.subr.bf16.mxu0 0
      %7732 = vmatpush1.bf16.msra.mxu0 0
      %7733 = vmatprep.subr.bf16.mxu0 0
      %7734 = vmatpush1.bf16.msra.mxu0 0
      %7735 = vmatprep.subr.bf16.mxu0 0
      %7736 = vmatpush1.bf16.msra.mxu0 0
      %7737 = vmatprep.subr.bf16.mxu0 0
      %7738 = vmatpush1.bf16.msra.mxu0 0
      %7739 = vmatprep.subr.bf16.mxu0 0
      %7740 = vmatpush1.bf16.msra.mxu0 0
      %7741 = vmatprep.subr.bf16.mxu0 0
      %7742 = vmatpush1.bf16.msra.mxu0 0
      %7743 = vmatprep.subr.bf16.mxu0 0
      %7744 = vmatpush1.bf16.msra.mxu0 0
      %7745 = vmatprep.subr.bf16.mxu0 0
      %7746 = vmatpush1.bf16.msra.mxu0 0
      %7747 = vmatprep.subr.bf16.mxu0 0
      %7748 = vmatpush1.bf16.msra.mxu0 0
      %7749 = vmatprep.subr.bf16.mxu0 0
      %7750 = vmatpush1.bf16.msra.mxu0 0
      %7751 = vmatprep.subr.bf16.mxu0 0
      %7752 = vmatpush1.bf16.msra.mxu0 0
      %7753 = vmatprep.subr.bf16.mxu0 0
      %7754 = vmatpush1.bf16.msra.mxu0 0
      %7755 = vmatprep.subr.bf16.mxu0 0
      %7756 = vmatpush1.bf16.msra.mxu0 0
      %7757 = vmatprep.mubr.bf16.mxu0 0
      %7758 = vmatmul.mubr.bf16.gmra.mrb[0].mxu0 %v7723
      %v7759 = vpop.f32.mrb[0].mxu0
      %v7760 = vadd.f32 0.0, %v7759
      %v7761 = vpop.f32.mrb[0].mxu0
      %v7762 = vpop.f32.mrb[0].mxu0
      %v7763 = vadd.f32 0.0, %v7762
      %v7764 = vpop.f32.mrb[0].mxu0
      %7765 = vdwg.mxu0
      %v7767 = vsel %vm5105, %v6541, 0
      %7769 = vmatprep.subr.bf16.mxu0 0
      %7770 = vmatpush1.bf16.msra.mxu0 %v2059
      %7771 = vmatprep.subr.bf16.mxu0 0
      %7772 = vmatpush1.bf16.msra.mxu0 0
      %7773 = vmatprep.subr.bf16.mxu0 0
      %7774 = vmatpush1.bf16.msra.mxu0 0
      %7775 = vmatprep.subr.bf16.mxu0 0
      %7776 = vmatpush1.bf16.msra.mxu0 0
      %7777 = vmatprep.subr.bf16.mxu0 0
      %7778 = vmatpush1.bf16.msra.mxu0 0
      %7779 = vmatprep.subr.bf16.mxu0 0
      %7780 = vmatpush1.bf16.msra.mxu0 0
      %7781 = vmatprep.subr.bf16.mxu0 0
      %7782 = vmatpush1.bf16.msra.mxu0 0
      %7783 = vmatprep.subr.bf16.mxu0 0
      %7784 = vmatpush1.bf16.msra.mxu0 0
      %7785 = vmatprep.subr.bf16.mxu0 0
      %7786 = vmatpush1.bf16.msra.mxu0 0
      %7787 = vmatprep.subr.bf16.mxu0 0
      %7788 = vmatpush1.bf16.msra.mxu0 0
      %7789 = vmatprep.subr.bf16.mxu0 0
      %7790 = vmatpush1.bf16.msra.mxu0 0
      %7791 = vmatprep.subr.bf16.mxu0 0
      %7792 = vmatpush1.bf16.msra.mxu0 0
      %7793 = vmatprep.subr.bf16.mxu0 0
      %7794 = vmatpush1.bf16.msra.mxu0 0
      %7795 = vmatprep.subr.bf16.mxu0 0
      %7796 = vmatpush1.bf16.msra.mxu0 0
      %7797 = vmatprep.subr.bf16.mxu0 0
      %7798 = vmatpush1.bf16.msra.mxu0 0
      %7799 = vmatprep.subr.bf16.mxu0 0
      %7800 = vmatpush1.bf16.msra.mxu0 0
      %7801 = vmatprep.mubr.bf16.mxu0 0
      %7802 = vmatmul.mubr.bf16.gmra.mrb[0].mxu0 %v7767
      %v7803 = vpop.f32.mrb[0].mxu0
      %v7804 = vadd.f32 0.0, %v7803
      %v7805 = vpop.f32.mrb[0].mxu0
      %v7806 = vpop.f32.mrb[0].mxu0
      %v7807 = vadd.f32 0.0, %v7806
      %v7808 = vpop.f32.mrb[0].mxu0
      %7809 = vdwg.mxu0
      %v7811 = vsel %vm5105, %v6542, 0
      %7813 = vmatprep.subr.bf16.mxu0 0
      %7814 = vmatpush1.bf16.msra.mxu0 %v2060
      %7815 = vmatprep.subr.bf16.mxu0 0
      %7816 = vmatpush1.bf16.msra.mxu0 0
      %7817 = vmatprep.subr.bf16.mxu0 0
      %7818 = vmatpush1.bf16.msra.mxu0 0
      %7819 = vmatprep.subr.bf16.mxu0 0
      %7820 = vmatpush1.bf16.msra.mxu0 0
      %7821 = vmatprep.subr.bf16.mxu0 0
      %7822 = vmatpush1.bf16.msra.mxu0 0
      %7823 = vmatprep.subr.bf16.mxu0 0
      %7824 = vmatpush1.bf16.msra.mxu0 0
      %7825 = vmatprep.subr.bf16.mxu0 0
      %7826 = vmatpush1.bf16.msra.mxu0 0
      %7827 = vmatprep.subr.bf16.mxu0 0
      %7828 = vmatpush1.bf16.msra.mxu0 0
      %7829 = vmatprep.subr.bf16.mxu0 0
      %7830 = vmatpush1.bf16.msra.mxu0 0
      %7831 = vmatprep.subr.bf16.mxu0 0
      %7832 = vmatpush1.bf16.msra.mxu0 0
      %7833 = vmatprep.subr.bf16.mxu0 0
      %7834 = vmatpush1.bf16.msra.mxu0 0
      %7835 = vmatprep.subr.bf16.mxu0 0
      %7836 = vmatpush1.bf16.msra.mxu0 0
      %7837 = vmatprep.subr.bf16.mxu0 0
      %7838 = vmatpush1.bf16.msra.mxu0 0
      %7839 = vmatprep.subr.bf16.mxu0 0
      %7840 = vmatpush1.bf16.msra.mxu0 0
      %7841 = vmatprep.subr.bf16.mxu0 0
      %7842 = vmatpush1.bf16.msra.mxu0 0
      %7843 = vmatprep.subr.bf16.mxu0 0
      %7844 = vmatpush1.bf16.msra.mxu0 0
      %7845 = vmatprep.mubr.bf16.mxu0 0
      %7846 = vmatmul.mubr.bf16.gmra.mrb[0].mxu0 %v7811
      %v7847 = vpop.f32.mrb[0].mxu0
      %v7848 = vadd.f32 0.0, %v7847
      %v7849 = vpop.f32.mrb[0].mxu0
      %v7850 = vpop.f32.mrb[0].mxu0
      %v7851 = vadd.f32 0.0, %v7850
      %v7852 = vpop.f32.mrb[0].mxu0
      %7853 = vdwg.mxu0
      %v7855 = vsel %vm5105, %v6543, 0
      %7857 = vmatprep.subr.bf16.mxu0 0
      %7858 = vmatpush1.bf16.msra.mxu0 %v2061
      %7859 = vmatprep.subr.bf16.mxu0 0
      %7860 = vmatpush1.bf16.msra.mxu0 0
      %7861 = vmatprep.subr.bf16.mxu0 0
      %7862 = vmatpush1.bf16.msra.mxu0 0
      %7863 = vmatprep.subr.bf16.mxu0 0
      %7864 = vmatpush1.bf16.msra.mxu0 0
      %7865 = vmatprep.subr.bf16.mxu0 0
      %7866 = vmatpush1.bf16.msra.mxu0 0
      %7867 = vmatprep.subr.bf16.mxu0 0
      %7868 = vmatpush1.bf16.msra.mxu0 0
      %7869 = vmatprep.subr.bf16.mxu0 0
      %7870 = vmatpush1.bf16.msra.mxu0 0
      %7871 = vmatprep.subr.bf16.mxu0 0
      %7872 = vmatpush1.bf16.msra.mxu0 0
      %7873 = vmatprep.subr.bf16.mxu0 0
      %7874 = vmatpush1.bf16.msra.mxu0 0
      %7875 = vmatprep.subr.bf16.mxu0 0
      %7876 = vmatpush1.bf16.msra.mxu0 0
      %7877 = vmatprep.subr.bf16.mxu0 0
      %7878 = vmatpush1.bf16.msra.mxu0 0
      %7879 = vmatprep.subr.bf16.mxu0 0
      %7880 = vmatpush1.bf16.msra.mxu0 0
      %7881 = vmatprep.subr.bf16.mxu0 0
      %7882 = vmatpush1.bf16.msra.mxu0 0
      %7883 = vmatprep.subr.bf16.mxu0 0
      %7884 = vmatpush1.bf16.msra.mxu0 0
      %7885 = vmatprep.subr.bf16.mxu0 0
      %7886 = vmatpush1.bf16.msra.mxu0 0
      %7887 = vmatprep.subr.bf16.mxu0 0
      %7888 = vmatpush1.bf16.msra.mxu0 0
      %7889 = vmatprep.mubr.bf16.mxu0 0
      %7890 = vmatmul.mubr.bf16.gmra.mrb[0].mxu0 %v7855
      %v7891 = vpop.f32.mrb[0].mxu0
      %v7892 = vadd.f32 0.0, %v7891
      %v7893 = vpop.f32.mrb[0].mxu0
      %v7894 = vpop.f32.mrb[0].mxu0
      %v7895 = vadd.f32 0.0, %v7894
      %v7896 = vpop.f32.mrb[0].mxu0
      %7897 = vdwg.mxu0
      %v7899 = vsel %vm5105, %v6544, 0
      %7901 = vmatprep.subr.bf16.mxu0 0
      %7902 = vmatpush1.bf16.msra.mxu0 %v2062
      %7903 = vmatprep.subr.bf16.mxu0 0
      %7904 = vmatpush1.bf16.msra.mxu0 0
      %7905 = vmatprep.subr.bf16.mxu0 0
      %7906 = vmatpush1.bf16.msra.mxu0 0
      %7907 = vmatprep.subr.bf16.mxu0 0
      %7908 = vmatpush1.bf16.msra.mxu0 0
      %7909 = vmatprep.subr.bf16.mxu0 0
      %7910 = vmatpush1.bf16.msra.mxu0 0
      %7911 = vmatprep.subr.bf16.mxu0 0
      %7912 = vmatpush1.bf16.msra.mxu0 0
      %7913 = vmatprep.subr.bf16.mxu0 0
      %7914 = vmatpush1.bf16.msra.mxu0 0
      %7915 = vmatprep.subr.bf16.mxu0 0
      %7916 = vmatpush1.bf16.msra.mxu0 0
      %7917 = vmatprep.subr.bf16.mxu0 0
      %7918 = vmatpush1.bf16.msra.mxu0 0
      %7919 = vmatprep.subr.bf16.mxu0 0
      %7920 = vmatpush1.bf16.msra.mxu0 0
      %7921 = vmatprep.subr.bf16.mxu0 0
      %7922 = vmatpush1.bf16.msra.mxu0 0
      %7923 = vmatprep.subr.bf16.mxu0 0
      %7924 = vmatpush1.bf16.msra.mxu0 0
      %7925 = vmatprep.subr.bf16.mxu0 0
      %7926 = vmatpush1.bf16.msra.mxu0 0
      %7927 = vmatprep.subr.bf16.mxu0 0
      %7928 = vmatpush1.bf16.msra.mxu0 0
      %7929 = vmatprep.subr.bf16.mxu0 0
      %7930 = vmatpush1.bf16.msra.mxu0 0
      %7931 = vmatprep.subr.bf16.mxu0 0
      %7932 = vmatpush1.bf16.msra.mxu0 0
      %7933 = vmatprep.mubr.bf16.mxu0 0
      %7934 = vmatmul.mubr.bf16.gmra.mrb[0].mxu0 %v7899
      %v7935 = vpop.f32.mrb[0].mxu0
      %v7936 = vadd.f32 0.0, %v7935
      %v7937 = vpop.f32.mrb[0].mxu0
      %v7938 = vpop.f32.mrb[0].mxu0
      %v7939 = vadd.f32 0.0, %v7938
      %v7940 = vpop.f32.mrb[0].mxu0
      %7941 = vdwg.mxu0
      %v7943 = vsel %vm5105, %v6545, 0
      %7945 = vmatprep.subr.bf16.mxu0 0
      %7946 = vmatpush1.bf16.msra.mxu0 %v2063
      %7947 = vmatprep.subr.bf16.mxu0 0
      %7948 = vmatpush1.bf16.msra.mxu0 0
      %7949 = vmatprep.subr.bf16.mxu0 0
      %7950 = vmatpush1.bf16.msra.mxu0 0
      %7951 = vmatprep.subr.bf16.mxu0 0
      %7952 = vmatpush1.bf16.msra.mxu0 0
      %7953 = vmatprep.subr.bf16.mxu0 0
      %7954 = vmatpush1.bf16.msra.mxu0 0
      %7955 = vmatprep.subr.bf16.mxu0 0
      %7956 = vmatpush1.bf16.msra.mxu0 0
      %7957 = vmatprep.subr.bf16.mxu0 0
      %7958 = vmatpush1.bf16.msra.mxu0 0
      %7959 = vmatprep.subr.bf16.mxu0 0
      %7960 = vmatpush1.bf16.msra.mxu0 0
      %7961 = vmatprep.subr.bf16.mxu0 0
      %7962 = vmatpush1.bf16.msra.mxu0 0
      %7963 = vmatprep.subr.bf16.mxu0 0
      %7964 = vmatpush1.bf16.msra.mxu0 0
      %7965 = vmatprep.subr.bf16.mxu0 0
      %7966 = vmatpush1.bf16.msra.mxu0 0
      %7967 = vmatprep.subr.bf16.mxu0 0
      %7968 = vmatpush1.bf16.msra.mxu0 0
      %7969 = vmatprep.subr.bf16.mxu0 0
      %7970 = vmatpush1.bf16.msra.mxu0 0
      %7971 = vmatprep.subr.bf16.mxu0 0
      %7972 = vmatpush1.bf16.msra.mxu0 0
      %7973 = vmatprep.subr.bf16.mxu0 0
      %7974 = vmatpush1.bf16.msra.mxu0 0
      %7975 = vmatprep.subr.bf16.mxu0 0
      %7976 = vmatpush1.bf16.msra.mxu0 0
      %7977 = vmatprep.mubr.bf16.mxu0 0
      %7978 = vmatmul.mubr.bf16.gmra.mrb[0].mxu0 %v7943
      %v7979 = vpop.f32.mrb[0].mxu0
      %v7980 = vadd.f32 0.0, %v7979
      %v7981 = vpop.f32.mrb[0].mxu0
      %v7982 = vpop.f32.mrb[0].mxu0
      %v7983 = vadd.f32 0.0, %v7982
      %v7984 = vpop.f32.mrb[0].mxu0
      %7985 = vdwg.mxu0
      %v7987 = vsel %vm5105, %v6546, 0
      %7989 = vmatprep.subr.bf16.mxu0 0
      %7990 = vmatpush1.bf16.msra.mxu0 %v2064
      %7991 = vmatprep.subr.bf16.mxu0 0
      %7992 = vmatpush1.bf16.msra.mxu0 0
      %7993 = vmatprep.subr.bf16.mxu0 0
      %7994 = vmatpush1.bf16.msra.mxu0 0
      %7995 = vmatprep.subr.bf16.mxu0 0
      %7996 = vmatpush1.bf16.msra.mxu0 0
      %7997 = vmatprep.subr.bf16.mxu0 0
      %7998 = vmatpush1.bf16.msra.mxu0 0
      %7999 = vmatprep.subr.bf16.mxu0 0
      %8000 = vmatpush1.bf16.msra.mxu0 0
      %8001 = vmatprep.subr.bf16.mxu0 0
      %8002 = vmatpush1.bf16.msra.mxu0 0
      %8003 = vmatprep.subr.bf16.mxu0 0
      %8004 = vmatpush1.bf16.msra.mxu0 0
      %8005 = vmatprep.subr.bf16.mxu0 0
      %8006 = vmatpush1.bf16.msra.mxu0 0
      %8007 = vmatprep.subr.bf16.mxu0 0
      %8008 = vmatpush1.bf16.msra.mxu0 0
      %8009 = vmatprep.subr.bf16.mxu0 0
      %8010 = vmatpush1.bf16.msra.mxu0 0
      %8011 = vmatprep.subr.bf16.mxu0 0
      %8012 = vmatpush1.bf16.msra.mxu0 0
      %8013 = vmatprep.subr.bf16.mxu0 0
      %8014 = vmatpush1.bf16.msra.mxu0 0
      %8015 = vmatprep.subr.bf16.mxu0 0
      %8016 = vmatpush1.bf16.msra.mxu0 0
      %8017 = vmatprep.subr.bf16.mxu0 0
      %8018 = vmatpush1.bf16.msra.mxu0 0
      %8019 = vmatprep.subr.bf16.mxu0 0
      %8020 = vmatpush1.bf16.msra.mxu0 0
      %8021 = vmatprep.mubr.bf16.mxu0 0
      %8022 = vmatmul.mubr.bf16.gmra.mrb[0].mxu0 %v7987
      %v8023 = vpop.f32.mrb[0].mxu0
      %v8024 = vadd.f32 0.0, %v8023
      %v8025 = vpop.f32.mrb[0].mxu0
      %v8026 = vpop.f32.mrb[0].mxu0
      %v8027 = vadd.f32 0.0, %v8026
      %v8028 = vpop.f32.mrb[0].mxu0
      %8029 = vdwg.mxu0
      %v8031 = vsel %vm5105, %v6547, 0
      %8033 = vmatprep.subr.bf16.mxu0 0
      %8034 = vmatpush1.bf16.msra.mxu0 %v2065
      %8035 = vmatprep.subr.bf16.mxu0 0
      %8036 = vmatpush1.bf16.msra.mxu0 0
      %8037 = vmatprep.subr.bf16.mxu0 0
      %8038 = vmatpush1.bf16.msra.mxu0 0
      %8039 = vmatprep.subr.bf16.mxu0 0
      %8040 = vmatpush1.bf16.msra.mxu0 0
      %8041 = vmatprep.subr.bf16.mxu0 0
      %8042 = vmatpush1.bf16.msra.mxu0 0
      %8043 = vmatprep.subr.bf16.mxu0 0
      %8044 = vmatpush1.bf16.msra.mxu0 0
      %8045 = vmatprep.subr.bf16.mxu0 0
      %8046 = vmatpush1.bf16.msra.mxu0 0
      %8047 = vmatprep.subr.bf16.mxu0 0
      %8048 = vmatpush1.bf16.msra.mxu0 0
      %8049 = vmatprep.subr.bf16.mxu0 0
      %8050 = vmatpush1.bf16.msra.mxu0 0
      %8051 = vmatprep.subr.bf16.mxu0 0
      %8052 = vmatpush1.bf16.msra.mxu0 0
      %8053 = vmatprep.subr.bf16.mxu0 0
      %8054 = vmatpush1.bf16.msra.mxu0 0
      %8055 = vmatprep.subr.bf16.mxu0 0
      %8056 = vmatpush1.bf16.msra.mxu0 0
      %8057 = vmatprep.subr.bf16.mxu0 0
      %8058 = vmatpush1.bf16.msra.mxu0 0
      %8059 = vmatprep.subr.bf16.mxu0 0
      %8060 = vmatpush1.bf16.msra.mxu0 0
      %8061 = vmatprep.subr.bf16.mxu0 0
      %8062 = vmatpush1.bf16.msra.mxu0 0
      %8063 = vmatprep.subr.bf16.mxu0 0
      %8064 = vmatpush1.bf16.msra.mxu0 0
      %8065 = vmatprep.mubr.bf16.mxu0 0
      %8066 = vmatmul.mubr.bf16.gmra.mrb[0].mxu0 %v8031
      %v8067 = vpop.f32.mrb[0].mxu0
      %v8068 = vadd.f32 0.0, %v8067
      %v8069 = vpop.f32.mrb[0].mxu0
      %v8070 = vpop.f32.mrb[0].mxu0
      %v8071 = vadd.f32 0.0, %v8070
      %v8072 = vpop.f32.mrb[0].mxu0
      %8073 = vdwg.mxu0
      %v8075 = vsel %vm5105, %v6548, 0
      %8077 = vmatprep.subr.bf16.mxu0 0
      %8078 = vmatpush1.bf16.msra.mxu0 %v2066
      %8079 = vmatprep.subr.bf16.mxu0 0
      %8080 = vmatpush1.bf16.msra.mxu0 0
      %8081 = vmatprep.subr.bf16.mxu0 0
      %8082 = vmatpush1.bf16.msra.mxu0 0
      %8083 = vmatprep.subr.bf16.mxu0 0
      %8084 = vmatpush1.bf16.msra.mxu0 0
      %8085 = vmatprep.subr.bf16.mxu0 0
      %8086 = vmatpush1.bf16.msra.mxu0 0
      %8087 = vmatprep.subr.bf16.mxu0 0
      %8088 = vmatpush1.bf16.msra.mxu0 0
      %8089 = vmatprep.subr.bf16.mxu0 0
      %8090 = vmatpush1.bf16.msra.mxu0 0
      %8091 = vmatprep.subr.bf16.mxu0 0
      %8092 = vmatpush1.bf16.msra.mxu0 0
      %8093 = vmatprep.subr.bf16.mxu0 0
      %8094 = vmatpush1.bf16.msra.mxu0 0
      %8095 = vmatprep.subr.bf16.mxu0 0
      %8096 = vmatpush1.bf16.msra.mxu0 0
      %8097 = vmatprep.subr.bf16.mxu0 0
      %8098 = vmatpush1.bf16.msra.mxu0 0
      %8099 = vmatprep.subr.bf16.mxu0 0
      %8100 = vmatpush1.bf16.msra.mxu0 0
      %8101 = vmatprep.subr.bf16.mxu0 0
      %8102 = vmatpush1.bf16.msra.mxu0 0
      %8103 = vmatprep.subr.bf16.mxu0 0
      %8104 = vmatpush1.bf16.msra.mxu0 0
      %8105 = vmatprep.subr.bf16.mxu0 0
      %8106 = vmatpush1.bf16.msra.mxu0 0
      %8107 = vmatprep.subr.bf16.mxu0 0
      %8108 = vmatpush1.bf16.msra.mxu0 0
      %8109 = vmatprep.mubr.bf16.mxu0 0
      %8110 = vmatmul.mubr.bf16.gmra.mrb[0].mxu0 %v8075
      %v8111 = vpop.f32.mrb[0].mxu0
      %v8112 = vadd.f32 0.0, %v8111
      %v8113 = vpop.f32.mrb[0].mxu0
      %v8114 = vpop.f32.mrb[0].mxu0
      %v8115 = vadd.f32 0.0, %v8114
      %v8116 = vpop.f32.mrb[0].mxu0
      %8117 = vdwg.mxu0
      %v8119 = vsel %vm5105, %v6549, 0
      %8121 = vmatprep.subr.bf16.mxu0 0
      %8122 = vmatpush1.bf16.msra.mxu0 %v2067
      %8123 = vmatprep.subr.bf16.mxu0 0
      %8124 = vmatpush1.bf16.msra.mxu0 0
      %8125 = vmatprep.subr.bf16.mxu0 0
      %8126 = vmatpush1.bf16.msra.mxu0 0
      %8127 = vmatprep.subr.bf16.mxu0 0
      %8128 = vmatpush1.bf16.msra.mxu0 0
      %8129 = vmatprep.subr.bf16.mxu0 0
      %8130 = vmatpush1.bf16.msra.mxu0 0
      %8131 = vmatprep.subr.bf16.mxu0 0
      %8132 = vmatpush1.bf16.msra.mxu0 0
      %8133 = vmatprep.subr.bf16.mxu0 0
      %8134 = vmatpush1.bf16.msra.mxu0 0
      %8135 = vmatprep.subr.bf16.mxu0 0
      %8136 = vmatpush1.bf16.msra.mxu0 0
      %8137 = vmatprep.subr.bf16.mxu0 0
      %8138 = vmatpush1.bf16.msra.mxu0 0
      %8139 = vmatprep.subr.bf16.mxu0 0
      %8140 = vmatpush1.bf16.msra.mxu0 0
      %8141 = vmatprep.subr.bf16.mxu0 0
      %8142 = vmatpush1.bf16.msra.mxu0 0
      %8143 = vmatprep.subr.bf16.mxu0 0
      %8144 = vmatpush1.bf16.msra.mxu0 0
      %8145 = vmatprep.subr.bf16.mxu0 0
      %8146 = vmatpush1.bf16.msra.mxu0 0
      %8147 = vmatprep.subr.bf16.mxu0 0
      %8148 = vmatpush1.bf16.msra.mxu0 0
      %8149 = vmatprep.subr.bf16.mxu0 0
      %8150 = vmatpush1.bf16.msra.mxu0 0
      %8151 = vmatprep.subr.bf16.mxu0 0
      %8152 = vmatpush1.bf16.msra.mxu0 0
      %8153 = vmatprep.mubr.bf16.mxu0 0
      %8154 = vmatmul.mubr.bf16.gmra.mrb[0].mxu0 %v8119
      %v8155 = vpop.f32.mrb[0].mxu0
      %v8156 = vadd.f32 0.0, %v8155
      %v8157 = vpop.f32.mrb[0].mxu0
      %v8158 = vpop.f32.mrb[0].mxu0
      %v8159 = vadd.f32 0.0, %v8158
      %v8160 = vpop.f32.mrb[0].mxu0
      %8161 = vdwg.mxu0
      %v8163 = vsel %vm5105, %v6550, 0
      %8165 = vmatprep.subr.bf16.mxu0 0
      %8166 = vmatpush1.bf16.msra.mxu0 %v2068
      %8167 = vmatprep.subr.bf16.mxu0 0
      %8168 = vmatpush1.bf16.msra.mxu0 0
      %8169 = vmatprep.subr.bf16.mxu0 0
      %8170 = vmatpush1.bf16.msra.mxu0 0
      %8171 = vmatprep.subr.bf16.mxu0 0
      %8172 = vmatpush1.bf16.msra.mxu0 0
      %8173 = vmatprep.subr.bf16.mxu0 0
      %8174 = vmatpush1.bf16.msra.mxu0 0
      %8175 = vmatprep.subr.bf16.mxu0 0
      %8176 = vmatpush1.bf16.msra.mxu0 0
      %8177 = vmatprep.subr.bf16.mxu0 0
      %8178 = vmatpush1.bf16.msra.mxu0 0
      %8179 = vmatprep.subr.bf16.mxu0 0
      %8180 = vmatpush1.bf16.msra.mxu0 0
      %8181 = vmatprep.subr.bf16.mxu0 0
      %8182 = vmatpush1.bf16.msra.mxu0 0
      %8183 = vmatprep.subr.bf16.mxu0 0
      %8184 = vmatpush1.bf16.msra.mxu0 0
      %8185 = vmatprep.subr.bf16.mxu0 0
      %8186 = vmatpush1.bf16.msra.mxu0 0
      %8187 = vmatprep.subr.bf16.mxu0 0
      %8188 = vmatpush1.bf16.msra.mxu0 0
      %8189 = vmatprep.subr.bf16.mxu0 0
      %8190 = vmatpush1.bf16.msra.mxu0 0
      %8191 = vmatprep.subr.bf16.mxu0 0
      %8192 = vmatpush1.bf16.msra.mxu0 0
      %8193 = vmatprep.subr.bf16.mxu0 0
      %8194 = vmatpush1.bf16.msra.mxu0 0
      %8195 = vmatprep.subr.bf16.mxu0 0
      %8196 = vmatpush1.bf16.msra.mxu0 0
      %8197 = vmatprep.mubr.bf16.mxu0 0
      %8198 = vmatmul.mubr.bf16.gmra.mrb[0].mxu0 %v8163
      %v8199 = vpop.f32.mrb[0].mxu0
      %v8200 = vadd.f32 0.0, %v8199
      %v8201 = vpop.f32.mrb[0].mxu0
      %v8202 = vpop.f32.mrb[0].mxu0
      %v8203 = vadd.f32 0.0, %v8202
      %v8204 = vpop.f32.mrb[0].mxu0
      %8205 = vdwg.mxu0
      %v8207 = vsel %vm5105, %v6551, 0
      %8209 = vmatprep.subr.bf16.mxu0 0
      %8210 = vmatpush1.bf16.msra.mxu0 %v2069
      %8211 = vmatprep.subr.bf16.mxu0 0
      %8212 = vmatpush1.bf16.msra.mxu0 0
      %8213 = vmatprep.subr.bf16.mxu0 0
      %8214 = vmatpush1.bf16.msra.mxu0 0
      %8215 = vmatprep.subr.bf16.mxu0 0
      %8216 = vmatpush1.bf16.msra.mxu0 0
      %8217 = vmatprep.subr.bf16.mxu0 0
      %8218 = vmatpush1.bf16.msra.mxu0 0
      %8219 = vmatprep.subr.bf16.mxu0 0
      %8220 = vmatpush1.bf16.msra.mxu0 0
      %8221 = vmatprep.subr.bf16.mxu0 0
      %8222 = vmatpush1.bf16.msra.mxu0 0
      %8223 = vmatprep.subr.bf16.mxu0 0
      %8224 = vmatpush1.bf16.msra.mxu0 0
      %8225 = vmatprep.subr.bf16.mxu0 0
      %8226 = vmatpush1.bf16.msra.mxu0 0
      %8227 = vmatprep.subr.bf16.mxu0 0
      %8228 = vmatpush1.bf16.msra.mxu0 0
      %8229 = vmatprep.subr.bf16.mxu0 0
      %8230 = vmatpush1.bf16.msra.mxu0 0
      %8231 = vmatprep.subr.bf16.mxu0 0
      %8232 = vmatpush1.bf16.msra.mxu0 0
      %8233 = vmatprep.subr.bf16.mxu0 0
      %8234 = vmatpush1.bf16.msra.mxu0 0
      %8235 = vmatprep.subr.bf16.mxu0 0
      %8236 = vmatpush1.bf16.msra.mxu0 0
      %8237 = vmatprep.subr.bf16.mxu0 0
      %8238 = vmatpush1.bf16.msra.mxu0 0
      %8239 = vmatprep.subr.bf16.mxu0 0
      %8240 = vmatpush1.bf16.msra.mxu0 0
      %8241 = vmatprep.mubr.bf16.mxu0 0
      %8242 = vmatmul.mubr.bf16.gmra.mrb[0].mxu0 %v8207
      %v8243 = vpop.f32.mrb[0].mxu0
      %v8244 = vadd.f32 0.0, %v8243
      %v8245 = vpop.f32.mrb[0].mxu0
      %v8246 = vpop.f32.mrb[0].mxu0
      %v8247 = vadd.f32 0.0, %v8246
      %v8248 = vpop.f32.mrb[0].mxu0
      %8249 = vdwg.mxu0
      %v8251 = vsel %vm5105, %v6552, 0
      %8253 = vmatprep.subr.bf16.mxu0 0
      %8254 = vmatpush1.bf16.msra.mxu0 %v2070
      %8255 = vmatprep.subr.bf16.mxu0 0
      %8256 = vmatpush1.bf16.msra.mxu0 0
      %8257 = vmatprep.subr.bf16.mxu0 0
      %8258 = vmatpush1.bf16.msra.mxu0 0
      %8259 = vmatprep.subr.bf16.mxu0 0
      %8260 = vmatpush1.bf16.msra.mxu0 0
      %8261 = vmatprep.subr.bf16.mxu0 0
      %8262 = vmatpush1.bf16.msra.mxu0 0
      %8263 = vmatprep.subr.bf16.mxu0 0
      %8264 = vmatpush1.bf16.msra.mxu0 0
      %8265 = vmatprep.subr.bf16.mxu0 0
      %8266 = vmatpush1.bf16.msra.mxu0 0
      %8267 = vmatprep.subr.bf16.mxu0 0
      %8268 = vmatpush1.bf16.msra.mxu0 0
      %8269 = vmatprep.subr.bf16.mxu0 0
      %8270 = vmatpush1.bf16.msra.mxu0 0
      %8271 = vmatprep.subr.bf16.mxu0 0
      %8272 = vmatpush1.bf16.msra.mxu0 0
      %8273 = vmatprep.subr.bf16.mxu0 0
      %8274 = vmatpush1.bf16.msra.mxu0 0
      %8275 = vmatprep.subr.bf16.mxu0 0
      %8276 = vmatpush1.bf16.msra.mxu0 0
      %8277 = vmatprep.subr.bf16.mxu0 0
      %8278 = vmatpush1.bf16.msra.mxu0 0
      %8279 = vmatprep.subr.bf16.mxu0 0
      %8280 = vmatpush1.bf16.msra.mxu0 0
      %8281 = vmatprep.subr.bf16.mxu0 0
      %8282 = vmatpush1.bf16.msra.mxu0 0
      %8283 = vmatprep.subr.bf16.mxu0 0
      %8284 = vmatpush1.bf16.msra.mxu0 0
      %8285 = vmatprep.mubr.bf16.mxu0 0
      %8286 = vmatmul.mubr.bf16.gmra.mrb[0].mxu0 %v8251
      %v8287 = vpop.f32.mrb[0].mxu0
      %v8288 = vadd.f32 0.0, %v8287
      %v8289 = vpop.f32.mrb[0].mxu0
      %v8290 = vpop.f32.mrb[0].mxu0
      %v8291 = vadd.f32 0.0, %v8290
      %v8292 = vpop.f32.mrb[0].mxu0
      %8293 = vdwg.mxu0
      %v8295 = vsel %vm5105, %v6553, 0
      %8297 = vmatprep.subr.bf16.mxu0 0
      %8298 = vmatpush1.bf16.msra.mxu0 %v2071
      %8299 = vmatprep.subr.bf16.mxu0 0
      %8300 = vmatpush1.bf16.msra.mxu0 0
      %8301 = vmatprep.subr.bf16.mxu0 0
      %8302 = vmatpush1.bf16.msra.mxu0 0
      %8303 = vmatprep.subr.bf16.mxu0 0
      %8304 = vmatpush1.bf16.msra.mxu0 0
      %8305 = vmatprep.subr.bf16.mxu0 0
      %8306 = vmatpush1.bf16.msra.mxu0 0
      %8307 = vmatprep.subr.bf16.mxu0 0
      %8308 = vmatpush1.bf16.msra.mxu0 0
      %8309 = vmatprep.subr.bf16.mxu0 0
      %8310 = vmatpush1.bf16.msra.mxu0 0
      %8311 = vmatprep.subr.bf16.mxu0 0
      %8312 = vmatpush1.bf16.msra.mxu0 0
      %8313 = vmatprep.subr.bf16.mxu0 0
      %8314 = vmatpush1.bf16.msra.mxu0 0
      %8315 = vmatprep.subr.bf16.mxu0 0
      %8316 = vmatpush1.bf16.msra.mxu0 0
      %8317 = vmatprep.subr.bf16.mxu0 0
      %8318 = vmatpush1.bf16.msra.mxu0 0
      %8319 = vmatprep.subr.bf16.mxu0 0
      %8320 = vmatpush1.bf16.msra.mxu0 0
      %8321 = vmatprep.subr.bf16.mxu0 0
      %8322 = vmatpush1.bf16.msra.mxu0 0
      %8323 = vmatprep.subr.bf16.mxu0 0
      %8324 = vmatpush1.bf16.msra.mxu0 0
      %8325 = vmatprep.subr.bf16.mxu0 0
      %8326 = vmatpush1.bf16.msra.mxu0 0
      %8327 = vmatprep.subr.bf16.mxu0 0
      %8328 = vmatpush1.bf16.msra.mxu0 0
      %8329 = vmatprep.mubr.bf16.mxu0 0
      %8330 = vmatmul.mubr.bf16.gmra.mrb[0].mxu0 %v8295
      %v8331 = vpop.f32.mrb[0].mxu0
      %v8332 = vadd.f32 0.0, %v8331
      %v8333 = vpop.f32.mrb[0].mxu0
      %v8334 = vpop.f32.mrb[0].mxu0
      %v8335 = vadd.f32 0.0, %v8334
      %v8336 = vpop.f32.mrb[0].mxu0
      %8337 = vdwg.mxu0
      %v8339 = vsel %vm5105, %v6554, 0
      %8341 = vmatprep.subr.bf16.mxu0 0
      %8342 = vmatpush1.bf16.msra.mxu0 %v2072
      %8343 = vmatprep.subr.bf16.mxu0 0
      %8344 = vmatpush1.bf16.msra.mxu0 0
      %8345 = vmatprep.subr.bf16.mxu0 0
      %8346 = vmatpush1.bf16.msra.mxu0 0
      %8347 = vmatprep.subr.bf16.mxu0 0
      %8348 = vmatpush1.bf16.msra.mxu0 0
      %8349 = vmatprep.subr.bf16.mxu0 0
      %8350 = vmatpush1.bf16.msra.mxu0 0
      %8351 = vmatprep.subr.bf16.mxu0 0
      %8352 = vmatpush1.bf16.msra.mxu0 0
      %8353 = vmatprep.subr.bf16.mxu0 0
      %8354 = vmatpush1.bf16.msra.mxu0 0
      %8355 = vmatprep.subr.bf16.mxu0 0
      %8356 = vmatpush1.bf16.msra.mxu0 0
      %8357 = vmatprep.subr.bf16.mxu0 0
      %8358 = vmatpush1.bf16.msra.mxu0 0
      %8359 = vmatprep.subr.bf16.mxu0 0
      %8360 = vmatpush1.bf16.msra.mxu0 0
      %8361 = vmatprep.subr.bf16.mxu0 0
      %8362 = vmatpush1.bf16.msra.mxu0 0
      %8363 = vmatprep.subr.bf16.mxu0 0
      %8364 = vmatpush1.bf16.msra.mxu0 0
      %8365 = vmatprep.subr.bf16.mxu0 0
      %8366 = vmatpush1.bf16.msra.mxu0 0
      %8367 = vmatprep.subr.bf16.mxu0 0
      %8368 = vmatpush1.bf16.msra.mxu0 0
      %8369 = vmatprep.subr.bf16.mxu0 0
      %8370 = vmatpush1.bf16.msra.mxu0 0
      %8371 = vmatprep.subr.bf16.mxu0 0
      %8372 = vmatpush1.bf16.msra.mxu0 0
      %8373 = vmatprep.mubr.bf16.mxu0 0
      %8374 = vmatmul.mubr.bf16.gmra.mrb[0].mxu0 %v8339
      %v8375 = vpop.f32.mrb[0].mxu0
      %v8376 = vadd.f32 0.0, %v8375
      %v8377 = vpop.f32.mrb[0].mxu0
      %v8378 = vpop.f32.mrb[0].mxu0
      %v8379 = vadd.f32 0.0, %v8378
      %v8380 = vpop.f32.mrb[0].mxu0
      %8381 = vdwg.mxu0
      %v8383 = vsel %vm5105, %v6555, 0
      %8385 = vmatprep.subr.bf16.mxu0 0
      %8386 = vmatpush1.bf16.msra.mxu0 %v2073
      %8387 = vmatprep.subr.bf16.mxu0 0
      %8388 = vmatpush1.bf16.msra.mxu0 0
      %8389 = vmatprep.subr.bf16.mxu0 0
      %8390 = vmatpush1.bf16.msra.mxu0 0
      %8391 = vmatprep.subr.bf16.mxu0 0
      %8392 = vmatpush1.bf16.msra.mxu0 0
      %8393 = vmatprep.subr.bf16.mxu0 0
      %8394 = vmatpush1.bf16.msra.mxu0 0
      %8395 = vmatprep.subr.bf16.mxu0 0
      %8396 = vmatpush1.bf16.msra.mxu0 0
      %8397 = vmatprep.subr.bf16.mxu0 0
      %8398 = vmatpush1.bf16.msra.mxu0 0
      %8399 = vmatprep.subr.bf16.mxu0 0
      %8400 = vmatpush1.bf16.msra.mxu0 0
      %8401 = vmatprep.subr.bf16.mxu0 0
      %8402 = vmatpush1.bf16.msra.mxu0 0
      %8403 = vmatprep.subr.bf16.mxu0 0
      %8404 = vmatpush1.bf16.msra.mxu0 0
      %8405 = vmatprep.subr.bf16.mxu0 0
      %8406 = vmatpush1.bf16.msra.mxu0 0
      %8407 = vmatprep.subr.bf16.mxu0 0
      %8408 = vmatpush1.bf16.msra.mxu0 0
      %8409 = vmatprep.subr.bf16.mxu0 0
      %8410 = vmatpush1.bf16.msra.mxu0 0
      %8411 = vmatprep.subr.bf16.mxu0 0
      %8412 = vmatpush1.bf16.msra.mxu0 0
      %8413 = vmatprep.subr.bf16.mxu0 0
      %8414 = vmatpush1.bf16.msra.mxu0 0
      %8415 = vmatprep.subr.bf16.mxu0 0
      %8416 = vmatpush1.bf16.msra.mxu0 0
      %8417 = vmatprep.mubr.bf16.mxu0 0
      %8418 = vmatmul.mubr.bf16.gmra.mrb[0].mxu0 %v8383
      %v8419 = vpop.f32.mrb[0].mxu0
      %v8420 = vadd.f32 0.0, %v8419
      %v8421 = vpop.f32.mrb[0].mxu0
      %v8422 = vpop.f32.mrb[0].mxu0
      %v8423 = vadd.f32 0.0, %v8422
      %v8424 = vpop.f32.mrb[0].mxu0
      %8425 = vdwg.mxu0
      %v8427 = vsel %vm5105, %v6556, 0
      %8429 = vmatprep.subr.bf16.mxu0 0
      %8430 = vmatpush1.bf16.msra.mxu0 %v2074
      %8431 = vmatprep.subr.bf16.mxu0 0
      %8432 = vmatpush1.bf16.msra.mxu0 0
      %8433 = vmatprep.subr.bf16.mxu0 0
      %8434 = vmatpush1.bf16.msra.mxu0 0
      %8435 = vmatprep.subr.bf16.mxu0 0
      %8436 = vmatpush1.bf16.msra.mxu0 0
      %8437 = vmatprep.subr.bf16.mxu0 0
      %8438 = vmatpush1.bf16.msra.mxu0 0
      %8439 = vmatprep.subr.bf16.mxu0 0
      %8440 = vmatpush1.bf16.msra.mxu0 0
      %8441 = vmatprep.subr.bf16.mxu0 0
      %8442 = vmatpush1.bf16.msra.mxu0 0
      %8443 = vmatprep.subr.bf16.mxu0 0
      %8444 = vmatpush1.bf16.msra.mxu0 0
      %8445 = vmatprep.subr.bf16.mxu0 0
      %8446 = vmatpush1.bf16.msra.mxu0 0
      %8447 = vmatprep.subr.bf16.mxu0 0
      %8448 = vmatpush1.bf16.msra.mxu0 0
      %8449 = vmatprep.subr.bf16.mxu0 0
      %8450 = vmatpush1.bf16.msra.mxu0 0
      %8451 = vmatprep.subr.bf16.mxu0 0
      %8452 = vmatpush1.bf16.msra.mxu0 0
      %8453 = vmatprep.subr.bf16.mxu0 0
      %8454 = vmatpush1.bf16.msra.mxu0 0
      %8455 = vmatprep.subr.bf16.mxu0 0
      %8456 = vmatpush1.bf16.msra.mxu0 0
      %8457 = vmatprep.subr.bf16.mxu0 0
      %8458 = vmatpush1.bf16.msra.mxu0 0
      %8459 = vmatprep.subr.bf16.mxu0 0
      %8460 = vmatpush1.bf16.msra.mxu0 0
      %8461 = vmatprep.mubr.bf16.mxu0 0
      %8462 = vmatmul.mubr.bf16.gmra.mrb[0].mxu0 %v8427
      %v8463 = vpop.f32.mrb[0].mxu0
      %v8464 = vadd.f32 0.0, %v8463
      %v8465 = vpop.f32.mrb[0].mxu0
      %v8466 = vpop.f32.mrb[0].mxu0
      %v8467 = vadd.f32 0.0, %v8466
      %v8468 = vpop.f32.mrb[0].mxu0
      %8469 = vdwg.mxu0
      %v8471 = vsel %vm5105, %v6557, 0
      %8473 = vmatprep.subr.bf16.mxu0 0
      %8474 = vmatpush1.bf16.msra.mxu0 %v2075
      %8475 = vmatprep.subr.bf16.mxu0 0
      %8476 = vmatpush1.bf16.msra.mxu0 0
      %8477 = vmatprep.subr.bf16.mxu0 0
      %8478 = vmatpush1.bf16.msra.mxu0 0
      %8479 = vmatprep.subr.bf16.mxu0 0
      %8480 = vmatpush1.bf16.msra.mxu0 0
      %8481 = vmatprep.subr.bf16.mxu0 0
      %8482 = vmatpush1.bf16.msra.mxu0 0
      %8483 = vmatprep.subr.bf16.mxu0 0
      %8484 = vmatpush1.bf16.msra.mxu0 0
      %8485 = vmatprep.subr.bf16.mxu0 0
      %8486 = vmatpush1.bf16.msra.mxu0 0
      %8487 = vmatprep.subr.bf16.mxu0 0
      %8488 = vmatpush1.bf16.msra.mxu0 0
      %8489 = vmatprep.subr.bf16.mxu0 0
      %8490 = vmatpush1.bf16.msra.mxu0 0
      %8491 = vmatprep.subr.bf16.mxu0 0
      %8492 = vmatpush1.bf16.msra.mxu0 0
      %8493 = vmatprep.subr.bf16.mxu0 0
      %8494 = vmatpush1.bf16.msra.mxu0 0
      %8495 = vmatprep.subr.bf16.mxu0 0
      %8496 = vmatpush1.bf16.msra.mxu0 0
      %8497 = vmatprep.subr.bf16.mxu0 0
      %8498 = vmatpush1.bf16.msra.mxu0 0
      %8499 = vmatprep.subr.bf16.mxu0 0
      %8500 = vmatpush1.bf16.msra.mxu0 0
      %8501 = vmatprep.subr.bf16.mxu0 0
      %8502 = vmatpush1.bf16.msra.mxu0 0
      %8503 = vmatprep.subr.bf16.mxu0 0
      %8504 = vmatpush1.bf16.msra.mxu0 0
      %8505 = vmatprep.mubr.bf16.mxu0 0
      %8506 = vmatmul.mubr.bf16.gmra.mrb[0].mxu0 %v8471
      %v8507 = vpop.f32.mrb[0].mxu0
      %v8508 = vadd.f32 0.0, %v8507
      %v8509 = vpop.f32.mrb[0].mxu0
      %v8510 = vpop.f32.mrb[0].mxu0
      %v8511 = vadd.f32 0.0, %v8510
      %v8512 = vpop.f32.mrb[0].mxu0
      %8513 = vdwg.mxu0
      %v8515 = vsel %vm5105, %v6558, 0
      %8517 = vmatprep.subr.bf16.mxu0 0
      %8518 = vmatpush1.bf16.msra.mxu0 %v2076
      %8519 = vmatprep.subr.bf16.mxu0 0
      %8520 = vmatpush1.bf16.msra.mxu0 0
      %8521 = vmatprep.subr.bf16.mxu0 0
      %8522 = vmatpush1.bf16.msra.mxu0 0
      %8523 = vmatprep.subr.bf16.mxu0 0
      %8524 = vmatpush1.bf16.msra.mxu0 0
      %8525 = vmatprep.subr.bf16.mxu0 0
      %8526 = vmatpush1.bf16.msra.mxu0 0
      %8527 = vmatprep.subr.bf16.mxu0 0
      %8528 = vmatpush1.bf16.msra.mxu0 0
      %8529 = vmatprep.subr.bf16.mxu0 0
      %8530 = vmatpush1.bf16.msra.mxu0 0
      %8531 = vmatprep.subr.bf16.mxu0 0
      %8532 = vmatpush1.bf16.msra.mxu0 0
      %8533 = vmatprep.subr.bf16.mxu0 0
      %8534 = vmatpush1.bf16.msra.mxu0 0
      %8535 = vmatprep.subr.bf16.mxu0 0
      %8536 = vmatpush1.bf16.msra.mxu0 0
      %8537 = vmatprep.subr.bf16.mxu0 0
      %8538 = vmatpush1.bf16.msra.mxu0 0
      %8539 = vmatprep.subr.bf16.mxu0 0
      %8540 = vmatpush1.bf16.msra.mxu0 0
      %8541 = vmatprep.subr.bf16.mxu0 0
      %8542 = vmatpush1.bf16.msra.mxu0 0
      %8543 = vmatprep.subr.bf16.mxu0 0
      %8544 = vmatpush1.bf16.msra.mxu0 0
      %8545 = vmatprep.subr.bf16.mxu0 0
      %8546 = vmatpush1.bf16.msra.mxu0 0
      %8547 = vmatprep.subr.bf16.mxu0 0
      %8548 = vmatpush1.bf16.msra.mxu0 0
      %8549 = vmatprep.mubr.bf16.mxu0 0
      %8550 = vmatmul.mubr.bf16.gmra.mrb[0].mxu0 %v8515
      %v8551 = vpop.f32.mrb[0].mxu0
      %v8552 = vadd.f32 0.0, %v8551
      %v8553 = vpop.f32.mrb[0].mxu0
      %v8554 = vpop.f32.mrb[0].mxu0
      %v8555 = vadd.f32 0.0, %v8554
      %v8556 = vpop.f32.mrb[0].mxu0
      %8557 = vdwg.mxu0
      %v8559 = vsel %vm5105, %v6559, 0
      %8561 = vmatprep.subr.bf16.mxu0 0
      %8562 = vmatpush1.bf16.msra.mxu0 %v2077
      %8563 = vmatprep.subr.bf16.mxu0 0
      %8564 = vmatpush1.bf16.msra.mxu0 0
      %8565 = vmatprep.subr.bf16.mxu0 0
      %8566 = vmatpush1.bf16.msra.mxu0 0
      %8567 = vmatprep.subr.bf16.mxu0 0
      %8568 = vmatpush1.bf16.msra.mxu0 0
      %8569 = vmatprep.subr.bf16.mxu0 0
      %8570 = vmatpush1.bf16.msra.mxu0 0
      %8571 = vmatprep.subr.bf16.mxu0 0
      %8572 = vmatpush1.bf16.msra.mxu0 0
      %8573 = vmatprep.subr.bf16.mxu0 0
      %8574 = vmatpush1.bf16.msra.mxu0 0
      %8575 = vmatprep.subr.bf16.mxu0 0
      %8576 = vmatpush1.bf16.msra.mxu0 0
      %8577 = vmatprep.subr.bf16.mxu0 0
      %8578 = vmatpush1.bf16.msra.mxu0 0
      %8579 = vmatprep.subr.bf16.mxu0 0
      %8580 = vmatpush1.bf16.msra.mxu0 0
      %8581 = vmatprep.subr.bf16.mxu0 0
      %8582 = vmatpush1.bf16.msra.mxu0 0
      %8583 = vmatprep.subr.bf16.mxu0 0
      %8584 = vmatpush1.bf16.msra.mxu0 0
      %8585 = vmatprep.subr.bf16.mxu0 0
      %8586 = vmatpush1.bf16.msra.mxu0 0
      %8587 = vmatprep.subr.bf16.mxu0 0
      %8588 = vmatpush1.bf16.msra.mxu0 0
      %8589 = vmatprep.subr.bf16.mxu0 0
      %8590 = vmatpush1.bf16.msra.mxu0 0
      %8591 = vmatprep.subr.bf16.mxu0 0
      %8592 = vmatpush1.bf16.msra.mxu0 0
      %8593 = vmatprep.mubr.bf16.mxu0 0
      %8594 = vmatmul.mubr.bf16.gmra.mrb[0].mxu0 %v8559
      %v8595 = vpop.f32.mrb[0].mxu0
      %v8596 = vadd.f32 0.0, %v8595
      %v8597 = vpop.f32.mrb[0].mxu0
      %v8598 = vpop.f32.mrb[0].mxu0
      %v8599 = vadd.f32 0.0, %v8598
      %v8600 = vpop.f32.mrb[0].mxu0
      %8601 = vdwg.mxu0
      %v8603 = vsel %vm5105, %v6560, 0
      %8605 = vmatprep.subr.bf16.mxu0 0
      %8606 = vmatpush1.bf16.msra.mxu0 %v2078
      %8607 = vmatprep.subr.bf16.mxu0 0
      %8608 = vmatpush1.bf16.msra.mxu0 0
      %8609 = vmatprep.subr.bf16.mxu0 0
      %8610 = vmatpush1.bf16.msra.mxu0 0
      %8611 = vmatprep.subr.bf16.mxu0 0
      %8612 = vmatpush1.bf16.msra.mxu0 0
      %8613 = vmatprep.subr.bf16.mxu0 0
      %8614 = vmatpush1.bf16.msra.mxu0 0
      %8615 = vmatprep.subr.bf16.mxu0 0
      %8616 = vmatpush1.bf16.msra.mxu0 0
      %8617 = vmatprep.subr.bf16.mxu0 0
      %8618 = vmatpush1.bf16.msra.mxu0 0
      %8619 = vmatprep.subr.bf16.mxu0 0
      %8620 = vmatpush1.bf16.msra.mxu0 0
      %8621 = vmatprep.subr.bf16.mxu0 0
      %8622 = vmatpush1.bf16.msra.mxu0 0
      %8623 = vmatprep.subr.bf16.mxu0 0
      %8624 = vmatpush1.bf16.msra.mxu0 0
      %8625 = vmatprep.subr.bf16.mxu0 0
      %8626 = vmatpush1.bf16.msra.mxu0 0
      %8627 = vmatprep.subr.bf16.mxu0 0
      %8628 = vmatpush1.bf16.msra.mxu0 0
      %8629 = vmatprep.subr.bf16.mxu0 0
      %8630 = vmatpush1.bf16.msra.mxu0 0
      %8631 = vmatprep.subr.bf16.mxu0 0
      %8632 = vmatpush1.bf16.msra.mxu0 0
      %8633 = vmatprep.subr.bf16.mxu0 0
      %8634 = vmatpush1.bf16.msra.mxu0 0
      %8635 = vmatprep.subr.bf16.mxu0 0
      %8636 = vmatpush1.bf16.msra.mxu0 0
      %8637 = vmatprep.mubr.bf16.mxu0 0
      %8638 = vmatmul.mubr.bf16.gmra.mrb[0].mxu0 %v8603
      %v8639 = vpop.f32.mrb[0].mxu0
      %v8640 = vadd.f32 0.0, %v8639
      %v8641 = vpop.f32.mrb[0].mxu0
      %v8642 = vpop.f32.mrb[0].mxu0
      %v8643 = vadd.f32 0.0, %v8642
      %v8644 = vpop.f32.mrb[0].mxu0
      %8645 = vdwg.mxu0
      %v8647 = vsel %vm5105, %v6561, 0
      %8649 = vmatprep.subr.bf16.mxu0 0
      %8650 = vmatpush1.bf16.msra.mxu0 %v2079
      %8651 = vmatprep.subr.bf16.mxu0 0
      %8652 = vmatpush1.bf16.msra.mxu0 0
      %8653 = vmatprep.subr.bf16.mxu0 0
      %8654 = vmatpush1.bf16.msra.mxu0 0
      %8655 = vmatprep.subr.bf16.mxu0 0
      %8656 = vmatpush1.bf16.msra.mxu0 0
      %8657 = vmatprep.subr.bf16.mxu0 0
      %8658 = vmatpush1.bf16.msra.mxu0 0
      %8659 = vmatprep.subr.bf16.mxu0 0
      %8660 = vmatpush1.bf16.msra.mxu0 0
      %8661 = vmatprep.subr.bf16.mxu0 0
      %8662 = vmatpush1.bf16.msra.mxu0 0
      %8663 = vmatprep.subr.bf16.mxu0 0
      %8664 = vmatpush1.bf16.msra.mxu0 0
      %8665 = vmatprep.subr.bf16.mxu0 0
      %8666 = vmatpush1.bf16.msra.mxu0 0
      %8667 = vmatprep.subr.bf16.mxu0 0
      %8668 = vmatpush1.bf16.msra.mxu0 0
      %8669 = vmatprep.subr.bf16.mxu0 0
      %8670 = vmatpush1.bf16.msra.mxu0 0
      %8671 = vmatprep.subr.bf16.mxu0 0
      %8672 = vmatpush1.bf16.msra.mxu0 0
      %8673 = vmatprep.subr.bf16.mxu0 0
      %8674 = vmatpush1.bf16.msra.mxu0 0
      %8675 = vmatprep.subr.bf16.mxu0 0
      %8676 = vmatpush1.bf16.msra.mxu0 0
      %8677 = vmatprep.subr.bf16.mxu0 0
      %8678 = vmatpush1.bf16.msra.mxu0 0
      %8679 = vmatprep.subr.bf16.mxu0 0
      %8680 = vmatpush1.bf16.msra.mxu0 0
      %8681 = vmatprep.mubr.bf16.mxu0 0
      %8682 = vmatmul.mubr.bf16.gmra.mrb[0].mxu0 %v8647
      %v8683 = vpop.f32.mrb[0].mxu0
      %v8684 = vadd.f32 0.0, %v8683
      %v8685 = vpop.f32.mrb[0].mxu0
      %v8686 = vpop.f32.mrb[0].mxu0
      %v8687 = vadd.f32 0.0, %v8686
      %v8688 = vpop.f32.mrb[0].mxu0
      %8689 = vdwg.mxu0
      %v8691 = vsel %vm5105, %v6562, 0
      %8693 = vmatprep.subr.bf16.mxu0 0
      %8694 = vmatpush1.bf16.msra.mxu0 %v2080
      %8695 = vmatprep.subr.bf16.mxu0 0
      %8696 = vmatpush1.bf16.msra.mxu0 0
      %8697 = vmatprep.subr.bf16.mxu0 0
      %8698 = vmatpush1.bf16.msra.mxu0 0
      %8699 = vmatprep.subr.bf16.mxu0 0
      %8700 = vmatpush1.bf16.msra.mxu0 0
      %8701 = vmatprep.subr.bf16.mxu0 0
      %8702 = vmatpush1.bf16.msra.mxu0 0
      %8703 = vmatprep.subr.bf16.mxu0 0
      %8704 = vmatpush1.bf16.msra.mxu0 0
      %8705 = vmatprep.subr.bf16.mxu0 0
      %8706 = vmatpush1.bf16.msra.mxu0 0
      %8707 = vmatprep.subr.bf16.mxu0 0
      %8708 = vmatpush1.bf16.msra.mxu0 0
      %8709 = vmatprep.subr.bf16.mxu0 0
      %8710 = vmatpush1.bf16.msra.mxu0 0
      %8711 = vmatprep.subr.bf16.mxu0 0
      %8712 = vmatpush1.bf16.msra.mxu0 0
      %8713 = vmatprep.subr.bf16.mxu0 0
      %8714 = vmatpush1.bf16.msra.mxu0 0
      %8715 = vmatprep.subr.bf16.mxu0 0
      %8716 = vmatpush1.bf16.msra.mxu0 0
      %8717 = vmatprep.subr.bf16.mxu0 0
      %8718 = vmatpush1.bf16.msra.mxu0 0
      %8719 = vmatprep.subr.bf16.mxu0 0
      %8720 = vmatpush1.bf16.msra.mxu0 0
      %8721 = vmatprep.subr.bf16.mxu0 0
      %8722 = vmatpush1.bf16.msra.mxu0 0
      %8723 = vmatprep.subr.bf16.mxu0 0
      %8724 = vmatpush1.bf16.msra.mxu0 0
      %8725 = vmatprep.mubr.bf16.mxu0 0
      %8726 = vmatmul.mubr.bf16.gmra.mrb[0].mxu0 %v8691
      %v8727 = vpop.f32.mrb[0].mxu0
      %v8728 = vadd.f32 0.0, %v8727
      %v8729 = vpop.f32.mrb[0].mxu0
      %v8730 = vpop.f32.mrb[0].mxu0
      %v8731 = vadd.f32 0.0, %v8730
      %v8732 = vpop.f32.mrb[0].mxu0
      %8733 = vdwg.mxu0
      %v8735 = vsel %vm5105, %v6563, 0
      %8737 = vmatprep.subr.bf16.mxu0 0
      %8738 = vmatpush1.bf16.msra.mxu0 %v2081
      %8739 = vmatprep.subr.bf16.mxu0 0
      %8740 = vmatpush1.bf16.msra.mxu0 0
      %8741 = vmatprep.subr.bf16.mxu0 0
      %8742 = vmatpush1.bf16.msra.mxu0 0
      %8743 = vmatprep.subr.bf16.mxu0 0
      %8744 = vmatpush1.bf16.msra.mxu0 0
      %8745 = vmatprep.subr.bf16.mxu0 0
      %8746 = vmatpush1.bf16.msra.mxu0 0
      %8747 = vmatprep.subr.bf16.mxu0 0
      %8748 = vmatpush1.bf16.msra.mxu0 0
      %8749 = vmatprep.subr.bf16.mxu0 0
      %8750 = vmatpush1.bf16.msra.mxu0 0
      %8751 = vmatprep.subr.bf16.mxu0 0
      %8752 = vmatpush1.bf16.msra.mxu0 0
      %8753 = vmatprep.subr.bf16.mxu0 0
      %8754 = vmatpush1.bf16.msra.mxu0 0
      %8755 = vmatprep.subr.bf16.mxu0 0
      %8756 = vmatpush1.bf16.msra.mxu0 0
      %8757 = vmatprep.subr.bf16.mxu0 0
      %8758 = vmatpush1.bf16.msra.mxu0 0
      %8759 = vmatprep.subr.bf16.mxu0 0
      %8760 = vmatpush1.bf16.msra.mxu0 0
      %8761 = vmatprep.subr.bf16.mxu0 0
      %8762 = vmatpush1.bf16.msra.mxu0 0
      %8763 = vmatprep.subr.bf16.mxu0 0
      %8764 = vmatpush1.bf16.msra.mxu0 0
      %8765 = vmatprep.subr.bf16.mxu0 0
      %8766 = vmatpush1.bf16.msra.mxu0 0
      %8767 = vmatprep.subr.bf16.mxu0 0
      %8768 = vmatpush1.bf16.msra.mxu0 0
      %8769 = vmatprep.mubr.bf16.mxu0 0
      %8770 = vmatmul.mubr.bf16.gmra.mrb[0].mxu0 %v8735
      %v8771 = vpop.f32.mrb[0].mxu0
      %v8772 = vadd.f32 0.0, %v8771
      %v8773 = vpop.f32.mrb[0].mxu0
      %v8774 = vpop.f32.mrb[0].mxu0
      %v8775 = vadd.f32 0.0, %v8774
      %v8776 = vpop.f32.mrb[0].mxu0
      %8777 = vdwg.mxu0
      %v8779 = vsel %vm5105, %v6564, 0
      %8781 = vmatprep.subr.bf16.mxu0 0
      %8782 = vmatpush1.bf16.msra.mxu0 %v2082
      %8783 = vmatprep.subr.bf16.mxu0 0
      %8784 = vmatpush1.bf16.msra.mxu0 0
      %8785 = vmatprep.subr.bf16.mxu0 0
      %8786 = vmatpush1.bf16.msra.mxu0 0
      %8787 = vmatprep.subr.bf16.mxu0 0
      %8788 = vmatpush1.bf16.msra.mxu0 0
      %8789 = vmatprep.subr.bf16.mxu0 0
      %8790 = vmatpush1.bf16.msra.mxu0 0
      %8791 = vmatprep.subr.bf16.mxu0 0
      %8792 = vmatpush1.bf16.msra.mxu0 0
      %8793 = vmatprep.subr.bf16.mxu0 0
      %8794 = vmatpush1.bf16.msra.mxu0 0
      %8795 = vmatprep.subr.bf16.mxu0 0
      %8796 = vmatpush1.bf16.msra.mxu0 0
      %8797 = vmatprep.subr.bf16.mxu0 0
      %8798 = vmatpush1.bf16.msra.mxu0 0
      %8799 = vmatprep.subr.bf16.mxu0 0
      %8800 = vmatpush1.bf16.msra.mxu0 0
      %8801 = vmatprep.subr.bf16.mxu0 0
      %8802 = vmatpush1.bf16.msra.mxu0 0
      %8803 = vmatprep.subr.bf16.mxu0 0
      %8804 = vmatpush1.bf16.msra.mxu0 0
      %8805 = vmatprep.subr.bf16.mxu0 0
      %8806 = vmatpush1.bf16.msra.mxu0 0
      %8807 = vmatprep.subr.bf16.mxu0 0
      %8808 = vmatpush1.bf16.msra.mxu0 0
      %8809 = vmatprep.subr.bf16.mxu0 0
      %8810 = vmatpush1.bf16.msra.mxu0 0
      %8811 = vmatprep.subr.bf16.mxu0 0
      %8812 = vmatpush1.bf16.msra.mxu0 0
      %8813 = vmatprep.mubr.bf16.mxu0 0
      %8814 = vmatmul.mubr.bf16.gmra.mrb[0].mxu0 %v8779
      %v8815 = vpop.f32.mrb[0].mxu0
      %v8816 = vadd.f32 0.0, %v8815
      %v8817 = vpop.f32.mrb[0].mxu0
      %v8818 = vpop.f32.mrb[0].mxu0
      %v8819 = vadd.f32 0.0, %v8818
      %v8820 = vpop.f32.mrb[0].mxu0
      %8821 = vdwg.mxu0
      %v8823 = vsel %vm5105, %v6565, 0
      %8825 = vmatprep.subr.bf16.mxu0 0
      %8826 = vmatpush1.bf16.msra.mxu0 %v2083
      %8827 = vmatprep.subr.bf16.mxu0 0
      %8828 = vmatpush1.bf16.msra.mxu0 0
      %8829 = vmatprep.subr.bf16.mxu0 0
      %8830 = vmatpush1.bf16.msra.mxu0 0
      %8831 = vmatprep.subr.bf16.mxu0 0
      %8832 = vmatpush1.bf16.msra.mxu0 0
      %8833 = vmatprep.subr.bf16.mxu0 0
      %8834 = vmatpush1.bf16.msra.mxu0 0
      %8835 = vmatprep.subr.bf16.mxu0 0
      %8836 = vmatpush1.bf16.msra.mxu0 0
      %8837 = vmatprep.subr.bf16.mxu0 0
      %8838 = vmatpush1.bf16.msra.mxu0 0
      %8839 = vmatprep.subr.bf16.mxu0 0
      %8840 = vmatpush1.bf16.msra.mxu0 0
      %8841 = vmatprep.subr.bf16.mxu0 0
      %8842 = vmatpush1.bf16.msra.mxu0 0
      %8843 = vmatprep.subr.bf16.mxu0 0
      %8844 = vmatpush1.bf16.msra.mxu0 0
      %8845 = vmatprep.subr.bf16.mxu0 0
      %8846 = vmatpush1.bf16.msra.mxu0 0
      %8847 = vmatprep.subr.bf16.mxu0 0
      %8848 = vmatpush1.bf16.msra.mxu0 0
      %8849 = vmatprep.subr.bf16.mxu0 0
      %8850 = vmatpush1.bf16.msra.mxu0 0
      %8851 = vmatprep.subr.bf16.mxu0 0
      %8852 = vmatpush1.bf16.msra.mxu0 0
      %8853 = vmatprep.subr.bf16.mxu0 0
      %8854 = vmatpush1.bf16.msra.mxu0 0
      %8855 = vmatprep.subr.bf16.mxu0 0
      %8856 = vmatpush1.bf16.msra.mxu0 0
      %8857 = vmatprep.mubr.bf16.mxu0 0
      %8858 = vmatmul.mubr.bf16.gmra.mrb[0].mxu0 %v8823
      %v8859 = vpop.f32.mrb[0].mxu0
      %v8860 = vadd.f32 0.0, %v8859
      %v8861 = vpop.f32.mrb[0].mxu0
      %v8862 = vpop.f32.mrb[0].mxu0
      %v8863 = vadd.f32 0.0, %v8862
      %v8864 = vpop.f32.mrb[0].mxu0
      %8865 = vdwg.mxu0
      %v8867 = vsel %vm5105, %v6566, 0
      %8869 = vmatprep.subr.bf16.mxu0 0
      %8870 = vmatpush1.bf16.msra.mxu0 %v2084
      %8871 = vmatprep.subr.bf16.mxu0 0
      %8872 = vmatpush1.bf16.msra.mxu0 0
      %8873 = vmatprep.subr.bf16.mxu0 0
      %8874 = vmatpush1.bf16.msra.mxu0 0
      %8875 = vmatprep.subr.bf16.mxu0 0
      %8876 = vmatpush1.bf16.msra.mxu0 0
      %8877 = vmatprep.subr.bf16.mxu0 0
      %8878 = vmatpush1.bf16.msra.mxu0 0
      %8879 = vmatprep.subr.bf16.mxu0 0
      %8880 = vmatpush1.bf16.msra.mxu0 0
      %8881 = vmatprep.subr.bf16.mxu0 0
      %8882 = vmatpush1.bf16.msra.mxu0 0
      %8883 = vmatprep.subr.bf16.mxu0 0
      %8884 = vmatpush1.bf16.msra.mxu0 0
      %8885 = vmatprep.subr.bf16.mxu0 0
      %8886 = vmatpush1.bf16.msra.mxu0 0
      %8887 = vmatprep.subr.bf16.mxu0 0
      %8888 = vmatpush1.bf16.msra.mxu0 0
      %8889 = vmatprep.subr.bf16.mxu0 0
      %8890 = vmatpush1.bf16.msra.mxu0 0
      %8891 = vmatprep.subr.bf16.mxu0 0
      %8892 = vmatpush1.bf16.msra.mxu0 0
      %8893 = vmatprep.subr.bf16.mxu0 0
      %8894 = vmatpush1.bf16.msra.mxu0 0
      %8895 = vmatprep.subr.bf16.mxu0 0
      %8896 = vmatpush1.bf16.msra.mxu0 0
      %8897 = vmatprep.subr.bf16.mxu0 0
      %8898 = vmatpush1.bf16.msra.mxu0 0
      %8899 = vmatprep.subr.bf16.mxu0 0
      %8900 = vmatpush1.bf16.msra.mxu0 0
      %8901 = vmatprep.mubr.bf16.mxu0 0
      %8902 = vmatmul.mubr.bf16.gmra.mrb[0].mxu0 %v8867
      %v8903 = vpop.f32.mrb[0].mxu0
      %v8904 = vadd.f32 0.0, %v8903
      %v8905 = vpop.f32.mrb[0].mxu0
      %v8906 = vpop.f32.mrb[0].mxu0
      %v8907 = vadd.f32 0.0, %v8906
      %v8908 = vpop.f32.mrb[0].mxu0
      %8909 = vdwg.mxu0
      %v8911 = vsel %vm5105, %v6567, 0
      %8913 = vmatprep.subr.bf16.mxu0 0
      %8914 = vmatpush1.bf16.msra.mxu0 %v2085
      %8915 = vmatprep.subr.bf16.mxu0 0
      %8916 = vmatpush1.bf16.msra.mxu0 0
      %8917 = vmatprep.subr.bf16.mxu0 0
      %8918 = vmatpush1.bf16.msra.mxu0 0
      %8919 = vmatprep.subr.bf16.mxu0 0
      %8920 = vmatpush1.bf16.msra.mxu0 0
      %8921 = vmatprep.subr.bf16.mxu0 0
      %8922 = vmatpush1.bf16.msra.mxu0 0
      %8923 = vmatprep.subr.bf16.mxu0 0
      %8924 = vmatpush1.bf16.msra.mxu0 0
      %8925 = vmatprep.subr.bf16.mxu0 0
      %8926 = vmatpush1.bf16.msra.mxu0 0
      %8927 = vmatprep.subr.bf16.mxu0 0
      %8928 = vmatpush1.bf16.msra.mxu0 0
      %8929 = vmatprep.subr.bf16.mxu0 0
      %8930 = vmatpush1.bf16.msra.mxu0 0
      %8931 = vmatprep.subr.bf16.mxu0 0
      %8932 = vmatpush1.bf16.msra.mxu0 0
      %8933 = vmatprep.subr.bf16.mxu0 0
      %8934 = vmatpush1.bf16.msra.mxu0 0
      %8935 = vmatprep.subr.bf16.mxu0 0
      %8936 = vmatpush1.bf16.msra.mxu0 0
      %8937 = vmatprep.subr.bf16.mxu0 0
      %8938 = vmatpush1.bf16.msra.mxu0 0
      %8939 = vmatprep.subr.bf16.mxu0 0
      %8940 = vmatpush1.bf16.msra.mxu0 0
      %8941 = vmatprep.subr.bf16.mxu0 0
      %8942 = vmatpush1.bf16.msra.mxu0 0
      %8943 = vmatprep.subr.bf16.mxu0 0
      %8944 = vmatpush1.bf16.msra.mxu0 0
      %8945 = vmatprep.mubr.bf16.mxu0 0
      %8946 = vmatmul.mubr.bf16.gmra.mrb[0].mxu0 %v8911
      %v8947 = vpop.f32.mrb[0].mxu0
      %v8948 = vadd.f32 0.0, %v8947
      %v8949 = vpop.f32.mrb[0].mxu0
      %v8950 = vpop.f32.mrb[0].mxu0
      %v8951 = vadd.f32 0.0, %v8950
      %v8952 = vpop.f32.mrb[0].mxu0
      %8953 = vdwg.mxu0
      %v8955 = vsel %vm5105, %v6568, 0
      %8957 = vmatprep.subr.bf16.mxu0 0
      %8958 = vmatpush1.bf16.msra.mxu0 %v2086
      %8959 = vmatprep.subr.bf16.mxu0 0
      %8960 = vmatpush1.bf16.msra.mxu0 0
      %8961 = vmatprep.subr.bf16.mxu0 0
      %8962 = vmatpush1.bf16.msra.mxu0 0
      %8963 = vmatprep.subr.bf16.mxu0 0
      %8964 = vmatpush1.bf16.msra.mxu0 0
      %8965 = vmatprep.subr.bf16.mxu0 0
      %8966 = vmatpush1.bf16.msra.mxu0 0
      %8967 = vmatprep.subr.bf16.mxu0 0
      %8968 = vmatpush1.bf16.msra.mxu0 0
      %8969 = vmatprep.subr.bf16.mxu0 0
      %8970 = vmatpush1.bf16.msra.mxu0 0
      %8971 = vmatprep.subr.bf16.mxu0 0
      %8972 = vmatpush1.bf16.msra.mxu0 0
      %8973 = vmatprep.subr.bf16.mxu0 0
      %8974 = vmatpush1.bf16.msra.mxu0 0
      %8975 = vmatprep.subr.bf16.mxu0 0
      %8976 = vmatpush1.bf16.msra.mxu0 0
      %8977 = vmatprep.subr.bf16.mxu0 0
      %8978 = vmatpush1.bf16.msra.mxu0 0
      %8979 = vmatprep.subr.bf16.mxu0 0
      %8980 = vmatpush1.bf16.msra.mxu0 0
      %8981 = vmatprep.subr.bf16.mxu0 0
      %8982 = vmatpush1.bf16.msra.mxu0 0
      %8983 = vmatprep.subr.bf16.mxu0 0
      %8984 = vmatpush1.bf16.msra.mxu0 0
      %8985 = vmatprep.subr.bf16.mxu0 0
      %8986 = vmatpush1.bf16.msra.mxu0 0
      %8987 = vmatprep.subr.bf16.mxu0 0
      %8988 = vmatpush1.bf16.msra.mxu0 0
      %8989 = vmatprep.mubr.bf16.mxu0 0
      %8990 = vmatmul.mubr.bf16.gmra.mrb[0].mxu0 %v8955
      %v8991 = vpop.f32.mrb[0].mxu0
      %v8992 = vadd.f32 0.0, %v8991
      %v8993 = vpop.f32.mrb[0].mxu0
      %v8994 = vpop.f32.mrb[0].mxu0
      %v8995 = vadd.f32 0.0, %v8994
      %v8996 = vpop.f32.mrb[0].mxu0
      %8997 = vdwg.mxu0
      %v8999 = vsel %vm5105, %v6569, 0
      %9001 = vmatprep.subr.bf16.mxu0 0
      %9002 = vmatpush1.bf16.msra.mxu0 %v2087
      %9003 = vmatprep.subr.bf16.mxu0 0
      %9004 = vmatpush1.bf16.msra.mxu0 0
      %9005 = vmatprep.subr.bf16.mxu0 0
      %9006 = vmatpush1.bf16.msra.mxu0 0
      %9007 = vmatprep.subr.bf16.mxu0 0
      %9008 = vmatpush1.bf16.msra.mxu0 0
      %9009 = vmatprep.subr.bf16.mxu0 0
      %9010 = vmatpush1.bf16.msra.mxu0 0
      %9011 = vmatprep.subr.bf16.mxu0 0
      %9012 = vmatpush1.bf16.msra.mxu0 0
      %9013 = vmatprep.subr.bf16.mxu0 0
      %9014 = vmatpush1.bf16.msra.mxu0 0
      %9015 = vmatprep.subr.bf16.mxu0 0
      %9016 = vmatpush1.bf16.msra.mxu0 0
      %9017 = vmatprep.subr.bf16.mxu0 0
      %9018 = vmatpush1.bf16.msra.mxu0 0
      %9019 = vmatprep.subr.bf16.mxu0 0
      %9020 = vmatpush1.bf16.msra.mxu0 0
      %9021 = vmatprep.subr.bf16.mxu0 0
      %9022 = vmatpush1.bf16.msra.mxu0 0
      %9023 = vmatprep.subr.bf16.mxu0 0
      %9024 = vmatpush1.bf16.msra.mxu0 0
      %9025 = vmatprep.subr.bf16.mxu0 0
      %9026 = vmatpush1.bf16.msra.mxu0 0
      %9027 = vmatprep.subr.bf16.mxu0 0
      %9028 = vmatpush1.bf16.msra.mxu0 0
      %9029 = vmatprep.subr.bf16.mxu0 0
      %9030 = vmatpush1.bf16.msra.mxu0 0
      %9031 = vmatprep.subr.bf16.mxu0 0
      %9032 = vmatpush1.bf16.msra.mxu0 0
      %9033 = vmatprep.mubr.bf16.mxu0 0
      %9034 = vmatmul.mubr.bf16.gmra.mrb[0].mxu0 %v8999
      %v9035 = vpop.f32.mrb[0].mxu0
      %v9036 = vadd.f32 0.0, %v9035
      %v9037 = vpop.f32.mrb[0].mxu0
      %v9038 = vpop.f32.mrb[0].mxu0
      %v9039 = vadd.f32 0.0, %v9038
      %v9040 = vpop.f32.mrb[0].mxu0
      %9041 = vdwg.mxu0
      %v9043 = vsel %vm5105, %v6570, 0
      %9045 = vmatprep.subr.bf16.mxu0 0
      %9046 = vmatpush1.bf16.msra.mxu0 %v2088
      %9047 = vmatprep.subr.bf16.mxu0 0
      %9048 = vmatpush1.bf16.msra.mxu0 0
      %9049 = vmatprep.subr.bf16.mxu0 0
      %9050 = vmatpush1.bf16.msra.mxu0 0
      %9051 = vmatprep.subr.bf16.mxu0 0
      %9052 = vmatpush1.bf16.msra.mxu0 0
      %9053 = vmatprep.subr.bf16.mxu0 0
      %9054 = vmatpush1.bf16.msra.mxu0 0
      %9055 = vmatprep.subr.bf16.mxu0 0
      %9056 = vmatpush1.bf16.msra.mxu0 0
      %9057 = vmatprep.subr.bf16.mxu0 0
      %9058 = vmatpush1.bf16.msra.mxu0 0
      %9059 = vmatprep.subr.bf16.mxu0 0
      %9060 = vmatpush1.bf16.msra.mxu0 0
      %9061 = vmatprep.subr.bf16.mxu0 0
      %9062 = vmatpush1.bf16.msra.mxu0 0
      %9063 = vmatprep.subr.bf16.mxu0 0
      %9064 = vmatpush1.bf16.msra.mxu0 0
      %9065 = vmatprep.subr.bf16.mxu0 0
      %9066 = vmatpush1.bf16.msra.mxu0 0
      %9067 = vmatprep.subr.bf16.mxu0 0
      %9068 = vmatpush1.bf16.msra.mxu0 0
      %9069 = vmatprep.subr.bf16.mxu0 0
      %9070 = vmatpush1.bf16.msra.mxu0 0
      %9071 = vmatprep.subr.bf16.mxu0 0
      %9072 = vmatpush1.bf16.msra.mxu0 0
      %9073 = vmatprep.subr.bf16.mxu0 0
      %9074 = vmatpush1.bf16.msra.mxu0 0
      %9075 = vmatprep.subr.bf16.mxu0 0
      %9076 = vmatpush1.bf16.msra.mxu0 0
      %9077 = vmatprep.mubr.bf16.mxu0 0
      %9078 = vmatmul.mubr.bf16.gmra.mrb[0].mxu0 %v9043
      %v9079 = vpop.f32.mrb[0].mxu0
      %v9080 = vadd.f32 0.0, %v9079
      %v9081 = vpop.f32.mrb[0].mxu0
      %v9082 = vpop.f32.mrb[0].mxu0
      %v9083 = vadd.f32 0.0, %v9082
      %v9084 = vpop.f32.mrb[0].mxu0
      %9085 = vdwg.mxu0
      %v9087 = vsel %vm5105, %v6571, 0
      %9089 = vmatprep.subr.bf16.mxu0 0
      %9090 = vmatpush1.bf16.msra.mxu0 %v2089
      %9091 = vmatprep.subr.bf16.mxu0 0
      %9092 = vmatpush1.bf16.msra.mxu0 0
      %9093 = vmatprep.subr.bf16.mxu0 0
      %9094 = vmatpush1.bf16.msra.mxu0 0
      %9095 = vmatprep.subr.bf16.mxu0 0
      %9096 = vmatpush1.bf16.msra.mxu0 0
      %9097 = vmatprep.subr.bf16.mxu0 0
      %9098 = vmatpush1.bf16.msra.mxu0 0
      %9099 = vmatprep.subr.bf16.mxu0 0
      %9100 = vmatpush1.bf16.msra.mxu0 0
      %9101 = vmatprep.subr.bf16.mxu0 0
      %9102 = vmatpush1.bf16.msra.mxu0 0
      %9103 = vmatprep.subr.bf16.mxu0 0
      %9104 = vmatpush1.bf16.msra.mxu0 0
      %9105 = vmatprep.subr.bf16.mxu0 0
      %9106 = vmatpush1.bf16.msra.mxu0 0
      %9107 = vmatprep.subr.bf16.mxu0 0
      %9108 = vmatpush1.bf16.msra.mxu0 0
      %9109 = vmatprep.subr.bf16.mxu0 0
      %9110 = vmatpush1.bf16.msra.mxu0 0
      %9111 = vmatprep.subr.bf16.mxu0 0
      %9112 = vmatpush1.bf16.msra.mxu0 0
      %9113 = vmatprep.subr.bf16.mxu0 0
      %9114 = vmatpush1.bf16.msra.mxu0 0
      %9115 = vmatprep.subr.bf16.mxu0 0
      %9116 = vmatpush1.bf16.msra.mxu0 0
      %9117 = vmatprep.subr.bf16.mxu0 0
      %9118 = vmatpush1.bf16.msra.mxu0 0
      %9119 = vmatprep.subr.bf16.mxu0 0
      %9120 = vmatpush1.bf16.msra.mxu0 0
      %9121 = vmatprep.mubr.bf16.mxu0 0
      %9122 = vmatmul.mubr.bf16.gmra.mrb[0].mxu0 %v9087
      %v9123 = vpop.f32.mrb[0].mxu0
      %v9124 = vadd.f32 0.0, %v9123
      %v9125 = vpop.f32.mrb[0].mxu0
      %v9126 = vpop.f32.mrb[0].mxu0
      %v9127 = vadd.f32 0.0, %v9126
      %v9128 = vpop.f32.mrb[0].mxu0
      %9129 = vdwg.mxu0
      %v9131 = vsel %vm5105, %v6572, 0
      %9133 = vmatprep.subr.bf16.mxu0 0
      %9134 = vmatpush1.bf16.msra.mxu0 %v2090
      %9135 = vmatprep.subr.bf16.mxu0 0
      %9136 = vmatpush1.bf16.msra.mxu0 0
      %9137 = vmatprep.subr.bf16.mxu0 0
      %9138 = vmatpush1.bf16.msra.mxu0 0
      %9139 = vmatprep.subr.bf16.mxu0 0
      %9140 = vmatpush1.bf16.msra.mxu0 0
      %9141 = vmatprep.subr.bf16.mxu0 0
      %9142 = vmatpush1.bf16.msra.mxu0 0
      %9143 = vmatprep.subr.bf16.mxu0 0
      %9144 = vmatpush1.bf16.msra.mxu0 0
      %9145 = vmatprep.subr.bf16.mxu0 0
      %9146 = vmatpush1.bf16.msra.mxu0 0
      %9147 = vmatprep.subr.bf16.mxu0 0
      %9148 = vmatpush1.bf16.msra.mxu0 0
      %9149 = vmatprep.subr.bf16.mxu0 0
      %9150 = vmatpush1.bf16.msra.mxu0 0
      %9151 = vmatprep.subr.bf16.mxu0 0
      %9152 = vmatpush1.bf16.msra.mxu0 0
      %9153 = vmatprep.subr.bf16.mxu0 0
      %9154 = vmatpush1.bf16.msra.mxu0 0
      %9155 = vmatprep.subr.bf16.mxu0 0
      %9156 = vmatpush1.bf16.msra.mxu0 0
      %9157 = vmatprep.subr.bf16.mxu0 0
      %9158 = vmatpush1.bf16.msra.mxu0 0
      %9159 = vmatprep.subr.bf16.mxu0 0
      %9160 = vmatpush1.bf16.msra.mxu0 0
      %9161 = vmatprep.subr.bf16.mxu0 0
      %9162 = vmatpush1.bf16.msra.mxu0 0
      %9163 = vmatprep.subr.bf16.mxu0 0
      %9164 = vmatpush1.bf16.msra.mxu0 0
      %9165 = vmatprep.mubr.bf16.mxu0 0
      %9166 = vmatmul.mubr.bf16.gmra.mrb[0].mxu0 %v9131
      %v9167 = vpop.f32.mrb[0].mxu0
      %v9168 = vadd.f32 0.0, %v9167
      %v9169 = vpop.f32.mrb[0].mxu0
      %v9170 = vpop.f32.mrb[0].mxu0
      %v9171 = vadd.f32 0.0, %v9170
      %v9172 = vpop.f32.mrb[0].mxu0
      %9173 = vdwg.mxu0
      %v9175 = vsel %vm5105, %v6573, 0
      %9177 = vmatprep.subr.bf16.mxu0 0
      %9178 = vmatpush1.bf16.msra.mxu0 %v2091
      %9179 = vmatprep.subr.bf16.mxu0 0
      %9180 = vmatpush1.bf16.msra.mxu0 0
      %9181 = vmatprep.subr.bf16.mxu0 0
      %9182 = vmatpush1.bf16.msra.mxu0 0
      %9183 = vmatprep.subr.bf16.mxu0 0
      %9184 = vmatpush1.bf16.msra.mxu0 0
      %9185 = vmatprep.subr.bf16.mxu0 0
      %9186 = vmatpush1.bf16.msra.mxu0 0
      %9187 = vmatprep.subr.bf16.mxu0 0
      %9188 = vmatpush1.bf16.msra.mxu0 0
      %9189 = vmatprep.subr.bf16.mxu0 0
      %9190 = vmatpush1.bf16.msra.mxu0 0
      %9191 = vmatprep.subr.bf16.mxu0 0
      %9192 = vmatpush1.bf16.msra.mxu0 0
      %9193 = vmatprep.subr.bf16.mxu0 0
      %9194 = vmatpush1.bf16.msra.mxu0 0
      %9195 = vmatprep.subr.bf16.mxu0 0
      %9196 = vmatpush1.bf16.msra.mxu0 0
      %9197 = vmatprep.subr.bf16.mxu0 0
      %9198 = vmatpush1.bf16.msra.mxu0 0
      %9199 = vmatprep.subr.bf16.mxu0 0
      %9200 = vmatpush1.bf16.msra.mxu0 0
      %9201 = vmatprep.subr.bf16.mxu0 0
      %9202 = vmatpush1.bf16.msra.mxu0 0
      %9203 = vmatprep.subr.bf16.mxu0 0
      %9204 = vmatpush1.bf16.msra.mxu0 0
      %9205 = vmatprep.subr.bf16.mxu0 0
      %9206 = vmatpush1.bf16.msra.mxu0 0
      %9207 = vmatprep.subr.bf16.mxu0 0
      %9208 = vmatpush1.bf16.msra.mxu0 0
      %9209 = vmatprep.mubr.bf16.mxu0 0
      %9210 = vmatmul.mubr.bf16.gmra.mrb[0].mxu0 %v9175
      %v9211 = vpop.f32.mrb[0].mxu0
      %v9212 = vadd.f32 0.0, %v9211
      %v9213 = vpop.f32.mrb[0].mxu0
      %v9214 = vpop.f32.mrb[0].mxu0
      %v9215 = vadd.f32 0.0, %v9214
      %v9216 = vpop.f32.mrb[0].mxu0
      %9217 = vdwg.mxu0
      %v9219 = vsel %vm5105, %v6574, 0
      %9221 = vmatprep.subr.bf16.mxu0 0
      %9222 = vmatpush1.bf16.msra.mxu0 %v2092
      %9223 = vmatprep.subr.bf16.mxu0 0
      %9224 = vmatpush1.bf16.msra.mxu0 0
      %9225 = vmatprep.subr.bf16.mxu0 0
      %9226 = vmatpush1.bf16.msra.mxu0 0
      %9227 = vmatprep.subr.bf16.mxu0 0
      %9228 = vmatpush1.bf16.msra.mxu0 0
      %9229 = vmatprep.subr.bf16.mxu0 0
      %9230 = vmatpush1.bf16.msra.mxu0 0
      %9231 = vmatprep.subr.bf16.mxu0 0
      %9232 = vmatpush1.bf16.msra.mxu0 0
      %9233 = vmatprep.subr.bf16.mxu0 0
      %9234 = vmatpush1.bf16.msra.mxu0 0
      %9235 = vmatprep.subr.bf16.mxu0 0
      %9236 = vmatpush1.bf16.msra.mxu0 0
      %9237 = vmatprep.subr.bf16.mxu0 0
      %9238 = vmatpush1.bf16.msra.mxu0 0
      %9239 = vmatprep.subr.bf16.mxu0 0
      %9240 = vmatpush1.bf16.msra.mxu0 0
      %9241 = vmatprep.subr.bf16.mxu0 0
      %9242 = vmatpush1.bf16.msra.mxu0 0
      %9243 = vmatprep.subr.bf16.mxu0 0
      %9244 = vmatpush1.bf16.msra.mxu0 0
      %9245 = vmatprep.subr.bf16.mxu0 0
      %9246 = vmatpush1.bf16.msra.mxu0 0
      %9247 = vmatprep.subr.bf16.mxu0 0
      %9248 = vmatpush1.bf16.msra.mxu0 0
      %9249 = vmatprep.subr.bf16.mxu0 0
      %9250 = vmatpush1.bf16.msra.mxu0 0
      %9251 = vmatprep.subr.bf16.mxu0 0
      %9252 = vmatpush1.bf16.msra.mxu0 0
      %9253 = vmatprep.mubr.bf16.mxu0 0
      %9254 = vmatmul.mubr.bf16.gmra.mrb[0].mxu0 %v9219
      %v9255 = vpop.f32.mrb[0].mxu0
      %v9256 = vadd.f32 0.0, %v9255
      %v9257 = vpop.f32.mrb[0].mxu0
      %v9258 = vpop.f32.mrb[0].mxu0
      %v9259 = vadd.f32 0.0, %v9258
      %v9260 = vpop.f32.mrb[0].mxu0
      %9261 = vdwg.mxu0
      %v9263 = vsel %vm5105, %v6575, 0
      %9265 = vmatprep.subr.bf16.mxu0 0
      %9266 = vmatpush1.bf16.msra.mxu0 %v2093
      %9267 = vmatprep.subr.bf16.mxu0 0
      %9268 = vmatpush1.bf16.msra.mxu0 0
      %9269 = vmatprep.subr.bf16.mxu0 0
      %9270 = vmatpush1.bf16.msra.mxu0 0
      %9271 = vmatprep.subr.bf16.mxu0 0
      %9272 = vmatpush1.bf16.msra.mxu0 0
      %9273 = vmatprep.subr.bf16.mxu0 0
      %9274 = vmatpush1.bf16.msra.mxu0 0
      %9275 = vmatprep.subr.bf16.mxu0 0
      %9276 = vmatpush1.bf16.msra.mxu0 0
      %9277 = vmatprep.subr.bf16.mxu0 0
      %9278 = vmatpush1.bf16.msra.mxu0 0
      %9279 = vmatprep.subr.bf16.mxu0 0
      %9280 = vmatpush1.bf16.msra.mxu0 0
      %9281 = vmatprep.subr.bf16.mxu0 0
      %9282 = vmatpush1.bf16.msra.mxu0 0
      %9283 = vmatprep.subr.bf16.mxu0 0
      %9284 = vmatpush1.bf16.msra.mxu0 0
      %9285 = vmatprep.subr.bf16.mxu0 0
      %9286 = vmatpush1.bf16.msra.mxu0 0
      %9287 = vmatprep.subr.bf16.mxu0 0
      %9288 = vmatpush1.bf16.msra.mxu0 0
      %9289 = vmatprep.subr.bf16.mxu0 0
      %9290 = vmatpush1.bf16.msra.mxu0 0
      %9291 = vmatprep.subr.bf16.mxu0 0
      %9292 = vmatpush1.bf16.msra.mxu0 0
      %9293 = vmatprep.subr.bf16.mxu0 0
      %9294 = vmatpush1.bf16.msra.mxu0 0
      %9295 = vmatprep.subr.bf16.mxu0 0
      %9296 = vmatpush1.bf16.msra.mxu0 0
      %9297 = vmatprep.mubr.bf16.mxu0 0
      %9298 = vmatmul.mubr.bf16.gmra.mrb[0].mxu0 %v9263
      %v9299 = vpop.f32.mrb[0].mxu0
      %v9300 = vadd.f32 0.0, %v9299
      %v9301 = vpop.f32.mrb[0].mxu0
      %v9302 = vpop.f32.mrb[0].mxu0
      %v9303 = vadd.f32 0.0, %v9302
      %v9304 = vpop.f32.mrb[0].mxu0
      %9305 = vdwg.mxu0
      %v9307 = vsel %vm5105, %v6576, 0
      %9309 = vmatprep.subr.bf16.mxu0 0
      %9310 = vmatpush1.bf16.msra.mxu0 %v2094
      %9311 = vmatprep.subr.bf16.mxu0 0
      %9312 = vmatpush1.bf16.msra.mxu0 0
      %9313 = vmatprep.subr.bf16.mxu0 0
      %9314 = vmatpush1.bf16.msra.mxu0 0
      %9315 = vmatprep.subr.bf16.mxu0 0
      %9316 = vmatpush1.bf16.msra.mxu0 0
      %9317 = vmatprep.subr.bf16.mxu0 0
      %9318 = vmatpush1.bf16.msra.mxu0 0
      %9319 = vmatprep.subr.bf16.mxu0 0
      %9320 = vmatpush1.bf16.msra.mxu0 0
      %9321 = vmatprep.subr.bf16.mxu0 0
      %9322 = vmatpush1.bf16.msra.mxu0 0
      %9323 = vmatprep.subr.bf16.mxu0 0
      %9324 = vmatpush1.bf16.msra.mxu0 0
      %9325 = vmatprep.subr.bf16.mxu0 0
      %9326 = vmatpush1.bf16.msra.mxu0 0
      %9327 = vmatprep.subr.bf16.mxu0 0
      %9328 = vmatpush1.bf16.msra.mxu0 0
      %9329 = vmatprep.subr.bf16.mxu0 0
      %9330 = vmatpush1.bf16.msra.mxu0 0
      %9331 = vmatprep.subr.bf16.mxu0 0
      %9332 = vmatpush1.bf16.msra.mxu0 0
      %9333 = vmatprep.subr.bf16.mxu0 0
      %9334 = vmatpush1.bf16.msra.mxu0 0
      %9335 = vmatprep.subr.bf16.mxu0 0
      %9336 = vmatpush1.bf16.msra.mxu0 0
      %9337 = vmatprep.subr.bf16.mxu0 0
      %9338 = vmatpush1.bf16.msra.mxu0 0
      %9339 = vmatprep.subr.bf16.mxu0 0
      %9340 = vmatpush1.bf16.msra.mxu0 0
      %9341 = vmatprep.mubr.bf16.mxu0 0
      %9342 = vmatmul.mubr.bf16.gmra.mrb[0].mxu0 %v9307
      %v9343 = vpop.f32.mrb[0].mxu0
      %v9344 = vadd.f32 0.0, %v9343
      %v9345 = vpop.f32.mrb[0].mxu0
      %v9346 = vpop.f32.mrb[0].mxu0
      %v9347 = vadd.f32 0.0, %v9346
      %v9348 = vpop.f32.mrb[0].mxu0
      %9349 = vdwg.mxu0
      %v9351 = vsel %vm5105, %v6577, 0
      %9353 = vmatprep.subr.bf16.mxu0 0
      %9354 = vmatpush1.bf16.msra.mxu0 %v2095
      %9355 = vmatprep.subr.bf16.mxu0 0
      %9356 = vmatpush1.bf16.msra.mxu0 0
      %9357 = vmatprep.subr.bf16.mxu0 0
      %9358 = vmatpush1.bf16.msra.mxu0 0
      %9359 = vmatprep.subr.bf16.mxu0 0
      %9360 = vmatpush1.bf16.msra.mxu0 0
      %9361 = vmatprep.subr.bf16.mxu0 0
      %9362 = vmatpush1.bf16.msra.mxu0 0
      %9363 = vmatprep.subr.bf16.mxu0 0
      %9364 = vmatpush1.bf16.msra.mxu0 0
      %9365 = vmatprep.subr.bf16.mxu0 0
      %9366 = vmatpush1.bf16.msra.mxu0 0
      %9367 = vmatprep.subr.bf16.mxu0 0
      %9368 = vmatpush1.bf16.msra.mxu0 0
      %9369 = vmatprep.subr.bf16.mxu0 0
      %9370 = vmatpush1.bf16.msra.mxu0 0
      %9371 = vmatprep.subr.bf16.mxu0 0
      %9372 = vmatpush1.bf16.msra.mxu0 0
      %9373 = vmatprep.subr.bf16.mxu0 0
      %9374 = vmatpush1.bf16.msra.mxu0 0
      %9375 = vmatprep.subr.bf16.mxu0 0
      %9376 = vmatpush1.bf16.msra.mxu0 0
      %9377 = vmatprep.subr.bf16.mxu0 0
      %9378 = vmatpush1.bf16.msra.mxu0 0
      %9379 = vmatprep.subr.bf16.mxu0 0
      %9380 = vmatpush1.bf16.msra.mxu0 0
      %9381 = vmatprep.subr.bf16.mxu0 0
      %9382 = vmatpush1.bf16.msra.mxu0 0
      %9383 = vmatprep.subr.bf16.mxu0 0
      %9384 = vmatpush1.bf16.msra.mxu0 0
      %9385 = vmatprep.mubr.bf16.mxu0 0
      %9386 = vmatmul.mubr.bf16.gmra.mrb[0].mxu0 %v9351
      %v9387 = vpop.f32.mrb[0].mxu0
      %v9388 = vadd.f32 0.0, %v9387
      %v9389 = vpop.f32.mrb[0].mxu0
      %v9390 = vpop.f32.mrb[0].mxu0
      %v9391 = vadd.f32 0.0, %v9390
      %v9392 = vpop.f32.mrb[0].mxu0
      %9393 = vdwg.mxu0
      %9410 = vrot.lane.b32.xlu0 %v6968, 8
      %v9411 = vpop.permute.xlu0 %9410
      %9412 = vrot.lane.b32.xlu0 %v6971, 8
      %v9413 = vpop.permute.xlu0 %9412
      %9414 = vrot.lane.b32.xlu0 %v7012, 8
      %v9415 = vpop.permute.xlu0 %9414
      %9416 = vrot.lane.b32.xlu0 %v7015, 8
      %v9417 = vpop.permute.xlu0 %9416
      %9418 = vrot.lane.b32.xlu0 %v7056, 8
      %v9419 = vpop.permute.xlu0 %9418
      %9420 = vrot.lane.b32.xlu0 %v7059, 8
      %v9421 = vpop.permute.xlu0 %9420
      %9422 = vrot.lane.b32.xlu0 %v7100, 8
      %v9423 = vpop.permute.xlu0 %9422
      %9424 = vrot.lane.b32.xlu0 %v7103, 8
      %v9425 = vpop.permute.xlu0 %9424
      %9426 = vrot.lane.b32.xlu0 %v7144, 8
      %v9427 = vpop.permute.xlu0 %9426
      %9428 = vrot.lane.b32.xlu0 %v7147, 8
      %v9429 = vpop.permute.xlu0 %9428
      %9430 = vrot.lane.b32.xlu0 %v7188, 8
      %v9431 = vpop.permute.xlu0 %9430
      %9432 = vrot.lane.b32.xlu0 %v7191, 8
      %v9433 = vpop.permute.xlu0 %9432
      %9434 = vrot.lane.b32.xlu0 %v7232, 8
      %v9435 = vpop.permute.xlu0 %9434
      %9436 = vrot.lane.b32.xlu0 %v7235, 8
      %v9437 = vpop.permute.xlu0 %9436
      %9438 = vrot.lane.b32.xlu0 %v7276, 8
      %v9439 = vpop.permute.xlu0 %9438
      %9440 = vrot.lane.b32.xlu0 %v7279, 8
      %v9441 = vpop.permute.xlu0 %9440
      %9474 = vrot.lane.b32.xlu0 %v7320, 16
      %v9475 = vpop.permute.xlu0 %9474
      %9476 = vrot.lane.b32.xlu0 %v7323, 16
      %v9477 = vpop.permute.xlu0 %9476
      %9478 = vrot.lane.b32.xlu0 %v7364, 16
      %v9479 = vpop.permute.xlu0 %9478
      %9480 = vrot.lane.b32.xlu0 %v7367, 16
      %v9481 = vpop.permute.xlu0 %9480
      %9482 = vrot.lane.b32.xlu0 %v7408, 16
      %v9483 = vpop.permute.xlu0 %9482
      %9484 = vrot.lane.b32.xlu0 %v7411, 16
      %v9485 = vpop.permute.xlu0 %9484
      %9486 = vrot.lane.b32.xlu0 %v7452, 16
      %v9487 = vpop.permute.xlu0 %9486
      %9488 = vrot.lane.b32.xlu0 %v7455, 16
      %v9489 = vpop.permute.xlu0 %9488
      %9490 = vrot.lane.b32.xlu0 %v7496, 16
      %v9491 = vpop.permute.xlu0 %9490
      %9492 = vrot.lane.b32.xlu0 %v7499, 16
      %v9493 = vpop.permute.xlu0 %9492
      %9494 = vrot.lane.b32.xlu0 %v7540, 16
      %v9495 = vpop.permute.xlu0 %9494
      %9496 = vrot.lane.b32.xlu0 %v7543, 16
      %v9497 = vpop.permute.xlu0 %9496
      %9498 = vrot.lane.b32.xlu0 %v7584, 16
      %v9499 = vpop.permute.xlu0 %9498
      %9500 = vrot.lane.b32.xlu0 %v7587, 16
      %v9501 = vpop.permute.xlu0 %9500
      %9502 = vrot.lane.b32.xlu0 %v7628, 16
      %v9503 = vpop.permute.xlu0 %9502
      %9504 = vrot.lane.b32.xlu0 %v7631, 16
      %v9505 = vpop.permute.xlu0 %9504
      %9538 = vrot.lane.b32.xlu0 %v7672, 24
      %v9539 = vpop.permute.xlu0 %9538
      %9540 = vrot.lane.b32.xlu0 %v7675, 24
      %v9541 = vpop.permute.xlu0 %9540
      %9542 = vrot.lane.b32.xlu0 %v7716, 24
      %v9543 = vpop.permute.xlu0 %9542
      %9544 = vrot.lane.b32.xlu0 %v7719, 24
      %v9545 = vpop.permute.xlu0 %9544
      %9546 = vrot.lane.b32.xlu0 %v7760, 24
      %v9547 = vpop.permute.xlu0 %9546
      %9548 = vrot.lane.b32.xlu0 %v7763, 24
      %v9549 = vpop.permute.xlu0 %9548
      %9550 = vrot.lane.b32.xlu0 %v7804, 24
      %v9551 = vpop.permute.xlu0 %9550
      %9552 = vrot.lane.b32.xlu0 %v7807, 24
      %v9553 = vpop.permute.xlu0 %9552
      %9554 = vrot.lane.b32.xlu0 %v7848, 24
      %v9555 = vpop.permute.xlu0 %9554
      %9556 = vrot.lane.b32.xlu0 %v7851, 24
      %v9557 = vpop.permute.xlu0 %9556
      %9558 = vrot.lane.b32.xlu0 %v7892, 24
      %v9559 = vpop.permute.xlu0 %9558
      %9560 = vrot.lane.b32.xlu0 %v7895, 24
      %v9561 = vpop.permute.xlu0 %9560
      %9562 = vrot.lane.b32.xlu0 %v7936, 24
      %v9563 = vpop.permute.xlu0 %9562
      %9564 = vrot.lane.b32.xlu0 %v7939, 24
      %v9565 = vpop.permute.xlu0 %9564
      %9566 = vrot.lane.b32.xlu0 %v7980, 24
      %v9567 = vpop.permute.xlu0 %9566
      %9568 = vrot.lane.b32.xlu0 %v7983, 24
      %v9569 = vpop.permute.xlu0 %9568
      %9602 = vrot.lane.b32.xlu0 %v8024, 32
      %v9603 = vpop.permute.xlu0 %9602
      %9604 = vrot.lane.b32.xlu0 %v8027, 32
      %v9605 = vpop.permute.xlu0 %9604
      %9606 = vrot.lane.b32.xlu0 %v8068, 32
      %v9607 = vpop.permute.xlu0 %9606
      %9608 = vrot.lane.b32.xlu0 %v8071, 32
      %v9609 = vpop.permute.xlu0 %9608
      %9610 = vrot.lane.b32.xlu0 %v8112, 32
      %v9611 = vpop.permute.xlu0 %9610
      %9612 = vrot.lane.b32.xlu0 %v8115, 32
      %v9613 = vpop.permute.xlu0 %9612
      %9614 = vrot.lane.b32.xlu0 %v8156, 32
      %v9615 = vpop.permute.xlu0 %9614
      %9616 = vrot.lane.b32.xlu0 %v8159, 32
      %v9617 = vpop.permute.xlu0 %9616
      %9618 = vrot.lane.b32.xlu0 %v8200, 32
      %v9619 = vpop.permute.xlu0 %9618
      %9620 = vrot.lane.b32.xlu0 %v8203, 32
      %v9621 = vpop.permute.xlu0 %9620
      %9622 = vrot.lane.b32.xlu0 %v8244, 32
      %v9623 = vpop.permute.xlu0 %9622
      %9624 = vrot.lane.b32.xlu0 %v8247, 32
      %v9625 = vpop.permute.xlu0 %9624
      %9626 = vrot.lane.b32.xlu0 %v8288, 32
      %v9627 = vpop.permute.xlu0 %9626
      %9628 = vrot.lane.b32.xlu0 %v8291, 32
      %v9629 = vpop.permute.xlu0 %9628
      %9630 = vrot.lane.b32.xlu0 %v8332, 32
      %v9631 = vpop.permute.xlu0 %9630
      %9632 = vrot.lane.b32.xlu0 %v8335, 32
      %v9633 = vpop.permute.xlu0 %9632
      %9666 = vrot.lane.b32.xlu0 %v8376, 40
      %v9667 = vpop.permute.xlu0 %9666
      %9668 = vrot.lane.b32.xlu0 %v8379, 40
      %v9669 = vpop.permute.xlu0 %9668
      %9670 = vrot.lane.b32.xlu0 %v8420, 40
      %v9671 = vpop.permute.xlu0 %9670
      %9672 = vrot.lane.b32.xlu0 %v8423, 40
      %v9673 = vpop.permute.xlu0 %9672
      %9674 = vrot.lane.b32.xlu0 %v8464, 40
      %v9675 = vpop.permute.xlu0 %9674
      %9676 = vrot.lane.b32.xlu0 %v8467, 40
      %v9677 = vpop.permute.xlu0 %9676
      %9678 = vrot.lane.b32.xlu0 %v8508, 40
      %v9679 = vpop.permute.xlu0 %9678
      %9680 = vrot.lane.b32.xlu0 %v8511, 40
      %v9681 = vpop.permute.xlu0 %9680
      %9682 = vrot.lane.b32.xlu0 %v8552, 40
      %v9683 = vpop.permute.xlu0 %9682
      %9684 = vrot.lane.b32.xlu0 %v8555, 40
      %v9685 = vpop.permute.xlu0 %9684
      %9686 = vrot.lane.b32.xlu0 %v8596, 40
      %v9687 = vpop.permute.xlu0 %9686
      %9688 = vrot.lane.b32.xlu0 %v8599, 40
      %v9689 = vpop.permute.xlu0 %9688
      %9690 = vrot.lane.b32.xlu0 %v8640, 40
      %v9691 = vpop.permute.xlu0 %9690
      %9692 = vrot.lane.b32.xlu0 %v8643, 40
      %v9693 = vpop.permute.xlu0 %9692
      %9694 = vrot.lane.b32.xlu0 %v8684, 40
      %v9695 = vpop.permute.xlu0 %9694
      %9696 = vrot.lane.b32.xlu0 %v8687, 40
      %v9697 = vpop.permute.xlu0 %9696
      %9730 = vrot.lane.b32.xlu0 %v8728, 48
      %v9731 = vpop.permute.xlu0 %9730
      %9732 = vrot.lane.b32.xlu0 %v8731, 48
      %v9733 = vpop.permute.xlu0 %9732
      %9734 = vrot.lane.b32.xlu0 %v8772, 48
      %v9735 = vpop.permute.xlu0 %9734
      %9736 = vrot.lane.b32.xlu0 %v8775, 48
      %v9737 = vpop.permute.xlu0 %9736
      %9738 = vrot.lane.b32.xlu0 %v8816, 48
      %v9739 = vpop.permute.xlu0 %9738
      %9740 = vrot.lane.b32.xlu0 %v8819, 48
      %v9741 = vpop.permute.xlu0 %9740
      %9742 = vrot.lane.b32.xlu0 %v8860, 48
      %v9743 = vpop.permute.xlu0 %9742
      %9744 = vrot.lane.b32.xlu0 %v8863, 48
      %v9745 = vpop.permute.xlu0 %9744
      %9746 = vrot.lane.b32.xlu0 %v8904, 48
      %v9747 = vpop.permute.xlu0 %9746
      %9748 = vrot.lane.b32.xlu0 %v8907, 48
      %v9749 = vpop.permute.xlu0 %9748
      %9750 = vrot.lane.b32.xlu0 %v8948, 48
      %v9751 = vpop.permute.xlu0 %9750
      %9752 = vrot.lane.b32.xlu0 %v8951, 48
      %v9753 = vpop.permute.xlu0 %9752
      %9754 = vrot.lane.b32.xlu0 %v8992, 48
      %v9755 = vpop.permute.xlu0 %9754
      %9756 = vrot.lane.b32.xlu0 %v8995, 48
      %v9757 = vpop.permute.xlu0 %9756
      %9758 = vrot.lane.b32.xlu0 %v9036, 48
      %v9759 = vpop.permute.xlu0 %9758
      %9760 = vrot.lane.b32.xlu0 %v9039, 48
      %v9761 = vpop.permute.xlu0 %9760
      %9794 = vrot.lane.b32.xlu0 %v9080, 56
      %v9795 = vpop.permute.xlu0 %9794
      %9796 = vrot.lane.b32.xlu0 %v9083, 56
      %v9797 = vpop.permute.xlu0 %9796
      %9798 = vrot.lane.b32.xlu0 %v9124, 56
      %v9799 = vpop.permute.xlu0 %9798
      %9800 = vrot.lane.b32.xlu0 %v9127, 56
      %v9801 = vpop.permute.xlu0 %9800
      %9802 = vrot.lane.b32.xlu0 %v9168, 56
      %v9803 = vpop.permute.xlu0 %9802
      %9804 = vrot.lane.b32.xlu0 %v9171, 56
      %v9805 = vpop.permute.xlu0 %9804
      %9806 = vrot.lane.b32.xlu0 %v9212, 56
      %v9807 = vpop.permute.xlu0 %9806
      %9808 = vrot.lane.b32.xlu0 %v9215, 56
      %v9809 = vpop.permute.xlu0 %9808
      %9810 = vrot.lane.b32.xlu0 %v9256, 56
      %v9811 = vpop.permute.xlu0 %9810
      %9812 = vrot.lane.b32.xlu0 %v9259, 56
      %v9813 = vpop.permute.xlu0 %9812
      %9814 = vrot.lane.b32.xlu0 %v9300, 56
      %v9815 = vpop.permute.xlu0 %9814
      %9816 = vrot.lane.b32.xlu0 %v9303, 56
      %v9817 = vpop.permute.xlu0 %9816
      %9818 = vrot.lane.b32.xlu0 %v9344, 56
      %v9819 = vpop.permute.xlu0 %9818
      %9820 = vrot.lane.b32.xlu0 %v9347, 56
      %v9821 = vpop.permute.xlu0 %9820
      %9822 = vrot.lane.b32.xlu0 %v9388, 56
      %v9823 = vpop.permute.xlu0 %9822
      %9824 = vrot.lane.b32.xlu0 %v9391, 56
      %v9825 = vpop.permute.xlu0 %9824
      %v9842 = vsel %vm2096, %v6616, %v9411
      %v9843 = vsel %vm2096, %v6619, %v9413
      %v9844 = vsel %vm2096, %v6660, %v9415
      %v9845 = vsel %vm2096, %v6663, %v9417
      %v9846 = vsel %vm2096, %v6704, %v9419
      %v9847 = vsel %vm2096, %v6707, %v9421
      %v9848 = vsel %vm2096, %v6748, %v9423
      %v9849 = vsel %vm2096, %v6751, %v9425
      %v9850 = vsel %vm2096, %v6792, %v9427
      %v9851 = vsel %vm2096, %v6795, %v9429
      %v9852 = vsel %vm2096, %v6836, %v9431
      %v9853 = vsel %vm2096, %v6839, %v9433
      %v9854 = vsel %vm2096, %v6880, %v9435
      %v9855 = vsel %vm2096, %v6883, %v9437
      %v9856 = vsel %vm2096, %v6924, %v9439
      %v9857 = vsel %vm2096, %v6927, %v9441
      %v9858 = vsel %vm5105, %v9842, %v9475
      %v9859 = vsel %vm5105, %v9843, %v9477
      %v9860 = vsel %vm5105, %v9844, %v9479
      %v9861 = vsel %vm5105, %v9845, %v9481
      %v9862 = vsel %vm5105, %v9846, %v9483
      %v9863 = vsel %vm5105, %v9847, %v9485
      %v9864 = vsel %vm5105, %v9848, %v9487
      %v9865 = vsel %vm5105, %v9849, %v9489
      %v9866 = vsel %vm5105, %v9850, %v9491
      %v9867 = vsel %vm5105, %v9851, %v9493
      %v9868 = vsel %vm5105, %v9852, %v9495
      %v9869 = vsel %vm5105, %v9853, %v9497
      %v9870 = vsel %vm5105, %v9854, %v9499
      %v9871 = vsel %vm5105, %v9855, %v9501
      %v9872 = vsel %vm5105, %v9856, %v9503
      %v9873 = vsel %vm5105, %v9857, %v9505
      %vm9874 = vcmask 195584
      %v9875 = vsel %vm9874, %v9858, %v9539
      %v9876 = vsel %vm9874, %v9859, %v9541
      %v9877 = vsel %vm9874, %v9860, %v9543
      %v9878 = vsel %vm9874, %v9861, %v9545
      %v9879 = vsel %vm9874, %v9862, %v9547
      %v9880 = vsel %vm9874, %v9863, %v9549
      %v9881 = vsel %vm9874, %v9864, %v9551
      %v9882 = vsel %vm9874, %v9865, %v9553
      %v9883 = vsel %vm9874, %v9866, %v9555
      %v9884 = vsel %vm9874, %v9867, %v9557
      %v9885 = vsel %vm9874, %v9868, %v9559
      %v9886 = vsel %vm9874, %v9869, %v9561
      %v9887 = vsel %vm9874, %v9870, %v9563
      %v9888 = vsel %vm9874, %v9871, %v9565
      %v9889 = vsel %vm9874, %v9872, %v9567
      %v9890 = vsel %vm9874, %v9873, %v9569
      %vm9891 = vcmask 261120
      %v9892 = vsel %vm9891, %v9875, %v9603
      %v9893 = vsel %vm9891, %v9876, %v9605
      %v9894 = vsel %vm9891, %v9877, %v9607
      %v9895 = vsel %vm9891, %v9878, %v9609
      %v9896 = vsel %vm9891, %v9879, %v9611
      %v9897 = vsel %vm9891, %v9880, %v9613
      %v9898 = vsel %vm9891, %v9881, %v9615
      %v9899 = vsel %vm9891, %v9882, %v9617
      %v9900 = vsel %vm9891, %v9883, %v9619
      %v9901 = vsel %vm9891, %v9884, %v9621
      %v9902 = vsel %vm9891, %v9885, %v9623
      %v9903 = vsel %vm9891, %v9886, %v9625
      %v9904 = vsel %vm9891, %v9887, %v9627
      %v9905 = vsel %vm9891, %v9888, %v9629
      %v9906 = vsel %vm9891, %v9889, %v9631
      %v9907 = vsel %vm9891, %v9890, %v9633
      %vm9908 = vcmask 326656
      %v9909 = vsel %vm9908, %v9892, %v9667
      %v9910 = vsel %vm9908, %v9893, %v9669
      %v9911 = vsel %vm9908, %v9894, %v9671
      %v9912 = vsel %vm9908, %v9895, %v9673
      %v9913 = vsel %vm9908, %v9896, %v9675
      %v9914 = vsel %vm9908, %v9897, %v9677
      %v9915 = vsel %vm9908, %v9898, %v9679
      %v9916 = vsel %vm9908, %v9899, %v9681
      %v9917 = vsel %vm9908, %v9900, %v9683
      %v9918 = vsel %vm9908, %v9901, %v9685
      %v9919 = vsel %vm9908, %v9902, %v9687
      %v9920 = vsel %vm9908, %v9903, %v9689
      %v9921 = vsel %vm9908, %v9904, %v9691
      %v9922 = vsel %vm9908, %v9905, %v9693
      %v9923 = vsel %vm9908, %v9906, %v9695
      %v9924 = vsel %vm9908, %v9907, %v9697
      %vm9925 = vcmask 392192
      %v9926 = vsel %vm9925, %v9909, %v9731
      %v9927 = vsel %vm9925, %v9910, %v9733
      %v9928 = vsel %vm9925, %v9911, %v9735
      %v9929 = vsel %vm9925, %v9912, %v9737
      %v9930 = vsel %vm9925, %v9913, %v9739
      %v9931 = vsel %vm9925, %v9914, %v9741
      %v9932 = vsel %vm9925, %v9915, %v9743
      %v9933 = vsel %vm9925, %v9916, %v9745
      %v9934 = vsel %vm9925, %v9917, %v9747
      %v9935 = vsel %vm9925, %v9918, %v9749
      %v9936 = vsel %vm9925, %v9919, %v9751
      %v9937 = vsel %vm9925, %v9920, %v9753
      %v9938 = vsel %vm9925, %v9921, %v9755
      %v9939 = vsel %vm9925, %v9922, %v9757
      %v9940 = vsel %vm9925, %v9923, %v9759
      %v9941 = vsel %vm9925, %v9924, %v9761
      %vm9942 = vcmask 457728
      %v9943 = vsel %vm9942, %v9926, %v9795
      %v9944 = vsel %vm9942, %v9927, %v9797
      %v9945 = vsel %vm9942, %v9928, %v9799
      %v9946 = vsel %vm9942, %v9929, %v9801
      %v9947 = vsel %vm9942, %v9930, %v9803
      %v9948 = vsel %vm9942, %v9931, %v9805
      %v9949 = vsel %vm9942, %v9932, %v9807
      %v9950 = vsel %vm9942, %v9933, %v9809
      %v9951 = vsel %vm9942, %v9934, %v9811
      %v9952 = vsel %vm9942, %v9935, %v9813
      %v9953 = vsel %vm9942, %v9936, %v9815
      %v9954 = vsel %vm9942, %v9937, %v9817
      %v9955 = vsel %vm9942, %v9938, %v9819
      %v9956 = vsel %vm9942, %v9939, %v9821
      %v9957 = vsel %vm9942, %v9940, %v9823
      %v9958 = vsel %vm9942, %v9941, %v9825
      %v9959 = vpack.c.bf16 %v9944, %v9943
      %v9960 = vpack.c.bf16 %v9946, %v9945
      %v9961 = vpack.c.bf16 %v9948, %v9947
      %v9962 = vpack.c.bf16 %v9950, %v9949
      %v9963 = vpack.c.bf16 %v9952, %v9951
      %v9964 = vpack.c.bf16 %v9954, %v9953
      %v9965 = vpack.c.bf16 %v9956, %v9955
      %v9966 = vpack.c.bf16 %v9958, %v9957
      %v9967 = vld [vmem:[%s7] sm:$0xf]
      %v9968 = vld [vmem:[%s7 + $0x4] sm:$0xf]
      %v9969 = vld [vmem:[%s7 + $0x8] sm:$0xf]
      %v9970 = vld [vmem:[%s7 + $0xc] sm:$0xf]
      %v9971 = vld [vmem:[%s7 + $0x10] sm:$0xf]
      %v9972 = vld [vmem:[%s7 + $0x14] sm:$0xf]
      %v9973 = vld [vmem:[%s7 + $0x18] sm:$0xf]
      %v9974 = vld [vmem:[%s7 + $0x1c] sm:$0xf]
      %v9975 = vld [vmem:[%s8] sm:$0x1]
      %v9977 = vlaneseq
      %v9978 = vshrl.u32 %v9977, 7
      %v9979 = vsub.s32 0, %v9978
      %v9980 = vrot.slane %v9975, %v9979
      %v9990 = vunpack.c.l.b16 %v9967
      %v9991 = vunpack.c.l.b16 %v9968
      %v9992 = vunpack.c.l.b16 %v9969
      %v9993 = vunpack.c.l.b16 %v9970
      %v9994 = vunpack.c.l.b16 %v9971
      %v9995 = vunpack.c.l.b16 %v9972
      %v9996 = vunpack.c.l.b16 %v9973
      %v9997 = vunpack.c.l.b16 %v9974
      %v9998 = vpack.c.b16 %v9991, %v9990
      %v9999 = vpack.c.b16 %v9993, %v9992
      %v10000 = vpack.c.b16 %v9995, %v9994
      %v10001 = vpack.c.b16 %v9997, %v9996
      %v10007 = vsel %vm454, %v9959, 0
      %v10010 = vsel %vm454, %v9960, 0
      %v10013 = vsel %vm454, %v9961, 0
      %v10016 = vsel %vm454, %v9962, 0
      %v10019 = vsel %vm454, %v9963, 0
      %v10022 = vsel %vm454, %v9964, 0
      %v10025 = vsel %vm454, %v9965, 0
      %v10028 = vsel %vm454, %v9966, 0
      %10030 = vmatprep.subr.bf16.mxu0 0
      %10031 = vmatpush1.bf16.msra.mxu0 %v9998
      %10032 = vmatprep.subr.bf16.mxu0 0
      %10033 = vmatpush1.bf16.msra.mxu0 %v9999
      %10034 = vmatprep.subr.bf16.mxu0 0
      %10035 = vmatpush1.bf16.msra.mxu0 %v10000
      %10036 = vmatprep.subr.bf16.mxu0 0
      %10037 = vmatpush1.bf16.msra.mxu0 %v10001
      %10038 = vmatprep.subr.bf16.mxu0 0
      %10039 = vmatpush1.bf16.msra.mxu0 0
      %10040 = vmatprep.subr.bf16.mxu0 0
      %10041 = vmatpush1.bf16.msra.mxu0 0
      %10042 = vmatprep.subr.bf16.mxu0 0
      %10043 = vmatpush1.bf16.msra.mxu0 0
      %10044 = vmatprep.subr.bf16.mxu0 0
      %10045 = vmatpush1.bf16.msra.mxu0 0
      %10046 = vmatprep.subr.bf16.mxu0 0
      %10047 = vmatpush1.bf16.msra.mxu0 0
      %10048 = vmatprep.subr.bf16.mxu0 0
      %10049 = vmatpush1.bf16.msra.mxu0 0
      %10050 = vmatprep.subr.bf16.mxu0 0
      %10051 = vmatpush1.bf16.msra.mxu0 0
      %10052 = vmatprep.subr.bf16.mxu0 0
      %10053 = vmatpush1.bf16.msra.mxu0 0
      %10054 = vmatprep.subr.bf16.mxu0 0
      %10055 = vmatpush1.bf16.msra.mxu0 0
      %10056 = vmatprep.subr.bf16.mxu0 0
      %10057 = vmatpush1.bf16.msra.mxu0 0
      %10058 = vmatprep.subr.bf16.mxu0 0
      %10059 = vmatpush1.bf16.msra.mxu0 0
      %10060 = vmatprep.subr.bf16.mxu0 0
      %10061 = vmatpush1.bf16.msra.mxu0 0
      %10062 = vmatprep.mubr.bf16.mxu0 0
      %10063 = vmatmul.mubr.bf16.gmra.mrb[0].mxu0 %v10007
      %v10064 = vpop.f32.mrb[0].mxu0
      %v10065 = vadd.f32 %v9980, %v10064
      %v10066 = vpop.f32.mrb[0].mxu0
      %v10067 = vpop.f32.mrb[0].mxu0
      %v10068 = vadd.f32 %v9980, %v10067
      %v10069 = vpop.f32.mrb[0].mxu0
      %10070 = vmatprep.mubr.bf16.mxu0 0
      %10071 = vmatmul.mubr.bf16.gmra.mrb[0].mxu0 %v10010
      %v10072 = vpop.f32.mrb[0].mxu0
      %v10073 = vadd.f32 %v9980, %v10072
      %v10074 = vpop.f32.mrb[0].mxu0
      %v10075 = vpop.f32.mrb[0].mxu0
      %v10076 = vadd.f32 %v9980, %v10075
      %v10077 = vpop.f32.mrb[0].mxu0
      %10078 = vmatprep.mubr.bf16.mxu0 0
      %10079 = vmatmul.mubr.bf16.gmra.mrb[0].mxu0 %v10013
      %v10080 = vpop.f32.mrb[0].mxu0
      %v10081 = vadd.f32 %v9980, %v10080
      %v10082 = vpop.f32.mrb[0].mxu0
      %v10083 = vpop.f32.mrb[0].mxu0
      %v10084 = vadd.f32 %v9980, %v10083
      %v10085 = vpop.f32.mrb[0].mxu0
      %10086 = vmatprep.mubr.bf16.mxu0 0
      %10087 = vmatmul.mubr.bf16.gmra.mrb[0].mxu0 %v10016
      %v10088 = vpop.f32.mrb[0].mxu0
      %v10089 = vadd.f32 %v9980, %v10088
      %v10090 = vpop.f32.mrb[0].mxu0
      %v10091 = vpop.f32.mrb[0].mxu0
      %v10092 = vadd.f32 %v9980, %v10091
      %v10093 = vpop.f32.mrb[0].mxu0
      %10094 = vmatprep.mubr.bf16.mxu0 0
      %10095 = vmatmul.mubr.bf16.gmra.mrb[0].mxu0 %v10019
      %v10096 = vpop.f32.mrb[0].mxu0
      %v10097 = vadd.f32 %v9980, %v10096
      %v10098 = vpop.f32.mrb[0].mxu0
      %v10099 = vpop.f32.mrb[0].mxu0
      %v10100 = vadd.f32 %v9980, %v10099
      %v10101 = vpop.f32.mrb[0].mxu0
      %10102 = vmatprep.mubr.bf16.mxu0 0
      %10103 = vmatmul.mubr.bf16.gmra.mrb[0].mxu0 %v10022
      %v10104 = vpop.f32.mrb[0].mxu0
      %v10105 = vadd.f32 %v9980, %v10104
      %v10106 = vpop.f32.mrb[0].mxu0
      %v10107 = vpop.f32.mrb[0].mxu0
      %v10108 = vadd.f32 %v9980, %v10107
      %v10109 = vpop.f32.mrb[0].mxu0
      %10110 = vmatprep.mubr.bf16.mxu0 0
      %10111 = vmatmul.mubr.bf16.gmra.mrb[0].mxu0 %v10025
      %v10112 = vpop.f32.mrb[0].mxu0
      %v10113 = vadd.f32 %v9980, %v10112
      %v10114 = vpop.f32.mrb[0].mxu0
      %v10115 = vpop.f32.mrb[0].mxu0
      %v10116 = vadd.f32 %v9980, %v10115
      %v10117 = vpop.f32.mrb[0].mxu0
      %10118 = vmatprep.mubr.bf16.mxu0 0
      %10119 = vmatmul.mubr.bf16.gmra.mrb[0].mxu0 %v10028
      %v10120 = vpop.f32.mrb[0].mxu0
      %v10121 = vadd.f32 %v9980, %v10120
      %v10122 = vpop.f32.mrb[0].mxu0
      %v10123 = vpop.f32.mrb[0].mxu0
      %v10124 = vadd.f32 %v9980, %v10123
      %v10125 = vpop.f32.mrb[0].mxu0
      %10126 = vdwg.mxu0
      %v10127 = vadd.f32 %v10065, %v391
      %v10128 = vadd.f32 %v10068, %v392
      %v10129 = vadd.f32 %v10073, %v393
      %v10130 = vadd.f32 %v10076, %v394
      %v10131 = vadd.f32 %v10081, %v395
      %v10132 = vadd.f32 %v10084, %v396
      %v10133 = vadd.f32 %v10089, %v397
      %v10134 = vadd.f32 %v10092, %v398
      %v10135 = vadd.f32 %v10097, %v399
      %v10136 = vadd.f32 %v10100, %v400
      %v10137 = vadd.f32 %v10105, %v401
      %v10138 = vadd.f32 %v10108, %v402
      %v10139 = vadd.f32 %v10113, %v403
      %v10140 = vadd.f32 %v10116, %v404
      %v10141 = vadd.f32 %v10121, %v405
      %v10142 = vadd.f32 %v10124, %v406
      %v10143 = vsel %vm454, %v10127, 0.0
      %10144 = vadd.xlane.f32.xlu0 %v10143
      %v10145 = vpop.xlane.xlu0 %10144
      %v10146 = vsel %vm454, %v10128, 0.0
      %10147 = vadd.xlane.f32.xlu0 %v10146
      %v10148 = vpop.xlane.xlu0 %10147
      %v10149 = vsel %vm454, %v10129, 0.0
      %10150 = vadd.xlane.f32.xlu0 %v10149
      %v10151 = vpop.xlane.xlu0 %10150
      %v10152 = vsel %vm454, %v10130, 0.0
      %10153 = vadd.xlane.f32.xlu0 %v10152
      %v10154 = vpop.xlane.xlu0 %10153
      %v10155 = vsel %vm454, %v10131, 0.0
      %10156 = vadd.xlane.f32.xlu0 %v10155
      %v10157 = vpop.xlane.xlu0 %10156
      %v10158 = vsel %vm454, %v10132, 0.0
      %10159 = vadd.xlane.f32.xlu0 %v10158
      %v10160 = vpop.xlane.xlu0 %10159
      %v10161 = vsel %vm454, %v10133, 0.0
      %10162 = vadd.xlane.f32.xlu0 %v10161
      %v10163 = vpop.xlane.xlu0 %10162
      %v10164 = vsel %vm454, %v10134, 0.0
      %10165 = vadd.xlane.f32.xlu0 %v10164
      %v10166 = vpop.xlane.xlu0 %10165
      %v10167 = vsel %vm454, %v10135, 0.0
      %10168 = vadd.xlane.f32.xlu0 %v10167
      %v10169 = vpop.xlane.xlu0 %10168
      %v10170 = vsel %vm454, %v10136, 0.0
      %10171 = vadd.xlane.f32.xlu0 %v10170
      %v10172 = vpop.xlane.xlu0 %10171
      %v10173 = vsel %vm454, %v10137, 0.0
      %10174 = vadd.xlane.f32.xlu0 %v10173
      %v10175 = vpop.xlane.xlu0 %10174
      %v10176 = vsel %vm454, %v10138, 0.0
      %10177 = vadd.xlane.f32.xlu0 %v10176
      %v10178 = vpop.xlane.xlu0 %10177
      %v10179 = vsel %vm454, %v10139, 0.0
      %10180 = vadd.xlane.f32.xlu0 %v10179
      %v10181 = vpop.xlane.xlu0 %10180
      %v10182 = vsel %vm454, %v10140, 0.0
      %10183 = vadd.xlane.f32.xlu0 %v10182
      %v10184 = vpop.xlane.xlu0 %10183
      %v10185 = vsel %vm454, %v10141, 0.0
      %10186 = vadd.xlane.f32.xlu0 %v10185
      %v10187 = vpop.xlane.xlu0 %10186
      %v10188 = vsel %vm454, %v10142, 0.0
      %10189 = vadd.xlane.f32.xlu0 %v10188
      %v10190 = vpop.xlane.xlu0 %10189
      %v10191 = vrcp.pop 64.0
      %v10192 = vmul.f32 %v10145, %v10191
      %v10193 = vmul.f32 %v10148, %v10191
      %v10194 = vmul.f32 %v10151, %v10191
      %v10195 = vmul.f32 %v10154, %v10191
      %v10196 = vmul.f32 %v10157, %v10191
      %v10197 = vmul.f32 %v10160, %v10191
      %v10198 = vmul.f32 %v10163, %v10191
      %v10199 = vmul.f32 %v10166, %v10191
      %v10200 = vmul.f32 %v10169, %v10191
      %v10201 = vmul.f32 %v10172, %v10191
      %v10202 = vmul.f32 %v10175, %v10191
      %v10203 = vmul.f32 %v10178, %v10191
      %v10204 = vmul.f32 %v10181, %v10191
      %v10205 = vmul.f32 %v10184, %v10191
      %v10206 = vmul.f32 %v10187, %v10191
      %v10207 = vmul.f32 %v10190, %v10191
      %v10208 = vsub.f32 %v10127, %v10192
      %v10209 = vsub.f32 %v10128, %v10193
      %v10210 = vsub.f32 %v10129, %v10194
      %v10211 = vsub.f32 %v10130, %v10195
      %v10212 = vsub.f32 %v10131, %v10196
      %v10213 = vsub.f32 %v10132, %v10197
      %v10214 = vsub.f32 %v10133, %v10198
      %v10215 = vsub.f32 %v10134, %v10199
      %v10216 = vsub.f32 %v10135, %v10200
      %v10217 = vsub.f32 %v10136, %v10201
      %v10218 = vsub.f32 %v10137, %v10202
      %v10219 = vsub.f32 %v10138, %v10203
      %v10220 = vsub.f32 %v10139, %v10204
      %v10221 = vsub.f32 %v10140, %v10205
      %v10222 = vsub.f32 %v10141, %v10206
      %v10223 = vsub.f32 %v10142, %v10207
      %v10224 = vmul.f32 %v10208, %v10208
      %v10225 = vmul.f32 %v10209, %v10209
      %v10226 = vmul.f32 %v10210, %v10210
      %v10227 = vmul.f32 %v10211, %v10211
      %v10228 = vmul.f32 %v10212, %v10212
      %v10229 = vmul.f32 %v10213, %v10213
      %v10230 = vmul.f32 %v10214, %v10214
      %v10231 = vmul.f32 %v10215, %v10215
      %v10232 = vmul.f32 %v10216, %v10216
      %v10233 = vmul.f32 %v10217, %v10217
      %v10234 = vmul.f32 %v10218, %v10218
      %v10235 = vmul.f32 %v10219, %v10219
      %v10236 = vmul.f32 %v10220, %v10220
      %v10237 = vmul.f32 %v10221, %v10221
      %v10238 = vmul.f32 %v10222, %v10222
      %v10239 = vmul.f32 %v10223, %v10223
      %v10240 = vsel %vm454, %v10224, 0.0
      %10241 = vadd.xlane.f32.xlu0 %v10240
      %v10242 = vpop.xlane.xlu0 %10241
      %v10243 = vsel %vm454, %v10225, 0.0
      %10244 = vadd.xlane.f32.xlu0 %v10243
      %v10245 = vpop.xlane.xlu0 %10244
      %v10246 = vsel %vm454, %v10226, 0.0
      %10247 = vadd.xlane.f32.xlu0 %v10246
      %v10248 = vpop.xlane.xlu0 %10247
      %v10249 = vsel %vm454, %v10227, 0.0
      %10250 = vadd.xlane.f32.xlu0 %v10249
      %v10251 = vpop.xlane.xlu0 %10250
      %v10252 = vsel %vm454, %v10228, 0.0
      %10253 = vadd.xlane.f32.xlu0 %v10252
      %v10254 = vpop.xlane.xlu0 %10253
      %v10255 = vsel %vm454, %v10229, 0.0
      %10256 = vadd.xlane.f32.xlu0 %v10255
      %v10257 = vpop.xlane.xlu0 %10256
      %v10258 = vsel %vm454, %v10230, 0.0
      %10259 = vadd.xlane.f32.xlu0 %v10258
      %v10260 = vpop.xlane.xlu0 %10259
      %v10261 = vsel %vm454, %v10231, 0.0
      %10262 = vadd.xlane.f32.xlu0 %v10261
      %v10263 = vpop.xlane.xlu0 %10262
      %v10264 = vsel %vm454, %v10232, 0.0
      %10265 = vadd.xlane.f32.xlu0 %v10264
      %v10266 = vpop.xlane.xlu0 %10265
      %v10267 = vsel %vm454, %v10233, 0.0
      %10268 = vadd.xlane.f32.xlu0 %v10267
      %v10269 = vpop.xlane.xlu0 %10268
      %v10270 = vsel %vm454, %v10234, 0.0
      %10271 = vadd.xlane.f32.xlu0 %v10270
      %v10272 = vpop.xlane.xlu0 %10271
      %v10273 = vsel %vm454, %v10235, 0.0
      %10274 = vadd.xlane.f32.xlu0 %v10273
      %v10275 = vpop.xlane.xlu0 %10274
      %v10276 = vsel %vm454, %v10236, 0.0
      %10277 = vadd.xlane.f32.xlu0 %v10276
      %v10278 = vpop.xlane.xlu0 %10277
      %v10279 = vsel %vm454, %v10237, 0.0
      %10280 = vadd.xlane.f32.xlu0 %v10279
      %v10281 = vpop.xlane.xlu0 %10280
      %v10282 = vsel %vm454, %v10238, 0.0
      %10283 = vadd.xlane.f32.xlu0 %v10282
      %v10284 = vpop.xlane.xlu0 %10283
      %v10285 = vsel %vm454, %v10239, 0.0
      %10286 = vadd.xlane.f32.xlu0 %v10285
      %v10287 = vpop.xlane.xlu0 %10286
      %v10288 = vmul.f32 %v10242, %v10191
      %v10289 = vmul.f32 %v10245, %v10191
      %v10290 = vmul.f32 %v10248, %v10191
      %v10291 = vmul.f32 %v10251, %v10191
      %v10292 = vmul.f32 %v10254, %v10191
      %v10293 = vmul.f32 %v10257, %v10191
      %v10294 = vmul.f32 %v10260, %v10191
      %v10295 = vmul.f32 %v10263, %v10191
      %v10296 = vmul.f32 %v10266, %v10191
      %v10297 = vmul.f32 %v10269, %v10191
      %v10298 = vmul.f32 %v10272, %v10191
      %v10299 = vmul.f32 %v10275, %v10191
      %v10300 = vmul.f32 %v10278, %v10191
      %v10301 = vmul.f32 %v10281, %v10191
      %v10302 = vmul.f32 %v10284, %v10191
      %v10303 = vmul.f32 %v10287, %v10191
      %v10304 = vadd.f32 %v10288, 1e-05
      %v10305 = vadd.f32 %v10289, 1e-05
      %v10306 = vadd.f32 %v10290, 1e-05
      %v10307 = vadd.f32 %v10291, 1e-05
      %v10308 = vadd.f32 %v10292, 1e-05
      %v10309 = vadd.f32 %v10293, 1e-05
      %v10310 = vadd.f32 %v10294, 1e-05
      %v10311 = vadd.f32 %v10295, 1e-05
      %v10312 = vadd.f32 %v10296, 1e-05
      %v10313 = vadd.f32 %v10297, 1e-05
      %v10314 = vadd.f32 %v10298, 1e-05
      %v10315 = vadd.f32 %v10299, 1e-05
      %v10316 = vadd.f32 %v10300, 1e-05
      %v10317 = vadd.f32 %v10301, 1e-05
      %v10318 = vadd.f32 %v10302, 1e-05
      %v10319 = vadd.f32 %v10303, 1e-05
      %v10320 = vrsqrt.pop %v10304
      %v10321 = vrsqrt.pop %v10305
      %v10322 = vrsqrt.pop %v10306
      %v10323 = vrsqrt.pop %v10307
      %v10324 = vrsqrt.pop %v10308
      %v10325 = vrsqrt.pop %v10309
      %v10326 = vrsqrt.pop %v10310
      %v10327 = vrsqrt.pop %v10311
      %v10328 = vrsqrt.pop %v10312
      %v10329 = vrsqrt.pop %v10313
      %v10330 = vrsqrt.pop %v10314
      %v10331 = vrsqrt.pop %v10315
      %v10332 = vrsqrt.pop %v10316
      %v10333 = vrsqrt.pop %v10317
      %v10334 = vrsqrt.pop %v10318
      %v10335 = vrsqrt.pop %v10319
      %v10336 = vmul.f32 %v10208, %v10320
      %v10337 = vmul.f32 %v10209, %v10321
      %v10338 = vmul.f32 %v10210, %v10322
      %v10339 = vmul.f32 %v10211, %v10323
      %v10340 = vmul.f32 %v10212, %v10324
      %v10341 = vmul.f32 %v10213, %v10325
      %v10342 = vmul.f32 %v10214, %v10326
      %v10343 = vmul.f32 %v10215, %v10327
      %v10344 = vmul.f32 %v10216, %v10328
      %v10345 = vmul.f32 %v10217, %v10329
      %v10346 = vmul.f32 %v10218, %v10330
      %v10347 = vmul.f32 %v10219, %v10331
      %v10348 = vmul.f32 %v10220, %v10332
      %v10349 = vmul.f32 %v10221, %v10333
      %v10350 = vmul.f32 %v10222, %v10334
      %v10351 = vmul.f32 %v10223, %v10335
      %v10352 = vld [vmem:[%s9] sm:$0x1]
      %v10354 = vlaneseq
      %v10355 = vshrl.u32 %v10354, 7
      %v10356 = vsub.s32 0, %v10355
      %v10357 = vrot.slane %v10352, %v10356
      %v10359 = vmul.f32 %v10336, %v10357
      %v10360 = vmul.f32 %v10337, %v10357
      %v10361 = vmul.f32 %v10338, %v10357
      %v10362 = vmul.f32 %v10339, %v10357
      %v10363 = vmul.f32 %v10340, %v10357
      %v10364 = vmul.f32 %v10341, %v10357
      %v10365 = vmul.f32 %v10342, %v10357
      %v10366 = vmul.f32 %v10343, %v10357
      %v10367 = vmul.f32 %v10344, %v10357
      %v10368 = vmul.f32 %v10345, %v10357
      %v10369 = vmul.f32 %v10346, %v10357
      %v10370 = vmul.f32 %v10347, %v10357
      %v10371 = vmul.f32 %v10348, %v10357
      %v10372 = vmul.f32 %v10349, %v10357
      %v10373 = vmul.f32 %v10350, %v10357
      %v10374 = vmul.f32 %v10351, %v10357
      %v10375 = vld [vmem:[%s10] sm:$0x1]
      %v10377 = vlaneseq
      %v10378 = vshrl.u32 %v10377, 7
      %v10379 = vsub.s32 0, %v10378
      %v10380 = vrot.slane %v10375, %v10379
      %v10382 = vadd.f32 %v10359, %v10380
      %v10383 = vadd.f32 %v10360, %v10380
      %v10384 = vadd.f32 %v10361, %v10380
      %v10385 = vadd.f32 %v10362, %v10380
      %v10386 = vadd.f32 %v10363, %v10380
      %v10387 = vadd.f32 %v10364, %v10380
      %v10388 = vadd.f32 %v10365, %v10380
      %v10389 = vadd.f32 %v10366, %v10380
      %v10390 = vadd.f32 %v10367, %v10380
      %v10391 = vadd.f32 %v10368, %v10380
      %v10392 = vadd.f32 %v10369, %v10380
      %v10393 = vadd.f32 %v10370, %v10380
      %v10394 = vadd.f32 %v10371, %v10380
      %v10395 = vadd.f32 %v10372, %v10380
      %v10396 = vadd.f32 %v10373, %v10380
      %v10397 = vadd.f32 %v10374, %v10380
      %10398 = vst.msk [vmem:[%s388] sm:$0xff] %vm454, %v10382
      %10399 = vst.msk [vmem:[%s388 + $0x8] sm:$0xff] %vm454, %v10383
      %10400 = vst.msk [vmem:[%s388 + $0x10] sm:$0xff] %vm454, %v10384
      %10401 = vst.msk [vmem:[%s388 + $0x18] sm:$0xff] %vm454, %v10385
      %10402 = vst.msk [vmem:[%s388 + $0x20] sm:$0xff] %vm454, %v10386
      %10403 = vst.msk [vmem:[%s388 + $0x28] sm:$0xff] %vm454, %v10387
      %10404 = vst.msk [vmem:[%s388 + $0x30] sm:$0xff] %vm454, %v10388
      %10405 = vst.msk [vmem:[%s388 + $0x38] sm:$0xff] %vm454, %v10389
      %10406 = vst.msk [vmem:[%s388 + $0x40] sm:$0xff] %vm454, %v10390
      %10407 = vst.msk [vmem:[%s388 + $0x48] sm:$0xff] %vm454, %v10391
      %10408 = vst.msk [vmem:[%s388 + $0x50] sm:$0xff] %vm454, %v10392
      %10409 = vst.msk [vmem:[%s388 + $0x58] sm:$0xff] %vm454, %v10393
      %10410 = vst.msk [vmem:[%s388 + $0x60] sm:$0xff] %vm454, %v10394
      %10411 = vst.msk [vmem:[%s388 + $0x68] sm:$0xff] %vm454, %v10395
      %10412 = vst.msk [vmem:[%s388 + $0x70] sm:$0xff] %vm454, %v10396
      %10413 = vst.msk [vmem:[%s388 + $0x78] sm:$0xff] %vm454, %v10397
      %s10414 = smul.u32 16, %s22
      %p10415 = scmp.lt.s32.totalorder %s10414, 31
      %s10416 = scalar_select %p10415, %s10414, 31
      %s10417 = smul.addr %s10416, 8
      %s10418 = scalar_lea.vmem %s11, %s10417
      // Predicated region
      $region65: #{tpu_custom_call.1} parent=63 // pred_check
        %p10419 = pneg %p276
      $region66: #{tpu_custom_call.1} parent=63 // pred_check_branch
        %10421 = sbr.rel (%p10419) target = $region68
      $region67: #{tpu_custom_call.1} parent=63 // pred_region
        %s10422 = smul.u32 16, %s22
      $region68: #{tpu_custom_call.1} parent=63 // pred_fallthru
        _
    $region64: #{tpu_custom_call.1} parent=5 // pred_fallthru
      _
    %p10423 = scmp.le.s32.totalorder 2, %s17
    // Predicated region
    $region69: #{tpu_custom_call.1} parent=5 // pred_check
      %p10424 = pneg %p10423
    $region70: #{tpu_custom_call.1} parent=5 // pred_check_branch
      %10426 = sbr.rel (%p10424) target = $region72
    $region71: #{tpu_custom_call.1} parent=5 // pred_region
      %s10427 = ssub.s32 %s17, 2
      // Predicated region
      $region73: #{tpu_custom_call.1} parent=71 // pred_check
        %p10428 = pneg %p282
      $region74: #{tpu_custom_call.1} parent=71 // pred_check_branch
        %10430 = sbr.rel (%p10428) target = $region76
      $region75: #{tpu_custom_call.1} parent=71 // pred_region
        %s10431 = smul.u32 16, %s23
        %p10432 = scmp.lt.s32.totalorder %s10431, 31
        %s10433 = scalar_select %p10432, %s10431, 31
        %s10434 = smul.addr %s10433, 8
        %s10435 = scalar_lea.vmem %s11, %s10434
      $region76: #{tpu_custom_call.1} parent=71 // pred_fallthru
        _
    $region72: #{tpu_custom_call.1} parent=5 // pred_fallthru
      _
  $region6: #{tpu_custom_call.1} parent=0 // loop_footer
    %s21 = sadd.s32 1, %s17
  $region7: #{tpu_custom_call.1} parent=0 // loop_footer_branch
    %16 = sbr.rel target = $region3
  $region8: #{tpu_custom_call.1} parent=0 // loop_exit
    _

</llo_original>
